<compile_context>
chip_gen: v5e
topology: v5e:2x2
jax: 0.10.0
libtpu: 0.0.40
codegen_flags: <defaults>
</compile_context>

<pallas_src>
import jax
import jax.numpy as jnp
from jax import lax
from jax.experimental import pallas as pl
from jax.experimental.pallas import tpu as pltpu


def _round_up(x, m):
    return (x + m - 1) // m * m


# -----------------------------------------------------------------------------
# Fused GAT + LSTM-encoder + LSTM-decoder, batch folded into rows
# -----------------------------------------------------------------------------
def gat_lstm_seq2seq(feats, adj, future_len, params):
    B, T, N, Fin = feats.shape
    Hg = params["gat_w"].shape[1]
    H = params["enc_whh"].shape[0]
    out_size = params["dec_wfc"].shape[1]
    G4 = 4 * H
    BT, BN, BTN = B * T, B * N, B * T * N

    # ---- pack all 4H-lane weights into a single (rows, 4H) array ------------
    names = ("enc_wih", "enc_whh", "enc_b", "dec_wih", "dec_whh", "dec_b")
    offs, pieces, cur = {}, [], 0
    for nm in names:
        a = params[nm].astype(jnp.float32)
        offs[nm] = cur
        rp = _round_up(a.shape[0], 8)              # keep row offsets 8-aligned
        if rp != a.shape[0]:
            a = jnp.concatenate(
                [a, jnp.zeros((rp - a.shape[0], a.shape[1]), jnp.float32)], 0)
        pieces.append(a)
        cur += rp
    w128 = jnp.concatenate(pieces, axis=0)         # (R, 4H)
    o_ewih, o_ewhh, o_eb = offs["enc_wih"], offs["enc_whh"], offs["enc_b"]
    o_dwih, o_dwhh, o_db = offs["dec_wih"], offs["dec_whh"], offs["dec_b"]

    gat_a = jnp.concatenate(
        [params["gat_asrc"], params["gat_adst"]], axis=0).astype(jnp.float32)

    feats_2d = feats.reshape(BTN, Fin).astype(jnp.float32)
    adj_f = adj.astype(jnp.float32)

    def kernel(feats_ref, adj_ref, gw_ref, ga_ref, w_ref, wfc_ref, bfc_ref,
               out_ref, h_scr, es_scr, g_scr, xp_scr):
        f32 = jnp.float32
        asrc = ga_ref[0:1, :]                                    # (1, Hg)
        adst = ga_ref[1:2, :]                                    # (1, Hg)

        # ---------------- GAT frame encoder ----------------
        # Shared node projection for all B*T frames: one MXU matmul.
        h_all = jnp.dot(feats_ref[...], gw_ref[...],
                        preferred_element_type=f32)              # (BTN, Hg)
        h_scr[...] = h_all
        # Hoisted attention prologue: src scores as a column, dst scores as
        # one lane-dense row from a single dot_general.
        es_scr[...] = jnp.sum(h_all * asrc, axis=-1, keepdims=True)   # (BTN,1)
        ed_row = lax.dot_general(adst, h_all, (((1,), (1,)), ((), ())),
                                 preferred_element_type=f32)          # (1,BTN)

        for f in range(BT):                     # frames are independent
            b, t = f // T, f % T
            ht = h_scr[f * N:(f + 1) * N, :]                     # (N, Hg)
            es = es_scr[f * N:(f + 1) * N, :]                    # (N, 1)
            ed = ed_row[:, f * N:(f + 1) * N]                    # (1, N)
            e = es + ed                                          # (N, N)
            e = jnp.where(e > 0.0, e, 0.2 * e)                   # LeakyReLU(0.2)
            e = jnp.where(adj_ref[b] > 0.0, e, -9e15)            # mask non-edges
            e = e - jnp.max(e, axis=-1, keepdims=True)
            pe = jnp.exp(e)
            attn = pe * pl.reciprocal(jnp.sum(pe, axis=-1, keepdims=True),
                                      approx=False)
            agg = jnp.dot(attn, ht, preferred_element_type=f32)  # (N, Hg)
            # ELU (clamped exp so the discarded branch never overflows);
            # store in (t, b, n) row order for the temporal recurrence.
            r0 = (t * B + b) * N
            g_scr[r0:r0 + N, :] = jnp.where(
                agg > 0.0, agg, jnp.exp(jnp.minimum(agg, 0.0)) - 1.0)

        # ---------------- LSTM encoder ----------------
        enc_wih = w_ref[o_ewih:o_ewih + Hg, :]                   # (Hg, 4H)
        enc_whh = w_ref[o_ewhh:o_ewhh + H, :]                    # (H, 4H)
        enc_b = w_ref[o_eb:o_eb + 1, :]                          # (1, 4H)
        # Hoisted input projection for all timesteps (one lane-dense matmul).
        xp_scr[...] = (jnp.dot(g_scr[...], enc_wih,
                               preferred_element_type=f32) + enc_b)

        hp = jnp.zeros((BN, H), f32)
        cp = jnp.zeros((BN, H), f32)
        for t in range(T):
            gates = xp_scr[t * BN:(t + 1) * BN, :] + jnp.dot(
                hp, enc_whh, preferred_element_type=f32)         # (BN, 4H)
            gi = jax.nn.sigmoid(gates[:, 0:H])
            gf = jax.nn.sigmoid(gates[:, H:2 * H])
            gg = jnp.tanh(gates[:, 2 * H:3 * H])
            go = jax.nn.sigmoid(gates[:, 3 * H:4 * H])
            cp = gf * cp + gi * gg
            hp = go * jnp.tanh(cp)

        # ---------------- autoregressive LSTM decoder ----------------
        dec_wih = w_ref[o_dwih:o_dwih + out_size, :]             # (out, 4H)
        dec_whh = w_ref[o_dwhh:o_dwhh + H, :]                    # (H, 4H)
        dec_b = w_ref[o_db:o_db + 1, :]                          # (1, 4H)
        wfc = wfc_ref[...]                                       # (H, out)
        bfc = bfc_ref[...]                                       # (1, out)
        # Fold the feedback y_{s-1} = h W_fc + b_fc into the recurrence:
        # gates_s = h_{s-1} @ (W_fc W_ih + W_hh) + (b_fc W_ih + b).
        w_fb = jnp.dot(wfc, dec_wih, preferred_element_type=f32) + dec_whh
        b_fb = jnp.dot(bfc, dec_wih, preferred_element_type=f32) + dec_b

        dh = hp                       # decoder hidden initialized from encoder
        dc = jnp.zeros((BN, H), f32)
        for s in range(future_len):
            if s == 0:                # initial decoder input is zeros
                gates = jnp.dot(dh, dec_whh, preferred_element_type=f32) + dec_b
            else:
                gates = jnp.dot(dh, w_fb, preferred_element_type=f32) + b_fb
            gi = jax.nn.sigmoid(gates[:, 0:H])
            gf = jax.nn.sigmoid(gates[:, H:2 * H])
            gg = jnp.tanh(gates[:, 2 * H:3 * H])
            go = jax.nn.sigmoid(gates[:, 3 * H:4 * H])
            dc = gf * dc + gi * gg
            dh = go * jnp.tanh(dc)
            y = jnp.dot(dh, wfc, preferred_element_type=f32) + bfc   # (BN, out)
            out_ref[:, s * out_size:(s + 1) * out_size] = y

    out = pl.pallas_call(
        kernel,
        out_shape=jax.ShapeDtypeStruct((BN, future_len * out_size), jnp.float32),
        scratch_shapes=[
            pltpu.VMEM((BTN, Hg), jnp.float32),    # h_scr  (node projections)
            pltpu.VMEM((BTN, 1), jnp.float32),     # es_scr (src attn scores)
            pltpu.VMEM((BTN, Hg), jnp.float32),    # g_scr  (GAT outputs, t-major)
            pltpu.VMEM((BTN, G4), jnp.float32),    # xp_scr (hoisted x @ W_ih + b)
        ],
    )(feats_2d, adj_f, params["gat_w"].astype(jnp.float32), gat_a, w128,
      params["dec_wfc"].astype(jnp.float32), params["dec_bfc"].astype(jnp.float32))

    out = out.reshape(B, N, future_len, out_size)
    return jnp.transpose(out, (0, 2, 1, 3))        # (B, future_len, N, out_size)


# -----------------------------------------------------------------------------
# Pure-JAX reference (same math, straightforward form) for correctness checking
# -----------------------------------------------------------------------------
def reference_forward(feats, adj, future_len, p):
    B, T, N, Fin = feats.shape
    H = p["enc_whh"].shape[0]
    out_size = p["dec_wfc"].shape[1]

    x = feats.reshape(B * T, N, Fin)
    A = jnp.broadcast_to(adj[:, None], (B, T, N, N)).reshape(B * T, N, N)
    h = jnp.einsum("bnf,fh->bnh", x, p["gat_w"])
    es = jnp.sum(h * p["gat_asrc"], -1, keepdims=True)
    ed = jnp.sum(h * p["gat_adst"], -1, keepdims=True)
    e = es + jnp.swapaxes(ed, 1, 2)
    e = jnp.where(e > 0.0, e, 0.2 * e)
    e = jnp.where(A > 0.0, e, -9e15)
    e = e - jnp.max(e, -1, keepdims=True)
    pe = jnp.exp(e)
    attn = pe / jnp.sum(pe, -1, keepdims=True)
    agg = jnp.einsum("bij,bjh->bih", attn, h)
    gat = jnp.where(agg > 0.0, agg, jnp.exp(jnp.minimum(agg, 0.0)) - 1.0)

    Hg = gat.shape[-1]
    gat_seq = gat.reshape(B, T, N, Hg)
    lstm_in = jnp.transpose(gat_seq, (0, 2, 1, 3)).reshape(B * N, T, Hg)

    BN = B * N
    hh = jnp.zeros((BN, H), jnp.float32)
    cc = jnp.zeros((BN, H), jnp.float32)
    for t in range(T):
        gates = lstm_in[:, t] @ p["enc_wih"] + hh @ p["enc_whh"] + p["enc_b"]
        gi = jax.nn.sigmoid(gates[:, 0:H])
        gf = jax.nn.sigmoid(gates[:, H:2 * H])
        gg = jnp.tanh(gates[:, 2 * H:3 * H])
        go = jax.nn.sigmoid(gates[:, 3 * H:4 * H])
        cc = gf * cc + gi * gg
        hh = go * jnp.tanh(cc)

    dh, dc = hh, jnp.zeros_like(hh)
    xt = jnp.zeros((BN, out_size), jnp.float32)
    outs = []
    for _ in range(future_len):
        gates = xt @ p["dec_wih"] + dh @ p["dec_whh"] + p["dec_b"]
        gi = jax.nn.sigmoid(gates[:, 0:H])
        gf = jax.nn.sigmoid(gates[:, H:2 * H])
        gg = jnp.tanh(gates[:, 2 * H:3 * H])
        go = jax.nn.sigmoid(gates[:, 3 * H:4 * H])
        dc = gf * dc + gi * gg
        dh = go * jnp.tanh(dc)
        y = dh @ p["dec_wfc"] + p["dec_bfc"]
        outs.append(y)
        xt = y
    out = jnp.stack(outs, axis=0).reshape(future_len, B, N, out_size)
    return jnp.transpose(out, (1, 0, 2, 3))


# -----------------------------------------------------------------------------
# Main
# -----------------------------------------------------------------------------
if __name__ == "__main__":
    B, T_obs, N, in_size = 2, 8, 16, 4
    gat_hidden, lstm_hidden, out_size, future_len = 32, 32, 2, 4

    key = jax.random.PRNGKey(0)
    ks = jax.random.split(key, 16)

    feats = jax.random.normal(ks[0], (B, T_obs, N, in_size), jnp.float32)
    adj_rand = (jax.random.uniform(ks[1], (B, N, N)) > 0.5).astype(jnp.float32)
    adj = jnp.maximum(adj_rand, jnp.eye(N, dtype=jnp.float32))   # keep self-loops

    s = 0.2
    H = lstm_hidden
    params = {
        "gat_w":    s * jax.random.normal(ks[2], (in_size, gat_hidden), jnp.float32),
        "gat_asrc": s * jax.random.normal(ks[3], (1, gat_hidden), jnp.float32),
        "gat_adst": s * jax.random.normal(ks[4], (1, gat_hidden), jnp.float32),
        # Gate-concatenated LSTM weights (order: i, f, g, o along the 4H axis).
        "enc_wih":  s * jax.random.normal(ks[5], (gat_hidden, 4 * H), jnp.float32),
        "enc_whh":  s * jax.random.normal(ks[6], (H, 4 * H), jnp.float32),
        "enc_b":    s * jax.random.normal(ks[7], (1, 4 * H), jnp.float32),
        # Decoder input / recurrent weights kept separate (out_size, 4H) / (H, 4H).
        "dec_wih":  s * jax.random.normal(ks[8], (out_size, 4 * H), jnp.float32),
        "dec_whh":  s * jax.random.normal(ks[9], (H, 4 * H), jnp.float32),
        "dec_b":    s * jax.random.normal(ks[10], (1, 4 * H), jnp.float32),
        "dec_wfc":  s * jax.random.normal(ks[11], (H, out_size), jnp.float32),
        "dec_bfc":  s * jax.random.normal(ks[12], (1, out_size), jnp.float32),
    }

    out = gat_lstm_seq2seq(feats, adj, future_len, params)
    out = jax.block_until_ready(out)
    assert out.shape == (B, future_len, N, out_size), out.shape

    ref = reference_forward(feats, adj, future_len, params)
    err = float(jnp.max(jnp.abs(out - ref)))
    assert err < 1e-3, f"mismatch vs reference: {err}"

    print("KERNEL_OK")
</pallas_src>

<mosaic_0001>
module attributes {stable_mosaic.version = 11 : i64} {
  func.func @kernel(%arg0: memref<256x4xf32, #tpu.memory_space<vmem>>, %arg1: memref<2x16x16xf32, #tpu.memory_space<vmem>>, %arg2: memref<4x32xf32, #tpu.memory_space<vmem>>, %arg3: memref<2x32xf32, #tpu.memory_space<vmem>>, %arg4: memref<120x128xf32, #tpu.memory_space<vmem>>, %arg5: memref<32x2xf32, #tpu.memory_space<vmem>>, %arg6: memref<1x2xf32, #tpu.memory_space<vmem>>, %arg7: memref<32x8xf32, #tpu.memory_space<vmem>>, %arg8: memref<256x32xf32, #tpu.memory_space<vmem>>, %arg9: memref<256x1xf32, #tpu.memory_space<vmem>>, %arg10: memref<256x32xf32, #tpu.memory_space<vmem>>, %arg11: memref<256x128xf32, #tpu.memory_space<vmem>>) attributes {dimension_semantics = [], scalar_prefetch = 0 : i64, scratch_operands = 4 : i64, tpu.core_type = #tpu.core_type<tc>} {
    %c0 = arith.constant 0 : index
    %c0_0 = arith.constant 0 : index
    %0 = vector.load %arg3[%c0, %c0_0] : memref<2x32xf32, #tpu.memory_space<vmem>>, vector<1x32xf32>
    %c1 = arith.constant 1 : index
    %c0_1 = arith.constant 0 : index
    %1 = vector.load %arg3[%c1, %c0_1] : memref<2x32xf32, #tpu.memory_space<vmem>>, vector<1x32xf32>
    %c0_2 = arith.constant 0 : index
    %c0_3 = arith.constant 0 : index
    %2 = vector.load %arg0[%c0_2, %c0_3] : memref<256x4xf32, #tpu.memory_space<vmem>>, vector<256x4xf32>
    %c0_4 = arith.constant 0 : index
    %c0_5 = arith.constant 0 : index
    %3 = vector.load %arg2[%c0_4, %c0_5] : memref<4x32xf32, #tpu.memory_space<vmem>>, vector<4x32xf32>
    %cst = arith.constant dense<0.000000e+00> : vector<256x32xf32>
    %4 = tpu.matmul %2, %3, %cst {dimension_numbers = #tpu.dot_dimension_numbers<[1], [0], [0], [1], [0, 0, 1, 1], [], []>} : vector<256x4xf32>, vector<4x32xf32>, vector<256x32xf32> -> vector<256x32xf32>
    %c0_6 = arith.constant 0 : index
    %c0_7 = arith.constant 0 : index
    %5 = vector.load %arg8[%c0_6, %c0_7] : memref<256x32xf32, #tpu.memory_space<vmem>>, vector<256x32xf32>
    tpu.vector_store %arg8[%c0_6, %c0_7], %4 {strides = array<i32>} : memref<256x32xf32, #tpu.memory_space<vmem>>, vector<256x32xf32>,
    %6 = vector.broadcast %0 : vector<1x32xf32> to vector<256x32xf32>
    %7 = arith.mulf %4, %6 : vector<256x32xf32>
    %cst_8 = arith.constant dense<0.000000e+00> : vector<256xf32>
    %8 = vector.multi_reduction <add>, %7, %cst_8 [1] : vector<256x32xf32> to vector<256xf32>
    %9 = vector.shape_cast %8 : vector<256xf32> to vector<256x1xf32>
    %c0_9 = arith.constant 0 : index
    %c0_10 = arith.constant 0 : index
    %10 = vector.load %arg9[%c0_9, %c0_10] : memref<256x1xf32, #tpu.memory_space<vmem>>, vector<256x1xf32>
    tpu.vector_store %arg9[%c0_9, %c0_10], %9 {strides = array<i32>} : memref<256x1xf32, #tpu.memory_space<vmem>>, vector<256x1xf32>,
    %cst_11 = arith.constant dense<0.000000e+00> : vector<1x256xf32>
    %11 = tpu.matmul %1, %4, %cst_11 {dimension_numbers = #tpu.dot_dimension_numbers<[1], [1], [0], [0], [0, 0, 1, 0], [], []>} : vector<1x32xf32>, vector<256x32xf32>, vector<1x256xf32> -> vector<1x256xf32>
    %c0_12 = arith.constant 0 : index
    %c0_13 = arith.constant 0 : index
    %12 = vector.load %arg8[%c0_12, %c0_13] : memref<256x32xf32, #tpu.memory_space<vmem>>, vector<16x32xf32>
    %c0_14 = arith.constant 0 : index
    %c0_15 = arith.constant 0 : index
    %13 = vector.load %arg9[%c0_14, %c0_15] : memref<256x1xf32, #tpu.memory_space<vmem>>, vector<16x1xf32>
    %14 = vector.extract_strided_slice %11 {offsets = [0, 0], sizes = [1, 16], strides = [1, 1]} : vector<1x256xf32> to vector<1x16xf32>
    %15 = vector.broadcast %13 : vector<16x1xf32> to vector<16x16xf32>
    %16 = vector.broadcast %14 : vector<1x16xf32> to vector<16x16xf32>
    %17 = arith.addf %15, %16 : vector<16x16xf32>
    %cst_16 = arith.constant 0.000000e+00 : f32
    %18 = vector.broadcast %cst_16 : f32 to vector<16x16xf32>
    %19 = arith.cmpf ogt, %17, %18 : vector<16x16xf32>
    %cst_17 = arith.constant 2.000000e-01 : f32
    %20 = vector.broadcast %cst_17 : f32 to vector<16x16xf32>
    %21 = arith.mulf %20, %17 : vector<16x16xf32>
    %22 = arith.select %19, %17, %21 : vector<16x16xi1>, vector<16x16xf32>
    %c0_18 = arith.constant 0 : index
    %c0_19 = arith.constant 0 : index
    %c0_20 = arith.constant 0 : index
    %23 = vector.load %arg1[%c0_18, %c0_19, %c0_20] : memref<2x16x16xf32, #tpu.memory_space<vmem>>, vector<1x16x16xf32>
    %24 = vector.shape_cast %23 : vector<1x16x16xf32> to vector<16x16xf32>
    %cst_21 = arith.constant 0.000000e+00 : f32
    %25 = vector.broadcast %cst_21 : f32 to vector<16x16xf32>
    %26 = arith.cmpf ogt, %24, %25 : vector<16x16xf32>
    %cst_22 = arith.constant -9.000000e+15 : f32
    %27 = vector.broadcast %cst_22 : f32 to vector<16x16xf32>
    %28 = arith.select %26, %22, %27 : vector<16x16xi1>, vector<16x16xf32>
    %cst_23 = arith.constant dense<0xFF800000> : vector<16xf32>
    %29 = vector.multi_reduction <maximumf>, %28, %cst_23 [1] : vector<16x16xf32> to vector<16xf32>
    %30 = vector.shape_cast %29 : vector<16xf32> to vector<16x1xf32>
    %31 = vector.broadcast %30 : vector<16x1xf32> to vector<16x16xf32>
    %32 = arith.subf %28, %31 : vector<16x16xf32>
    %33 = math.exp %32 : vector<16x16xf32>
    %cst_24 = arith.constant dense<0.000000e+00> : vector<16xf32>
    %34 = vector.multi_reduction <add>, %33, %cst_24 [1] : vector<16x16xf32> to vector<16xf32>
    %35 = vector.shape_cast %34 : vector<16xf32> to vector<16x1xf32>
    %36 = tpu.reciprocal %35 : vector<16x1xf32> -> vector<16x1xf32>
    %37 = vector.broadcast %36 : vector<16x1xf32> to vector<16x16xf32>
    %38 = arith.mulf %33, %37 : vector<16x16xf32>
    %cst_25 = arith.constant dense<0.000000e+00> : vector<16x32xf32>
    %39 = tpu.matmul %38, %12, %cst_25 {dimension_numbers = #tpu.dot_dimension_numbers<[1], [0], [0], [1], [0, 0, 1, 1], [], []>} : vector<16x16xf32>, vector<16x32xf32>, vector<16x32xf32> -> vector<16x32xf32>
    %cst_26 = arith.constant 0.000000e+00 : f32
    %40 = vector.broadcast %cst_26 : f32 to vector<16x32xf32>
    %41 = arith.cmpf ogt, %39, %40 : vector<16x32xf32>
    %cst_27 = arith.constant 0.000000e+00 : f32
    %42 = vector.broadcast %cst_27 : f32 to vector<16x32xf32>
    %43 = arith.minimumf %39, %42 : vector<16x32xf32>
    %44 = math.exp %43 : vector<16x32xf32>
    %cst_28 = arith.constant 1.000000e+00 : f32
    %45 = vector.broadcast %cst_28 : f32 to vector<16x32xf32>
    %46 = arith.subf %44, %45 : vector<16x32xf32>
    %47 = arith.select %41, %39, %46 : vector<16x32xi1>, vector<16x32xf32>
    %c0_29 = arith.constant 0 : index
    %c0_30 = arith.constant 0 : index
    %48 = vector.load %arg10[%c0_29, %c0_30] : memref<256x32xf32, #tpu.memory_space<vmem>>, vector<16x32xf32>
    tpu.vector_store %arg10[%c0_29, %c0_30], %47 {strides = array<i32>} : memref<256x32xf32, #tpu.memory_space<vmem>>, vector<16x32xf32>,
    %c16 = arith.constant 16 : index
    %c0_31 = arith.constant 0 : index
    %49 = vector.load %arg8[%c16, %c0_31] : memref<256x32xf32, #tpu.memory_space<vmem>>, vector<16x32xf32>
    %c16_32 = arith.constant 16 : index
    %c0_33 = arith.constant 0 : index
    %50 = vector.load %arg9[%c16_32, %c0_33] : memref<256x1xf32, #tpu.memory_space<vmem>>, vector<16x1xf32>
    %51 = vector.extract_strided_slice %11 {offsets = [0, 16], sizes = [1, 16], strides = [1, 1]} : vector<1x256xf32> to vector<1x16xf32>
    %52 = vector.broadcast %50 : vector<16x1xf32> to vector<16x16xf32>
    %53 = vector.broadcast %51 : vector<1x16xf32> to vector<16x16xf32>
    %54 = arith.addf %52, %53 : vector<16x16xf32>
    %cst_34 = arith.constant 0.000000e+00 : f32
    %55 = vector.broadcast %cst_34 : f32 to vector<16x16xf32>
    %56 = arith.cmpf ogt, %54, %55 : vector<16x16xf32>
    %cst_35 = arith.constant 2.000000e-01 : f32
    %57 = vector.broadcast %cst_35 : f32 to vector<16x16xf32>
    %58 = arith.mulf %57, %54 : vector<16x16xf32>
    %59 = arith.select %56, %54, %58 : vector<16x16xi1>, vector<16x16xf32>
    %c0_36 = arith.constant 0 : index
    %c0_37 = arith.constant 0 : index
    %c0_38 = arith.constant 0 : index
    %60 = vector.load %arg1[%c0_36, %c0_37, %c0_38] : memref<2x16x16xf32, #tpu.memory_space<vmem>>, vector<1x16x16xf32>
    %61 = vector.shape_cast %60 : vector<1x16x16xf32> to vector<16x16xf32>
    %cst_39 = arith.constant 0.000000e+00 : f32
    %62 = vector.broadcast %cst_39 : f32 to vector<16x16xf32>
    %63 = arith.cmpf ogt, %61, %62 : vector<16x16xf32>
    %cst_40 = arith.constant -9.000000e+15 : f32
    %64 = vector.broadcast %cst_40 : f32 to vector<16x16xf32>
    %65 = arith.select %63, %59, %64 : vector<16x16xi1>, vector<16x16xf32>
    %cst_41 = arith.constant dense<0xFF800000> : vector<16xf32>
    %66 = vector.multi_reduction <maximumf>, %65, %cst_41 [1] : vector<16x16xf32> to vector<16xf32>
    %67 = vector.shape_cast %66 : vector<16xf32> to vector<16x1xf32>
    %68 = vector.broadcast %67 : vector<16x1xf32> to vector<16x16xf32>
    %69 = arith.subf %65, %68 : vector<16x16xf32>
    %70 = math.exp %69 : vector<16x16xf32>
    %cst_42 = arith.constant dense<0.000000e+00> : vector<16xf32>
    %71 = vector.multi_reduction <add>, %70, %cst_42 [1] : vector<16x16xf32> to vector<16xf32>
    %72 = vector.shape_cast %71 : vector<16xf32> to vector<16x1xf32>
    %73 = tpu.reciprocal %72 : vector<16x1xf32> -> vector<16x1xf32>
    %74 = vector.broadcast %73 : vector<16x1xf32> to vector<16x16xf32>
    %75 = arith.mulf %70, %74 : vector<16x16xf32>
    %cst_43 = arith.constant dense<0.000000e+00> : vector<16x32xf32>
    %76 = tpu.matmul %75, %49, %cst_43 {dimension_numbers = #tpu.dot_dimension_numbers<[1], [0], [0], [1], [0, 0, 1, 1], [], []>} : vector<16x16xf32>, vector<16x32xf32>, vector<16x32xf32> -> vector<16x32xf32>
    %cst_44 = arith.constant 0.000000e+00 : f32
    %77 = vector.broadcast %cst_44 : f32 to vector<16x32xf32>
    %78 = arith.cmpf ogt, %76, %77 : vector<16x32xf32>
    %cst_45 = arith.constant 0.000000e+00 : f32
    %79 = vector.broadcast %cst_45 : f32 to vector<16x32xf32>
    %80 = arith.minimumf %76, %79 : vector<16x32xf32>
    %81 = math.exp %80 : vector<16x32xf32>
    %cst_46 = arith.constant 1.000000e+00 : f32
    %82 = vector.broadcast %cst_46 : f32 to vector<16x32xf32>
    %83 = arith.subf %81, %82 : vector<16x32xf32>
    %84 = arith.select %78, %76, %83 : vector<16x32xi1>, vector<16x32xf32>
    %c32 = arith.constant 32 : index
    %c0_47 = arith.constant 0 : index
    %85 = vector.load %arg10[%c32, %c0_47] : memref<256x32xf32, #tpu.memory_space<vmem>>, vector<16x32xf32>
    tpu.vector_store %arg10[%c32, %c0_47], %84 {strides = array<i32>} : memref<256x32xf32, #tpu.memory_space<vmem>>, vector<16x32xf32>,
    %c32_48 = arith.constant 32 : index
    %c0_49 = arith.constant 0 : index
    %86 = vector.load %arg8[%c32_48, %c0_49] : memref<256x32xf32, #tpu.memory_space<vmem>>, vector<16x32xf32>
    %c32_50 = arith.constant 32 : index
    %c0_51 = arith.constant 0 : index
    %87 = vector.load %arg9[%c32_50, %c0_51] : memref<256x1xf32, #tpu.memory_space<vmem>>, vector<16x1xf32>
    %88 = vector.extract_strided_slice %11 {offsets = [0, 32], sizes = [1, 16], strides = [1, 1]} : vector<1x256xf32> to vector<1x16xf32>
    %89 = vector.broadcast %87 : vector<16x1xf32> to vector<16x16xf32>
    %90 = vector.broadcast %88 : vector<1x16xf32> to vector<16x16xf32>
    %91 = arith.addf %89, %90 : vector<16x16xf32>
    %cst_52 = arith.constant 0.000000e+00 : f32
    %92 = vector.broadcast %cst_52 : f32 to vector<16x16xf32>
    %93 = arith.cmpf ogt, %91, %92 : vector<16x16xf32>
    %cst_53 = arith.constant 2.000000e-01 : f32
    %94 = vector.broadcast %cst_53 : f32 to vector<16x16xf32>
    %95 = arith.mulf %94, %91 : vector<16x16xf32>
    %96 = arith.select %93, %91, %95 : vector<16x16xi1>, vector<16x16xf32>
    %c0_54 = arith.constant 0 : index
    %c0_55 = arith.constant 0 : index
    %c0_56 = arith.constant 0 : index
    %97 = vector.load %arg1[%c0_54, %c0_55, %c0_56] : memref<2x16x16xf32, #tpu.memory_space<vmem>>, vector<1x16x16xf32>
    %98 = vector.shape_cast %97 : vector<1x16x16xf32> to vector<16x16xf32>
    %cst_57 = arith.constant 0.000000e+00 : f32
    %99 = vector.broadcast %cst_57 : f32 to vector<16x16xf32>
    %100 = arith.cmpf ogt, %98, %99 : vector<16x16xf32>
    %cst_58 = arith.constant -9.000000e+15 : f32
    %101 = vector.broadcast %cst_58 : f32 to vector<16x16xf32>
    %102 = arith.select %100, %96, %101 : vector<16x16xi1>, vector<16x16xf32>
    %cst_59 = arith.constant dense<0xFF800000> : vector<16xf32>
    %103 = vector.multi_reduction <maximumf>, %102, %cst_59 [1] : vector<16x16xf32> to vector<16xf32>
    %104 = vector.shape_cast %103 : vector<16xf32> to vector<16x1xf32>
    %105 = vector.broadcast %104 : vector<16x1xf32> to vector<16x16xf32>
    %106 = arith.subf %102, %105 : vector<16x16xf32>
    %107 = math.exp %106 : vector<16x16xf32>
    %cst_60 = arith.constant dense<0.000000e+00> : vector<16xf32>
    %108 = vector.multi_reduction <add>, %107, %cst_60 [1] : vector<16x16xf32> to vector<16xf32>
    %109 = vector.shape_cast %108 : vector<16xf32> to vector<16x1xf32>
    %110 = tpu.reciprocal %109 : vector<16x1xf32> -> vector<16x1xf32>
    %111 = vector.broadcast %110 : vector<16x1xf32> to vector<16x16xf32>
    %112 = arith.mulf %107, %111 : vector<16x16xf32>
    %cst_61 = arith.constant dense<0.000000e+00> : vector<16x32xf32>
    %113 = tpu.matmul %112, %86, %cst_61 {dimension_numbers = #tpu.dot_dimension_numbers<[1], [0], [0], [1], [0, 0, 1, 1], [], []>} : vector<16x16xf32>, vector<16x32xf32>, vector<16x32xf32> -> vector<16x32xf32>
    %cst_62 = arith.constant 0.000000e+00 : f32
    %114 = vector.broadcast %cst_62 : f32 to vector<16x32xf32>
    %115 = arith.cmpf ogt, %113, %114 : vector<16x32xf32>
    %cst_63 = arith.constant 0.000000e+00 : f32
    %116 = vector.broadcast %cst_63 : f32 to vector<16x32xf32>
    %117 = arith.minimumf %113, %116 : vector<16x32xf32>
    %118 = math.exp %117 : vector<16x32xf32>
    %cst_64 = arith.constant 1.000000e+00 : f32
    %119 = vector.broadcast %cst_64 : f32 to vector<16x32xf32>
    %120 = arith.subf %118, %119 : vector<16x32xf32>
    %121 = arith.select %115, %113, %120 : vector<16x32xi1>, vector<16x32xf32>
    %c64 = arith.constant 64 : index
    %c0_65 = arith.constant 0 : index
    %122 = vector.load %arg10[%c64, %c0_65] : memref<256x32xf32, #tpu.memory_space<vmem>>, vector<16x32xf32>
    tpu.vector_store %arg10[%c64, %c0_65], %121 {strides = array<i32>} : memref<256x32xf32, #tpu.memory_space<vmem>>, vector<16x32xf32>,
    %c48 = arith.constant 48 : index
    %c0_66 = arith.constant 0 : index
    %123 = vector.load %arg8[%c48, %c0_66] : memref<256x32xf32, #tpu.memory_space<vmem>>, vector<16x32xf32>
    %c48_67 = arith.constant 48 : index
    %c0_68 = arith.constant 0 : index
    %124 = vector.load %arg9[%c48_67, %c0_68] : memref<256x1xf32, #tpu.memory_space<vmem>>, vector<16x1xf32>
    %125 = vector.extract_strided_slice %11 {offsets = [0, 48], sizes = [1, 16], strides = [1, 1]} : vector<1x256xf32> to vector<1x16xf32>
    %126 = vector.broadcast %124 : vector<16x1xf32> to vector<16x16xf32>
    %127 = vector.broadcast %125 : vector<1x16xf32> to vector<16x16xf32>
    %128 = arith.addf %126, %127 : vector<16x16xf32>
    %cst_69 = arith.constant 0.000000e+00 : f32
    %129 = vector.broadcast %cst_69 : f32 to vector<16x16xf32>
    %130 = arith.cmpf ogt, %128, %129 : vector<16x16xf32>
    %cst_70 = arith.constant 2.000000e-01 : f32
    %131 = vector.broadcast %cst_70 : f32 to vector<16x16xf32>
    %132 = arith.mulf %131, %128 : vector<16x16xf32>
    %133 = arith.select %130, %128, %132 : vector<16x16xi1>, vector<16x16xf32>
    %c0_71 = arith.constant 0 : index
    %c0_72 = arith.constant 0 : index
    %c0_73 = arith.constant 0 : index
    %134 = vector.load %arg1[%c0_71, %c0_72, %c0_73] : memref<2x16x16xf32, #tpu.memory_space<vmem>>, vector<1x16x16xf32>
    %135 = vector.shape_cast %134 : vector<1x16x16xf32> to vector<16x16xf32>
    %cst_74 = arith.constant 0.000000e+00 : f32
    %136 = vector.broadcast %cst_74 : f32 to vector<16x16xf32>
    %137 = arith.cmpf ogt, %135, %136 : vector<16x16xf32>
    %cst_75 = arith.constant -9.000000e+15 : f32
    %138 = vector.broadcast %cst_75 : f32 to vector<16x16xf32>
    %139 = arith.select %137, %133, %138 : vector<16x16xi1>, vector<16x16xf32>
    %cst_76 = arith.constant dense<0xFF800000> : vector<16xf32>
    %140 = vector.multi_reduction <maximumf>, %139, %cst_76 [1] : vector<16x16xf32> to vector<16xf32>
    %141 = vector.shape_cast %140 : vector<16xf32> to vector<16x1xf32>
    %142 = vector.broadcast %141 : vector<16x1xf32> to vector<16x16xf32>
    %143 = arith.subf %139, %142 : vector<16x16xf32>
    %144 = math.exp %143 : vector<16x16xf32>
    %cst_77 = arith.constant dense<0.000000e+00> : vector<16xf32>
    %145 = vector.multi_reduction <add>, %144, %cst_77 [1] : vector<16x16xf32> to vector<16xf32>
    %146 = vector.shape_cast %145 : vector<16xf32> to vector<16x1xf32>
    %147 = tpu.reciprocal %146 : vector<16x1xf32> -> vector<16x1xf32>
    %148 = vector.broadcast %147 : vector<16x1xf32> to vector<16x16xf32>
    %149 = arith.mulf %144, %148 : vector<16x16xf32>
    %cst_78 = arith.constant dense<0.000000e+00> : vector<16x32xf32>
    %150 = tpu.matmul %149, %123, %cst_78 {dimension_numbers = #tpu.dot_dimension_numbers<[1], [0], [0], [1], [0, 0, 1, 1], [], []>} : vector<16x16xf32>, vector<16x32xf32>, vector<16x32xf32> -> vector<16x32xf32>
    %cst_79 = arith.constant 0.000000e+00 : f32
    %151 = vector.broadcast %cst_79 : f32 to vector<16x32xf32>
    %152 = arith.cmpf ogt, %150, %151 : vector<16x32xf32>
    %cst_80 = arith.constant 0.000000e+00 : f32
    %153 = vector.broadcast %cst_80 : f32 to vector<16x32xf32>
    %154 = arith.minimumf %150, %153 : vector<16x32xf32>
    %155 = math.exp %154 : vector<16x32xf32>
    %cst_81 = arith.constant 1.000000e+00 : f32
    %156 = vector.broadcast %cst_81 : f32 to vector<16x32xf32>
    %157 = arith.subf %155, %156 : vector<16x32xf32>
    %158 = arith.select %152, %150, %157 : vector<16x32xi1>, vector<16x32xf32>
    %c96 = arith.constant 96 : index
    %c0_82 = arith.constant 0 : index
    %159 = vector.load %arg10[%c96, %c0_82] : memref<256x32xf32, #tpu.memory_space<vmem>>, vector<16x32xf32>
    tpu.vector_store %arg10[%c96, %c0_82], %158 {strides = array<i32>} : memref<256x32xf32, #tpu.memory_space<vmem>>, vector<16x32xf32>,
    %c64_83 = arith.constant 64 : index
    %c0_84 = arith.constant 0 : index
    %160 = vector.load %arg8[%c64_83, %c0_84] : memref<256x32xf32, #tpu.memory_space<vmem>>, vector<16x32xf32>
    %c64_85 = arith.constant 64 : index
    %c0_86 = arith.constant 0 : index
    %161 = vector.load %arg9[%c64_85, %c0_86] : memref<256x1xf32, #tpu.memory_space<vmem>>, vector<16x1xf32>
    %162 = vector.extract_strided_slice %11 {offsets = [0, 64], sizes = [1, 16], strides = [1, 1]} : vector<1x256xf32> to vector<1x16xf32>
    %163 = vector.broadcast %161 : vector<16x1xf32> to vector<16x16xf32>
    %164 = vector.broadcast %162 : vector<1x16xf32> to vector<16x16xf32>
    %165 = arith.addf %163, %164 : vector<16x16xf32>
    %cst_87 = arith.constant 0.000000e+00 : f32
    %166 = vector.broadcast %cst_87 : f32 to vector<16x16xf32>
    %167 = arith.cmpf ogt, %165, %166 : vector<16x16xf32>
    %cst_88 = arith.constant 2.000000e-01 : f32
    %168 = vector.broadcast %cst_88 : f32 to vector<16x16xf32>
    %169 = arith.mulf %168, %165 : vector<16x16xf32>
    %170 = arith.select %167, %165, %169 : vector<16x16xi1>, vector<16x16xf32>
    %c0_89 = arith.constant 0 : index
    %c0_90 = arith.constant 0 : index
    %c0_91 = arith.constant 0 : index
    %171 = vector.load %arg1[%c0_89, %c0_90, %c0_91] : memref<2x16x16xf32, #tpu.memory_space<vmem>>, vector<1x16x16xf32>
    %172 = vector.shape_cast %171 : vector<1x16x16xf32> to vector<16x16xf32>
    %cst_92 = arith.constant 0.000000e+00 : f32
    %173 = vector.broadcast %cst_92 : f32 to vector<16x16xf32>
    %174 = arith.cmpf ogt, %172, %173 : vector<16x16xf32>
    %cst_93 = arith.constant -9.000000e+15 : f32
    %175 = vector.broadcast %cst_93 : f32 to vector<16x16xf32>
    %176 = arith.select %174, %170, %175 : vector<16x16xi1>, vector<16x16xf32>
    %cst_94 = arith.constant dense<0xFF800000> : vector<16xf32>
    %177 = vector.multi_reduction <maximumf>, %176, %cst_94 [1] : vector<16x16xf32> to vector<16xf32>
    %178 = vector.shape_cast %177 : vector<16xf32> to vector<16x1xf32>
    %179 = vector.broadcast %178 : vector<16x1xf32> to vector<16x16xf32>
    %180 = arith.subf %176, %179 : vector<16x16xf32>
    %181 = math.exp %180 : vector<16x16xf32>
    %cst_95 = arith.constant dense<0.000000e+00> : vector<16xf32>
    %182 = vector.multi_reduction <add>, %181, %cst_95 [1] : vector<16x16xf32> to vector<16xf32>
    %183 = vector.shape_cast %182 : vector<16xf32> to vector<16x1xf32>
    %184 = tpu.reciprocal %183 : vector<16x1xf32> -> vector<16x1xf32>
    %185 = vector.broadcast %184 : vector<16x1xf32> to vector<16x16xf32>
    %186 = arith.mulf %181, %185 : vector<16x16xf32>
    %cst_96 = arith.constant dense<0.000000e+00> : vector<16x32xf32>
    %187 = tpu.matmul %186, %160, %cst_96 {dimension_numbers = #tpu.dot_dimension_numbers<[1], [0], [0], [1], [0, 0, 1, 1], [], []>} : vector<16x16xf32>, vector<16x32xf32>, vector<16x32xf32> -> vector<16x32xf32>
    %cst_97 = arith.constant 0.000000e+00 : f32
    %188 = vector.broadcast %cst_97 : f32 to vector<16x32xf32>
    %189 = arith.cmpf ogt, %187, %188 : vector<16x32xf32>
    %cst_98 = arith.constant 0.000000e+00 : f32
    %190 = vector.broadcast %cst_98 : f32 to vector<16x32xf32>
    %191 = arith.minimumf %187, %190 : vector<16x32xf32>
    %192 = math.exp %191 : vector<16x32xf32>
    %cst_99 = arith.constant 1.000000e+00 : f32
    %193 = vector.broadcast %cst_99 : f32 to vector<16x32xf32>
    %194 = arith.subf %192, %193 : vector<16x32xf32>
    %195 = arith.select %189, %187, %194 : vector<16x32xi1>, vector<16x32xf32>
    %c128 = arith.constant 128 : index
    %c0_100 = arith.constant 0 : index
    %196 = vector.load %arg10[%c128, %c0_100] : memref<256x32xf32, #tpu.memory_space<vmem>>, vector<16x32xf32>
    tpu.vector_store %arg10[%c128, %c0_100], %195 {strides = array<i32>} : memref<256x32xf32, #tpu.memory_space<vmem>>, vector<16x32xf32>,
    %c80 = arith.constant 80 : index
    %c0_101 = arith.constant 0 : index
    %197 = vector.load %arg8[%c80, %c0_101] : memref<256x32xf32, #tpu.memory_space<vmem>>, vector<16x32xf32>
    %c80_102 = arith.constant 80 : index
    %c0_103 = arith.constant 0 : index
    %198 = vector.load %arg9[%c80_102, %c0_103] : memref<256x1xf32, #tpu.memory_space<vmem>>, vector<16x1xf32>
    %199 = vector.extract_strided_slice %11 {offsets = [0, 80], sizes = [1, 16], strides = [1, 1]} : vector<1x256xf32> to vector<1x16xf32>
    %200 = vector.broadcast %198 : vector<16x1xf32> to vector<16x16xf32>
    %201 = vector.broadcast %199 : vector<1x16xf32> to vector<16x16xf32>
    %202 = arith.addf %200, %201 : vector<16x16xf32>
    %cst_104 = arith.constant 0.000000e+00 : f32
    %203 = vector.broadcast %cst_104 : f32 to vector<16x16xf32>
    %204 = arith.cmpf ogt, %202, %203 : vector<16x16xf32>
    %cst_105 = arith.constant 2.000000e-01 : f32
    %205 = vector.broadcast %cst_105 : f32 to vector<16x16xf32>
    %206 = arith.mulf %205, %202 : vector<16x16xf32>
    %207 = arith.select %204, %202, %206 : vector<16x16xi1>, vector<16x16xf32>
    %c0_106 = arith.constant 0 : index
    %c0_107 = arith.constant 0 : index
    %c0_108 = arith.constant 0 : index
    %208 = vector.load %arg1[%c0_106, %c0_107, %c0_108] : memref<2x16x16xf32, #tpu.memory_space<vmem>>, vector<1x16x16xf32>
    %209 = vector.shape_cast %208 : vector<1x16x16xf32> to vector<16x16xf32>
    %cst_109 = arith.constant 0.000000e+00 : f32
    %210 = vector.broadcast %cst_109 : f32 to vector<16x16xf32>
    %211 = arith.cmpf ogt, %209, %210 : vector<16x16xf32>
    %cst_110 = arith.constant -9.000000e+15 : f32
    %212 = vector.broadcast %cst_110 : f32 to vector<16x16xf32>
    %213 = arith.select %211, %207, %212 : vector<16x16xi1>, vector<16x16xf32>
    %cst_111 = arith.constant dense<0xFF800000> : vector<16xf32>
    %214 = vector.multi_reduction <maximumf>, %213, %cst_111 [1] : vector<16x16xf32> to vector<16xf32>
    %215 = vector.shape_cast %214 : vector<16xf32> to vector<16x1xf32>
    %216 = vector.broadcast %215 : vector<16x1xf32> to vector<16x16xf32>
    %217 = arith.subf %213, %216 : vector<16x16xf32>
    %218 = math.exp %217 : vector<16x16xf32>
    %cst_112 = arith.constant dense<0.000000e+00> : vector<16xf32>
    %219 = vector.multi_reduction <add>, %218, %cst_112 [1] : vector<16x16xf32> to vector<16xf32>
    %220 = vector.shape_cast %219 : vector<16xf32> to vector<16x1xf32>
    %221 = tpu.reciprocal %220 : vector<16x1xf32> -> vector<16x1xf32>
    %222 = vector.broadcast %221 : vector<16x1xf32> to vector<16x16xf32>
    %223 = arith.mulf %218, %222 : vector<16x16xf32>
    %cst_113 = arith.constant dense<0.000000e+00> : vector<16x32xf32>
    %224 = tpu.matmul %223, %197, %cst_113 {dimension_numbers = #tpu.dot_dimension_numbers<[1], [0], [0], [1], [0, 0, 1, 1], [], []>} : vector<16x16xf32>, vector<16x32xf32>, vector<16x32xf32> -> vector<16x32xf32>
    %cst_114 = arith.constant 0.000000e+00 : f32
    %225 = vector.broadcast %cst_114 : f32 to vector<16x32xf32>
    %226 = arith.cmpf ogt, %224, %225 : vector<16x32xf32>
    %cst_115 = arith.constant 0.000000e+00 : f32
    %227 = vector.broadcast %cst_115 : f32 to vector<16x32xf32>
    %228 = arith.minimumf %224, %227 : vector<16x32xf32>
    %229 = math.exp %228 : vector<16x32xf32>
    %cst_116 = arith.constant 1.000000e+00 : f32
    %230 = vector.broadcast %cst_116 : f32 to vector<16x32xf32>
    %231 = arith.subf %229, %230 : vector<16x32xf32>
    %232 = arith.select %226, %224, %231 : vector<16x32xi1>, vector<16x32xf32>
    %c160 = arith.constant 160 : index
    %c0_117 = arith.constant 0 : index
    %233 = vector.load %arg10[%c160, %c0_117] : memref<256x32xf32, #tpu.memory_space<vmem>>, vector<16x32xf32>
    tpu.vector_store %arg10[%c160, %c0_117], %232 {strides = array<i32>} : memref<256x32xf32, #tpu.memory_space<vmem>>, vector<16x32xf32>,
    %c96_118 = arith.constant 96 : index
    %c0_119 = arith.constant 0 : index
    %234 = vector.load %arg8[%c96_118, %c0_119] : memref<256x32xf32, #tpu.memory_space<vmem>>, vector<16x32xf32>
    %c96_120 = arith.constant 96 : index
    %c0_121 = arith.constant 0 : index
    %235 = vector.load %arg9[%c96_120, %c0_121] : memref<256x1xf32, #tpu.memory_space<vmem>>, vector<16x1xf32>
    %236 = vector.extract_strided_slice %11 {offsets = [0, 96], sizes = [1, 16], strides = [1, 1]} : vector<1x256xf32> to vector<1x16xf32>
    %237 = vector.broadcast %235 : vector<16x1xf32> to vector<16x16xf32>
    %238 = vector.broadcast %236 : vector<1x16xf32> to vector<16x16xf32>
    %239 = arith.addf %237, %238 : vector<16x16xf32>
    %cst_122 = arith.constant 0.000000e+00 : f32
    %240 = vector.broadcast %cst_122 : f32 to vector<16x16xf32>
    %241 = arith.cmpf ogt, %239, %240 : vector<16x16xf32>
    %cst_123 = arith.constant 2.000000e-01 : f32
    %242 = vector.broadcast %cst_123 : f32 to vector<16x16xf32>
    %243 = arith.mulf %242, %239 : vector<16x16xf32>
    %244 = arith.select %241, %239, %243 : vector<16x16xi1>, vector<16x16xf32>
    %c0_124 = arith.constant 0 : index
    %c0_125 = arith.constant 0 : index
    %c0_126 = arith.constant 0 : index
    %245 = vector.load %arg1[%c0_124, %c0_125, %c0_126] : memref<2x16x16xf32, #tpu.memory_space<vmem>>, vector<1x16x16xf32>
    %246 = vector.shape_cast %245 : vector<1x16x16xf32> to vector<16x16xf32>
    %cst_127 = arith.constant 0.000000e+00 : f32
    %247 = vector.broadcast %cst_127 : f32 to vector<16x16xf32>
    %248 = arith.cmpf ogt, %246, %247 : vector<16x16xf32>
    %cst_128 = arith.constant -9.000000e+15 : f32
    %249 = vector.broadcast %cst_128 : f32 to vector<16x16xf32>
    %250 = arith.select %248, %244, %249 : vector<16x16xi1>, vector<16x16xf32>
    %cst_129 = arith.constant dense<0xFF800000> : vector<16xf32>
    %251 = vector.multi_reduction <maximumf>, %250, %cst_129 [1] : vector<16x16xf32> to vector<16xf32>
    %252 = vector.shape_cast %251 : vector<16xf32> to vector<16x1xf32>
    %253 = vector.broadcast %252 : vector<16x1xf32> to vector<16x16xf32>
    %254 = arith.subf %250, %253 : vector<16x16xf32>
    %255 = math.exp %254 : vector<16x16xf32>
    %cst_130 = arith.constant dense<0.000000e+00> : vector<16xf32>
    %256 = vector.multi_reduction <add>, %255, %cst_130 [1] : vector<16x16xf32> to vector<16xf32>
    %257 = vector.shape_cast %256 : vector<16xf32> to vector<16x1xf32>
    %258 = tpu.reciprocal %257 : vector<16x1xf32> -> vector<16x1xf32>
    %259 = vector.broadcast %258 : vector<16x1xf32> to vector<16x16xf32>
    %260 = arith.mulf %255, %259 : vector<16x16xf32>
    %cst_131 = arith.constant dense<0.000000e+00> : vector<16x32xf32>
    %261 = tpu.matmul %260, %234, %cst_131 {dimension_numbers = #tpu.dot_dimension_numbers<[1], [0], [0], [1], [0, 0, 1, 1], [], []>} : vector<16x16xf32>, vector<16x32xf32>, vector<16x32xf32> -> vector<16x32xf32>
    %cst_132 = arith.constant 0.000000e+00 : f32
    %262 = vector.broadcast %cst_132 : f32 to vector<16x32xf32>
    %263 = arith.cmpf ogt, %261, %262 : vector<16x32xf32>
    %cst_133 = arith.constant 0.000000e+00 : f32
    %264 = vector.broadcast %cst_133 : f32 to vector<16x32xf32>
    %265 = arith.minimumf %261, %264 : vector<16x32xf32>
    %266 = math.exp %265 : vector<16x32xf32>
    %cst_134 = arith.constant 1.000000e+00 : f32
    %267 = vector.broadcast %cst_134 : f32 to vector<16x32xf32>
    %268 = arith.subf %266, %267 : vector<16x32xf32>
    %269 = arith.select %263, %261, %268 : vector<16x32xi1>, vector<16x32xf32>
    %c192 = arith.constant 192 : index
    %c0_135 = arith.constant 0 : index
    %270 = vector.load %arg10[%c192, %c0_135] : memref<256x32xf32, #tpu.memory_space<vmem>>, vector<16x32xf32>
    tpu.vector_store %arg10[%c192, %c0_135], %269 {strides = array<i32>} : memref<256x32xf32, #tpu.memory_space<vmem>>, vector<16x32xf32>,
    %c112 = arith.constant 112 : index
    %c0_136 = arith.constant 0 : index
    %271 = vector.load %arg8[%c112, %c0_136] : memref<256x32xf32, #tpu.memory_space<vmem>>, vector<16x32xf32>
    %c112_137 = arith.constant 112 : index
    %c0_138 = arith.constant 0 : index
    %272 = vector.load %arg9[%c112_137, %c0_138] : memref<256x1xf32, #tpu.memory_space<vmem>>, vector<16x1xf32>
    %273 = vector.extract_strided_slice %11 {offsets = [0, 112], sizes = [1, 16], strides = [1, 1]} : vector<1x256xf32> to vector<1x16xf32>
    %274 = vector.broadcast %272 : vector<16x1xf32> to vector<16x16xf32>
    %275 = vector.broadcast %273 : vector<1x16xf32> to vector<16x16xf32>
    %276 = arith.addf %274, %275 : vector<16x16xf32>
    %cst_139 = arith.constant 0.000000e+00 : f32
    %277 = vector.broadcast %cst_139 : f32 to vector<16x16xf32>
    %278 = arith.cmpf ogt, %276, %277 : vector<16x16xf32>
    %cst_140 = arith.constant 2.000000e-01 : f32
    %279 = vector.broadcast %cst_140 : f32 to vector<16x16xf32>
    %280 = arith.mulf %279, %276 : vector<16x16xf32>
    %281 = arith.select %278, %276, %280 : vector<16x16xi1>, vector<16x16xf32>
    %c0_141 = arith.constant 0 : index
    %c0_142 = arith.constant 0 : index
    %c0_143 = arith.constant 0 : index
    %282 = vector.load %arg1[%c0_141, %c0_142, %c0_143] : memref<2x16x16xf32, #tpu.memory_space<vmem>>, vector<1x16x16xf32>
    %283 = vector.shape_cast %282 : vector<1x16x16xf32> to vector<16x16xf32>
    %cst_144 = arith.constant 0.000000e+00 : f32
    %284 = vector.broadcast %cst_144 : f32 to vector<16x16xf32>
    %285 = arith.cmpf ogt, %283, %284 : vector<16x16xf32>
    %cst_145 = arith.constant -9.000000e+15 : f32
    %286 = vector.broadcast %cst_145 : f32 to vector<16x16xf32>
    %287 = arith.select %285, %281, %286 : vector<16x16xi1>, vector<16x16xf32>
    %cst_146 = arith.constant dense<0xFF800000> : vector<16xf32>
    %288 = vector.multi_reduction <maximumf>, %287, %cst_146 [1] : vector<16x16xf32> to vector<16xf32>
    %289 = vector.shape_cast %288 : vector<16xf32> to vector<16x1xf32>
    %290 = vector.broadcast %289 : vector<16x1xf32> to vector<16x16xf32>
    %291 = arith.subf %287, %290 : vector<16x16xf32>
    %292 = math.exp %291 : vector<16x16xf32>
    %cst_147 = arith.constant dense<0.000000e+00> : vector<16xf32>
    %293 = vector.multi_reduction <add>, %292, %cst_147 [1] : vector<16x16xf32> to vector<16xf32>
    %294 = vector.shape_cast %293 : vector<16xf32> to vector<16x1xf32>
    %295 = tpu.reciprocal %294 : vector<16x1xf32> -> vector<16x1xf32>
    %296 = vector.broadcast %295 : vector<16x1xf32> to vector<16x16xf32>
    %297 = arith.mulf %292, %296 : vector<16x16xf32>
    %cst_148 = arith.constant dense<0.000000e+00> : vector<16x32xf32>
    %298 = tpu.matmul %297, %271, %cst_148 {dimension_numbers = #tpu.dot_dimension_numbers<[1], [0], [0], [1], [0, 0, 1, 1], [], []>} : vector<16x16xf32>, vector<16x32xf32>, vector<16x32xf32> -> vector<16x32xf32>
    %cst_149 = arith.constant 0.000000e+00 : f32
    %299 = vector.broadcast %cst_149 : f32 to vector<16x32xf32>
    %300 = arith.cmpf ogt, %298, %299 : vector<16x32xf32>
    %cst_150 = arith.constant 0.000000e+00 : f32
    %301 = vector.broadcast %cst_150 : f32 to vector<16x32xf32>
    %302 = arith.minimumf %298, %301 : vector<16x32xf32>
    %303 = math.exp %302 : vector<16x32xf32>
    %cst_151 = arith.constant 1.000000e+00 : f32
    %304 = vector.broadcast %cst_151 : f32 to vector<16x32xf32>
    %305 = arith.subf %303, %304 : vector<16x32xf32>
    %306 = arith.select %300, %298, %305 : vector<16x32xi1>, vector<16x32xf32>
    %c224 = arith.constant 224 : index
    %c0_152 = arith.constant 0 : index
    %307 = vector.load %arg10[%c224, %c0_152] : memref<256x32xf32, #tpu.memory_space<vmem>>, vector<16x32xf32>
    tpu.vector_store %arg10[%c224, %c0_152], %306 {strides = array<i32>} : memref<256x32xf32, #tpu.memory_space<vmem>>, vector<16x32xf32>,
    %c128_153 = arith.constant 128 : index
    %c0_154 = arith.constant 0 : index
    %308 = vector.load %arg8[%c128_153, %c0_154] : memref<256x32xf32, #tpu.memory_space<vmem>>, vector<16x32xf32>
    %c128_155 = arith.constant 128 : index
    %c0_156 = arith.constant 0 : index
    %309 = vector.load %arg9[%c128_155, %c0_156] : memref<256x1xf32, #tpu.memory_space<vmem>>, vector<16x1xf32>
    %310 = vector.extract_strided_slice %11 {offsets = [0, 128], sizes = [1, 16], strides = [1, 1]} : vector<1x256xf32> to vector<1x16xf32>
    %311 = vector.broadcast %309 : vector<16x1xf32> to vector<16x16xf32>
    %312 = vector.broadcast %310 : vector<1x16xf32> to vector<16x16xf32>
    %313 = arith.addf %311, %312 : vector<16x16xf32>
    %cst_157 = arith.constant 0.000000e+00 : f32
    %314 = vector.broadcast %cst_157 : f32 to vector<16x16xf32>
    %315 = arith.cmpf ogt, %313, %314 : vector<16x16xf32>
    %cst_158 = arith.constant 2.000000e-01 : f32
    %316 = vector.broadcast %cst_158 : f32 to vector<16x16xf32>
    %317 = arith.mulf %316, %313 : vector<16x16xf32>
    %318 = arith.select %315, %313, %317 : vector<16x16xi1>, vector<16x16xf32>
    %c1_159 = arith.constant 1 : index
    %c0_160 = arith.constant 0 : index
    %c0_161 = arith.constant 0 : index
    %319 = vector.load %arg1[%c1_159, %c0_160, %c0_161] : memref<2x16x16xf32, #tpu.memory_space<vmem>>, vector<1x16x16xf32>
    %320 = vector.shape_cast %319 : vector<1x16x16xf32> to vector<16x16xf32>
    %cst_162 = arith.constant 0.000000e+00 : f32
    %321 = vector.broadcast %cst_162 : f32 to vector<16x16xf32>
    %322 = arith.cmpf ogt, %320, %321 : vector<16x16xf32>
    %cst_163 = arith.constant -9.000000e+15 : f32
    %323 = vector.broadcast %cst_163 : f32 to vector<16x16xf32>
    %324 = arith.select %322, %318, %323 : vector<16x16xi1>, vector<16x16xf32>
    %cst_164 = arith.constant dense<0xFF800000> : vector<16xf32>
    %325 = vector.multi_reduction <maximumf>, %324, %cst_164 [1] : vector<16x16xf32> to vector<16xf32>
    %326 = vector.shape_cast %325 : vector<16xf32> to vector<16x1xf32>
    %327 = vector.broadcast %326 : vector<16x1xf32> to vector<16x16xf32>
    %328 = arith.subf %324, %327 : vector<16x16xf32>
    %329 = math.exp %328 : vector<16x16xf32>
    %cst_165 = arith.constant dense<0.000000e+00> : vector<16xf32>
    %330 = vector.multi_reduction <add>, %329, %cst_165 [1] : vector<16x16xf32> to vector<16xf32>
    %331 = vector.shape_cast %330 : vector<16xf32> to vector<16x1xf32>
    %332 = tpu.reciprocal %331 : vector<16x1xf32> -> vector<16x1xf32>
    %333 = vector.broadcast %332 : vector<16x1xf32> to vector<16x16xf32>
    %334 = arith.mulf %329, %333 : vector<16x16xf32>
    %cst_166 = arith.constant dense<0.000000e+00> : vector<16x32xf32>
    %335 = tpu.matmul %334, %308, %cst_166 {dimension_numbers = #tpu.dot_dimension_numbers<[1], [0], [0], [1], [0, 0, 1, 1], [], []>} : vector<16x16xf32>, vector<16x32xf32>, vector<16x32xf32> -> vector<16x32xf32>
    %cst_167 = arith.constant 0.000000e+00 : f32
    %336 = vector.broadcast %cst_167 : f32 to vector<16x32xf32>
    %337 = arith.cmpf ogt, %335, %336 : vector<16x32xf32>
    %cst_168 = arith.constant 0.000000e+00 : f32
    %338 = vector.broadcast %cst_168 : f32 to vector<16x32xf32>
    %339 = arith.minimumf %335, %338 : vector<16x32xf32>
    %340 = math.exp %339 : vector<16x32xf32>
    %cst_169 = arith.constant 1.000000e+00 : f32
    %341 = vector.broadcast %cst_169 : f32 to vector<16x32xf32>
    %342 = arith.subf %340, %341 : vector<16x32xf32>
    %343 = arith.select %337, %335, %342 : vector<16x32xi1>, vector<16x32xf32>
    %c16_170 = arith.constant 16 : index
    %c0_171 = arith.constant 0 : index
    %344 = vector.load %arg10[%c16_170, %c0_171] : memref<256x32xf32, #tpu.memory_space<vmem>>, vector<16x32xf32>
    tpu.vector_store %arg10[%c16_170, %c0_171], %343 {strides = array<i32>} : memref<256x32xf32, #tpu.memory_space<vmem>>, vector<16x32xf32>,
    %c144 = arith.constant 144 : index
    %c0_172 = arith.constant 0 : index
    %345 = vector.load %arg8[%c144, %c0_172] : memref<256x32xf32, #tpu.memory_space<vmem>>, vector<16x32xf32>
    %c144_173 = arith.constant 144 : index
    %c0_174 = arith.constant 0 : index
    %346 = vector.load %arg9[%c144_173, %c0_174] : memref<256x1xf32, #tpu.memory_space<vmem>>, vector<16x1xf32>
    %347 = vector.extract_strided_slice %11 {offsets = [0, 144], sizes = [1, 16], strides = [1, 1]} : vector<1x256xf32> to vector<1x16xf32>
    %348 = vector.broadcast %346 : vector<16x1xf32> to vector<16x16xf32>
    %349 = vector.broadcast %347 : vector<1x16xf32> to vector<16x16xf32>
    %350 = arith.addf %348, %349 : vector<16x16xf32>
    %cst_175 = arith.constant 0.000000e+00 : f32
    %351 = vector.broadcast %cst_175 : f32 to vector<16x16xf32>
    %352 = arith.cmpf ogt, %350, %351 : vector<16x16xf32>
    %cst_176 = arith.constant 2.000000e-01 : f32
    %353 = vector.broadcast %cst_176 : f32 to vector<16x16xf32>
    %354 = arith.mulf %353, %350 : vector<16x16xf32>
    %355 = arith.select %352, %350, %354 : vector<16x16xi1>, vector<16x16xf32>
    %c1_177 = arith.constant 1 : index
    %c0_178 = arith.constant 0 : index
    %c0_179 = arith.constant 0 : index
    %356 = vector.load %arg1[%c1_177, %c0_178, %c0_179] : memref<2x16x16xf32, #tpu.memory_space<vmem>>, vector<1x16x16xf32>
    %357 = vector.shape_cast %356 : vector<1x16x16xf32> to vector<16x16xf32>
    %cst_180 = arith.constant 0.000000e+00 : f32
    %358 = vector.broadcast %cst_180 : f32 to vector<16x16xf32>
    %359 = arith.cmpf ogt, %357, %358 : vector<16x16xf32>
    %cst_181 = arith.constant -9.000000e+15 : f32
    %360 = vector.broadcast %cst_181 : f32 to vector<16x16xf32>
    %361 = arith.select %359, %355, %360 : vector<16x16xi1>, vector<16x16xf32>
    %cst_182 = arith.constant dense<0xFF800000> : vector<16xf32>
    %362 = vector.multi_reduction <maximumf>, %361, %cst_182 [1] : vector<16x16xf32> to vector<16xf32>
    %363 = vector.shape_cast %362 : vector<16xf32> to vector<16x1xf32>
    %364 = vector.broadcast %363 : vector<16x1xf32> to vector<16x16xf32>
    %365 = arith.subf %361, %364 : vector<16x16xf32>
    %366 = math.exp %365 : vector<16x16xf32>
    %cst_183 = arith.constant dense<0.000000e+00> : vector<16xf32>
    %367 = vector.multi_reduction <add>, %366, %cst_183 [1] : vector<16x16xf32> to vector<16xf32>
    %368 = vector.shape_cast %367 : vector<16xf32> to vector<16x1xf32>
    %369 = tpu.reciprocal %368 : vector<16x1xf32> -> vector<16x1xf32>
    %370 = vector.broadcast %369 : vector<16x1xf32> to vector<16x16xf32>
    %371 = arith.mulf %366, %370 : vector<16x16xf32>
    %cst_184 = arith.constant dense<0.000000e+00> : vector<16x32xf32>
    %372 = tpu.matmul %371, %345, %cst_184 {dimension_numbers = #tpu.dot_dimension_numbers<[1], [0], [0], [1], [0, 0, 1, 1], [], []>} : vector<16x16xf32>, vector<16x32xf32>, vector<16x32xf32> -> vector<16x32xf32>
    %cst_185 = arith.constant 0.000000e+00 : f32
    %373 = vector.broadcast %cst_185 : f32 to vector<16x32xf32>
    %374 = arith.cmpf ogt, %372, %373 : vector<16x32xf32>
    %cst_186 = arith.constant 0.000000e+00 : f32
    %375 = vector.broadcast %cst_186 : f32 to vector<16x32xf32>
    %376 = arith.minimumf %372, %375 : vector<16x32xf32>
    %377 = math.exp %376 : vector<16x32xf32>
    %cst_187 = arith.constant 1.000000e+00 : f32
    %378 = vector.broadcast %cst_187 : f32 to vector<16x32xf32>
    %379 = arith.subf %377, %378 : vector<16x32xf32>
    %380 = arith.select %374, %372, %379 : vector<16x32xi1>, vector<16x32xf32>
    %c48_188 = arith.constant 48 : index
    %c0_189 = arith.constant 0 : index
    %381 = vector.load %arg10[%c48_188, %c0_189] : memref<256x32xf32, #tpu.memory_space<vmem>>, vector<16x32xf32>
    tpu.vector_store %arg10[%c48_188, %c0_189], %380 {strides = array<i32>} : memref<256x32xf32, #tpu.memory_space<vmem>>, vector<16x32xf32>,
    %c160_190 = arith.constant 160 : index
    %c0_191 = arith.constant 0 : index
    %382 = vector.load %arg8[%c160_190, %c0_191] : memref<256x32xf32, #tpu.memory_space<vmem>>, vector<16x32xf32>
    %c160_192 = arith.constant 160 : index
    %c0_193 = arith.constant 0 : index
    %383 = vector.load %arg9[%c160_192, %c0_193] : memref<256x1xf32, #tpu.memory_space<vmem>>, vector<16x1xf32>
    %384 = vector.extract_strided_slice %11 {offsets = [0, 160], sizes = [1, 16], strides = [1, 1]} : vector<1x256xf32> to vector<1x16xf32>
    %385 = vector.broadcast %383 : vector<16x1xf32> to vector<16x16xf32>
    %386 = vector.broadcast %384 : vector<1x16xf32> to vector<16x16xf32>
    %387 = arith.addf %385, %386 : vector<16x16xf32>
    %cst_194 = arith.constant 0.000000e+00 : f32
    %388 = vector.broadcast %cst_194 : f32 to vector<16x16xf32>
    %389 = arith.cmpf ogt, %387, %388 : vector<16x16xf32>
    %cst_195 = arith.constant 2.000000e-01 : f32
    %390 = vector.broadcast %cst_195 : f32 to vector<16x16xf32>
    %391 = arith.mulf %390, %387 : vector<16x16xf32>
    %392 = arith.select %389, %387, %391 : vector<16x16xi1>, vector<16x16xf32>
    %c1_196 = arith.constant 1 : index
    %c0_197 = arith.constant 0 : index
    %c0_198 = arith.constant 0 : index
    %393 = vector.load %arg1[%c1_196, %c0_197, %c0_198] : memref<2x16x16xf32, #tpu.memory_space<vmem>>, vector<1x16x16xf32>
    %394 = vector.shape_cast %393 : vector<1x16x16xf32> to vector<16x16xf32>
    %cst_199 = arith.constant 0.000000e+00 : f32
    %395 = vector.broadcast %cst_199 : f32 to vector<16x16xf32>
    %396 = arith.cmpf ogt, %394, %395 : vector<16x16xf32>
    %cst_200 = arith.constant -9.000000e+15 : f32
    %397 = vector.broadcast %cst_200 : f32 to vector<16x16xf32>
    %398 = arith.select %396, %392, %397 : vector<16x16xi1>, vector<16x16xf32>
    %cst_201 = arith.constant dense<0xFF800000> : vector<16xf32>
    %399 = vector.multi_reduction <maximumf>, %398, %cst_201 [1] : vector<16x16xf32> to vector<16xf32>
    %400 = vector.shape_cast %399 : vector<16xf32> to vector<16x1xf32>
    %401 = vector.broadcast %400 : vector<16x1xf32> to vector<16x16xf32>
    %402 = arith.subf %398, %401 : vector<16x16xf32>
    %403 = math.exp %402 : vector<16x16xf32>
    %cst_202 = arith.constant dense<0.000000e+00> : vector<16xf32>
    %404 = vector.multi_reduction <add>, %403, %cst_202 [1] : vector<16x16xf32> to vector<16xf32>
    %405 = vector.shape_cast %404 : vector<16xf32> to vector<16x1xf32>
    %406 = tpu.reciprocal %405 : vector<16x1xf32> -> vector<16x1xf32>
    %407 = vector.broadcast %406 : vector<16x1xf32> to vector<16x16xf32>
    %408 = arith.mulf %403, %407 : vector<16x16xf32>
    %cst_203 = arith.constant dense<0.000000e+00> : vector<16x32xf32>
    %409 = tpu.matmul %408, %382, %cst_203 {dimension_numbers = #tpu.dot_dimension_numbers<[1], [0], [0], [1], [0, 0, 1, 1], [], []>} : vector<16x16xf32>, vector<16x32xf32>, vector<16x32xf32> -> vector<16x32xf32>
    %cst_204 = arith.constant 0.000000e+00 : f32
    %410 = vector.broadcast %cst_204 : f32 to vector<16x32xf32>
    %411 = arith.cmpf ogt, %409, %410 : vector<16x32xf32>
    %cst_205 = arith.constant 0.000000e+00 : f32
    %412 = vector.broadcast %cst_205 : f32 to vector<16x32xf32>
    %413 = arith.minimumf %409, %412 : vector<16x32xf32>
    %414 = math.exp %413 : vector<16x32xf32>
    %cst_206 = arith.constant 1.000000e+00 : f32
    %415 = vector.broadcast %cst_206 : f32 to vector<16x32xf32>
    %416 = arith.subf %414, %415 : vector<16x32xf32>
    %417 = arith.select %411, %409, %416 : vector<16x32xi1>, vector<16x32xf32>
    %c80_207 = arith.constant 80 : index
    %c0_208 = arith.constant 0 : index
    %418 = vector.load %arg10[%c80_207, %c0_208] : memref<256x32xf32, #tpu.memory_space<vmem>>, vector<16x32xf32>
    tpu.vector_store %arg10[%c80_207, %c0_208], %417 {strides = array<i32>} : memref<256x32xf32, #tpu.memory_space<vmem>>, vector<16x32xf32>,
    %c176 = arith.constant 176 : index
    %c0_209 = arith.constant 0 : index
    %419 = vector.load %arg8[%c176, %c0_209] : memref<256x32xf32, #tpu.memory_space<vmem>>, vector<16x32xf32>
    %c176_210 = arith.constant 176 : index
    %c0_211 = arith.constant 0 : index
    %420 = vector.load %arg9[%c176_210, %c0_211] : memref<256x1xf32, #tpu.memory_space<vmem>>, vector<16x1xf32>
    %421 = vector.extract_strided_slice %11 {offsets = [0, 176], sizes = [1, 16], strides = [1, 1]} : vector<1x256xf32> to vector<1x16xf32>
    %422 = vector.broadcast %420 : vector<16x1xf32> to vector<16x16xf32>
    %423 = vector.broadcast %421 : vector<1x16xf32> to vector<16x16xf32>
    %424 = arith.addf %422, %423 : vector<16x16xf32>
    %cst_212 = arith.constant 0.000000e+00 : f32
    %425 = vector.broadcast %cst_212 : f32 to vector<16x16xf32>
    %426 = arith.cmpf ogt, %424, %425 : vector<16x16xf32>
    %cst_213 = arith.constant 2.000000e-01 : f32
    %427 = vector.broadcast %cst_213 : f32 to vector<16x16xf32>
    %428 = arith.mulf %427, %424 : vector<16x16xf32>
    %429 = arith.select %426, %424, %428 : vector<16x16xi1>, vector<16x16xf32>
    %c1_214 = arith.constant 1 : index
    %c0_215 = arith.constant 0 : index
    %c0_216 = arith.constant 0 : index
    %430 = vector.load %arg1[%c1_214, %c0_215, %c0_216] : memref<2x16x16xf32, #tpu.memory_space<vmem>>, vector<1x16x16xf32>
    %431 = vector.shape_cast %430 : vector<1x16x16xf32> to vector<16x16xf32>
    %cst_217 = arith.constant 0.000000e+00 : f32
    %432 = vector.broadcast %cst_217 : f32 to vector<16x16xf32>
    %433 = arith.cmpf ogt, %431, %432 : vector<16x16xf32>
    %cst_218 = arith.constant -9.000000e+15 : f32
    %434 = vector.broadcast %cst_218 : f32 to vector<16x16xf32>
    %435 = arith.select %433, %429, %434 : vector<16x16xi1>, vector<16x16xf32>
    %cst_219 = arith.constant dense<0xFF800000> : vector<16xf32>
    %436 = vector.multi_reduction <maximumf>, %435, %cst_219 [1] : vector<16x16xf32> to vector<16xf32>
    %437 = vector.shape_cast %436 : vector<16xf32> to vector<16x1xf32>
    %438 = vector.broadcast %437 : vector<16x1xf32> to vector<16x16xf32>
    %439 = arith.subf %435, %438 : vector<16x16xf32>
    %440 = math.exp %439 : vector<16x16xf32>
    %cst_220 = arith.constant dense<0.000000e+00> : vector<16xf32>
    %441 = vector.multi_reduction <add>, %440, %cst_220 [1] : vector<16x16xf32> to vector<16xf32>
    %442 = vector.shape_cast %441 : vector<16xf32> to vector<16x1xf32>
    %443 = tpu.reciprocal %442 : vector<16x1xf32> -> vector<16x1xf32>
    %444 = vector.broadcast %443 : vector<16x1xf32> to vector<16x16xf32>
    %445 = arith.mulf %440, %444 : vector<16x16xf32>
    %cst_221 = arith.constant dense<0.000000e+00> : vector<16x32xf32>
    %446 = tpu.matmul %445, %419, %cst_221 {dimension_numbers = #tpu.dot_dimension_numbers<[1], [0], [0], [1], [0, 0, 1, 1], [], []>} : vector<16x16xf32>, vector<16x32xf32>, vector<16x32xf32> -> vector<16x32xf32>
    %cst_222 = arith.constant 0.000000e+00 : f32
    %447 = vector.broadcast %cst_222 : f32 to vector<16x32xf32>
    %448 = arith.cmpf ogt, %446, %447 : vector<16x32xf32>
    %cst_223 = arith.constant 0.000000e+00 : f32
    %449 = vector.broadcast %cst_223 : f32 to vector<16x32xf32>
    %450 = arith.minimumf %446, %449 : vector<16x32xf32>
    %451 = math.exp %450 : vector<16x32xf32>
    %cst_224 = arith.constant 1.000000e+00 : f32
    %452 = vector.broadcast %cst_224 : f32 to vector<16x32xf32>
    %453 = arith.subf %451, %452 : vector<16x32xf32>
    %454 = arith.select %448, %446, %453 : vector<16x32xi1>, vector<16x32xf32>
    %c112_225 = arith.constant 112 : index
    %c0_226 = arith.constant 0 : index
    %455 = vector.load %arg10[%c112_225, %c0_226] : memref<256x32xf32, #tpu.memory_space<vmem>>, vector<16x32xf32>
    tpu.vector_store %arg10[%c112_225, %c0_226], %454 {strides = array<i32>} : memref<256x32xf32, #tpu.memory_space<vmem>>, vector<16x32xf32>,
    %c192_227 = arith.constant 192 : index
    %c0_228 = arith.constant 0 : index
    %456 = vector.load %arg8[%c192_227, %c0_228] : memref<256x32xf32, #tpu.memory_space<vmem>>, vector<16x32xf32>
    %c192_229 = arith.constant 192 : index
    %c0_230 = arith.constant 0 : index
    %457 = vector.load %arg9[%c192_229, %c0_230] : memref<256x1xf32, #tpu.memory_space<vmem>>, vector<16x1xf32>
    %458 = vector.extract_strided_slice %11 {offsets = [0, 192], sizes = [1, 16], strides = [1, 1]} : vector<1x256xf32> to vector<1x16xf32>
    %459 = vector.broadcast %457 : vector<16x1xf32> to vector<16x16xf32>
    %460 = vector.broadcast %458 : vector<1x16xf32> to vector<16x16xf32>
    %461 = arith.addf %459, %460 : vector<16x16xf32>
    %cst_231 = arith.constant 0.000000e+00 : f32
    %462 = vector.broadcast %cst_231 : f32 to vector<16x16xf32>
    %463 = arith.cmpf ogt, %461, %462 : vector<16x16xf32>
    %cst_232 = arith.constant 2.000000e-01 : f32
    %464 = vector.broadcast %cst_232 : f32 to vector<16x16xf32>
    %465 = arith.mulf %464, %461 : vector<16x16xf32>
    %466 = arith.select %463, %461, %465 : vector<16x16xi1>, vector<16x16xf32>
    %c1_233 = arith.constant 1 : index
    %c0_234 = arith.constant 0 : index
    %c0_235 = arith.constant 0 : index
    %467 = vector.load %arg1[%c1_233, %c0_234, %c0_235] : memref<2x16x16xf32, #tpu.memory_space<vmem>>, vector<1x16x16xf32>
    %468 = vector.shape_cast %467 : vector<1x16x16xf32> to vector<16x16xf32>
    %cst_236 = arith.constant 0.000000e+00 : f32
    %469 = vector.broadcast %cst_236 : f32 to vector<16x16xf32>
    %470 = arith.cmpf ogt, %468, %469 : vector<16x16xf32>
    %cst_237 = arith.constant -9.000000e+15 : f32
    %471 = vector.broadcast %cst_237 : f32 to vector<16x16xf32>
    %472 = arith.select %470, %466, %471 : vector<16x16xi1>, vector<16x16xf32>
    %cst_238 = arith.constant dense<0xFF800000> : vector<16xf32>
    %473 = vector.multi_reduction <maximumf>, %472, %cst_238 [1] : vector<16x16xf32> to vector<16xf32>
    %474 = vector.shape_cast %473 : vector<16xf32> to vector<16x1xf32>
    %475 = vector.broadcast %474 : vector<16x1xf32> to vector<16x16xf32>
    %476 = arith.subf %472, %475 : vector<16x16xf32>
    %477 = math.exp %476 : vector<16x16xf32>
    %cst_239 = arith.constant dense<0.000000e+00> : vector<16xf32>
    %478 = vector.multi_reduction <add>, %477, %cst_239 [1] : vector<16x16xf32> to vector<16xf32>
    %479 = vector.shape_cast %478 : vector<16xf32> to vector<16x1xf32>
    %480 = tpu.reciprocal %479 : vector<16x1xf32> -> vector<16x1xf32>
    %481 = vector.broadcast %480 : vector<16x1xf32> to vector<16x16xf32>
    %482 = arith.mulf %477, %481 : vector<16x16xf32>
    %cst_240 = arith.constant dense<0.000000e+00> : vector<16x32xf32>
    %483 = tpu.matmul %482, %456, %cst_240 {dimension_numbers = #tpu.dot_dimension_numbers<[1], [0], [0], [1], [0, 0, 1, 1], [], []>} : vector<16x16xf32>, vector<16x32xf32>, vector<16x32xf32> -> vector<16x32xf32>
    %cst_241 = arith.constant 0.000000e+00 : f32
    %484 = vector.broadcast %cst_241 : f32 to vector<16x32xf32>
    %485 = arith.cmpf ogt, %483, %484 : vector<16x32xf32>
    %cst_242 = arith.constant 0.000000e+00 : f32
    %486 = vector.broadcast %cst_242 : f32 to vector<16x32xf32>
    %487 = arith.minimumf %483, %486 : vector<16x32xf32>
    %488 = math.exp %487 : vector<16x32xf32>
    %cst_243 = arith.constant 1.000000e+00 : f32
    %489 = vector.broadcast %cst_243 : f32 to vector<16x32xf32>
    %490 = arith.subf %488, %489 : vector<16x32xf32>
    %491 = arith.select %485, %483, %490 : vector<16x32xi1>, vector<16x32xf32>
    %c144_244 = arith.constant 144 : index
    %c0_245 = arith.constant 0 : index
    %492 = vector.load %arg10[%c144_244, %c0_245] : memref<256x32xf32, #tpu.memory_space<vmem>>, vector<16x32xf32>
    tpu.vector_store %arg10[%c144_244, %c0_245], %491 {strides = array<i32>} : memref<256x32xf32, #tpu.memory_space<vmem>>, vector<16x32xf32>,
    %c208 = arith.constant 208 : index
    %c0_246 = arith.constant 0 : index
    %493 = vector.load %arg8[%c208, %c0_246] : memref<256x32xf32, #tpu.memory_space<vmem>>, vector<16x32xf32>
    %c208_247 = arith.constant 208 : index
    %c0_248 = arith.constant 0 : index
    %494 = vector.load %arg9[%c208_247, %c0_248] : memref<256x1xf32, #tpu.memory_space<vmem>>, vector<16x1xf32>
    %495 = vector.extract_strided_slice %11 {offsets = [0, 208], sizes = [1, 16], strides = [1, 1]} : vector<1x256xf32> to vector<1x16xf32>
    %496 = vector.broadcast %494 : vector<16x1xf32> to vector<16x16xf32>
    %497 = vector.broadcast %495 : vector<1x16xf32> to vector<16x16xf32>
    %498 = arith.addf %496, %497 : vector<16x16xf32>
    %cst_249 = arith.constant 0.000000e+00 : f32
    %499 = vector.broadcast %cst_249 : f32 to vector<16x16xf32>
    %500 = arith.cmpf ogt, %498, %499 : vector<16x16xf32>
    %cst_250 = arith.constant 2.000000e-01 : f32
    %501 = vector.broadcast %cst_250 : f32 to vector<16x16xf32>
    %502 = arith.mulf %501, %498 : vector<16x16xf32>
    %503 = arith.select %500, %498, %502 : vector<16x16xi1>, vector<16x16xf32>
    %c1_251 = arith.constant 1 : index
    %c0_252 = arith.constant 0 : index
    %c0_253 = arith.constant 0 : index
    %504 = vector.load %arg1[%c1_251, %c0_252, %c0_253] : memref<2x16x16xf32, #tpu.memory_space<vmem>>, vector<1x16x16xf32>
    %505 = vector.shape_cast %504 : vector<1x16x16xf32> to vector<16x16xf32>
    %cst_254 = arith.constant 0.000000e+00 : f32
    %506 = vector.broadcast %cst_254 : f32 to vector<16x16xf32>
    %507 = arith.cmpf ogt, %505, %506 : vector<16x16xf32>
    %cst_255 = arith.constant -9.000000e+15 : f32
    %508 = vector.broadcast %cst_255 : f32 to vector<16x16xf32>
    %509 = arith.select %507, %503, %508 : vector<16x16xi1>, vector<16x16xf32>
    %cst_256 = arith.constant dense<0xFF800000> : vector<16xf32>
    %510 = vector.multi_reduction <maximumf>, %509, %cst_256 [1] : vector<16x16xf32> to vector<16xf32>
    %511 = vector.shape_cast %510 : vector<16xf32> to vector<16x1xf32>
    %512 = vector.broadcast %511 : vector<16x1xf32> to vector<16x16xf32>
    %513 = arith.subf %509, %512 : vector<16x16xf32>
    %514 = math.exp %513 : vector<16x16xf32>
    %cst_257 = arith.constant dense<0.000000e+00> : vector<16xf32>
    %515 = vector.multi_reduction <add>, %514, %cst_257 [1] : vector<16x16xf32> to vector<16xf32>
    %516 = vector.shape_cast %515 : vector<16xf32> to vector<16x1xf32>
    %517 = tpu.reciprocal %516 : vector<16x1xf32> -> vector<16x1xf32>
    %518 = vector.broadcast %517 : vector<16x1xf32> to vector<16x16xf32>
    %519 = arith.mulf %514, %518 : vector<16x16xf32>
    %cst_258 = arith.constant dense<0.000000e+00> : vector<16x32xf32>
    %520 = tpu.matmul %519, %493, %cst_258 {dimension_numbers = #tpu.dot_dimension_numbers<[1], [0], [0], [1], [0, 0, 1, 1], [], []>} : vector<16x16xf32>, vector<16x32xf32>, vector<16x32xf32> -> vector<16x32xf32>
    %cst_259 = arith.constant 0.000000e+00 : f32
    %521 = vector.broadcast %cst_259 : f32 to vector<16x32xf32>
    %522 = arith.cmpf ogt, %520, %521 : vector<16x32xf32>
    %cst_260 = arith.constant 0.000000e+00 : f32
    %523 = vector.broadcast %cst_260 : f32 to vector<16x32xf32>
    %524 = arith.minimumf %520, %523 : vector<16x32xf32>
    %525 = math.exp %524 : vector<16x32xf32>
    %cst_261 = arith.constant 1.000000e+00 : f32
    %526 = vector.broadcast %cst_261 : f32 to vector<16x32xf32>
    %527 = arith.subf %525, %526 : vector<16x32xf32>
    %528 = arith.select %522, %520, %527 : vector<16x32xi1>, vector<16x32xf32>
    %c176_262 = arith.constant 176 : index
    %c0_263 = arith.constant 0 : index
    %529 = vector.load %arg10[%c176_262, %c0_263] : memref<256x32xf32, #tpu.memory_space<vmem>>, vector<16x32xf32>
    tpu.vector_store %arg10[%c176_262, %c0_263], %528 {strides = array<i32>} : memref<256x32xf32, #tpu.memory_space<vmem>>, vector<16x32xf32>,
    %c224_264 = arith.constant 224 : index
    %c0_265 = arith.constant 0 : index
    %530 = vector.load %arg8[%c224_264, %c0_265] : memref<256x32xf32, #tpu.memory_space<vmem>>, vector<16x32xf32>
    %c224_266 = arith.constant 224 : index
    %c0_267 = arith.constant 0 : index
    %531 = vector.load %arg9[%c224_266, %c0_267] : memref<256x1xf32, #tpu.memory_space<vmem>>, vector<16x1xf32>
    %532 = vector.extract_strided_slice %11 {offsets = [0, 224], sizes = [1, 16], strides = [1, 1]} : vector<1x256xf32> to vector<1x16xf32>
    %533 = vector.broadcast %531 : vector<16x1xf32> to vector<16x16xf32>
    %534 = vector.broadcast %532 : vector<1x16xf32> to vector<16x16xf32>
    %535 = arith.addf %533, %534 : vector<16x16xf32>
    %cst_268 = arith.constant 0.000000e+00 : f32
    %536 = vector.broadcast %cst_268 : f32 to vector<16x16xf32>
    %537 = arith.cmpf ogt, %535, %536 : vector<16x16xf32>
    %cst_269 = arith.constant 2.000000e-01 : f32
    %538 = vector.broadcast %cst_269 : f32 to vector<16x16xf32>
    %539 = arith.mulf %538, %535 : vector<16x16xf32>
    %540 = arith.select %537, %535, %539 : vector<16x16xi1>, vector<16x16xf32>
    %c1_270 = arith.constant 1 : index
    %c0_271 = arith.constant 0 : index
    %c0_272 = arith.constant 0 : index
    %541 = vector.load %arg1[%c1_270, %c0_271, %c0_272] : memref<2x16x16xf32, #tpu.memory_space<vmem>>, vector<1x16x16xf32>
    %542 = vector.shape_cast %541 : vector<1x16x16xf32> to vector<16x16xf32>
    %cst_273 = arith.constant 0.000000e+00 : f32
    %543 = vector.broadcast %cst_273 : f32 to vector<16x16xf32>
    %544 = arith.cmpf ogt, %542, %543 : vector<16x16xf32>
    %cst_274 = arith.constant -9.000000e+15 : f32
    %545 = vector.broadcast %cst_274 : f32 to vector<16x16xf32>
    %546 = arith.select %544, %540, %545 : vector<16x16xi1>, vector<16x16xf32>
    %cst_275 = arith.constant dense<0xFF800000> : vector<16xf32>
    %547 = vector.multi_reduction <maximumf>, %546, %cst_275 [1] : vector<16x16xf32> to vector<16xf32>
    %548 = vector.shape_cast %547 : vector<16xf32> to vector<16x1xf32>
    %549 = vector.broadcast %548 : vector<16x1xf32> to vector<16x16xf32>
    %550 = arith.subf %546, %549 : vector<16x16xf32>
    %551 = math.exp %550 : vector<16x16xf32>
    %cst_276 = arith.constant dense<0.000000e+00> : vector<16xf32>
    %552 = vector.multi_reduction <add>, %551, %cst_276 [1] : vector<16x16xf32> to vector<16xf32>
    %553 = vector.shape_cast %552 : vector<16xf32> to vector<16x1xf32>
    %554 = tpu.reciprocal %553 : vector<16x1xf32> -> vector<16x1xf32>
    %555 = vector.broadcast %554 : vector<16x1xf32> to vector<16x16xf32>
    %556 = arith.mulf %551, %555 : vector<16x16xf32>
    %cst_277 = arith.constant dense<0.000000e+00> : vector<16x32xf32>
    %557 = tpu.matmul %556, %530, %cst_277 {dimension_numbers = #tpu.dot_dimension_numbers<[1], [0], [0], [1], [0, 0, 1, 1], [], []>} : vector<16x16xf32>, vector<16x32xf32>, vector<16x32xf32> -> vector<16x32xf32>
    %cst_278 = arith.constant 0.000000e+00 : f32
    %558 = vector.broadcast %cst_278 : f32 to vector<16x32xf32>
    %559 = arith.cmpf ogt, %557, %558 : vector<16x32xf32>
    %cst_279 = arith.constant 0.000000e+00 : f32
    %560 = vector.broadcast %cst_279 : f32 to vector<16x32xf32>
    %561 = arith.minimumf %557, %560 : vector<16x32xf32>
    %562 = math.exp %561 : vector<16x32xf32>
    %cst_280 = arith.constant 1.000000e+00 : f32
    %563 = vector.broadcast %cst_280 : f32 to vector<16x32xf32>
    %564 = arith.subf %562, %563 : vector<16x32xf32>
    %565 = arith.select %559, %557, %564 : vector<16x32xi1>, vector<16x32xf32>
    %c208_281 = arith.constant 208 : index
    %c0_282 = arith.constant 0 : index
    %566 = vector.load %arg10[%c208_281, %c0_282] : memref<256x32xf32, #tpu.memory_space<vmem>>, vector<16x32xf32>
    tpu.vector_store %arg10[%c208_281, %c0_282], %565 {strides = array<i32>} : memref<256x32xf32, #tpu.memory_space<vmem>>, vector<16x32xf32>,
    %c240 = arith.constant 240 : index
    %c0_283 = arith.constant 0 : index
    %567 = vector.load %arg8[%c240, %c0_283] : memref<256x32xf32, #tpu.memory_space<vmem>>, vector<16x32xf32>
    %c240_284 = arith.constant 240 : index
    %c0_285 = arith.constant 0 : index
    %568 = vector.load %arg9[%c240_284, %c0_285] : memref<256x1xf32, #tpu.memory_space<vmem>>, vector<16x1xf32>
    %569 = vector.extract_strided_slice %11 {offsets = [0, 240], sizes = [1, 16], strides = [1, 1]} : vector<1x256xf32> to vector<1x16xf32>
    %570 = vector.broadcast %568 : vector<16x1xf32> to vector<16x16xf32>
    %571 = vector.broadcast %569 : vector<1x16xf32> to vector<16x16xf32>
    %572 = arith.addf %570, %571 : vector<16x16xf32>
    %cst_286 = arith.constant 0.000000e+00 : f32
    %573 = vector.broadcast %cst_286 : f32 to vector<16x16xf32>
    %574 = arith.cmpf ogt, %572, %573 : vector<16x16xf32>
    %cst_287 = arith.constant 2.000000e-01 : f32
    %575 = vector.broadcast %cst_287 : f32 to vector<16x16xf32>
    %576 = arith.mulf %575, %572 : vector<16x16xf32>
    %577 = arith.select %574, %572, %576 : vector<16x16xi1>, vector<16x16xf32>
    %c1_288 = arith.constant 1 : index
    %c0_289 = arith.constant 0 : index
    %c0_290 = arith.constant 0 : index
    %578 = vector.load %arg1[%c1_288, %c0_289, %c0_290] : memref<2x16x16xf32, #tpu.memory_space<vmem>>, vector<1x16x16xf32>
    %579 = vector.shape_cast %578 : vector<1x16x16xf32> to vector<16x16xf32>
    %cst_291 = arith.constant 0.000000e+00 : f32
    %580 = vector.broadcast %cst_291 : f32 to vector<16x16xf32>
    %581 = arith.cmpf ogt, %579, %580 : vector<16x16xf32>
    %cst_292 = arith.constant -9.000000e+15 : f32
    %582 = vector.broadcast %cst_292 : f32 to vector<16x16xf32>
    %583 = arith.select %581, %577, %582 : vector<16x16xi1>, vector<16x16xf32>
    %cst_293 = arith.constant dense<0xFF800000> : vector<16xf32>
    %584 = vector.multi_reduction <maximumf>, %583, %cst_293 [1] : vector<16x16xf32> to vector<16xf32>
    %585 = vector.shape_cast %584 : vector<16xf32> to vector<16x1xf32>
    %586 = vector.broadcast %585 : vector<16x1xf32> to vector<16x16xf32>
    %587 = arith.subf %583, %586 : vector<16x16xf32>
    %588 = math.exp %587 : vector<16x16xf32>
    %cst_294 = arith.constant dense<0.000000e+00> : vector<16xf32>
    %589 = vector.multi_reduction <add>, %588, %cst_294 [1] : vector<16x16xf32> to vector<16xf32>
    %590 = vector.shape_cast %589 : vector<16xf32> to vector<16x1xf32>
    %591 = tpu.reciprocal %590 : vector<16x1xf32> -> vector<16x1xf32>
    %592 = vector.broadcast %591 : vector<16x1xf32> to vector<16x16xf32>
    %593 = arith.mulf %588, %592 : vector<16x16xf32>
    %cst_295 = arith.constant dense<0.000000e+00> : vector<16x32xf32>
    %594 = tpu.matmul %593, %567, %cst_295 {dimension_numbers = #tpu.dot_dimension_numbers<[1], [0], [0], [1], [0, 0, 1, 1], [], []>} : vector<16x16xf32>, vector<16x32xf32>, vector<16x32xf32> -> vector<16x32xf32>
    %cst_296 = arith.constant 0.000000e+00 : f32
    %595 = vector.broadcast %cst_296 : f32 to vector<16x32xf32>
    %596 = arith.cmpf ogt, %594, %595 : vector<16x32xf32>
    %cst_297 = arith.constant 0.000000e+00 : f32
    %597 = vector.broadcast %cst_297 : f32 to vector<16x32xf32>
    %598 = arith.minimumf %594, %597 : vector<16x32xf32>
    %599 = math.exp %598 : vector<16x32xf32>
    %cst_298 = arith.constant 1.000000e+00 : f32
    %600 = vector.broadcast %cst_298 : f32 to vector<16x32xf32>
    %601 = arith.subf %599, %600 : vector<16x32xf32>
    %602 = arith.select %596, %594, %601 : vector<16x32xi1>, vector<16x32xf32>
    %c240_299 = arith.constant 240 : index
    %c0_300 = arith.constant 0 : index
    %603 = vector.load %arg10[%c240_299, %c0_300] : memref<256x32xf32, #tpu.memory_space<vmem>>, vector<16x32xf32>
    tpu.vector_store %arg10[%c240_299, %c0_300], %602 {strides = array<i32>} : memref<256x32xf32, #tpu.memory_space<vmem>>, vector<16x32xf32>,
    %c0_301 = arith.constant 0 : index
    %c0_302 = arith.constant 0 : index
    %604 = vector.load %arg4[%c0_301, %c0_302] : memref<120x128xf32, #tpu.memory_space<vmem>>, vector<32x128xf32>
    %c32_303 = arith.constant 32 : index
    %c0_304 = arith.constant 0 : index
    %605 = vector.load %arg4[%c32_303, %c0_304] : memref<120x128xf32, #tpu.memory_space<vmem>>, vector<32x128xf32>
    %c64_305 = arith.constant 64 : index
    %c0_306 = arith.constant 0 : index
    %606 = vector.load %arg4[%c64_305, %c0_306] : memref<120x128xf32, #tpu.memory_space<vmem>>, vector<1x128xf32>
    %c0_307 = arith.constant 0 : index
    %c0_308 = arith.constant 0 : index
    %607 = vector.load %arg10[%c0_307, %c0_308] : memref<256x32xf32, #tpu.memory_space<vmem>>, vector<256x32xf32>
    %cst_309 = arith.constant dense<0.000000e+00> : vector<256x128xf32>
    %608 = tpu.matmul %607, %604, %cst_309 {dimension_numbers = #tpu.dot_dimension_numbers<[1], [0], [0], [1], [0, 0, 1, 1], [], []>} : vector<256x32xf32>, vector<32x128xf32>, vector<256x128xf32> -> vector<256x128xf32>
    %609 = vector.broadcast %606 : vector<1x128xf32> to vector<256x128xf32>
    %610 = arith.addf %608, %609 : vector<256x128xf32>
    %c0_310 = arith.constant 0 : index
    %c0_311 = arith.constant 0 : index
    %611 = vector.load %arg11[%c0_310, %c0_311] : memref<256x128xf32, #tpu.memory_space<vmem>>, vector<256x128xf32>
    tpu.vector_store %arg11[%c0_310, %c0_311], %610 {strides = array<i32>} : memref<256x128xf32, #tpu.memory_space<vmem>>, vector<256x128xf32>,
    %cst_312 = arith.constant 0.000000e+00 : f32
    %612 = vector.broadcast %cst_312 : f32 to vector<32x32xf32>
    %cst_313 = arith.constant 0.000000e+00 : f32
    %613 = vector.broadcast %cst_313 : f32 to vector<32x32xf32>
    %c0_314 = arith.constant 0 : index
    %c0_315 = arith.constant 0 : index
    %614 = vector.load %arg11[%c0_314, %c0_315] : memref<256x128xf32, #tpu.memory_space<vmem>>, vector<32x128xf32>
    %cst_316 = arith.constant dense<0.000000e+00> : vector<32x128xf32>
    %615 = tpu.matmul %612, %605, %cst_316 {dimension_numbers = #tpu.dot_dimension_numbers<[1], [0], [0], [1], [0, 0, 1, 1], [], []>} : vector<32x32xf32>, vector<32x128xf32>, vector<32x128xf32> -> vector<32x128xf32>
    %616 = arith.addf %614, %615 : vector<32x128xf32>
    %617 = vector.extract_strided_slice %616 {offsets = [0, 0], sizes = [32, 32], strides = [1, 1]} : vector<32x128xf32> to vector<32x32xf32>
    %618 = arith.negf %617 : vector<32x32xf32>
    %619 = math.exp %618 : vector<32x32xf32>
    %cst_317 = arith.constant 1.000000e+00 : f32
    %620 = vector.broadcast %cst_317 : f32 to vector<32x32xf32>
    %621 = arith.addf %620, %619 : vector<32x32xf32>
    %622 = arith.divf %620, %621 : vector<32x32xf32>
    %623 = vector.extract_strided_slice %616 {offsets = [0, 32], sizes = [32, 32], strides = [1, 1]} : vector<32x128xf32> to vector<32x32xf32>
    %624 = arith.negf %623 : vector<32x32xf32>
    %625 = math.exp %624 : vector<32x32xf32>
    %cst_318 = arith.constant 1.000000e+00 : f32
    %626 = vector.broadcast %cst_318 : f32 to vector<32x32xf32>
    %627 = arith.addf %626, %625 : vector<32x32xf32>
    %628 = arith.divf %626, %627 : vector<32x32xf32>
    %629 = vector.extract_strided_slice %616 {offsets = [0, 64], sizes = [32, 32], strides = [1, 1]} : vector<32x128xf32> to vector<32x32xf32>
    %630 = math.tanh %629 : vector<32x32xf32>
    %631 = vector.extract_strided_slice %616 {offsets = [0, 96], sizes = [32, 32], strides = [1, 1]} : vector<32x128xf32> to vector<32x32xf32>
    %632 = arith.negf %631 : vector<32x32xf32>
    %633 = math.exp %632 : vector<32x32xf32>
    %cst_319 = arith.constant 1.000000e+00 : f32
    %634 = vector.broadcast %cst_319 : f32 to vector<32x32xf32>
    %635 = arith.addf %634, %633 : vector<32x32xf32>
    %636 = arith.divf %634, %635 : vector<32x32xf32>
    %637 = arith.mulf %628, %613 : vector<32x32xf32>
    %638 = arith.mulf %622, %630 : vector<32x32xf32>
    %639 = arith.addf %637, %638 : vector<32x32xf32>
    %640 = math.tanh %639 : vector<32x32xf32>
    %641 = arith.mulf %636, %640 : vector<32x32xf32>
    %c32_320 = arith.constant 32 : index
    %c0_321 = arith.constant 0 : index
    %642 = vector.load %arg11[%c32_320, %c0_321] : memref<256x128xf32, #tpu.memory_space<vmem>>, vector<32x128xf32>
    %cst_322 = arith.constant dense<0.000000e+00> : vector<32x128xf32>
    %643 = tpu.matmul %641, %605, %cst_322 {dimension_numbers = #tpu.dot_dimension_numbers<[1], [0], [0], [1], [0, 0, 1, 1], [], []>} : vector<32x32xf32>, vector<32x128xf32>, vector<32x128xf32> -> vector<32x128xf32>
    %644 = arith.addf %642, %643 : vector<32x128xf32>
    %645 = vector.extract_strided_slice %644 {offsets = [0, 0], sizes = [32, 32], strides = [1, 1]} : vector<32x128xf32> to vector<32x32xf32>
    %646 = arith.negf %645 : vector<32x32xf32>
    %647 = math.exp %646 : vector<32x32xf32>
    %cst_323 = arith.constant 1.000000e+00 : f32
    %648 = vector.broadcast %cst_323 : f32 to vector<32x32xf32>
    %649 = arith.addf %648, %647 : vector<32x32xf32>
    %650 = arith.divf %648, %649 : vector<32x32xf32>
    %651 = vector.extract_strided_slice %644 {offsets = [0, 32], sizes = [32, 32], strides = [1, 1]} : vector<32x128xf32> to vector<32x32xf32>
    %652 = arith.negf %651 : vector<32x32xf32>
    %653 = math.exp %652 : vector<32x32xf32>
    %cst_324 = arith.constant 1.000000e+00 : f32
    %654 = vector.broadcast %cst_324 : f32 to vector<32x32xf32>
    %655 = arith.addf %654, %653 : vector<32x32xf32>
    %656 = arith.divf %654, %655 : vector<32x32xf32>
    %657 = vector.extract_strided_slice %644 {offsets = [0, 64], sizes = [32, 32], strides = [1, 1]} : vector<32x128xf32> to vector<32x32xf32>
    %658 = math.tanh %657 : vector<32x32xf32>
    %659 = vector.extract_strided_slice %644 {offsets = [0, 96], sizes = [32, 32], strides = [1, 1]} : vector<32x128xf32> to vector<32x32xf32>
    %660 = arith.negf %659 : vector<32x32xf32>
    %661 = math.exp %660 : vector<32x32xf32>
    %cst_325 = arith.constant 1.000000e+00 : f32
    %662 = vector.broadcast %cst_325 : f32 to vector<32x32xf32>
    %663 = arith.addf %662, %661 : vector<32x32xf32>
    %664 = arith.divf %662, %663 : vector<32x32xf32>
    %665 = arith.mulf %656, %639 : vector<32x32xf32>
    %666 = arith.mulf %650, %658 : vector<32x32xf32>
    %667 = arith.addf %665, %666 : vector<32x32xf32>
    %668 = math.tanh %667 : vector<32x32xf32>
    %669 = arith.mulf %664, %668 : vector<32x32xf32>
    %c64_326 = arith.constant 64 : index
    %c0_327 = arith.constant 0 : index
    %670 = vector.load %arg11[%c64_326, %c0_327] : memref<256x128xf32, #tpu.memory_space<vmem>>, vector<32x128xf32>
    %cst_328 = arith.constant dense<0.000000e+00> : vector<32x128xf32>
    %671 = tpu.matmul %669, %605, %cst_328 {dimension_numbers = #tpu.dot_dimension_numbers<[1], [0], [0], [1], [0, 0, 1, 1], [], []>} : vector<32x32xf32>, vector<32x128xf32>, vector<32x128xf32> -> vector<32x128xf32>
    %672 = arith.addf %670, %671 : vector<32x128xf32>
    %673 = vector.extract_strided_slice %672 {offsets = [0, 0], sizes = [32, 32], strides = [1, 1]} : vector<32x128xf32> to vector<32x32xf32>
    %674 = arith.negf %673 : vector<32x32xf32>
    %675 = math.exp %674 : vector<32x32xf32>
    %cst_329 = arith.constant 1.000000e+00 : f32
    %676 = vector.broadcast %cst_329 : f32 to vector<32x32xf32>
    %677 = arith.addf %676, %675 : vector<32x32xf32>
    %678 = arith.divf %676, %677 : vector<32x32xf32>
    %679 = vector.extract_strided_slice %672 {offsets = [0, 32], sizes = [32, 32], strides = [1, 1]} : vector<32x128xf32> to vector<32x32xf32>
    %680 = arith.negf %679 : vector<32x32xf32>
    %681 = math.exp %680 : vector<32x32xf32>
    %cst_330 = arith.constant 1.000000e+00 : f32
    %682 = vector.broadcast %cst_330 : f32 to vector<32x32xf32>
    %683 = arith.addf %682, %681 : vector<32x32xf32>
    %684 = arith.divf %682, %683 : vector<32x32xf32>
    %685 = vector.extract_strided_slice %672 {offsets = [0, 64], sizes = [32, 32], strides = [1, 1]} : vector<32x128xf32> to vector<32x32xf32>
    %686 = math.tanh %685 : vector<32x32xf32>
    %687 = vector.extract_strided_slice %672 {offsets = [0, 96], sizes = [32, 32], strides = [1, 1]} : vector<32x128xf32> to vector<32x32xf32>
    %688 = arith.negf %687 : vector<32x32xf32>
    %689 = math.exp %688 : vector<32x32xf32>
    %cst_331 = arith.constant 1.000000e+00 : f32
    %690 = vector.broadcast %cst_331 : f32 to vector<32x32xf32>
    %691 = arith.addf %690, %689 : vector<32x32xf32>
    %692 = arith.divf %690, %691 : vector<32x32xf32>
    %693 = arith.mulf %684, %667 : vector<32x32xf32>
    %694 = arith.mulf %678, %686 : vector<32x32xf32>
    %695 = arith.addf %693, %694 : vector<32x32xf32>
    %696 = math.tanh %695 : vector<32x32xf32>
    %697 = arith.mulf %692, %696 : vector<32x32xf32>
    %c96_332 = arith.constant 96 : index
    %c0_333 = arith.constant 0 : index
    %698 = vector.load %arg11[%c96_332, %c0_333] : memref<256x128xf32, #tpu.memory_space<vmem>>, vector<32x128xf32>
    %cst_334 = arith.constant dense<0.000000e+00> : vector<32x128xf32>
    %699 = tpu.matmul %697, %605, %cst_334 {dimension_numbers = #tpu.dot_dimension_numbers<[1], [0], [0], [1], [0, 0, 1, 1], [], []>} : vector<32x32xf32>, vector<32x128xf32>, vector<32x128xf32> -> vector<32x128xf32>
    %700 = arith.addf %698, %699 : vector<32x128xf32>
    %701 = vector.extract_strided_slice %700 {offsets = [0, 0], sizes = [32, 32], strides = [1, 1]} : vector<32x128xf32> to vector<32x32xf32>
    %702 = arith.negf %701 : vector<32x32xf32>
    %703 = math.exp %702 : vector<32x32xf32>
    %cst_335 = arith.constant 1.000000e+00 : f32
    %704 = vector.broadcast %cst_335 : f32 to vector<32x32xf32>
    %705 = arith.addf %704, %703 : vector<32x32xf32>
    %706 = arith.divf %704, %705 : vector<32x32xf32>
    %707 = vector.extract_strided_slice %700 {offsets = [0, 32], sizes = [32, 32], strides = [1, 1]} : vector<32x128xf32> to vector<32x32xf32>
    %708 = arith.negf %707 : vector<32x32xf32>
    %709 = math.exp %708 : vector<32x32xf32>
    %cst_336 = arith.constant 1.000000e+00 : f32
    %710 = vector.broadcast %cst_336 : f32 to vector<32x32xf32>
    %711 = arith.addf %710, %709 : vector<32x32xf32>
    %712 = arith.divf %710, %711 : vector<32x32xf32>
    %713 = vector.extract_strided_slice %700 {offsets = [0, 64], sizes = [32, 32], strides = [1, 1]} : vector<32x128xf32> to vector<32x32xf32>
    %714 = math.tanh %713 : vector<32x32xf32>
    %715 = vector.extract_strided_slice %700 {offsets = [0, 96], sizes = [32, 32], strides = [1, 1]} : vector<32x128xf32> to vector<32x32xf32>
    %716 = arith.negf %715 : vector<32x32xf32>
    %717 = math.exp %716 : vector<32x32xf32>
    %cst_337 = arith.constant 1.000000e+00 : f32
    %718 = vector.broadcast %cst_337 : f32 to vector<32x32xf32>
    %719 = arith.addf %718, %717 : vector<32x32xf32>
    %720 = arith.divf %718, %719 : vector<32x32xf32>
    %721 = arith.mulf %712, %695 : vector<32x32xf32>
    %722 = arith.mulf %706, %714 : vector<32x32xf32>
    %723 = arith.addf %721, %722 : vector<32x32xf32>
    %724 = math.tanh %723 : vector<32x32xf32>
    %725 = arith.mulf %720, %724 : vector<32x32xf32>
    %c128_338 = arith.constant 128 : index
    %c0_339 = arith.constant 0 : index
    %726 = vector.load %arg11[%c128_338, %c0_339] : memref<256x128xf32, #tpu.memory_space<vmem>>, vector<32x128xf32>
    %cst_340 = arith.constant dense<0.000000e+00> : vector<32x128xf32>
    %727 = tpu.matmul %725, %605, %cst_340 {dimension_numbers = #tpu.dot_dimension_numbers<[1], [0], [0], [1], [0, 0, 1, 1], [], []>} : vector<32x32xf32>, vector<32x128xf32>, vector<32x128xf32> -> vector<32x128xf32>
    %728 = arith.addf %726, %727 : vector<32x128xf32>
    %729 = vector.extract_strided_slice %728 {offsets = [0, 0], sizes = [32, 32], strides = [1, 1]} : vector<32x128xf32> to vector<32x32xf32>
    %730 = arith.negf %729 : vector<32x32xf32>
    %731 = math.exp %730 : vector<32x32xf32>
    %cst_341 = arith.constant 1.000000e+00 : f32
    %732 = vector.broadcast %cst_341 : f32 to vector<32x32xf32>
    %733 = arith.addf %732, %731 : vector<32x32xf32>
    %734 = arith.divf %732, %733 : vector<32x32xf32>
    %735 = vector.extract_strided_slice %728 {offsets = [0, 32], sizes = [32, 32], strides = [1, 1]} : vector<32x128xf32> to vector<32x32xf32>
    %736 = arith.negf %735 : vector<32x32xf32>
    %737 = math.exp %736 : vector<32x32xf32>
    %cst_342 = arith.constant 1.000000e+00 : f32
    %738 = vector.broadcast %cst_342 : f32 to vector<32x32xf32>
    %739 = arith.addf %738, %737 : vector<32x32xf32>
    %740 = arith.divf %738, %739 : vector<32x32xf32>
    %741 = vector.extract_strided_slice %728 {offsets = [0, 64], sizes = [32, 32], strides = [1, 1]} : vector<32x128xf32> to vector<32x32xf32>
    %742 = math.tanh %741 : vector<32x32xf32>
    %743 = vector.extract_strided_slice %728 {offsets = [0, 96], sizes = [32, 32], strides = [1, 1]} : vector<32x128xf32> to vector<32x32xf32>
    %744 = arith.negf %743 : vector<32x32xf32>
    %745 = math.exp %744 : vector<32x32xf32>
    %cst_343 = arith.constant 1.000000e+00 : f32
    %746 = vector.broadcast %cst_343 : f32 to vector<32x32xf32>
    %747 = arith.addf %746, %745 : vector<32x32xf32>
    %748 = arith.divf %746, %747 : vector<32x32xf32>
    %749 = arith.mulf %740, %723 : vector<32x32xf32>
    %750 = arith.mulf %734, %742 : vector<32x32xf32>
    %751 = arith.addf %749, %750 : vector<32x32xf32>
    %752 = math.tanh %751 : vector<32x32xf32>
    %753 = arith.mulf %748, %752 : vector<32x32xf32>
    %c160_344 = arith.constant 160 : index
    %c0_345 = arith.constant 0 : index
    %754 = vector.load %arg11[%c160_344, %c0_345] : memref<256x128xf32, #tpu.memory_space<vmem>>, vector<32x128xf32>
    %cst_346 = arith.constant dense<0.000000e+00> : vector<32x128xf32>
    %755 = tpu.matmul %753, %605, %cst_346 {dimension_numbers = #tpu.dot_dimension_numbers<[1], [0], [0], [1], [0, 0, 1, 1], [], []>} : vector<32x32xf32>, vector<32x128xf32>, vector<32x128xf32> -> vector<32x128xf32>
    %756 = arith.addf %754, %755 : vector<32x128xf32>
    %757 = vector.extract_strided_slice %756 {offsets = [0, 0], sizes = [32, 32], strides = [1, 1]} : vector<32x128xf32> to vector<32x32xf32>
    %758 = arith.negf %757 : vector<32x32xf32>
    %759 = math.exp %758 : vector<32x32xf32>
    %cst_347 = arith.constant 1.000000e+00 : f32
    %760 = vector.broadcast %cst_347 : f32 to vector<32x32xf32>
    %761 = arith.addf %760, %759 : vector<32x32xf32>
    %762 = arith.divf %760, %761 : vector<32x32xf32>
    %763 = vector.extract_strided_slice %756 {offsets = [0, 32], sizes = [32, 32], strides = [1, 1]} : vector<32x128xf32> to vector<32x32xf32>
    %764 = arith.negf %763 : vector<32x32xf32>
    %765 = math.exp %764 : vector<32x32xf32>
    %cst_348 = arith.constant 1.000000e+00 : f32
    %766 = vector.broadcast %cst_348 : f32 to vector<32x32xf32>
    %767 = arith.addf %766, %765 : vector<32x32xf32>
    %768 = arith.divf %766, %767 : vector<32x32xf32>
    %769 = vector.extract_strided_slice %756 {offsets = [0, 64], sizes = [32, 32], strides = [1, 1]} : vector<32x128xf32> to vector<32x32xf32>
    %770 = math.tanh %769 : vector<32x32xf32>
    %771 = vector.extract_strided_slice %756 {offsets = [0, 96], sizes = [32, 32], strides = [1, 1]} : vector<32x128xf32> to vector<32x32xf32>
    %772 = arith.negf %771 : vector<32x32xf32>
    %773 = math.exp %772 : vector<32x32xf32>
    %cst_349 = arith.constant 1.000000e+00 : f32
    %774 = vector.broadcast %cst_349 : f32 to vector<32x32xf32>
    %775 = arith.addf %774, %773 : vector<32x32xf32>
    %776 = arith.divf %774, %775 : vector<32x32xf32>
    %777 = arith.mulf %768, %751 : vector<32x32xf32>
    %778 = arith.mulf %762, %770 : vector<32x32xf32>
    %779 = arith.addf %777, %778 : vector<32x32xf32>
    %780 = math.tanh %779 : vector<32x32xf32>
    %781 = arith.mulf %776, %780 : vector<32x32xf32>
    %c192_350 = arith.constant 192 : index
    %c0_351 = arith.constant 0 : index
    %782 = vector.load %arg11[%c192_350, %c0_351] : memref<256x128xf32, #tpu.memory_space<vmem>>, vector<32x128xf32>
    %cst_352 = arith.constant dense<0.000000e+00> : vector<32x128xf32>
    %783 = tpu.matmul %781, %605, %cst_352 {dimension_numbers = #tpu.dot_dimension_numbers<[1], [0], [0], [1], [0, 0, 1, 1], [], []>} : vector<32x32xf32>, vector<32x128xf32>, vector<32x128xf32> -> vector<32x128xf32>
    %784 = arith.addf %782, %783 : vector<32x128xf32>
    %785 = vector.extract_strided_slice %784 {offsets = [0, 0], sizes = [32, 32], strides = [1, 1]} : vector<32x128xf32> to vector<32x32xf32>
    %786 = arith.negf %785 : vector<32x32xf32>
    %787 = math.exp %786 : vector<32x32xf32>
    %cst_353 = arith.constant 1.000000e+00 : f32
    %788 = vector.broadcast %cst_353 : f32 to vector<32x32xf32>
    %789 = arith.addf %788, %787 : vector<32x32xf32>
    %790 = arith.divf %788, %789 : vector<32x32xf32>
    %791 = vector.extract_strided_slice %784 {offsets = [0, 32], sizes = [32, 32], strides = [1, 1]} : vector<32x128xf32> to vector<32x32xf32>
    %792 = arith.negf %791 : vector<32x32xf32>
    %793 = math.exp %792 : vector<32x32xf32>
    %cst_354 = arith.constant 1.000000e+00 : f32
    %794 = vector.broadcast %cst_354 : f32 to vector<32x32xf32>
    %795 = arith.addf %794, %793 : vector<32x32xf32>
    %796 = arith.divf %794, %795 : vector<32x32xf32>
    %797 = vector.extract_strided_slice %784 {offsets = [0, 64], sizes = [32, 32], strides = [1, 1]} : vector<32x128xf32> to vector<32x32xf32>
    %798 = math.tanh %797 : vector<32x32xf32>
    %799 = vector.extract_strided_slice %784 {offsets = [0, 96], sizes = [32, 32], strides = [1, 1]} : vector<32x128xf32> to vector<32x32xf32>
    %800 = arith.negf %799 : vector<32x32xf32>
    %801 = math.exp %800 : vector<32x32xf32>
    %cst_355 = arith.constant 1.000000e+00 : f32
    %802 = vector.broadcast %cst_355 : f32 to vector<32x32xf32>
    %803 = arith.addf %802, %801 : vector<32x32xf32>
    %804 = arith.divf %802, %803 : vector<32x32xf32>
    %805 = arith.mulf %796, %779 : vector<32x32xf32>
    %806 = arith.mulf %790, %798 : vector<32x32xf32>
    %807 = arith.addf %805, %806 : vector<32x32xf32>
    %808 = math.tanh %807 : vector<32x32xf32>
    %809 = arith.mulf %804, %808 : vector<32x32xf32>
    %c224_356 = arith.constant 224 : index
    %c0_357 = arith.constant 0 : index
    %810 = vector.load %arg11[%c224_356, %c0_357] : memref<256x128xf32, #tpu.memory_space<vmem>>, vector<32x128xf32>
    %cst_358 = arith.constant dense<0.000000e+00> : vector<32x128xf32>
    %811 = tpu.matmul %809, %605, %cst_358 {dimension_numbers = #tpu.dot_dimension_numbers<[1], [0], [0], [1], [0, 0, 1, 1], [], []>} : vector<32x32xf32>, vector<32x128xf32>, vector<32x128xf32> -> vector<32x128xf32>
    %812 = arith.addf %810, %811 : vector<32x128xf32>
    %813 = vector.extract_strided_slice %812 {offsets = [0, 0], sizes = [32, 32], strides = [1, 1]} : vector<32x128xf32> to vector<32x32xf32>
    %814 = arith.negf %813 : vector<32x32xf32>
    %815 = math.exp %814 : vector<32x32xf32>
    %cst_359 = arith.constant 1.000000e+00 : f32
    %816 = vector.broadcast %cst_359 : f32 to vector<32x32xf32>
    %817 = arith.addf %816, %815 : vector<32x32xf32>
    %818 = arith.divf %816, %817 : vector<32x32xf32>
    %819 = vector.extract_strided_slice %812 {offsets = [0, 32], sizes = [32, 32], strides = [1, 1]} : vector<32x128xf32> to vector<32x32xf32>
    %820 = arith.negf %819 : vector<32x32xf32>
    %821 = math.exp %820 : vector<32x32xf32>
    %cst_360 = arith.constant 1.000000e+00 : f32
    %822 = vector.broadcast %cst_360 : f32 to vector<32x32xf32>
    %823 = arith.addf %822, %821 : vector<32x32xf32>
    %824 = arith.divf %822, %823 : vector<32x32xf32>
    %825 = vector.extract_strided_slice %812 {offsets = [0, 64], sizes = [32, 32], strides = [1, 1]} : vector<32x128xf32> to vector<32x32xf32>
    %826 = math.tanh %825 : vector<32x32xf32>
    %827 = vector.extract_strided_slice %812 {offsets = [0, 96], sizes = [32, 32], strides = [1, 1]} : vector<32x128xf32> to vector<32x32xf32>
    %828 = arith.negf %827 : vector<32x32xf32>
    %829 = math.exp %828 : vector<32x32xf32>
    %cst_361 = arith.constant 1.000000e+00 : f32
    %830 = vector.broadcast %cst_361 : f32 to vector<32x32xf32>
    %831 = arith.addf %830, %829 : vector<32x32xf32>
    %832 = arith.divf %830, %831 : vector<32x32xf32>
    %833 = arith.mulf %824, %807 : vector<32x32xf32>
    %834 = arith.mulf %818, %826 : vector<32x32xf32>
    %835 = arith.addf %833, %834 : vector<32x32xf32>
    %836 = math.tanh %835 : vector<32x32xf32>
    %837 = arith.mulf %832, %836 : vector<32x32xf32>
    %c72 = arith.constant 72 : index
    %c0_362 = arith.constant 0 : index
    %838 = vector.load %arg4[%c72, %c0_362] : memref<120x128xf32, #tpu.memory_space<vmem>>, vector<2x128xf32>
    %c80_363 = arith.constant 80 : index
    %c0_364 = arith.constant 0 : index
    %839 = vector.load %arg4[%c80_363, %c0_364] : memref<120x128xf32, #tpu.memory_space<vmem>>, vector<32x128xf32>
    %c112_365 = arith.constant 112 : index
    %c0_366 = arith.constant 0 : index
    %840 = vector.load %arg4[%c112_365, %c0_366] : memref<120x128xf32, #tpu.memory_space<vmem>>, vector<1x128xf32>
    %c0_367 = arith.constant 0 : index
    %c0_368 = arith.constant 0 : index
    %841 = vector.load %arg5[%c0_367, %c0_368] : memref<32x2xf32, #tpu.memory_space<vmem>>, vector<32x2xf32>
    %c0_369 = arith.constant 0 : index
    %c0_370 = arith.constant 0 : index
    %842 = vector.load %arg6[%c0_369, %c0_370] : memref<1x2xf32, #tpu.memory_space<vmem>>, vector<1x2xf32>
    %cst_371 = arith.constant dense<0.000000e+00> : vector<32x128xf32>
    %843 = tpu.matmul %841, %838, %cst_371 {dimension_numbers = #tpu.dot_dimension_numbers<[1], [0], [0], [1], [0, 0, 1, 1], [], []>} : vector<32x2xf32>, vector<2x128xf32>, vector<32x128xf32> -> vector<32x128xf32>
    %844 = arith.addf %843, %839 : vector<32x128xf32>
    %cst_372 = arith.constant dense<0.000000e+00> : vector<1x128xf32>
    %845 = tpu.matmul %842, %838, %cst_372 {dimension_numbers = #tpu.dot_dimension_numbers<[1], [0], [0], [1], [0, 0, 1, 1], [], []>} : vector<1x2xf32>, vector<2x128xf32>, vector<1x128xf32> -> vector<1x128xf32>
    %846 = arith.addf %845, %840 : vector<1x128xf32>
    %cst_373 = arith.constant 0.000000e+00 : f32
    %847 = vector.broadcast %cst_373 : f32 to vector<32x32xf32>
    %cst_374 = arith.constant dense<0.000000e+00> : vector<32x128xf32>
    %848 = tpu.matmul %837, %839, %cst_374 {dimension_numbers = #tpu.dot_dimension_numbers<[1], [0], [0], [1], [0, 0, 1, 1], [], []>} : vector<32x32xf32>, vector<32x128xf32>, vector<32x128xf32> -> vector<32x128xf32>
    %849 = vector.broadcast %840 : vector<1x128xf32> to vector<32x128xf32>
    %850 = arith.addf %848, %849 : vector<32x128xf32>
    %851 = vector.extract_strided_slice %850 {offsets = [0, 0], sizes = [32, 32], strides = [1, 1]} : vector<32x128xf32> to vector<32x32xf32>
    %852 = arith.negf %851 : vector<32x32xf32>
    %853 = math.exp %852 : vector<32x32xf32>
    %cst_375 = arith.constant 1.000000e+00 : f32
    %854 = vector.broadcast %cst_375 : f32 to vector<32x32xf32>
    %855 = arith.addf %854, %853 : vector<32x32xf32>
    %856 = arith.divf %854, %855 : vector<32x32xf32>
    %857 = vector.extract_strided_slice %850 {offsets = [0, 32], sizes = [32, 32], strides = [1, 1]} : vector<32x128xf32> to vector<32x32xf32>
    %858 = arith.negf %857 : vector<32x32xf32>
    %859 = math.exp %858 : vector<32x32xf32>
    %cst_376 = arith.constant 1.000000e+00 : f32
    %860 = vector.broadcast %cst_376 : f32 to vector<32x32xf32>
    %861 = arith.addf %860, %859 : vector<32x32xf32>
    %862 = arith.divf %860, %861 : vector<32x32xf32>
    %863 = vector.extract_strided_slice %850 {offsets = [0, 64], sizes = [32, 32], strides = [1, 1]} : vector<32x128xf32> to vector<32x32xf32>
    %864 = math.tanh %863 : vector<32x32xf32>
    %865 = vector.extract_strided_slice %850 {offsets = [0, 96], sizes = [32, 32], strides = [1, 1]} : vector<32x128xf32> to vector<32x32xf32>
    %866 = arith.negf %865 : vector<32x32xf32>
    %867 = math.exp %866 : vector<32x32xf32>
    %cst_377 = arith.constant 1.000000e+00 : f32
    %868 = vector.broadcast %cst_377 : f32 to vector<32x32xf32>
    %869 = arith.addf %868, %867 : vector<32x32xf32>
    %870 = arith.divf %868, %869 : vector<32x32xf32>
    %871 = arith.mulf %862, %847 : vector<32x32xf32>
    %872 = arith.mulf %856, %864 : vector<32x32xf32>
    %873 = arith.addf %871, %872 : vector<32x32xf32>
    %874 = math.tanh %873 : vector<32x32xf32>
    %875 = arith.mulf %870, %874 : vector<32x32xf32>
    %cst_378 = arith.constant dense<0.000000e+00> : vector<32x2xf32>
    %876 = tpu.matmul %875, %841, %cst_378 {dimension_numbers = #tpu.dot_dimension_numbers<[1], [0], [0], [1], [0, 0, 1, 1], [], []>} : vector<32x32xf32>, vector<32x2xf32>, vector<32x2xf32> -> vector<32x2xf32>
    %877 = vector.broadcast %842 : vector<1x2xf32> to vector<32x2xf32>
    %878 = arith.addf %876, %877 : vector<32x2xf32>
    %c0_379 = arith.constant 0 : index
    %c0_380 = arith.constant 0 : index
    %879 = vector.load %arg7[%c0_379, %c0_380] : memref<32x8xf32, #tpu.memory_space<vmem>>, vector<32x2xf32>
    tpu.vector_store %arg7[%c0_379, %c0_380], %878 {strides = array<i32>} : memref<32x8xf32, #tpu.memory_space<vmem>>, vector<32x2xf32>,
    %cst_381 = arith.constant dense<0.000000e+00> : vector<32x128xf32>
    %880 = tpu.matmul %875, %844, %cst_381 {dimension_numbers = #tpu.dot_dimension_numbers<[1], [0], [0], [1], [0, 0, 1, 1], [], []>} : vector<32x32xf32>, vector<32x128xf32>, vector<32x128xf32> -> vector<32x128xf32>
    %881 = vector.broadcast %846 : vector<1x128xf32> to vector<32x128xf32>
    %882 = arith.addf %880, %881 : vector<32x128xf32>
    %883 = vector.extract_strided_slice %882 {offsets = [0, 0], sizes = [32, 32], strides = [1, 1]} : vector<32x128xf32> to vector<32x32xf32>
    %884 = arith.negf %883 : vector<32x32xf32>
    %885 = math.exp %884 : vector<32x32xf32>
    %cst_382 = arith.constant 1.000000e+00 : f32
    %886 = vector.broadcast %cst_382 : f32 to vector<32x32xf32>
    %887 = arith.addf %886, %885 : vector<32x32xf32>
    %888 = arith.divf %886, %887 : vector<32x32xf32>
    %889 = vector.extract_strided_slice %882 {offsets = [0, 32], sizes = [32, 32], strides = [1, 1]} : vector<32x128xf32> to vector<32x32xf32>
    %890 = arith.negf %889 : vector<32x32xf32>
    %891 = math.exp %890 : vector<32x32xf32>
    %cst_383 = arith.constant 1.000000e+00 : f32
    %892 = vector.broadcast %cst_383 : f32 to vector<32x32xf32>
    %893 = arith.addf %892, %891 : vector<32x32xf32>
    %894 = arith.divf %892, %893 : vector<32x32xf32>
    %895 = vector.extract_strided_slice %882 {offsets = [0, 64], sizes = [32, 32], strides = [1, 1]} : vector<32x128xf32> to vector<32x32xf32>
    %896 = math.tanh %895 : vector<32x32xf32>
    %897 = vector.extract_strided_slice %882 {offsets = [0, 96], sizes = [32, 32], strides = [1, 1]} : vector<32x128xf32> to vector<32x32xf32>
    %898 = arith.negf %897 : vector<32x32xf32>
    %899 = math.exp %898 : vector<32x32xf32>
    %cst_384 = arith.constant 1.000000e+00 : f32
    %900 = vector.broadcast %cst_384 : f32 to vector<32x32xf32>
    %901 = arith.addf %900, %899 : vector<32x32xf32>
    %902 = arith.divf %900, %901 : vector<32x32xf32>
    %903 = arith.mulf %894, %873 : vector<32x32xf32>
    %904 = arith.mulf %888, %896 : vector<32x32xf32>
    %905 = arith.addf %903, %904 : vector<32x32xf32>
    %906 = math.tanh %905 : vector<32x32xf32>
    %907 = arith.mulf %902, %906 : vector<32x32xf32>
    %cst_385 = arith.constant dense<0.000000e+00> : vector<32x2xf32>
    %908 = tpu.matmul %907, %841, %cst_385 {dimension_numbers = #tpu.dot_dimension_numbers<[1], [0], [0], [1], [0, 0, 1, 1], [], []>} : vector<32x32xf32>, vector<32x2xf32>, vector<32x2xf32> -> vector<32x2xf32>
    %909 = vector.broadcast %842 : vector<1x2xf32> to vector<32x2xf32>
    %910 = arith.addf %908, %909 : vector<32x2xf32>
    %c0_386 = arith.constant 0 : index
    %c2 = arith.constant 2 : index
    %911 = vector.load %arg7[%c0_386, %c2] : memref<32x8xf32, #tpu.memory_space<vmem>>, vector<32x2xf32>
    tpu.vector_store %arg7[%c0_386, %c2], %910 {strides = array<i32>} : memref<32x8xf32, #tpu.memory_space<vmem>>, vector<32x2xf32>,
    %cst_387 = arith.constant dense<0.000000e+00> : vector<32x128xf32>
    %912 = tpu.matmul %907, %844, %cst_387 {dimension_numbers = #tpu.dot_dimension_numbers<[1], [0], [0], [1], [0, 0, 1, 1], [], []>} : vector<32x32xf32>, vector<32x128xf32>, vector<32x128xf32> -> vector<32x128xf32>
    %913 = vector.broadcast %846 : vector<1x128xf32> to vector<32x128xf32>
    %914 = arith.addf %912, %913 : vector<32x128xf32>
    %915 = vector.extract_strided_slice %914 {offsets = [0, 0], sizes = [32, 32], strides = [1, 1]} : vector<32x128xf32> to vector<32x32xf32>
    %916 = arith.negf %915 : vector<32x32xf32>
    %917 = math.exp %916 : vector<32x32xf32>
    %cst_388 = arith.constant 1.000000e+00 : f32
    %918 = vector.broadcast %cst_388 : f32 to vector<32x32xf32>
    %919 = arith.addf %918, %917 : vector<32x32xf32>
    %920 = arith.divf %918, %919 : vector<32x32xf32>
    %921 = vector.extract_strided_slice %914 {offsets = [0, 32], sizes = [32, 32], strides = [1, 1]} : vector<32x128xf32> to vector<32x32xf32>
    %922 = arith.negf %921 : vector<32x32xf32>
    %923 = math.exp %922 : vector<32x32xf32>
    %cst_389 = arith.constant 1.000000e+00 : f32
    %924 = vector.broadcast %cst_389 : f32 to vector<32x32xf32>
    %925 = arith.addf %924, %923 : vector<32x32xf32>
    %926 = arith.divf %924, %925 : vector<32x32xf32>
    %927 = vector.extract_strided_slice %914 {offsets = [0, 64], sizes = [32, 32], strides = [1, 1]} : vector<32x128xf32> to vector<32x32xf32>
    %928 = math.tanh %927 : vector<32x32xf32>
    %929 = vector.extract_strided_slice %914 {offsets = [0, 96], sizes = [32, 32], strides = [1, 1]} : vector<32x128xf32> to vector<32x32xf32>
    %930 = arith.negf %929 : vector<32x32xf32>
    %931 = math.exp %930 : vector<32x32xf32>
    %cst_390 = arith.constant 1.000000e+00 : f32
    %932 = vector.broadcast %cst_390 : f32 to vector<32x32xf32>
    %933 = arith.addf %932, %931 : vector<32x32xf32>
    %934 = arith.divf %932, %933 : vector<32x32xf32>
    %935 = arith.mulf %926, %905 : vector<32x32xf32>
    %936 = arith.mulf %920, %928 : vector<32x32xf32>
    %937 = arith.addf %935, %936 : vector<32x32xf32>
    %938 = math.tanh %937 : vector<32x32xf32>
    %939 = arith.mulf %934, %938 : vector<32x32xf32>
    %cst_391 = arith.constant dense<0.000000e+00> : vector<32x2xf32>
    %940 = tpu.matmul %939, %841, %cst_391 {dimension_numbers = #tpu.dot_dimension_numbers<[1], [0], [0], [1], [0, 0, 1, 1], [], []>} : vector<32x32xf32>, vector<32x2xf32>, vector<32x2xf32> -> vector<32x2xf32>
    %941 = vector.broadcast %842 : vector<1x2xf32> to vector<32x2xf32>
    %942 = arith.addf %940, %941 : vector<32x2xf32>
    %c0_392 = arith.constant 0 : index
    %c4 = arith.constant 4 : index
    %943 = vector.load %arg7[%c0_392, %c4] : memref<32x8xf32, #tpu.memory_space<vmem>>, vector<32x2xf32>
    tpu.vector_store %arg7[%c0_392, %c4], %942 {strides = array<i32>} : memref<32x8xf32, #tpu.memory_space<vmem>>, vector<32x2xf32>,
    %cst_393 = arith.constant dense<0.000000e+00> : vector<32x128xf32>
    %944 = tpu.matmul %939, %844, %cst_393 {dimension_numbers = #tpu.dot_dimension_numbers<[1], [0], [0], [1], [0, 0, 1, 1], [], []>} : vector<32x32xf32>, vector<32x128xf32>, vector<32x128xf32> -> vector<32x128xf32>
    %945 = vector.broadcast %846 : vector<1x128xf32> to vector<32x128xf32>
    %946 = arith.addf %944, %945 : vector<32x128xf32>
    %947 = vector.extract_strided_slice %946 {offsets = [0, 0], sizes = [32, 32], strides = [1, 1]} : vector<32x128xf32> to vector<32x32xf32>
    %948 = arith.negf %947 : vector<32x32xf32>
    %949 = math.exp %948 : vector<32x32xf32>
    %cst_394 = arith.constant 1.000000e+00 : f32
    %950 = vector.broadcast %cst_394 : f32 to vector<32x32xf32>
    %951 = arith.addf %950, %949 : vector<32x32xf32>
    %952 = arith.divf %950, %951 : vector<32x32xf32>
    %953 = vector.extract_strided_slice %946 {offsets = [0, 32], sizes = [32, 32], strides = [1, 1]} : vector<32x128xf32> to vector<32x32xf32>
    %954 = arith.negf %953 : vector<32x32xf32>
    %955 = math.exp %954 : vector<32x32xf32>
    %cst_395 = arith.constant 1.000000e+00 : f32
    %956 = vector.broadcast %cst_395 : f32 to vector<32x32xf32>
    %957 = arith.addf %956, %955 : vector<32x32xf32>
    %958 = arith.divf %956, %957 : vector<32x32xf32>
    %959 = vector.extract_strided_slice %946 {offsets = [0, 64], sizes = [32, 32], strides = [1, 1]} : vector<32x128xf32> to vector<32x32xf32>
    %960 = math.tanh %959 : vector<32x32xf32>
    %961 = vector.extract_strided_slice %946 {offsets = [0, 96], sizes = [32, 32], strides = [1, 1]} : vector<32x128xf32> to vector<32x32xf32>
    %962 = arith.negf %961 : vector<32x32xf32>
    %963 = math.exp %962 : vector<32x32xf32>
    %cst_396 = arith.constant 1.000000e+00 : f32
    %964 = vector.broadcast %cst_396 : f32 to vector<32x32xf32>
    %965 = arith.addf %964, %963 : vector<32x32xf32>
    %966 = arith.divf %964, %965 : vector<32x32xf32>
    %967 = arith.mulf %958, %937 : vector<32x32xf32>
    %968 = arith.mulf %952, %960 : vector<32x32xf32>
    %969 = arith.addf %967, %968 : vector<32x32xf32>
    %970 = math.tanh %969 : vector<32x32xf32>
    %971 = arith.mulf %966, %970 : vector<32x32xf32>
    %cst_397 = arith.constant dense<0.000000e+00> : vector<32x2xf32>
    %972 = tpu.matmul %971, %841, %cst_397 {dimension_numbers = #tpu.dot_dimension_numbers<[1], [0], [0], [1], [0, 0, 1, 1], [], []>} : vector<32x32xf32>, vector<32x2xf32>, vector<32x2xf32> -> vector<32x2xf32>
    %973 = vector.broadcast %842 : vector<1x2xf32> to vector<32x2xf32>
    %974 = arith.addf %972, %973 : vector<32x2xf32>
    %c0_398 = arith.constant 0 : index
    %c6 = arith.constant 6 : index
    %975 = vector.load %arg7[%c0_398, %c6] : memref<32x8xf32, #tpu.memory_space<vmem>>, vector<32x2xf32>
    tpu.vector_store %arg7[%c0_398, %c6], %974 {strides = array<i32>} : memref<32x8xf32, #tpu.memory_space<vmem>>, vector<32x2xf32>,
    return
  }
}

</mosaic_0001>

<llo_original>
// kernel: tpu_custom_call.1
$region0: #{tpu_custom_call.1}
  #allocation0 [shape = 'u32[]', space=smem, size = 0x4, offset = 0x4, fixed_abs, tag = 'smem constant byte address 0x4 - core index']
  #allocation1 [shape = 'u32[72,128]{1,0:T(1,128)}', space=vmem, size = 0x9000, scoped, tag = 'internal scratch']
  #allocation2 [shape = 'f32[256,32]{1,0:T(8,128)}', space=vmem, size = 0x20000, scoped, tag = 'scratch operand']
  #allocation3 [shape = 'f32[256,1]{1,0:T(8,128)}', space=vmem, size = 0x20000, scoped, tag = 'scratch operand']
  #allocation4 [shape = 'f32[256,32]{1,0:T(8,128)}', space=vmem, size = 0x20000, scoped, tag = 'scratch operand']
  #allocation5 [shape = 'f32[256,128]{1,0:T(8,128)}', space=vmem, size = 0x20000, scoped, tag = 'scratch operand']
  %s0 = inlined_call_operand.vmem [shape: f32[256,4], index: 0, kind: input, shape index: {}]
  %s1 = inlined_call_operand.vmem [shape: f32[2,16,16], index: 1, kind: input, shape index: {}]
  %s2 = inlined_call_operand.vmem [shape: f32[4,32], index: 2, kind: input, shape index: {}]
  %s3 = inlined_call_operand.vmem [shape: f32[2,32], index: 3, kind: input, shape index: {}]
  %s4 = inlined_call_operand.vmem [shape: f32[120,128], index: 4, kind: input, shape index: {}]
  %s5 = inlined_call_operand.vmem [shape: f32[32,2], index: 5, kind: input, shape index: {}]
  %s6 = inlined_call_operand.vmem [shape: f32[1,2], index: 6, kind: input, shape index: {}]
  %s7 = inlined_call_operand.vmem [shape: f32[32,8], index: 7, kind: output, shape index: {}]
  %s8 = sld [smem:[#allocation0]]
  $region38: #{tpu_custom_call.1} parent=0
    _
  %s10 = ssub.s32 1, %s8
  %s11 = scalar_select 0, %s10, %s8
  // Predicated region
  $region2: #{tpu_custom_call.1} parent=0 // pred_check
    _
  $region3: #{tpu_custom_call.1} parent=0 // pred_check_branch
    %13 = sbr.rel (0) target = $region5
  $region4: #{tpu_custom_call.1} parent=0 // pred_region
    _
  $region5: #{tpu_custom_call.1} parent=0 // pred_fallthru
    _
  // Predicated region
  $region6: #{tpu_custom_call.1} parent=0 // pred_check
    _
  $region7: #{tpu_custom_call.1} parent=0 // pred_check_branch
    %15 = sbr.rel (0) target = $region9
  $region8: #{tpu_custom_call.1} parent=0 // pred_region
    _
  $region9: #{tpu_custom_call.1} parent=0 // pred_fallthru
    _
  // Predicated region
  $region10: #{tpu_custom_call.1} parent=0 // pred_check
    _
  $region11: #{tpu_custom_call.1} parent=0 // pred_check_branch
    %17 = sbr.rel (0) target = $region13
  $region12: #{tpu_custom_call.1} parent=0 // pred_region
    _
  $region13: #{tpu_custom_call.1} parent=0 // pred_fallthru
    _
  // Predicated region
  $region14: #{tpu_custom_call.1} parent=0 // pred_check
    _
  $region15: #{tpu_custom_call.1} parent=0 // pred_check_branch
    %19 = sbr.rel (0) target = $region17
  $region16: #{tpu_custom_call.1} parent=0 // pred_region
    _
  $region17: #{tpu_custom_call.1} parent=0 // pred_fallthru
    _
  // Predicated region
  $region18: #{tpu_custom_call.1} parent=0 // pred_check
    _
  $region19: #{tpu_custom_call.1} parent=0 // pred_check_branch
    %21 = sbr.rel (0) target = $region21
  $region20: #{tpu_custom_call.1} parent=0 // pred_region
    _
  $region21: #{tpu_custom_call.1} parent=0 // pred_fallthru
    _
  // Predicated region
  $region22: #{tpu_custom_call.1} parent=0 // pred_check
    _
  $region23: #{tpu_custom_call.1} parent=0 // pred_check_branch
    %23 = sbr.rel (0) target = $region25
  $region24: #{tpu_custom_call.1} parent=0 // pred_region
    _
  $region25: #{tpu_custom_call.1} parent=0 // pred_fallthru
    _
  // Predicated region
  $region26: #{tpu_custom_call.1} parent=0 // pred_check
    _
  $region27: #{tpu_custom_call.1} parent=0 // pred_check_branch
    %25 = sbr.rel (0) target = $region29
  $region28: #{tpu_custom_call.1} parent=0 // pred_region
    _
  $region29: #{tpu_custom_call.1} parent=0 // pred_fallthru
    _
  %v26 = vld [vmem:[%s3] sm:$0x1]
  %v27 = vld [vmem:[%s3 + $0x1] sm:$0x1]
  %v28 = vld [vmem:[%s0] sm:$0xff]
  %v29 = vld [vmem:[%s0 + $0x8] sm:$0xff]
  %v30 = vld [vmem:[%s0 + $0x10] sm:$0xff]
  %v31 = vld [vmem:[%s0 + $0x18] sm:$0xff]
  %v32 = vld [vmem:[%s0 + $0x20] sm:$0xff]
  %v33 = vld [vmem:[%s0 + $0x28] sm:$0xff]
  %v34 = vld [vmem:[%s0 + $0x30] sm:$0xff]
  %v35 = vld [vmem:[%s0 + $0x38] sm:$0xff]
  %v36 = vld [vmem:[%s0 + $0x40] sm:$0xff]
  %v37 = vld [vmem:[%s0 + $0x48] sm:$0xff]
  %v38 = vld [vmem:[%s0 + $0x50] sm:$0xff]
  %v39 = vld [vmem:[%s0 + $0x58] sm:$0xff]
  %v40 = vld [vmem:[%s0 + $0x60] sm:$0xff]
  %v41 = vld [vmem:[%s0 + $0x68] sm:$0xff]
  %v42 = vld [vmem:[%s0 + $0x70] sm:$0xff]
  %v43 = vld [vmem:[%s0 + $0x78] sm:$0xff]
  %v44 = vld [vmem:[%s0 + $0x80] sm:$0xff]
  %v45 = vld [vmem:[%s0 + $0x88] sm:$0xff]
  %v46 = vld [vmem:[%s0 + $0x90] sm:$0xff]
  %v47 = vld [vmem:[%s0 + $0x98] sm:$0xff]
  %v48 = vld [vmem:[%s0 + $0xa0] sm:$0xff]
  %v49 = vld [vmem:[%s0 + $0xa8] sm:$0xff]
  %v50 = vld [vmem:[%s0 + $0xb0] sm:$0xff]
  %v51 = vld [vmem:[%s0 + $0xb8] sm:$0xff]
  %v52 = vld [vmem:[%s0 + $0xc0] sm:$0xff]
  %v53 = vld [vmem:[%s0 + $0xc8] sm:$0xff]
  %v54 = vld [vmem:[%s0 + $0xd0] sm:$0xff]
  %v55 = vld [vmem:[%s0 + $0xd8] sm:$0xff]
  %v56 = vld [vmem:[%s0 + $0xe0] sm:$0xff]
  %v57 = vld [vmem:[%s0 + $0xe8] sm:$0xff]
  %v58 = vld [vmem:[%s0 + $0xf0] sm:$0xff]
  %v59 = vld [vmem:[%s0 + $0xf8] sm:$0xff]
  %v60 = vld [vmem:[%s2] sm:$0xf]
  %vm61 = vcmask 31744
  %v63 = vsel %vm61, %v28, 0
  %v66 = vsel %vm61, %v29, 0
  %v69 = vsel %vm61, %v30, 0
  %v72 = vsel %vm61, %v31, 0
  %v75 = vsel %vm61, %v32, 0
  %v78 = vsel %vm61, %v33, 0
  %v81 = vsel %vm61, %v34, 0
  %v84 = vsel %vm61, %v35, 0
  %v87 = vsel %vm61, %v36, 0
  %v90 = vsel %vm61, %v37, 0
  %v93 = vsel %vm61, %v38, 0
  %v96 = vsel %vm61, %v39, 0
  %v99 = vsel %vm61, %v40, 0
  %v102 = vsel %vm61, %v41, 0
  %v105 = vsel %vm61, %v42, 0
  %v108 = vsel %vm61, %v43, 0
  %v111 = vsel %vm61, %v44, 0
  %v114 = vsel %vm61, %v45, 0
  %v117 = vsel %vm61, %v46, 0
  %v120 = vsel %vm61, %v47, 0
  %v123 = vsel %vm61, %v48, 0
  %v126 = vsel %vm61, %v49, 0
  %v129 = vsel %vm61, %v50, 0
  %v132 = vsel %vm61, %v51, 0
  %v135 = vsel %vm61, %v52, 0
  %v138 = vsel %vm61, %v53, 0
  %v141 = vsel %vm61, %v54, 0
  %v144 = vsel %vm61, %v55, 0
  %v147 = vsel %vm61, %v56, 0
  %v150 = vsel %vm61, %v57, 0
  %v153 = vsel %vm61, %v58, 0
  %v156 = vsel %vm61, %v59, 0
  %vm158 = vcmask 1043456
  %v160 = vsel %vm158, %v60, 0
  %162 = vmatpush.msra.mxu0 0.0
  %163 = vmatpush.msra.mxu0 0.0
  %164 = vmatpush.msra.mxu0 0.0
  %165 = vmatpush.msra.mxu0 0.0
  %166 = vmatpush.msra.mxu0 0.0
  %167 = vmatpush.msra.mxu0 0.0
  %168 = vmatpush.msra.mxu0 0.0
  %169 = vmatpush.msra.mxu0 0.0
  %170 = vmatpush.msra.mxu0 0.0
  %171 = vmatpush.msra.mxu0 0.0
  %172 = vmatpush.msra.mxu0 0.0
  %173 = vmatpush.msra.mxu0 0.0
  %174 = vmatpush.msra.mxu0 0.0
  %175 = vmatpush.msra.mxu0 0.0
  %176 = vmatpush.msra.mxu0 0.0
  %177 = vmatpush.msra.mxu0 %v160
  %178 = vmatmul.f32.gmra.mxu0 %v63
  %v179 = vpop.f32.mrf.mxu0
  %v180 = vadd.f32 0.0, %v179
  %181 = vmatmul.f32.gmra.mxu0 %v66
  %v182 = vpop.f32.mrf.mxu0
  %v183 = vadd.f32 0.0, %v182
  %184 = vmatmul.f32.gmra.mxu0 %v69
  %v185 = vpop.f32.mrf.mxu0
  %v186 = vadd.f32 0.0, %v185
  %187 = vmatmul.f32.gmra.mxu0 %v72
  %v188 = vpop.f32.mrf.mxu0
  %v189 = vadd.f32 0.0, %v188
  %190 = vmatmul.f32.gmra.mxu0 %v75
  %v191 = vpop.f32.mrf.mxu0
  %v192 = vadd.f32 0.0, %v191
  %193 = vmatmul.f32.gmra.mxu0 %v78
  %v194 = vpop.f32.mrf.mxu0
  %v195 = vadd.f32 0.0, %v194
  %196 = vmatmul.f32.gmra.mxu0 %v81
  %v197 = vpop.f32.mrf.mxu0
  %v198 = vadd.f32 0.0, %v197
  %199 = vmatmul.f32.gmra.mxu0 %v84
  %v200 = vpop.f32.mrf.mxu0
  %v201 = vadd.f32 0.0, %v200
  %202 = vmatmul.f32.gmra.mxu0 %v87
  %v203 = vpop.f32.mrf.mxu0
  %v204 = vadd.f32 0.0, %v203
  %205 = vmatmul.f32.gmra.mxu0 %v90
  %v206 = vpop.f32.mrf.mxu0
  %v207 = vadd.f32 0.0, %v206
  %208 = vmatmul.f32.gmra.mxu0 %v93
  %v209 = vpop.f32.mrf.mxu0
  %v210 = vadd.f32 0.0, %v209
  %211 = vmatmul.f32.gmra.mxu0 %v96
  %v212 = vpop.f32.mrf.mxu0
  %v213 = vadd.f32 0.0, %v212
  %214 = vmatmul.f32.gmra.mxu0 %v99
  %v215 = vpop.f32.mrf.mxu0
  %v216 = vadd.f32 0.0, %v215
  %217 = vmatmul.f32.gmra.mxu0 %v102
  %v218 = vpop.f32.mrf.mxu0
  %v219 = vadd.f32 0.0, %v218
  %220 = vmatmul.f32.gmra.mxu0 %v105
  %v221 = vpop.f32.mrf.mxu0
  %v222 = vadd.f32 0.0, %v221
  %223 = vmatmul.f32.gmra.mxu0 %v108
  %v224 = vpop.f32.mrf.mxu0
  %v225 = vadd.f32 0.0, %v224
  %226 = vmatmul.f32.gmra.mxu0 %v111
  %v227 = vpop.f32.mrf.mxu0
  %v228 = vadd.f32 0.0, %v227
  %229 = vmatmul.f32.gmra.mxu0 %v114
  %v230 = vpop.f32.mrf.mxu0
  %v231 = vadd.f32 0.0, %v230
  %232 = vmatmul.f32.gmra.mxu0 %v117
  %v233 = vpop.f32.mrf.mxu0
  %v234 = vadd.f32 0.0, %v233
  %235 = vmatmul.f32.gmra.mxu0 %v120
  %v236 = vpop.f32.mrf.mxu0
  %v237 = vadd.f32 0.0, %v236
  %238 = vmatmul.f32.gmra.mxu0 %v123
  %v239 = vpop.f32.mrf.mxu0
  %v240 = vadd.f32 0.0, %v239
  %241 = vmatmul.f32.gmra.mxu0 %v126
  %v242 = vpop.f32.mrf.mxu0
  %v243 = vadd.f32 0.0, %v242
  %244 = vmatmul.f32.gmra.mxu0 %v129
  %v245 = vpop.f32.mrf.mxu0
  %v246 = vadd.f32 0.0, %v245
  %247 = vmatmul.f32.gmra.mxu0 %v132
  %v248 = vpop.f32.mrf.mxu0
  %v249 = vadd.f32 0.0, %v248
  %250 = vmatmul.f32.gmra.mxu0 %v135
  %v251 = vpop.f32.mrf.mxu0
  %v252 = vadd.f32 0.0, %v251
  %253 = vmatmul.f32.gmra.mxu0 %v138
  %v254 = vpop.f32.mrf.mxu0
  %v255 = vadd.f32 0.0, %v254
  %256 = vmatmul.f32.gmra.mxu0 %v141
  %v257 = vpop.f32.mrf.mxu0
  %v258 = vadd.f32 0.0, %v257
  %259 = vmatmul.f32.gmra.mxu0 %v144
  %v260 = vpop.f32.mrf.mxu0
  %v261 = vadd.f32 0.0, %v260
  %262 = vmatmul.f32.gmra.mxu0 %v147
  %v263 = vpop.f32.mrf.mxu0
  %v264 = vadd.f32 0.0, %v263
  %265 = vmatmul.f32.gmra.mxu0 %v150
  %v266 = vpop.f32.mrf.mxu0
  %v267 = vadd.f32 0.0, %v266
  %268 = vmatmul.f32.gmra.mxu0 %v153
  %v269 = vpop.f32.mrf.mxu0
  %v270 = vadd.f32 0.0, %v269
  %271 = vmatmul.f32.gmra.mxu0 %v156
  %v272 = vpop.f32.mrf.mxu0
  %v273 = vadd.f32 0.0, %v272
  %274 = vdwg.mxu0
  %vm275 = vcmask 261120
  %276 = vst.msk [vmem:[#allocation2] sm:$0xff] %vm275, %v180
  %277 = vst.msk [vmem:[#allocation2 + $0x8] sm:$0xff] %vm275, %v183
  %278 = vst.msk [vmem:[#allocation2 + $0x10] sm:$0xff] %vm275, %v186
  %279 = vst.msk [vmem:[#allocation2 + $0x18] sm:$0xff] %vm275, %v189
  %280 = vst.msk [vmem:[#allocation2 + $0x20] sm:$0xff] %vm275, %v192
  %281 = vst.msk [vmem:[#allocation2 + $0x28] sm:$0xff] %vm275, %v195
  %282 = vst.msk [vmem:[#allocation2 + $0x30] sm:$0xff] %vm275, %v198
  %283 = vst.msk [vmem:[#allocation2 + $0x38] sm:$0xff] %vm275, %v201
  %284 = vst.msk [vmem:[#allocation2 + $0x40] sm:$0xff] %vm275, %v204
  %285 = vst.msk [vmem:[#allocation2 + $0x48] sm:$0xff] %vm275, %v207
  %286 = vst.msk [vmem:[#allocation2 + $0x50] sm:$0xff] %vm275, %v210
  %287 = vst.msk [vmem:[#allocation2 + $0x58] sm:$0xff] %vm275, %v213
  %288 = vst.msk [vmem:[#allocation2 + $0x60] sm:$0xff] %vm275, %v216
  %289 = vst.msk [vmem:[#allocation2 + $0x68] sm:$0xff] %vm275, %v219
  %290 = vst.msk [vmem:[#allocation2 + $0x70] sm:$0xff] %vm275, %v222
  %291 = vst.msk [vmem:[#allocation2 + $0x78] sm:$0xff] %vm275, %v225
  %292 = vst.msk [vmem:[#allocation2 + $0x80] sm:$0xff] %vm275, %v228
  %293 = vst.msk [vmem:[#allocation2 + $0x88] sm:$0xff] %vm275, %v231
  %294 = vst.msk [vmem:[#allocation2 + $0x90] sm:$0xff] %vm275, %v234
  %295 = vst.msk [vmem:[#allocation2 + $0x98] sm:$0xff] %vm275, %v237
  %296 = vst.msk [vmem:[#allocation2 + $0xa0] sm:$0xff] %vm275, %v240
  %297 = vst.msk [vmem:[#allocation2 + $0xa8] sm:$0xff] %vm275, %v243
  %298 = vst.msk [vmem:[#allocation2 + $0xb0] sm:$0xff] %vm275, %v246
  %299 = vst.msk [vmem:[#allocation2 + $0xb8] sm:$0xff] %vm275, %v249
  %300 = vst.msk [vmem:[#allocation2 + $0xc0] sm:$0xff] %vm275, %v252
  %301 = vst.msk [vmem:[#allocation2 + $0xc8] sm:$0xff] %vm275, %v255
  %302 = vst.msk [vmem:[#allocation2 + $0xd0] sm:$0xff] %vm275, %v258
  %303 = vst.msk [vmem:[#allocation2 + $0xd8] sm:$0xff] %vm275, %v261
  %304 = vst.msk [vmem:[#allocation2 + $0xe0] sm:$0xff] %vm275, %v264
  %305 = vst.msk [vmem:[#allocation2 + $0xe8] sm:$0xff] %vm275, %v267
  %306 = vst.msk [vmem:[#allocation2 + $0xf0] sm:$0xff] %vm275, %v270
  %307 = vst.msk [vmem:[#allocation2 + $0xf8] sm:$0xff] %vm275, %v273
  %v308 = vperm.slane %v26, 0
  %v309 = vmul.f32 %v180, %v308
  %v310 = vmul.f32 %v183, %v308
  %v311 = vmul.f32 %v186, %v308
  %v312 = vmul.f32 %v189, %v308
  %v313 = vmul.f32 %v192, %v308
  %v314 = vmul.f32 %v195, %v308
  %v315 = vmul.f32 %v198, %v308
  %v316 = vmul.f32 %v201, %v308
  %v317 = vmul.f32 %v204, %v308
  %v318 = vmul.f32 %v207, %v308
  %v319 = vmul.f32 %v210, %v308
  %v320 = vmul.f32 %v213, %v308
  %v321 = vmul.f32 %v216, %v308
  %v322 = vmul.f32 %v219, %v308
  %v323 = vmul.f32 %v222, %v308
  %v324 = vmul.f32 %v225, %v308
  %v325 = vmul.f32 %v228, %v308
  %v326 = vmul.f32 %v231, %v308
  %v327 = vmul.f32 %v234, %v308
  %v328 = vmul.f32 %v237, %v308
  %v329 = vmul.f32 %v240, %v308
  %v330 = vmul.f32 %v243, %v308
  %v331 = vmul.f32 %v246, %v308
  %v332 = vmul.f32 %v249, %v308
  %v333 = vmul.f32 %v252, %v308
  %v334 = vmul.f32 %v255, %v308
  %v335 = vmul.f32 %v258, %v308
  %v336 = vmul.f32 %v261, %v308
  %v337 = vmul.f32 %v264, %v308
  %v338 = vmul.f32 %v267, %v308
  %v339 = vmul.f32 %v270, %v308
  %v340 = vmul.f32 %v273, %v308
  %v341 = vsel %vm275, %v309, 0.0
  %342 = vadd.xlane.f32.xlu0 %v341
  %v343 = vpop.xlane.xlu0 %342
  %v344 = vsel %vm275, %v310, 0.0
  %345 = vadd.xlane.f32.xlu0 %v344
  %v346 = vpop.xlane.xlu0 %345
  %v347 = vsel %vm275, %v311, 0.0
  %348 = vadd.xlane.f32.xlu0 %v347
  %v349 = vpop.xlane.xlu0 %348
  %v350 = vsel %vm275, %v312, 0.0
  %351 = vadd.xlane.f32.xlu0 %v350
  %v352 = vpop.xlane.xlu0 %351
  %v353 = vsel %vm275, %v313, 0.0
  %354 = vadd.xlane.f32.xlu0 %v353
  %v355 = vpop.xlane.xlu0 %354
  %v356 = vsel %vm275, %v314, 0.0
  %357 = vadd.xlane.f32.xlu0 %v356
  %v358 = vpop.xlane.xlu0 %357
  %v359 = vsel %vm275, %v315, 0.0
  %360 = vadd.xlane.f32.xlu0 %v359
  %v361 = vpop.xlane.xlu0 %360
  %v362 = vsel %vm275, %v316, 0.0
  %363 = vadd.xlane.f32.xlu0 %v362
  %v364 = vpop.xlane.xlu0 %363
  %v365 = vsel %vm275, %v317, 0.0
  %366 = vadd.xlane.f32.xlu0 %v365
  %v367 = vpop.xlane.xlu0 %366
  %v368 = vsel %vm275, %v318, 0.0
  %369 = vadd.xlane.f32.xlu0 %v368
  %v370 = vpop.xlane.xlu0 %369
  %v371 = vsel %vm275, %v319, 0.0
  %372 = vadd.xlane.f32.xlu0 %v371
  %v373 = vpop.xlane.xlu0 %372
  %v374 = vsel %vm275, %v320, 0.0
  %375 = vadd.xlane.f32.xlu0 %v374
  %v376 = vpop.xlane.xlu0 %375
  %v377 = vsel %vm275, %v321, 0.0
  %378 = vadd.xlane.f32.xlu0 %v377
  %v379 = vpop.xlane.xlu0 %378
  %v380 = vsel %vm275, %v322, 0.0
  %381 = vadd.xlane.f32.xlu0 %v380
  %v382 = vpop.xlane.xlu0 %381
  %v383 = vsel %vm275, %v323, 0.0
  %384 = vadd.xlane.f32.xlu0 %v383
  %v385 = vpop.xlane.xlu0 %384
  %v386 = vsel %vm275, %v324, 0.0
  %387 = vadd.xlane.f32.xlu0 %v386
  %v388 = vpop.xlane.xlu0 %387
  %v389 = vsel %vm275, %v325, 0.0
  %390 = vadd.xlane.f32.xlu0 %v389
  %v391 = vpop.xlane.xlu0 %390
  %v392 = vsel %vm275, %v326, 0.0
  %393 = vadd.xlane.f32.xlu0 %v392
  %v394 = vpop.xlane.xlu0 %393
  %v395 = vsel %vm275, %v327, 0.0
  %396 = vadd.xlane.f32.xlu0 %v395
  %v397 = vpop.xlane.xlu0 %396
  %v398 = vsel %vm275, %v328, 0.0
  %399 = vadd.xlane.f32.xlu0 %v398
  %v400 = vpop.xlane.xlu0 %399
  %v401 = vsel %vm275, %v329, 0.0
  %402 = vadd.xlane.f32.xlu0 %v401
  %v403 = vpop.xlane.xlu0 %402
  %v404 = vsel %vm275, %v330, 0.0
  %405 = vadd.xlane.f32.xlu0 %v404
  %v406 = vpop.xlane.xlu0 %405
  %v407 = vsel %vm275, %v331, 0.0
  %408 = vadd.xlane.f32.xlu0 %v407
  %v409 = vpop.xlane.xlu0 %408
  %v410 = vsel %vm275, %v332, 0.0
  %411 = vadd.xlane.f32.xlu0 %v410
  %v412 = vpop.xlane.xlu0 %411
  %v413 = vsel %vm275, %v333, 0.0
  %414 = vadd.xlane.f32.xlu0 %v413
  %v415 = vpop.xlane.xlu0 %414
  %v416 = vsel %vm275, %v334, 0.0
  %417 = vadd.xlane.f32.xlu0 %v416
  %v418 = vpop.xlane.xlu0 %417
  %v419 = vsel %vm275, %v335, 0.0
  %420 = vadd.xlane.f32.xlu0 %v419
  %v421 = vpop.xlane.xlu0 %420
  %v422 = vsel %vm275, %v336, 0.0
  %423 = vadd.xlane.f32.xlu0 %v422
  %v424 = vpop.xlane.xlu0 %423
  %v425 = vsel %vm275, %v337, 0.0
  %426 = vadd.xlane.f32.xlu0 %v425
  %v427 = vpop.xlane.xlu0 %426
  %v428 = vsel %vm275, %v338, 0.0
  %429 = vadd.xlane.f32.xlu0 %v428
  %v430 = vpop.xlane.xlu0 %429
  %v431 = vsel %vm275, %v339, 0.0
  %432 = vadd.xlane.f32.xlu0 %v431
  %v433 = vpop.xlane.xlu0 %432
  %v434 = vsel %vm275, %v340, 0.0
  %435 = vadd.xlane.f32.xlu0 %v434
  %v436 = vpop.xlane.xlu0 %435
  %vm437 = vcmask 7168
  %438 = vst.msk [vmem:[#allocation3] sm:$0xff] %vm437, %v343
  %439 = vst.msk [vmem:[#allocation3 + $0x8] sm:$0xff] %vm437, %v346
  %440 = vst.msk [vmem:[#allocation3 + $0x10] sm:$0xff] %vm437, %v349
  %441 = vst.msk [vmem:[#allocation3 + $0x18] sm:$0xff] %vm437, %v352
  %442 = vst.msk [vmem:[#allocation3 + $0x20] sm:$0xff] %vm437, %v355
  %443 = vst.msk [vmem:[#allocation3 + $0x28] sm:$0xff] %vm437, %v358
  %444 = vst.msk [vmem:[#allocation3 + $0x30] sm:$0xff] %vm437, %v361
  %445 = vst.msk [vmem:[#allocation3 + $0x38] sm:$0xff] %vm437, %v364
  %446 = vst.msk [vmem:[#allocation3 + $0x40] sm:$0xff] %vm437, %v367
  %447 = vst.msk [vmem:[#allocation3 + $0x48] sm:$0xff] %vm437, %v370
  %448 = vst.msk [vmem:[#allocation3 + $0x50] sm:$0xff] %vm437, %v373
  %449 = vst.msk [vmem:[#allocation3 + $0x58] sm:$0xff] %vm437, %v376
  %450 = vst.msk [vmem:[#allocation3 + $0x60] sm:$0xff] %vm437, %v379
  %451 = vst.msk [vmem:[#allocation3 + $0x68] sm:$0xff] %vm437, %v382
  %452 = vst.msk [vmem:[#allocation3 + $0x70] sm:$0xff] %vm437, %v385
  %453 = vst.msk [vmem:[#allocation3 + $0x78] sm:$0xff] %vm437, %v388
  %454 = vst.msk [vmem:[#allocation3 + $0x80] sm:$0xff] %vm437, %v391
  %455 = vst.msk [vmem:[#allocation3 + $0x88] sm:$0xff] %vm437, %v394
  %456 = vst.msk [vmem:[#allocation3 + $0x90] sm:$0xff] %vm437, %v397
  %457 = vst.msk [vmem:[#allocation3 + $0x98] sm:$0xff] %vm437, %v400
  %458 = vst.msk [vmem:[#allocation3 + $0xa0] sm:$0xff] %vm437, %v403
  %459 = vst.msk [vmem:[#allocation3 + $0xa8] sm:$0xff] %vm437, %v406
  %460 = vst.msk [vmem:[#allocation3 + $0xb0] sm:$0xff] %vm437, %v409
  %461 = vst.msk [vmem:[#allocation3 + $0xb8] sm:$0xff] %vm437, %v412
  %462 = vst.msk [vmem:[#allocation3 + $0xc0] sm:$0xff] %vm437, %v415
  %463 = vst.msk [vmem:[#allocation3 + $0xc8] sm:$0xff] %vm437, %v418
  %464 = vst.msk [vmem:[#allocation3 + $0xd0] sm:$0xff] %vm437, %v421
  %465 = vst.msk [vmem:[#allocation3 + $0xd8] sm:$0xff] %vm437, %v424
  %466 = vst.msk [vmem:[#allocation3 + $0xe0] sm:$0xff] %vm437, %v427
  %467 = vst.msk [vmem:[#allocation3 + $0xe8] sm:$0xff] %vm437, %v430
  %468 = vst.msk [vmem:[#allocation3 + $0xf0] sm:$0xff] %vm437, %v433
  %469 = vst.msk [vmem:[#allocation3 + $0xf8] sm:$0xff] %vm437, %v436
  %v471 = vsel %vm275, %v27, 0
  %v474 = vsel %vm275, %v180, 0
  %v477 = vsel %vm275, %v183, 0
  %v480 = vsel %vm275, %v186, 0
  %v483 = vsel %vm275, %v189, 0
  %v486 = vsel %vm275, %v192, 0
  %v489 = vsel %vm275, %v195, 0
  %v492 = vsel %vm275, %v198, 0
  %v495 = vsel %vm275, %v201, 0
  %v498 = vsel %vm275, %v204, 0
  %v501 = vsel %vm275, %v207, 0
  %v504 = vsel %vm275, %v210, 0
  %v507 = vsel %vm275, %v213, 0
  %v510 = vsel %vm275, %v216, 0
  %v513 = vsel %vm275, %v219, 0
  %v516 = vsel %vm275, %v222, 0
  %v519 = vsel %vm275, %v225, 0
  %v522 = vsel %vm275, %v228, 0
  %v525 = vsel %vm275, %v231, 0
  %v528 = vsel %vm275, %v234, 0
  %v531 = vsel %vm275, %v237, 0
  %v534 = vsel %vm275, %v240, 0
  %v537 = vsel %vm275, %v243, 0
  %v540 = vsel %vm275, %v246, 0
  %v543 = vsel %vm275, %v249, 0
  %v546 = vsel %vm275, %v252, 0
  %v549 = vsel %vm275, %v255, 0
  %v552 = vsel %vm275, %v258, 0
  %v555 = vsel %vm275, %v261, 0
  %v558 = vsel %vm275, %v264, 0
  %v561 = vsel %vm275, %v267, 0
  %v564 = vsel %vm275, %v270, 0
  %v567 = vsel %vm275, %v273, 0
  %569 = vmatpush.xpose.msra.mxu0 %v519
  %570 = vmatpush.xpose.msra.mxu0 %v516
  %571 = vmatpush.xpose.msra.mxu0 %v513
  %572 = vmatpush.xpose.msra.mxu0 %v510
  %573 = vmatpush.xpose.msra.mxu0 %v507
  %574 = vmatpush.xpose.msra.mxu0 %v504
  %575 = vmatpush.xpose.msra.mxu0 %v501
  %576 = vmatpush.xpose.msra.mxu0 %v498
  %577 = vmatpush.xpose.msra.mxu0 %v495
  %578 = vmatpush.xpose.msra.mxu0 %v492
  %579 = vmatpush.xpose.msra.mxu0 %v489
  %580 = vmatpush.xpose.msra.mxu0 %v486
  %581 = vmatpush.xpose.msra.mxu0 %v483
  %582 = vmatpush.xpose.msra.mxu0 %v480
  %583 = vmatpush.xpose.msra.mxu0 %v477
  %584 = vmatpush.xpose.msra.mxu0 %v474
  %585 = vmatmul.f32.gmra.mxu0 %v471
  %v586 = vpop.f32.mrf.mxu0
  %v587 = vadd.f32 0.0, %v586
  %588 = vdwg.mxu0
  %589 = vmatpush.xpose.msra.mxu0 %v567
  %590 = vmatpush.xpose.msra.mxu0 %v564
  %591 = vmatpush.xpose.msra.mxu0 %v561
  %592 = vmatpush.xpose.msra.mxu0 %v558
  %593 = vmatpush.xpose.msra.mxu0 %v555
  %594 = vmatpush.xpose.msra.mxu0 %v552
  %595 = vmatpush.xpose.msra.mxu0 %v549
  %596 = vmatpush.xpose.msra.mxu0 %v546
  %597 = vmatpush.xpose.msra.mxu0 %v543
  %598 = vmatpush.xpose.msra.mxu0 %v540
  %599 = vmatpush.xpose.msra.mxu0 %v537
  %600 = vmatpush.xpose.msra.mxu0 %v534
  %601 = vmatpush.xpose.msra.mxu0 %v531
  %602 = vmatpush.xpose.msra.mxu0 %v528
  %603 = vmatpush.xpose.msra.mxu0 %v525
  %604 = vmatpush.xpose.msra.mxu0 %v522
  %605 = vmatmul.f32.gmra.mxu0 %v471
  %v606 = vpop.f32.mrf.mxu0
  %v607 = vadd.f32 0.0, %v606
  %608 = vdwg.mxu0
  %v609 = vld [vmem:[#allocation2] sm:$0xff]
  %v610 = vld [vmem:[#allocation2 + $0x8] sm:$0xff]
  %v611 = vld [vmem:[#allocation3] sm:$0xff]
  %v612 = vld [vmem:[#allocation3 + $0x8] sm:$0xff]
  %614 = vset.pattern.permute.xlu0 0
  %615 = vperm.xlu0 %614, %v611
  %v616 = vpop.permute.xlu0 %615
  %619 = vset.pattern.permute.xlu0 0
  %620 = vperm.xlu0 %619, %v612
  %v621 = vpop.permute.xlu0 %620
  %v623 = vperm.slane %v587, 0
  %v624 = vadd.f32 %v616, %v623
  %v625 = vadd.f32 %v621, %v623
  %vm626 = vcmp.gt.f32.partialorder %v624, 0.0
  %vm627 = vcmp.gt.f32.partialorder %v625, 0.0
  %v628 = vmul.f32 %v624, 0.2
  %v629 = vmul.f32 %v625, 0.2
  %v630 = vsel %vm626, %v624, %v628
  %v631 = vsel %vm627, %v625, %v629
  %v632 = vld [vmem:[%s1] sm:$0xff]
  %v633 = vld [vmem:[%s1 + $0x8] sm:$0xff]
  %vm634 = vcmp.gt.f32.partialorder %v632, 0.0
  %vm635 = vcmp.gt.f32.partialorder %v633, 0.0
  %v636 = vsel %vm634, %v630, -9e+15
  %v637 = vsel %vm635, %v631, -9e+15
  %vm638 = vcmask 130048
  %v639 = vsel %vm638, %v636, -inf
  %640 = vmax.xlane.f32.xlu0 %v639
  %v641 = vpop.xlane.xlu0 %640
  %v642 = vsel %vm638, %v637, -inf
  %643 = vmax.xlane.f32.xlu0 %v642
  %v644 = vpop.xlane.xlu0 %643
  %v645 = vsub.f32 %v636, %v641
  %v646 = vsub.f32 %v637, %v644
  %v647 = vmul.f32 %v645, 1.442695
  %v648 = vpow.pop %v647
  %v649 = vmul.f32 %v646, 1.442695
  %v650 = vpow.pop %v649
  %v651 = vsel %vm638, %v648, 0.0
  %652 = vadd.xlane.f32.xlu0 %v651
  %v653 = vpop.xlane.xlu0 %652
  %v654 = vsel %vm638, %v650, 0.0
  %655 = vadd.xlane.f32.xlu0 %v654
  %v656 = vpop.xlane.xlu0 %655
  %v657 = vrcp.pop %v653
  %v658 = vmul.f32 %v653, %v657
  %v659 = vsub.f32 1.0, %v658
  %v660 = vmul.f32 %v657, %v659
  %v661 = vadd.f32 %v657, %v660
  %vm662 = vweird.f32 %v653
  %vm663 = vweird.f32 %v657
  %vm664 = vmor %vm662, %vm663
  %v665 = vsel %vm664, %v657, %v661
  %v666 = vand.u32 2147483647, %v653
  %vm667 = vcmp.eq.f32.partialorder %v666, 8.507059e+37
  %v668 = vand.u32 %v653, 2147483648
  %v669 = vor.u32 1.1754944e-38, %v668
  %v670 = vsel %vm667, %v669, %v665
  %v671 = vrcp.pop %v656
  %v672 = vmul.f32 %v656, %v671
  %v673 = vsub.f32 1.0, %v672
  %v674 = vmul.f32 %v671, %v673
  %v675 = vadd.f32 %v671, %v674
  %vm676 = vweird.f32 %v656
  %vm677 = vweird.f32 %v671
  %vm678 = vmor %vm676, %vm677
  %v679 = vsel %vm678, %v671, %v675
  %v680 = vand.u32 2147483647, %v656
  %vm681 = vcmp.eq.f32.partialorder %v680, 8.507059e+37
  %v682 = vand.u32 %v656, 2147483648
  %v683 = vor.u32 1.1754944e-38, %v682
  %v684 = vsel %vm681, %v683, %v679
  %v685 = vmul.f32 %v648, %v670
  %v686 = vmul.f32 %v650, %v684
  %v688 = vsel %vm638, %v685, 0
  %v691 = vsel %vm638, %v686, 0
  %693 = vmatpush.msra.mxu0 0.0
  %694 = vmatpush.msra.mxu0 0.0
  %695 = vmatpush.msra.mxu0 0.0
  %696 = vmatpush.msra.mxu0 0.0
  %697 = vmatpush.msra.mxu0 0.0
  %698 = vmatpush.msra.mxu0 0.0
  %699 = vmatpush.msra.mxu0 0.0
  %700 = vmatpush.msra.mxu0 0.0
  %701 = vmatpush.msra.mxu0 0.0
  %702 = vmatpush.msra.mxu0 0.0
  %703 = vmatpush.msra.mxu0 0.0
  %704 = vmatpush.msra.mxu0 0.0
  %705 = vmatpush.msra.mxu0 0.0
  %706 = vmatpush.msra.mxu0 0.0
  %707 = vmatpush.msra.mxu0 %v610
  %708 = vmatpush.msra.mxu0 %v609
  %709 = vmatmul.f32.gmra.mxu0 %v688
  %v710 = vpop.f32.mrf.mxu0
  %v711 = vadd.f32 0.0, %v710
  %712 = vmatmul.f32.gmra.mxu0 %v691
  %v713 = vpop.f32.mrf.mxu0
  %v714 = vadd.f32 0.0, %v713
  %715 = vdwg.mxu0
  %vm716 = vcmp.gt.f32.partialorder %v711, 0.0
  %vm717 = vcmp.gt.f32.partialorder %v714, 0.0
  %v718 = vmin.f32 %v711, 0.0
  %v719 = vmin.f32 %v714, 0.0
  %v720 = vmul.f32 %v718, 1.442695
  %v721 = vpow.pop %v720
  %v722 = vmul.f32 %v719, 1.442695
  %v723 = vpow.pop %v722
  %v724 = vsub.f32 %v721, 1.0
  %v725 = vsub.f32 %v723, 1.0
  %v726 = vsel %vm716, %v711, %v724
  %v727 = vsel %vm717, %v714, %v725
  %728 = vst.msk [vmem:[#allocation4] sm:$0xff] %vm275, %v726
  %729 = vst.msk [vmem:[#allocation4 + $0x8] sm:$0xff] %vm275, %v727
  %v730 = vld [vmem:[#allocation2 + $0x10] sm:$0xff]
  %v731 = vld [vmem:[#allocation2 + $0x18] sm:$0xff]
  %v732 = vld [vmem:[#allocation3 + $0x10] sm:$0xff]
  %v733 = vld [vmem:[#allocation3 + $0x18] sm:$0xff]
  %735 = vset.pattern.permute.xlu0 0
  %736 = vperm.xlu0 %735, %v732
  %v737 = vpop.permute.xlu0 %736
  %740 = vset.pattern.permute.xlu0 0
  %741 = vperm.xlu0 %740, %v733
  %v742 = vpop.permute.xlu0 %741
  %v744 = vadd.f32 %v737, %v623
  %v745 = vadd.f32 %v742, %v623
  %vm746 = vcmp.gt.f32.partialorder %v744, 0.0
  %vm747 = vcmp.gt.f32.partialorder %v745, 0.0
  %v748 = vmul.f32 %v744, 0.2
  %v749 = vmul.f32 %v745, 0.2
  %v750 = vsel %vm746, %v744, %v748
  %v751 = vsel %vm747, %v745, %v749
  %v752 = vld [vmem:[%s1] sm:$0xff]
  %v753 = vld [vmem:[%s1 + $0x8] sm:$0xff]
  %vm754 = vcmp.gt.f32.partialorder %v752, 0.0
  %vm755 = vcmp.gt.f32.partialorder %v753, 0.0
  %758 = vrot.lane.b32.xlu0 %v750, 112
  %v759 = vpop.permute.xlu0 %758
  %760 = vrot.lane.b32.xlu0 %v751, 112
  %v761 = vpop.permute.xlu0 %760
  %v764 = vsel %vm754, %v759, -9e+15
  %v765 = vsel %vm755, %v761, -9e+15
  %v766 = vsel %vm638, %v764, -inf
  %767 = vmax.xlane.f32.xlu0 %v766
  %v768 = vpop.xlane.xlu0 %767
  %v769 = vsel %vm638, %v765, -inf
  %770 = vmax.xlane.f32.xlu0 %v769
  %v771 = vpop.xlane.xlu0 %770
  %v772 = vsub.f32 %v764, %v768
  %v773 = vsub.f32 %v765, %v771
  %v774 = vmul.f32 %v772, 1.442695
  %v775 = vpow.pop %v774
  %v776 = vmul.f32 %v773, 1.442695
  %v777 = vpow.pop %v776
  %v778 = vsel %vm638, %v775, 0.0
  %779 = vadd.xlane.f32.xlu0 %v778
  %v780 = vpop.xlane.xlu0 %779
  %v781 = vsel %vm638, %v777, 0.0
  %782 = vadd.xlane.f32.xlu0 %v781
  %v783 = vpop.xlane.xlu0 %782
  %v784 = vrcp.pop %v780
  %v785 = vmul.f32 %v780, %v784
  %v786 = vsub.f32 1.0, %v785
  %v787 = vmul.f32 %v784, %v786
  %v788 = vadd.f32 %v784, %v787
  %vm789 = vweird.f32 %v780
  %vm790 = vweird.f32 %v784
  %vm791 = vmor %vm789, %vm790
  %v792 = vsel %vm791, %v784, %v788
  %v793 = vand.u32 2147483647, %v780
  %vm794 = vcmp.eq.f32.partialorder %v793, 8.507059e+37
  %v795 = vand.u32 %v780, 2147483648
  %v796 = vor.u32 1.1754944e-38, %v795
  %v797 = vsel %vm794, %v796, %v792
  %v798 = vrcp.pop %v783
  %v799 = vmul.f32 %v783, %v798
  %v800 = vsub.f32 1.0, %v799
  %v801 = vmul.f32 %v798, %v800
  %v802 = vadd.f32 %v798, %v801
  %vm803 = vweird.f32 %v783
  %vm804 = vweird.f32 %v798
  %vm805 = vmor %vm803, %vm804
  %v806 = vsel %vm805, %v798, %v802
  %v807 = vand.u32 2147483647, %v783
  %vm808 = vcmp.eq.f32.partialorder %v807, 8.507059e+37
  %v809 = vand.u32 %v783, 2147483648
  %v810 = vor.u32 1.1754944e-38, %v809
  %v811 = vsel %vm808, %v810, %v806
  %v812 = vmul.f32 %v775, %v797
  %v813 = vmul.f32 %v777, %v811
  %v815 = vsel %vm638, %v812, 0
  %v818 = vsel %vm638, %v813, 0
  %820 = vmatpush.msra.mxu0 0.0
  %821 = vmatpush.msra.mxu0 0.0
  %822 = vmatpush.msra.mxu0 0.0
  %823 = vmatpush.msra.mxu0 0.0
  %824 = vmatpush.msra.mxu0 0.0
  %825 = vmatpush.msra.mxu0 0.0
  %826 = vmatpush.msra.mxu0 0.0
  %827 = vmatpush.msra.mxu0 0.0
  %828 = vmatpush.msra.mxu0 0.0
  %829 = vmatpush.msra.mxu0 0.0
  %830 = vmatpush.msra.mxu0 0.0
  %831 = vmatpush.msra.mxu0 0.0
  %832 = vmatpush.msra.mxu0 0.0
  %833 = vmatpush.msra.mxu0 0.0
  %834 = vmatpush.msra.mxu0 %v731
  %835 = vmatpush.msra.mxu0 %v730
  %836 = vmatmul.f32.gmra.mxu0 %v815
  %v837 = vpop.f32.mrf.mxu0
  %v838 = vadd.f32 0.0, %v837
  %839 = vmatmul.f32.gmra.mxu0 %v818
  %v840 = vpop.f32.mrf.mxu0
  %v841 = vadd.f32 0.0, %v840
  %842 = vdwg.mxu0
  %vm843 = vcmp.gt.f32.partialorder %v838, 0.0
  %vm844 = vcmp.gt.f32.partialorder %v841, 0.0
  %v845 = vmin.f32 %v838, 0.0
  %v846 = vmin.f32 %v841, 0.0
  %v847 = vmul.f32 %v845, 1.442695
  %v848 = vpow.pop %v847
  %v849 = vmul.f32 %v846, 1.442695
  %v850 = vpow.pop %v849
  %v851 = vsub.f32 %v848, 1.0
  %v852 = vsub.f32 %v850, 1.0
  %v853 = vsel %vm843, %v838, %v851
  %v854 = vsel %vm844, %v841, %v852
  %855 = vst.msk [vmem:[#allocation4 + $0x20] sm:$0xff] %vm275, %v853
  %856 = vst.msk [vmem:[#allocation4 + $0x28] sm:$0xff] %vm275, %v854
  %v857 = vld [vmem:[#allocation2 + $0x20] sm:$0xff]
  %v858 = vld [vmem:[#allocation2 + $0x28] sm:$0xff]
  %v859 = vld [vmem:[#allocation3 + $0x20] sm:$0xff]
  %v860 = vld [vmem:[#allocation3 + $0x28] sm:$0xff]
  %862 = vset.pattern.permute.xlu0 0
  %863 = vperm.xlu0 %862, %v859
  %v864 = vpop.permute.xlu0 %863
  %867 = vset.pattern.permute.xlu0 0
  %868 = vperm.xlu0 %867, %v860
  %v869 = vpop.permute.xlu0 %868
  %v871 = vadd.f32 %v864, %v623
  %v872 = vadd.f32 %v869, %v623
  %vm873 = vcmp.gt.f32.partialorder %v871, 0.0
  %vm874 = vcmp.gt.f32.partialorder %v872, 0.0
  %v875 = vmul.f32 %v871, 0.2
  %v876 = vmul.f32 %v872, 0.2
  %v877 = vsel %vm873, %v871, %v875
  %v878 = vsel %vm874, %v872, %v876
  %v879 = vld [vmem:[%s1] sm:$0xff]
  %v880 = vld [vmem:[%s1 + $0x8] sm:$0xff]
  %vm881 = vcmp.gt.f32.partialorder %v879, 0.0
  %vm882 = vcmp.gt.f32.partialorder %v880, 0.0
  %885 = vrot.lane.b32.xlu0 %v877, 96
  %v886 = vpop.permute.xlu0 %885
  %887 = vrot.lane.b32.xlu0 %v878, 96
  %v888 = vpop.permute.xlu0 %887
  %v891 = vsel %vm881, %v886, -9e+15
  %v892 = vsel %vm882, %v888, -9e+15
  %v893 = vsel %vm638, %v891, -inf
  %894 = vmax.xlane.f32.xlu0 %v893
  %v895 = vpop.xlane.xlu0 %894
  %v896 = vsel %vm638, %v892, -inf
  %897 = vmax.xlane.f32.xlu0 %v896
  %v898 = vpop.xlane.xlu0 %897
  %v899 = vsub.f32 %v891, %v895
  %v900 = vsub.f32 %v892, %v898
  %v901 = vmul.f32 %v899, 1.442695
  %v902 = vpow.pop %v901
  %v903 = vmul.f32 %v900, 1.442695
  %v904 = vpow.pop %v903
  %v905 = vsel %vm638, %v902, 0.0
  %906 = vadd.xlane.f32.xlu0 %v905
  %v907 = vpop.xlane.xlu0 %906
  %v908 = vsel %vm638, %v904, 0.0
  %909 = vadd.xlane.f32.xlu0 %v908
  %v910 = vpop.xlane.xlu0 %909
  %v911 = vrcp.pop %v907
  %v912 = vmul.f32 %v907, %v911
  %v913 = vsub.f32 1.0, %v912
  %v914 = vmul.f32 %v911, %v913
  %v915 = vadd.f32 %v911, %v914
  %vm916 = vweird.f32 %v907
  %vm917 = vweird.f32 %v911
  %vm918 = vmor %vm916, %vm917
  %v919 = vsel %vm918, %v911, %v915
  %v920 = vand.u32 2147483647, %v907
  %vm921 = vcmp.eq.f32.partialorder %v920, 8.507059e+37
  %v922 = vand.u32 %v907, 2147483648
  %v923 = vor.u32 1.1754944e-38, %v922
  %v924 = vsel %vm921, %v923, %v919
  %v925 = vrcp.pop %v910
  %v926 = vmul.f32 %v910, %v925
  %v927 = vsub.f32 1.0, %v926
  %v928 = vmul.f32 %v925, %v927
  %v929 = vadd.f32 %v925, %v928
  %vm930 = vweird.f32 %v910
  %vm931 = vweird.f32 %v925
  %vm932 = vmor %vm930, %vm931
  %v933 = vsel %vm932, %v925, %v929
  %v934 = vand.u32 2147483647, %v910
  %vm935 = vcmp.eq.f32.partialorder %v934, 8.507059e+37
  %v936 = vand.u32 %v910, 2147483648
  %v937 = vor.u32 1.1754944e-38, %v936
  %v938 = vsel %vm935, %v937, %v933
  %v939 = vmul.f32 %v902, %v924
  %v940 = vmul.f32 %v904, %v938
  %v942 = vsel %vm638, %v939, 0
  %v945 = vsel %vm638, %v940, 0
  %947 = vmatpush.msra.mxu0 0.0
  %948 = vmatpush.msra.mxu0 0.0
  %949 = vmatpush.msra.mxu0 0.0
  %950 = vmatpush.msra.mxu0 0.0
  %951 = vmatpush.msra.mxu0 0.0
  %952 = vmatpush.msra.mxu0 0.0
  %953 = vmatpush.msra.mxu0 0.0
  %954 = vmatpush.msra.mxu0 0.0
  %955 = vmatpush.msra.mxu0 0.0
  %956 = vmatpush.msra.mxu0 0.0
  %957 = vmatpush.msra.mxu0 0.0
  %958 = vmatpush.msra.mxu0 0.0
  %959 = vmatpush.msra.mxu0 0.0
  %960 = vmatpush.msra.mxu0 0.0
  %961 = vmatpush.msra.mxu0 %v858
  %962 = vmatpush.msra.mxu0 %v857
  %963 = vmatmul.f32.gmra.mxu0 %v942
  %v964 = vpop.f32.mrf.mxu0
  %v965 = vadd.f32 0.0, %v964
  %966 = vmatmul.f32.gmra.mxu0 %v945
  %v967 = vpop.f32.mrf.mxu0
  %v968 = vadd.f32 0.0, %v967
  %969 = vdwg.mxu0
  %vm970 = vcmp.gt.f32.partialorder %v965, 0.0
  %vm971 = vcmp.gt.f32.partialorder %v968, 0.0
  %v972 = vmin.f32 %v965, 0.0
  %v973 = vmin.f32 %v968, 0.0
  %v974 = vmul.f32 %v972, 1.442695
  %v975 = vpow.pop %v974
  %v976 = vmul.f32 %v973, 1.442695
  %v977 = vpow.pop %v976
  %v978 = vsub.f32 %v975, 1.0
  %v979 = vsub.f32 %v977, 1.0
  %v980 = vsel %vm970, %v965, %v978
  %v981 = vsel %vm971, %v968, %v979
  %982 = vst.msk [vmem:[#allocation4 + $0x40] sm:$0xff] %vm275, %v980
  %983 = vst.msk [vmem:[#allocation4 + $0x48] sm:$0xff] %vm275, %v981
  %v984 = vld [vmem:[#allocation2 + $0x30] sm:$0xff]
  %v985 = vld [vmem:[#allocation2 + $0x38] sm:$0xff]
  %v986 = vld [vmem:[#allocation3 + $0x30] sm:$0xff]
  %v987 = vld [vmem:[#allocation3 + $0x38] sm:$0xff]
  %989 = vset.pattern.permute.xlu0 0
  %990 = vperm.xlu0 %989, %v986
  %v991 = vpop.permute.xlu0 %990
  %994 = vset.pattern.permute.xlu0 0
  %995 = vperm.xlu0 %994, %v987
  %v996 = vpop.permute.xlu0 %995
  %v998 = vadd.f32 %v991, %v623
  %v999 = vadd.f32 %v996, %v623
  %vm1000 = vcmp.gt.f32.partialorder %v998, 0.0
  %vm1001 = vcmp.gt.f32.partialorder %v999, 0.0
  %v1002 = vmul.f32 %v998, 0.2
  %v1003 = vmul.f32 %v999, 0.2
  %v1004 = vsel %vm1000, %v998, %v1002
  %v1005 = vsel %vm1001, %v999, %v1003
  %v1006 = vld [vmem:[%s1] sm:$0xff]
  %v1007 = vld [vmem:[%s1 + $0x8] sm:$0xff]
  %vm1008 = vcmp.gt.f32.partialorder %v1006, 0.0
  %vm1009 = vcmp.gt.f32.partialorder %v1007, 0.0
  %1012 = vrot.lane.b32.xlu0 %v1004, 80
  %v1013 = vpop.permute.xlu0 %1012
  %1014 = vrot.lane.b32.xlu0 %v1005, 80
  %v1015 = vpop.permute.xlu0 %1014
  %v1018 = vsel %vm1008, %v1013, -9e+15
  %v1019 = vsel %vm1009, %v1015, -9e+15
  %v1020 = vsel %vm638, %v1018, -inf
  %1021 = vmax.xlane.f32.xlu0 %v1020
  %v1022 = vpop.xlane.xlu0 %1021
  %v1023 = vsel %vm638, %v1019, -inf
  %1024 = vmax.xlane.f32.xlu0 %v1023
  %v1025 = vpop.xlane.xlu0 %1024
  %v1026 = vsub.f32 %v1018, %v1022
  %v1027 = vsub.f32 %v1019, %v1025
  %v1028 = vmul.f32 %v1026, 1.442695
  %v1029 = vpow.pop %v1028
  %v1030 = vmul.f32 %v1027, 1.442695
  %v1031 = vpow.pop %v1030
  %v1032 = vsel %vm638, %v1029, 0.0
  %1033 = vadd.xlane.f32.xlu0 %v1032
  %v1034 = vpop.xlane.xlu0 %1033
  %v1035 = vsel %vm638, %v1031, 0.0
  %1036 = vadd.xlane.f32.xlu0 %v1035
  %v1037 = vpop.xlane.xlu0 %1036
  %v1038 = vrcp.pop %v1034
  %v1039 = vmul.f32 %v1034, %v1038
  %v1040 = vsub.f32 1.0, %v1039
  %v1041 = vmul.f32 %v1038, %v1040
  %v1042 = vadd.f32 %v1038, %v1041
  %vm1043 = vweird.f32 %v1034
  %vm1044 = vweird.f32 %v1038
  %vm1045 = vmor %vm1043, %vm1044
  %v1046 = vsel %vm1045, %v1038, %v1042
  %v1047 = vand.u32 2147483647, %v1034
  %vm1048 = vcmp.eq.f32.partialorder %v1047, 8.507059e+37
  %v1049 = vand.u32 %v1034, 2147483648
  %v1050 = vor.u32 1.1754944e-38, %v1049
  %v1051 = vsel %vm1048, %v1050, %v1046
  %v1052 = vrcp.pop %v1037
  %v1053 = vmul.f32 %v1037, %v1052
  %v1054 = vsub.f32 1.0, %v1053
  %v1055 = vmul.f32 %v1052, %v1054
  %v1056 = vadd.f32 %v1052, %v1055
  %vm1057 = vweird.f32 %v1037
  %vm1058 = vweird.f32 %v1052
  %vm1059 = vmor %vm1057, %vm1058
  %v1060 = vsel %vm1059, %v1052, %v1056
  %v1061 = vand.u32 2147483647, %v1037
  %vm1062 = vcmp.eq.f32.partialorder %v1061, 8.507059e+37
  %v1063 = vand.u32 %v1037, 2147483648
  %v1064 = vor.u32 1.1754944e-38, %v1063
  %v1065 = vsel %vm1062, %v1064, %v1060
  %v1066 = vmul.f32 %v1029, %v1051
  %v1067 = vmul.f32 %v1031, %v1065
  %v1069 = vsel %vm638, %v1066, 0
  %v1072 = vsel %vm638, %v1067, 0
  %1074 = vmatpush.msra.mxu0 0.0
  %1075 = vmatpush.msra.mxu0 0.0
  %1076 = vmatpush.msra.mxu0 0.0
  %1077 = vmatpush.msra.mxu0 0.0
  %1078 = vmatpush.msra.mxu0 0.0
  %1079 = vmatpush.msra.mxu0 0.0
  %1080 = vmatpush.msra.mxu0 0.0
  %1081 = vmatpush.msra.mxu0 0.0
  %1082 = vmatpush.msra.mxu0 0.0
  %1083 = vmatpush.msra.mxu0 0.0
  %1084 = vmatpush.msra.mxu0 0.0
  %1085 = vmatpush.msra.mxu0 0.0
  %1086 = vmatpush.msra.mxu0 0.0
  %1087 = vmatpush.msra.mxu0 0.0
  %1088 = vmatpush.msra.mxu0 %v985
  %1089 = vmatpush.msra.mxu0 %v984
  %1090 = vmatmul.f32.gmra.mxu0 %v1069
  %v1091 = vpop.f32.mrf.mxu0
  %v1092 = vadd.f32 0.0, %v1091
  %1093 = vmatmul.f32.gmra.mxu0 %v1072
  %v1094 = vpop.f32.mrf.mxu0
  %v1095 = vadd.f32 0.0, %v1094
  %1096 = vdwg.mxu0
  %vm1097 = vcmp.gt.f32.partialorder %v1092, 0.0
  %vm1098 = vcmp.gt.f32.partialorder %v1095, 0.0
  %v1099 = vmin.f32 %v1092, 0.0
  %v1100 = vmin.f32 %v1095, 0.0
  %v1101 = vmul.f32 %v1099, 1.442695
  %v1102 = vpow.pop %v1101
  %v1103 = vmul.f32 %v1100, 1.442695
  %v1104 = vpow.pop %v1103
  %v1105 = vsub.f32 %v1102, 1.0
  %v1106 = vsub.f32 %v1104, 1.0
  %v1107 = vsel %vm1097, %v1092, %v1105
  %v1108 = vsel %vm1098, %v1095, %v1106
  %1109 = vst.msk [vmem:[#allocation4 + $0x60] sm:$0xff] %vm275, %v1107
  %1110 = vst.msk [vmem:[#allocation4 + $0x68] sm:$0xff] %vm275, %v1108
  %v1111 = vld [vmem:[#allocation2 + $0x40] sm:$0xff]
  %v1112 = vld [vmem:[#allocation2 + $0x48] sm:$0xff]
  %v1113 = vld [vmem:[#allocation3 + $0x40] sm:$0xff]
  %v1114 = vld [vmem:[#allocation3 + $0x48] sm:$0xff]
  %1116 = vset.pattern.permute.xlu0 0
  %1117 = vperm.xlu0 %1116, %v1113
  %v1118 = vpop.permute.xlu0 %1117
  %1121 = vset.pattern.permute.xlu0 0
  %1122 = vperm.xlu0 %1121, %v1114
  %v1123 = vpop.permute.xlu0 %1122
  %v1125 = vadd.f32 %v1118, %v623
  %v1126 = vadd.f32 %v1123, %v623
  %vm1127 = vcmp.gt.f32.partialorder %v1125, 0.0
  %vm1128 = vcmp.gt.f32.partialorder %v1126, 0.0
  %v1129 = vmul.f32 %v1125, 0.2
  %v1130 = vmul.f32 %v1126, 0.2
  %v1131 = vsel %vm1127, %v1125, %v1129
  %v1132 = vsel %vm1128, %v1126, %v1130
  %v1133 = vld [vmem:[%s1] sm:$0xff]
  %v1134 = vld [vmem:[%s1 + $0x8] sm:$0xff]
  %vm1135 = vcmp.gt.f32.partialorder %v1133, 0.0
  %vm1136 = vcmp.gt.f32.partialorder %v1134, 0.0
  %1139 = vrot.lane.b32.xlu0 %v1131, 64
  %v1140 = vpop.permute.xlu0 %1139
  %1141 = vrot.lane.b32.xlu0 %v1132, 64
  %v1142 = vpop.permute.xlu0 %1141
  %v1145 = vsel %vm1135, %v1140, -9e+15
  %v1146 = vsel %vm1136, %v1142, -9e+15
  %v1147 = vsel %vm638, %v1145, -inf
  %1148 = vmax.xlane.f32.xlu0 %v1147
  %v1149 = vpop.xlane.xlu0 %1148
  %v1150 = vsel %vm638, %v1146, -inf
  %1151 = vmax.xlane.f32.xlu0 %v1150
  %v1152 = vpop.xlane.xlu0 %1151
  %v1153 = vsub.f32 %v1145, %v1149
  %v1154 = vsub.f32 %v1146, %v1152
  %v1155 = vmul.f32 %v1153, 1.442695
  %v1156 = vpow.pop %v1155
  %v1157 = vmul.f32 %v1154, 1.442695
  %v1158 = vpow.pop %v1157
  %v1159 = vsel %vm638, %v1156, 0.0
  %1160 = vadd.xlane.f32.xlu0 %v1159
  %v1161 = vpop.xlane.xlu0 %1160
  %v1162 = vsel %vm638, %v1158, 0.0
  %1163 = vadd.xlane.f32.xlu0 %v1162
  %v1164 = vpop.xlane.xlu0 %1163
  %v1165 = vrcp.pop %v1161
  %v1166 = vmul.f32 %v1161, %v1165
  %v1167 = vsub.f32 1.0, %v1166
  %v1168 = vmul.f32 %v1165, %v1167
  %v1169 = vadd.f32 %v1165, %v1168
  %vm1170 = vweird.f32 %v1161
  %vm1171 = vweird.f32 %v1165
  %vm1172 = vmor %vm1170, %vm1171
  %v1173 = vsel %vm1172, %v1165, %v1169
  %v1174 = vand.u32 2147483647, %v1161
  %vm1175 = vcmp.eq.f32.partialorder %v1174, 8.507059e+37
  %v1176 = vand.u32 %v1161, 2147483648
  %v1177 = vor.u32 1.1754944e-38, %v1176
  %v1178 = vsel %vm1175, %v1177, %v1173
  %v1179 = vrcp.pop %v1164
  %v1180 = vmul.f32 %v1164, %v1179
  %v1181 = vsub.f32 1.0, %v1180
  %v1182 = vmul.f32 %v1179, %v1181
  %v1183 = vadd.f32 %v1179, %v1182
  %vm1184 = vweird.f32 %v1164
  %vm1185 = vweird.f32 %v1179
  %vm1186 = vmor %vm1184, %vm1185
  %v1187 = vsel %vm1186, %v1179, %v1183
  %v1188 = vand.u32 2147483647, %v1164
  %vm1189 = vcmp.eq.f32.partialorder %v1188, 8.507059e+37
  %v1190 = vand.u32 %v1164, 2147483648
  %v1191 = vor.u32 1.1754944e-38, %v1190
  %v1192 = vsel %vm1189, %v1191, %v1187
  %v1193 = vmul.f32 %v1156, %v1178
  %v1194 = vmul.f32 %v1158, %v1192
  %v1196 = vsel %vm638, %v1193, 0
  %v1199 = vsel %vm638, %v1194, 0
  %1201 = vmatpush.msra.mxu0 0.0
  %1202 = vmatpush.msra.mxu0 0.0
  %1203 = vmatpush.msra.mxu0 0.0
  %1204 = vmatpush.msra.mxu0 0.0
  %1205 = vmatpush.msra.mxu0 0.0
  %1206 = vmatpush.msra.mxu0 0.0
  %1207 = vmatpush.msra.mxu0 0.0
  %1208 = vmatpush.msra.mxu0 0.0
  %1209 = vmatpush.msra.mxu0 0.0
  %1210 = vmatpush.msra.mxu0 0.0
  %1211 = vmatpush.msra.mxu0 0.0
  %1212 = vmatpush.msra.mxu0 0.0
  %1213 = vmatpush.msra.mxu0 0.0
  %1214 = vmatpush.msra.mxu0 0.0
  %1215 = vmatpush.msra.mxu0 %v1112
  %1216 = vmatpush.msra.mxu0 %v1111
  %1217 = vmatmul.f32.gmra.mxu0 %v1196
  %v1218 = vpop.f32.mrf.mxu0
  %v1219 = vadd.f32 0.0, %v1218
  %1220 = vmatmul.f32.gmra.mxu0 %v1199
  %v1221 = vpop.f32.mrf.mxu0
  %v1222 = vadd.f32 0.0, %v1221
  %1223 = vdwg.mxu0
  %vm1224 = vcmp.gt.f32.partialorder %v1219, 0.0
  %vm1225 = vcmp.gt.f32.partialorder %v1222, 0.0
  %v1226 = vmin.f32 %v1219, 0.0
  %v1227 = vmin.f32 %v1222, 0.0
  %v1228 = vmul.f32 %v1226, 1.442695
  %v1229 = vpow.pop %v1228
  %v1230 = vmul.f32 %v1227, 1.442695
  %v1231 = vpow.pop %v1230
  %v1232 = vsub.f32 %v1229, 1.0
  %v1233 = vsub.f32 %v1231, 1.0
  %v1234 = vsel %vm1224, %v1219, %v1232
  %v1235 = vsel %vm1225, %v1222, %v1233
  %1236 = vst.msk [vmem:[#allocation4 + $0x80] sm:$0xff] %vm275, %v1234
  %1237 = vst.msk [vmem:[#allocation4 + $0x88] sm:$0xff] %vm275, %v1235
  %v1238 = vld [vmem:[#allocation2 + $0x50] sm:$0xff]
  %v1239 = vld [vmem:[#allocation2 + $0x58] sm:$0xff]
  %v1240 = vld [vmem:[#allocation3 + $0x50] sm:$0xff]
  %v1241 = vld [vmem:[#allocation3 + $0x58] sm:$0xff]
  %1243 = vset.pattern.permute.xlu0 0
  %1244 = vperm.xlu0 %1243, %v1240
  %v1245 = vpop.permute.xlu0 %1244
  %1248 = vset.pattern.permute.xlu0 0
  %1249 = vperm.xlu0 %1248, %v1241
  %v1250 = vpop.permute.xlu0 %1249
  %v1252 = vadd.f32 %v1245, %v623
  %v1253 = vadd.f32 %v1250, %v623
  %vm1254 = vcmp.gt.f32.partialorder %v1252, 0.0
  %vm1255 = vcmp.gt.f32.partialorder %v1253, 0.0
  %v1256 = vmul.f32 %v1252, 0.2
  %v1257 = vmul.f32 %v1253, 0.2
  %v1258 = vsel %vm1254, %v1252, %v1256
  %v1259 = vsel %vm1255, %v1253, %v1257
  %v1260 = vld [vmem:[%s1] sm:$0xff]
  %v1261 = vld [vmem:[%s1 + $0x8] sm:$0xff]
  %vm1262 = vcmp.gt.f32.partialorder %v1260, 0.0
  %vm1263 = vcmp.gt.f32.partialorder %v1261, 0.0
  %1266 = vrot.lane.b32.xlu0 %v1258, 48
  %v1267 = vpop.permute.xlu0 %1266
  %1268 = vrot.lane.b32.xlu0 %v1259, 48
  %v1269 = vpop.permute.xlu0 %1268
  %v1272 = vsel %vm1262, %v1267, -9e+15
  %v1273 = vsel %vm1263, %v1269, -9e+15
  %v1274 = vsel %vm638, %v1272, -inf
  %1275 = vmax.xlane.f32.xlu0 %v1274
  %v1276 = vpop.xlane.xlu0 %1275
  %v1277 = vsel %vm638, %v1273, -inf
  %1278 = vmax.xlane.f32.xlu0 %v1277
  %v1279 = vpop.xlane.xlu0 %1278
  %v1280 = vsub.f32 %v1272, %v1276
  %v1281 = vsub.f32 %v1273, %v1279
  %v1282 = vmul.f32 %v1280, 1.442695
  %v1283 = vpow.pop %v1282
  %v1284 = vmul.f32 %v1281, 1.442695
  %v1285 = vpow.pop %v1284
  %v1286 = vsel %vm638, %v1283, 0.0
  %1287 = vadd.xlane.f32.xlu0 %v1286
  %v1288 = vpop.xlane.xlu0 %1287
  %v1289 = vsel %vm638, %v1285, 0.0
  %1290 = vadd.xlane.f32.xlu0 %v1289
  %v1291 = vpop.xlane.xlu0 %1290
  %v1292 = vrcp.pop %v1288
  %v1293 = vmul.f32 %v1288, %v1292
  %v1294 = vsub.f32 1.0, %v1293
  %v1295 = vmul.f32 %v1292, %v1294
  %v1296 = vadd.f32 %v1292, %v1295
  %vm1297 = vweird.f32 %v1288
  %vm1298 = vweird.f32 %v1292
  %vm1299 = vmor %vm1297, %vm1298
  %v1300 = vsel %vm1299, %v1292, %v1296
  %v1301 = vand.u32 2147483647, %v1288
  %vm1302 = vcmp.eq.f32.partialorder %v1301, 8.507059e+37
  %v1303 = vand.u32 %v1288, 2147483648
  %v1304 = vor.u32 1.1754944e-38, %v1303
  %v1305 = vsel %vm1302, %v1304, %v1300
  %v1306 = vrcp.pop %v1291
  %v1307 = vmul.f32 %v1291, %v1306
  %v1308 = vsub.f32 1.0, %v1307
  %v1309 = vmul.f32 %v1306, %v1308
  %v1310 = vadd.f32 %v1306, %v1309
  %vm1311 = vweird.f32 %v1291
  %vm1312 = vweird.f32 %v1306
  %vm1313 = vmor %vm1311, %vm1312
  %v1314 = vsel %vm1313, %v1306, %v1310
  %v1315 = vand.u32 2147483647, %v1291
  %vm1316 = vcmp.eq.f32.partialorder %v1315, 8.507059e+37
  %v1317 = vand.u32 %v1291, 2147483648
  %v1318 = vor.u32 1.1754944e-38, %v1317
  %v1319 = vsel %vm1316, %v1318, %v1314
  %v1320 = vmul.f32 %v1283, %v1305
  %v1321 = vmul.f32 %v1285, %v1319
  %v1323 = vsel %vm638, %v1320, 0
  %v1326 = vsel %vm638, %v1321, 0
  %1328 = vmatpush.msra.mxu0 0.0
  %1329 = vmatpush.msra.mxu0 0.0
  %1330 = vmatpush.msra.mxu0 0.0
  %1331 = vmatpush.msra.mxu0 0.0
  %1332 = vmatpush.msra.mxu0 0.0
  %1333 = vmatpush.msra.mxu0 0.0
  %1334 = vmatpush.msra.mxu0 0.0
  %1335 = vmatpush.msra.mxu0 0.0
  %1336 = vmatpush.msra.mxu0 0.0
  %1337 = vmatpush.msra.mxu0 0.0
  %1338 = vmatpush.msra.mxu0 0.0
  %1339 = vmatpush.msra.mxu0 0.0
  %1340 = vmatpush.msra.mxu0 0.0
  %1341 = vmatpush.msra.mxu0 0.0
  %1342 = vmatpush.msra.mxu0 %v1239
  %1343 = vmatpush.msra.mxu0 %v1238
  %1344 = vmatmul.f32.gmra.mxu0 %v1323
  %v1345 = vpop.f32.mrf.mxu0
  %v1346 = vadd.f32 0.0, %v1345
  %1347 = vmatmul.f32.gmra.mxu0 %v1326
  %v1348 = vpop.f32.mrf.mxu0
  %v1349 = vadd.f32 0.0, %v1348
  %1350 = vdwg.mxu0
  %vm1351 = vcmp.gt.f32.partialorder %v1346, 0.0
  %vm1352 = vcmp.gt.f32.partialorder %v1349, 0.0
  %v1353 = vmin.f32 %v1346, 0.0
  %v1354 = vmin.f32 %v1349, 0.0
  %v1355 = vmul.f32 %v1353, 1.442695
  %v1356 = vpow.pop %v1355
  %v1357 = vmul.f32 %v1354, 1.442695
  %v1358 = vpow.pop %v1357
  %v1359 = vsub.f32 %v1356, 1.0
  %v1360 = vsub.f32 %v1358, 1.0
  %v1361 = vsel %vm1351, %v1346, %v1359
  %v1362 = vsel %vm1352, %v1349, %v1360
  %1363 = vst.msk [vmem:[#allocation4 + $0xa0] sm:$0xff] %vm275, %v1361
  %1364 = vst.msk [vmem:[#allocation4 + $0xa8] sm:$0xff] %vm275, %v1362
  %v1365 = vld [vmem:[#allocation2 + $0x60] sm:$0xff]
  %v1366 = vld [vmem:[#allocation2 + $0x68] sm:$0xff]
  %v1367 = vld [vmem:[#allocation3 + $0x60] sm:$0xff]
  %v1368 = vld [vmem:[#allocation3 + $0x68] sm:$0xff]
  %1370 = vset.pattern.permute.xlu0 0
  %1371 = vperm.xlu0 %1370, %v1367
  %v1372 = vpop.permute.xlu0 %1371
  %1375 = vset.pattern.permute.xlu0 0
  %1376 = vperm.xlu0 %1375, %v1368
  %v1377 = vpop.permute.xlu0 %1376
  %v1379 = vadd.f32 %v1372, %v623
  %v1380 = vadd.f32 %v1377, %v623
  %vm1381 = vcmp.gt.f32.partialorder %v1379, 0.0
  %vm1382 = vcmp.gt.f32.partialorder %v1380, 0.0
  %v1383 = vmul.f32 %v1379, 0.2
  %v1384 = vmul.f32 %v1380, 0.2
  %v1385 = vsel %vm1381, %v1379, %v1383
  %v1386 = vsel %vm1382, %v1380, %v1384
  %v1387 = vld [vmem:[%s1] sm:$0xff]
  %v1388 = vld [vmem:[%s1 + $0x8] sm:$0xff]
  %vm1389 = vcmp.gt.f32.partialorder %v1387, 0.0
  %vm1390 = vcmp.gt.f32.partialorder %v1388, 0.0
  %1393 = vrot.lane.b32.xlu0 %v1385, 32
  %v1394 = vpop.permute.xlu0 %1393
  %1395 = vrot.lane.b32.xlu0 %v1386, 32
  %v1396 = vpop.permute.xlu0 %1395
  %v1399 = vsel %vm1389, %v1394, -9e+15
  %v1400 = vsel %vm1390, %v1396, -9e+15
  %v1401 = vsel %vm638, %v1399, -inf
  %1402 = vmax.xlane.f32.xlu0 %v1401
  %v1403 = vpop.xlane.xlu0 %1402
  %v1404 = vsel %vm638, %v1400, -inf
  %1405 = vmax.xlane.f32.xlu0 %v1404
  %v1406 = vpop.xlane.xlu0 %1405
  %v1407 = vsub.f32 %v1399, %v1403
  %v1408 = vsub.f32 %v1400, %v1406
  %v1409 = vmul.f32 %v1407, 1.442695
  %v1410 = vpow.pop %v1409
  %v1411 = vmul.f32 %v1408, 1.442695
  %v1412 = vpow.pop %v1411
  %v1413 = vsel %vm638, %v1410, 0.0
  %1414 = vadd.xlane.f32.xlu0 %v1413
  %v1415 = vpop.xlane.xlu0 %1414
  %v1416 = vsel %vm638, %v1412, 0.0
  %1417 = vadd.xlane.f32.xlu0 %v1416
  %v1418 = vpop.xlane.xlu0 %1417
  %v1419 = vrcp.pop %v1415
  %v1420 = vmul.f32 %v1415, %v1419
  %v1421 = vsub.f32 1.0, %v1420
  %v1422 = vmul.f32 %v1419, %v1421
  %v1423 = vadd.f32 %v1419, %v1422
  %vm1424 = vweird.f32 %v1415
  %vm1425 = vweird.f32 %v1419
  %vm1426 = vmor %vm1424, %vm1425
  %v1427 = vsel %vm1426, %v1419, %v1423
  %v1428 = vand.u32 2147483647, %v1415
  %vm1429 = vcmp.eq.f32.partialorder %v1428, 8.507059e+37
  %v1430 = vand.u32 %v1415, 2147483648
  %v1431 = vor.u32 1.1754944e-38, %v1430
  %v1432 = vsel %vm1429, %v1431, %v1427
  %v1433 = vrcp.pop %v1418
  %v1434 = vmul.f32 %v1418, %v1433
  %v1435 = vsub.f32 1.0, %v1434
  %v1436 = vmul.f32 %v1433, %v1435
  %v1437 = vadd.f32 %v1433, %v1436
  %vm1438 = vweird.f32 %v1418
  %vm1439 = vweird.f32 %v1433
  %vm1440 = vmor %vm1438, %vm1439
  %v1441 = vsel %vm1440, %v1433, %v1437
  %v1442 = vand.u32 2147483647, %v1418
  %vm1443 = vcmp.eq.f32.partialorder %v1442, 8.507059e+37
  %v1444 = vand.u32 %v1418, 2147483648
  %v1445 = vor.u32 1.1754944e-38, %v1444
  %v1446 = vsel %vm1443, %v1445, %v1441
  %v1447 = vmul.f32 %v1410, %v1432
  %v1448 = vmul.f32 %v1412, %v1446
  %v1450 = vsel %vm638, %v1447, 0
  %v1453 = vsel %vm638, %v1448, 0
  %1455 = vmatpush.msra.mxu0 0.0
  %1456 = vmatpush.msra.mxu0 0.0
  %1457 = vmatpush.msra.mxu0 0.0
  %1458 = vmatpush.msra.mxu0 0.0
  %1459 = vmatpush.msra.mxu0 0.0
  %1460 = vmatpush.msra.mxu0 0.0
  %1461 = vmatpush.msra.mxu0 0.0
  %1462 = vmatpush.msra.mxu0 0.0
  %1463 = vmatpush.msra.mxu0 0.0
  %1464 = vmatpush.msra.mxu0 0.0
  %1465 = vmatpush.msra.mxu0 0.0
  %1466 = vmatpush.msra.mxu0 0.0
  %1467 = vmatpush.msra.mxu0 0.0
  %1468 = vmatpush.msra.mxu0 0.0
  %1469 = vmatpush.msra.mxu0 %v1366
  %1470 = vmatpush.msra.mxu0 %v1365
  %1471 = vmatmul.f32.gmra.mxu0 %v1450
  %v1472 = vpop.f32.mrf.mxu0
  %v1473 = vadd.f32 0.0, %v1472
  %1474 = vmatmul.f32.gmra.mxu0 %v1453
  %v1475 = vpop.f32.mrf.mxu0
  %v1476 = vadd.f32 0.0, %v1475
  %1477 = vdwg.mxu0
  %vm1478 = vcmp.gt.f32.partialorder %v1473, 0.0
  %vm1479 = vcmp.gt.f32.partialorder %v1476, 0.0
  %v1480 = vmin.f32 %v1473, 0.0
  %v1481 = vmin.f32 %v1476, 0.0
  %v1482 = vmul.f32 %v1480, 1.442695
  %v1483 = vpow.pop %v1482
  %v1484 = vmul.f32 %v1481, 1.442695
  %v1485 = vpow.pop %v1484
  %v1486 = vsub.f32 %v1483, 1.0
  %v1487 = vsub.f32 %v1485, 1.0
  %v1488 = vsel %vm1478, %v1473, %v1486
  %v1489 = vsel %vm1479, %v1476, %v1487
  %1490 = vst.msk [vmem:[#allocation4 + $0xc0] sm:$0xff] %vm275, %v1488
  %1491 = vst.msk [vmem:[#allocation4 + $0xc8] sm:$0xff] %vm275, %v1489
  %v1492 = vld [vmem:[#allocation2 + $0x70] sm:$0xff]
  %v1493 = vld [vmem:[#allocation2 + $0x78] sm:$0xff]
  %v1494 = vld [vmem:[#allocation3 + $0x70] sm:$0xff]
  %v1495 = vld [vmem:[#allocation3 + $0x78] sm:$0xff]
  %1497 = vset.pattern.permute.xlu0 0
  %1498 = vperm.xlu0 %1497, %v1494
  %v1499 = vpop.permute.xlu0 %1498
  %1502 = vset.pattern.permute.xlu0 0
  %1503 = vperm.xlu0 %1502, %v1495
  %v1504 = vpop.permute.xlu0 %1503
  %v1506 = vadd.f32 %v1499, %v623
  %v1507 = vadd.f32 %v1504, %v623
  %vm1508 = vcmp.gt.f32.partialorder %v1506, 0.0
  %vm1509 = vcmp.gt.f32.partialorder %v1507, 0.0
  %v1510 = vmul.f32 %v1506, 0.2
  %v1511 = vmul.f32 %v1507, 0.2
  %v1512 = vsel %vm1508, %v1506, %v1510
  %v1513 = vsel %vm1509, %v1507, %v1511
  %v1514 = vld [vmem:[%s1] sm:$0xff]
  %v1515 = vld [vmem:[%s1 + $0x8] sm:$0xff]
  %vm1516 = vcmp.gt.f32.partialorder %v1514, 0.0
  %vm1517 = vcmp.gt.f32.partialorder %v1515, 0.0
  %1520 = vrot.lane.b32.xlu0 %v1512, 16
  %v1521 = vpop.permute.xlu0 %1520
  %1522 = vrot.lane.b32.xlu0 %v1513, 16
  %v1523 = vpop.permute.xlu0 %1522
  %v1526 = vsel %vm1516, %v1521, -9e+15
  %v1527 = vsel %vm1517, %v1523, -9e+15
  %v1528 = vsel %vm638, %v1526, -inf
  %1529 = vmax.xlane.f32.xlu0 %v1528
  %v1530 = vpop.xlane.xlu0 %1529
  %v1531 = vsel %vm638, %v1527, -inf
  %1532 = vmax.xlane.f32.xlu0 %v1531
  %v1533 = vpop.xlane.xlu0 %1532
  %v1534 = vsub.f32 %v1526, %v1530
  %v1535 = vsub.f32 %v1527, %v1533
  %v1536 = vmul.f32 %v1534, 1.442695
  %v1537 = vpow.pop %v1536
  %v1538 = vmul.f32 %v1535, 1.442695
  %v1539 = vpow.pop %v1538
  %v1540 = vsel %vm638, %v1537, 0.0
  %1541 = vadd.xlane.f32.xlu0 %v1540
  %v1542 = vpop.xlane.xlu0 %1541
  %v1543 = vsel %vm638, %v1539, 0.0
  %1544 = vadd.xlane.f32.xlu0 %v1543
  %v1545 = vpop.xlane.xlu0 %1544
  %v1546 = vrcp.pop %v1542
  %v1547 = vmul.f32 %v1542, %v1546
  %v1548 = vsub.f32 1.0, %v1547
  %v1549 = vmul.f32 %v1546, %v1548
  %v1550 = vadd.f32 %v1546, %v1549
  %vm1551 = vweird.f32 %v1542
  %vm1552 = vweird.f32 %v1546
  %vm1553 = vmor %vm1551, %vm1552
  %v1554 = vsel %vm1553, %v1546, %v1550
  %v1555 = vand.u32 2147483647, %v1542
  %vm1556 = vcmp.eq.f32.partialorder %v1555, 8.507059e+37
  %v1557 = vand.u32 %v1542, 2147483648
  %v1558 = vor.u32 1.1754944e-38, %v1557
  %v1559 = vsel %vm1556, %v1558, %v1554
  %v1560 = vrcp.pop %v1545
  %v1561 = vmul.f32 %v1545, %v1560
  %v1562 = vsub.f32 1.0, %v1561
  %v1563 = vmul.f32 %v1560, %v1562
  %v1564 = vadd.f32 %v1560, %v1563
  %vm1565 = vweird.f32 %v1545
  %vm1566 = vweird.f32 %v1560
  %vm1567 = vmor %vm1565, %vm1566
  %v1568 = vsel %vm1567, %v1560, %v1564
  %v1569 = vand.u32 2147483647, %v1545
  %vm1570 = vcmp.eq.f32.partialorder %v1569, 8.507059e+37
  %v1571 = vand.u32 %v1545, 2147483648
  %v1572 = vor.u32 1.1754944e-38, %v1571
  %v1573 = vsel %vm1570, %v1572, %v1568
  %v1574 = vmul.f32 %v1537, %v1559
  %v1575 = vmul.f32 %v1539, %v1573
  %v1577 = vsel %vm638, %v1574, 0
  %v1580 = vsel %vm638, %v1575, 0
  %1582 = vmatpush.msra.mxu0 0.0
  %1583 = vmatpush.msra.mxu0 0.0
  %1584 = vmatpush.msra.mxu0 0.0
  %1585 = vmatpush.msra.mxu0 0.0
  %1586 = vmatpush.msra.mxu0 0.0
  %1587 = vmatpush.msra.mxu0 0.0
  %1588 = vmatpush.msra.mxu0 0.0
  %1589 = vmatpush.msra.mxu0 0.0
  %1590 = vmatpush.msra.mxu0 0.0
  %1591 = vmatpush.msra.mxu0 0.0
  %1592 = vmatpush.msra.mxu0 0.0
  %1593 = vmatpush.msra.mxu0 0.0
  %1594 = vmatpush.msra.mxu0 0.0
  %1595 = vmatpush.msra.mxu0 0.0
  %1596 = vmatpush.msra.mxu0 %v1493
  %1597 = vmatpush.msra.mxu0 %v1492
  %1598 = vmatmul.f32.gmra.mxu0 %v1577
  %v1599 = vpop.f32.mrf.mxu0
  %v1600 = vadd.f32 0.0, %v1599
  %1601 = vmatmul.f32.gmra.mxu0 %v1580
  %v1602 = vpop.f32.mrf.mxu0
  %v1603 = vadd.f32 0.0, %v1602
  %1604 = vdwg.mxu0
  %vm1605 = vcmp.gt.f32.partialorder %v1600, 0.0
  %vm1606 = vcmp.gt.f32.partialorder %v1603, 0.0
  %v1607 = vmin.f32 %v1600, 0.0
  %v1608 = vmin.f32 %v1603, 0.0
  %v1609 = vmul.f32 %v1607, 1.442695
  %v1610 = vpow.pop %v1609
  %v1611 = vmul.f32 %v1608, 1.442695
  %v1612 = vpow.pop %v1611
  %v1613 = vsub.f32 %v1610, 1.0
  %v1614 = vsub.f32 %v1612, 1.0
  %v1615 = vsel %vm1605, %v1600, %v1613
  %v1616 = vsel %vm1606, %v1603, %v1614
  %1617 = vst.msk [vmem:[#allocation4 + $0xe0] sm:$0xff] %vm275, %v1615
  %1618 = vst.msk [vmem:[#allocation4 + $0xe8] sm:$0xff] %vm275, %v1616
  %v1619 = vld [vmem:[#allocation2 + $0x80] sm:$0xff]
  %v1620 = vld [vmem:[#allocation2 + $0x88] sm:$0xff]
  %v1621 = vld [vmem:[#allocation3 + $0x80] sm:$0xff]
  %v1622 = vld [vmem:[#allocation3 + $0x88] sm:$0xff]
  %1624 = vset.pattern.permute.xlu0 0
  %1625 = vperm.xlu0 %1624, %v1621
  %v1626 = vpop.permute.xlu0 %1625
  %1629 = vset.pattern.permute.xlu0 0
  %1630 = vperm.xlu0 %1629, %v1622
  %v1631 = vpop.permute.xlu0 %1630
  %v1633 = vperm.slane %v607, 0
  %v1634 = vadd.f32 %v1626, %v1633
  %v1635 = vadd.f32 %v1631, %v1633
  %vm1636 = vcmp.gt.f32.partialorder %v1634, 0.0
  %vm1637 = vcmp.gt.f32.partialorder %v1635, 0.0
  %v1638 = vmul.f32 %v1634, 0.2
  %v1639 = vmul.f32 %v1635, 0.2
  %v1640 = vsel %vm1636, %v1634, %v1638
  %v1641 = vsel %vm1637, %v1635, %v1639
  %s1642 = scalar_lea.vmem %s1, 16
  %v1643 = vld [vmem:[%s1642] sm:$0xff]
  %v1644 = vld [vmem:[%s1642 + $0x8] sm:$0xff]
  %vm1645 = vcmp.gt.f32.partialorder %v1643, 0.0
  %vm1646 = vcmp.gt.f32.partialorder %v1644, 0.0
  %v1647 = vsel %vm1645, %v1640, -9e+15
  %v1648 = vsel %vm1646, %v1641, -9e+15
  %v1649 = vsel %vm638, %v1647, -inf
  %1650 = vmax.xlane.f32.xlu0 %v1649
  %v1651 = vpop.xlane.xlu0 %1650
  %v1652 = vsel %vm638, %v1648, -inf
  %1653 = vmax.xlane.f32.xlu0 %v1652
  %v1654 = vpop.xlane.xlu0 %1653
  %v1655 = vsub.f32 %v1647, %v1651
  %v1656 = vsub.f32 %v1648, %v1654
  %v1657 = vmul.f32 %v1655, 1.442695
  %v1658 = vpow.pop %v1657
  %v1659 = vmul.f32 %v1656, 1.442695
  %v1660 = vpow.pop %v1659
  %v1661 = vsel %vm638, %v1658, 0.0
  %1662 = vadd.xlane.f32.xlu0 %v1661
  %v1663 = vpop.xlane.xlu0 %1662
  %v1664 = vsel %vm638, %v1660, 0.0
  %1665 = vadd.xlane.f32.xlu0 %v1664
  %v1666 = vpop.xlane.xlu0 %1665
  %v1667 = vrcp.pop %v1663
  %v1668 = vmul.f32 %v1663, %v1667
  %v1669 = vsub.f32 1.0, %v1668
  %v1670 = vmul.f32 %v1667, %v1669
  %v1671 = vadd.f32 %v1667, %v1670
  %vm1672 = vweird.f32 %v1663
  %vm1673 = vweird.f32 %v1667
  %vm1674 = vmor %vm1672, %vm1673
  %v1675 = vsel %vm1674, %v1667, %v1671
  %v1676 = vand.u32 2147483647, %v1663
  %vm1677 = vcmp.eq.f32.partialorder %v1676, 8.507059e+37
  %v1678 = vand.u32 %v1663, 2147483648
  %v1679 = vor.u32 1.1754944e-38, %v1678
  %v1680 = vsel %vm1677, %v1679, %v1675
  %v1681 = vrcp.pop %v1666
  %v1682 = vmul.f32 %v1666, %v1681
  %v1683 = vsub.f32 1.0, %v1682
  %v1684 = vmul.f32 %v1681, %v1683
  %v1685 = vadd.f32 %v1681, %v1684
  %vm1686 = vweird.f32 %v1666
  %vm1687 = vweird.f32 %v1681
  %vm1688 = vmor %vm1686, %vm1687
  %v1689 = vsel %vm1688, %v1681, %v1685
  %v1690 = vand.u32 2147483647, %v1666
  %vm1691 = vcmp.eq.f32.partialorder %v1690, 8.507059e+37
  %v1692 = vand.u32 %v1666, 2147483648
  %v1693 = vor.u32 1.1754944e-38, %v1692
  %v1694 = vsel %vm1691, %v1693, %v1689
  %v1695 = vmul.f32 %v1658, %v1680
  %v1696 = vmul.f32 %v1660, %v1694
  %v1698 = vsel %vm638, %v1695, 0
  %v1701 = vsel %vm638, %v1696, 0
  %1703 = vmatpush.msra.mxu0 0.0
  %1704 = vmatpush.msra.mxu0 0.0
  %1705 = vmatpush.msra.mxu0 0.0
  %1706 = vmatpush.msra.mxu0 0.0
  %1707 = vmatpush.msra.mxu0 0.0
  %1708 = vmatpush.msra.mxu0 0.0
  %1709 = vmatpush.msra.mxu0 0.0
  %1710 = vmatpush.msra.mxu0 0.0
  %1711 = vmatpush.msra.mxu0 0.0
  %1712 = vmatpush.msra.mxu0 0.0
  %1713 = vmatpush.msra.mxu0 0.0
  %1714 = vmatpush.msra.mxu0 0.0
  %1715 = vmatpush.msra.mxu0 0.0
  %1716 = vmatpush.msra.mxu0 0.0
  %1717 = vmatpush.msra.mxu0 %v1620
  %1718 = vmatpush.msra.mxu0 %v1619
  %1719 = vmatmul.f32.gmra.mxu0 %v1698
  %v1720 = vpop.f32.mrf.mxu0
  %v1721 = vadd.f32 0.0, %v1720
  %1722 = vmatmul.f32.gmra.mxu0 %v1701
  %v1723 = vpop.f32.mrf.mxu0
  %v1724 = vadd.f32 0.0, %v1723
  %1725 = vdwg.mxu0
  %vm1726 = vcmp.gt.f32.partialorder %v1721, 0.0
  %vm1727 = vcmp.gt.f32.partialorder %v1724, 0.0
  %v1728 = vmin.f32 %v1721, 0.0
  %v1729 = vmin.f32 %v1724, 0.0
  %v1730 = vmul.f32 %v1728, 1.442695
  %v1731 = vpow.pop %v1730
  %v1732 = vmul.f32 %v1729, 1.442695
  %v1733 = vpow.pop %v1732
  %v1734 = vsub.f32 %v1731, 1.0
  %v1735 = vsub.f32 %v1733, 1.0
  %v1736 = vsel %vm1726, %v1721, %v1734
  %v1737 = vsel %vm1727, %v1724, %v1735
  %1738 = vst.msk [vmem:[#allocation4 + $0x10] sm:$0xff] %vm275, %v1736
  %1739 = vst.msk [vmem:[#allocation4 + $0x18] sm:$0xff] %vm275, %v1737
  %v1740 = vld [vmem:[#allocation2 + $0x90] sm:$0xff]
  %v1741 = vld [vmem:[#allocation2 + $0x98] sm:$0xff]
  %v1742 = vld [vmem:[#allocation3 + $0x90] sm:$0xff]
  %v1743 = vld [vmem:[#allocation3 + $0x98] sm:$0xff]
  %1745 = vset.pattern.permute.xlu0 0
  %1746 = vperm.xlu0 %1745, %v1742
  %v1747 = vpop.permute.xlu0 %1746
  %1750 = vset.pattern.permute.xlu0 0
  %1751 = vperm.xlu0 %1750, %v1743
  %v1752 = vpop.permute.xlu0 %1751
  %v1754 = vadd.f32 %v1747, %v1633
  %v1755 = vadd.f32 %v1752, %v1633
  %vm1756 = vcmp.gt.f32.partialorder %v1754, 0.0
  %vm1757 = vcmp.gt.f32.partialorder %v1755, 0.0
  %v1758 = vmul.f32 %v1754, 0.2
  %v1759 = vmul.f32 %v1755, 0.2
  %v1760 = vsel %vm1756, %v1754, %v1758
  %v1761 = vsel %vm1757, %v1755, %v1759
  %v1762 = vld [vmem:[%s1642] sm:$0xff]
  %v1763 = vld [vmem:[%s1642 + $0x8] sm:$0xff]
  %vm1764 = vcmp.gt.f32.partialorder %v1762, 0.0
  %vm1765 = vcmp.gt.f32.partialorder %v1763, 0.0
  %1768 = vrot.lane.b32.xlu0 %v1760, 112
  %v1769 = vpop.permute.xlu0 %1768
  %1770 = vrot.lane.b32.xlu0 %v1761, 112
  %v1771 = vpop.permute.xlu0 %1770
  %v1774 = vsel %vm1764, %v1769, -9e+15
  %v1775 = vsel %vm1765, %v1771, -9e+15
  %v1776 = vsel %vm638, %v1774, -inf
  %1777 = vmax.xlane.f32.xlu0 %v1776
  %v1778 = vpop.xlane.xlu0 %1777
  %v1779 = vsel %vm638, %v1775, -inf
  %1780 = vmax.xlane.f32.xlu0 %v1779
  %v1781 = vpop.xlane.xlu0 %1780
  %v1782 = vsub.f32 %v1774, %v1778
  %v1783 = vsub.f32 %v1775, %v1781
  %v1784 = vmul.f32 %v1782, 1.442695
  %v1785 = vpow.pop %v1784
  %v1786 = vmul.f32 %v1783, 1.442695
  %v1787 = vpow.pop %v1786
  %v1788 = vsel %vm638, %v1785, 0.0
  %1789 = vadd.xlane.f32.xlu0 %v1788
  %v1790 = vpop.xlane.xlu0 %1789
  %v1791 = vsel %vm638, %v1787, 0.0
  %1792 = vadd.xlane.f32.xlu0 %v1791
  %v1793 = vpop.xlane.xlu0 %1792
  %v1794 = vrcp.pop %v1790
  %v1795 = vmul.f32 %v1790, %v1794
  %v1796 = vsub.f32 1.0, %v1795
  %v1797 = vmul.f32 %v1794, %v1796
  %v1798 = vadd.f32 %v1794, %v1797
  %vm1799 = vweird.f32 %v1790
  %vm1800 = vweird.f32 %v1794
  %vm1801 = vmor %vm1799, %vm1800
  %v1802 = vsel %vm1801, %v1794, %v1798
  %v1803 = vand.u32 2147483647, %v1790
  %vm1804 = vcmp.eq.f32.partialorder %v1803, 8.507059e+37
  %v1805 = vand.u32 %v1790, 2147483648
  %v1806 = vor.u32 1.1754944e-38, %v1805
  %v1807 = vsel %vm1804, %v1806, %v1802
  %v1808 = vrcp.pop %v1793
  %v1809 = vmul.f32 %v1793, %v1808
  %v1810 = vsub.f32 1.0, %v1809
  %v1811 = vmul.f32 %v1808, %v1810
  %v1812 = vadd.f32 %v1808, %v1811
  %vm1813 = vweird.f32 %v1793
  %vm1814 = vweird.f32 %v1808
  %vm1815 = vmor %vm1813, %vm1814
  %v1816 = vsel %vm1815, %v1808, %v1812
  %v1817 = vand.u32 2147483647, %v1793
  %vm1818 = vcmp.eq.f32.partialorder %v1817, 8.507059e+37
  %v1819 = vand.u32 %v1793, 2147483648
  %v1820 = vor.u32 1.1754944e-38, %v1819
  %v1821 = vsel %vm1818, %v1820, %v1816
  %v1822 = vmul.f32 %v1785, %v1807
  %v1823 = vmul.f32 %v1787, %v1821
  %v1825 = vsel %vm638, %v1822, 0
  %v1828 = vsel %vm638, %v1823, 0
  %1830 = vmatpush.msra.mxu0 0.0
  %1831 = vmatpush.msra.mxu0 0.0
  %1832 = vmatpush.msra.mxu0 0.0
  %1833 = vmatpush.msra.mxu0 0.0
  %1834 = vmatpush.msra.mxu0 0.0
  %1835 = vmatpush.msra.mxu0 0.0
  %1836 = vmatpush.msra.mxu0 0.0
  %1837 = vmatpush.msra.mxu0 0.0
  %1838 = vmatpush.msra.mxu0 0.0
  %1839 = vmatpush.msra.mxu0 0.0
  %1840 = vmatpush.msra.mxu0 0.0
  %1841 = vmatpush.msra.mxu0 0.0
  %1842 = vmatpush.msra.mxu0 0.0
  %1843 = vmatpush.msra.mxu0 0.0
  %1844 = vmatpush.msra.mxu0 %v1741
  %1845 = vmatpush.msra.mxu0 %v1740
  %1846 = vmatmul.f32.gmra.mxu0 %v1825
  %v1847 = vpop.f32.mrf.mxu0
  %v1848 = vadd.f32 0.0, %v1847
  %1849 = vmatmul.f32.gmra.mxu0 %v1828
  %v1850 = vpop.f32.mrf.mxu0
  %v1851 = vadd.f32 0.0, %v1850
  %1852 = vdwg.mxu0
  %vm1853 = vcmp.gt.f32.partialorder %v1848, 0.0
  %vm1854 = vcmp.gt.f32.partialorder %v1851, 0.0
  %v1855 = vmin.f32 %v1848, 0.0
  %v1856 = vmin.f32 %v1851, 0.0
  %v1857 = vmul.f32 %v1855, 1.442695
  %v1858 = vpow.pop %v1857
  %v1859 = vmul.f32 %v1856, 1.442695
  %v1860 = vpow.pop %v1859
  %v1861 = vsub.f32 %v1858, 1.0
  %v1862 = vsub.f32 %v1860, 1.0
  %v1863 = vsel %vm1853, %v1848, %v1861
  %v1864 = vsel %vm1854, %v1851, %v1862
  %1865 = vst.msk [vmem:[#allocation4 + $0x30] sm:$0xff] %vm275, %v1863
  %1866 = vst.msk [vmem:[#allocation4 + $0x38] sm:$0xff] %vm275, %v1864
  %v1867 = vld [vmem:[#allocation2 + $0xa0] sm:$0xff]
  %v1868 = vld [vmem:[#allocation2 + $0xa8] sm:$0xff]
  %v1869 = vld [vmem:[#allocation3 + $0xa0] sm:$0xff]
  %v1870 = vld [vmem:[#allocation3 + $0xa8] sm:$0xff]
  %1872 = vset.pattern.permute.xlu0 0
  %1873 = vperm.xlu0 %1872, %v1869
  %v1874 = vpop.permute.xlu0 %1873
  %1877 = vset.pattern.permute.xlu0 0
  %1878 = vperm.xlu0 %1877, %v1870
  %v1879 = vpop.permute.xlu0 %1878
  %v1881 = vadd.f32 %v1874, %v1633
  %v1882 = vadd.f32 %v1879, %v1633
  %vm1883 = vcmp.gt.f32.partialorder %v1881, 0.0
  %vm1884 = vcmp.gt.f32.partialorder %v1882, 0.0
  %v1885 = vmul.f32 %v1881, 0.2
  %v1886 = vmul.f32 %v1882, 0.2
  %v1887 = vsel %vm1883, %v1881, %v1885
  %v1888 = vsel %vm1884, %v1882, %v1886
  %v1889 = vld [vmem:[%s1642] sm:$0xff]
  %v1890 = vld [vmem:[%s1642 + $0x8] sm:$0xff]
  %vm1891 = vcmp.gt.f32.partialorder %v1889, 0.0
  %vm1892 = vcmp.gt.f32.partialorder %v1890, 0.0
  %1895 = vrot.lane.b32.xlu0 %v1887, 96
  %v1896 = vpop.permute.xlu0 %1895
  %1897 = vrot.lane.b32.xlu0 %v1888, 96
  %v1898 = vpop.permute.xlu0 %1897
  %v1901 = vsel %vm1891, %v1896, -9e+15
  %v1902 = vsel %vm1892, %v1898, -9e+15
  %v1903 = vsel %vm638, %v1901, -inf
  %1904 = vmax.xlane.f32.xlu0 %v1903
  %v1905 = vpop.xlane.xlu0 %1904
  %v1906 = vsel %vm638, %v1902, -inf
  %1907 = vmax.xlane.f32.xlu0 %v1906
  %v1908 = vpop.xlane.xlu0 %1907
  %v1909 = vsub.f32 %v1901, %v1905
  %v1910 = vsub.f32 %v1902, %v1908
  %v1911 = vmul.f32 %v1909, 1.442695
  %v1912 = vpow.pop %v1911
  %v1913 = vmul.f32 %v1910, 1.442695
  %v1914 = vpow.pop %v1913
  %v1915 = vsel %vm638, %v1912, 0.0
  %1916 = vadd.xlane.f32.xlu0 %v1915
  %v1917 = vpop.xlane.xlu0 %1916
  %v1918 = vsel %vm638, %v1914, 0.0
  %1919 = vadd.xlane.f32.xlu0 %v1918
  %v1920 = vpop.xlane.xlu0 %1919
  %v1921 = vrcp.pop %v1917
  %v1922 = vmul.f32 %v1917, %v1921
  %v1923 = vsub.f32 1.0, %v1922
  %v1924 = vmul.f32 %v1921, %v1923
  %v1925 = vadd.f32 %v1921, %v1924
  %vm1926 = vweird.f32 %v1917
  %vm1927 = vweird.f32 %v1921
  %vm1928 = vmor %vm1926, %vm1927
  %v1929 = vsel %vm1928, %v1921, %v1925
  %v1930 = vand.u32 2147483647, %v1917
  %vm1931 = vcmp.eq.f32.partialorder %v1930, 8.507059e+37
  %v1932 = vand.u32 %v1917, 2147483648
  %v1933 = vor.u32 1.1754944e-38, %v1932
  %v1934 = vsel %vm1931, %v1933, %v1929
  %v1935 = vrcp.pop %v1920
  %v1936 = vmul.f32 %v1920, %v1935
  %v1937 = vsub.f32 1.0, %v1936
  %v1938 = vmul.f32 %v1935, %v1937
  %v1939 = vadd.f32 %v1935, %v1938
  %vm1940 = vweird.f32 %v1920
  %vm1941 = vweird.f32 %v1935
  %vm1942 = vmor %vm1940, %vm1941
  %v1943 = vsel %vm1942, %v1935, %v1939
  %v1944 = vand.u32 2147483647, %v1920
  %vm1945 = vcmp.eq.f32.partialorder %v1944, 8.507059e+37
  %v1946 = vand.u32 %v1920, 2147483648
  %v1947 = vor.u32 1.1754944e-38, %v1946
  %v1948 = vsel %vm1945, %v1947, %v1943
  %v1949 = vmul.f32 %v1912, %v1934
  %v1950 = vmul.f32 %v1914, %v1948
  %v1952 = vsel %vm638, %v1949, 0
  %v1955 = vsel %vm638, %v1950, 0
  %1957 = vmatpush.msra.mxu0 0.0
  %1958 = vmatpush.msra.mxu0 0.0
  %1959 = vmatpush.msra.mxu0 0.0
  %1960 = vmatpush.msra.mxu0 0.0
  %1961 = vmatpush.msra.mxu0 0.0
  %1962 = vmatpush.msra.mxu0 0.0
  %1963 = vmatpush.msra.mxu0 0.0
  %1964 = vmatpush.msra.mxu0 0.0
  %1965 = vmatpush.msra.mxu0 0.0
  %1966 = vmatpush.msra.mxu0 0.0
  %1967 = vmatpush.msra.mxu0 0.0
  %1968 = vmatpush.msra.mxu0 0.0
  %1969 = vmatpush.msra.mxu0 0.0
  %1970 = vmatpush.msra.mxu0 0.0
  %1971 = vmatpush.msra.mxu0 %v1868
  %1972 = vmatpush.msra.mxu0 %v1867
  %1973 = vmatmul.f32.gmra.mxu0 %v1952
  %v1974 = vpop.f32.mrf.mxu0
  %v1975 = vadd.f32 0.0, %v1974
  %1976 = vmatmul.f32.gmra.mxu0 %v1955
  %v1977 = vpop.f32.mrf.mxu0
  %v1978 = vadd.f32 0.0, %v1977
  %1979 = vdwg.mxu0
  %vm1980 = vcmp.gt.f32.partialorder %v1975, 0.0
  %vm1981 = vcmp.gt.f32.partialorder %v1978, 0.0
  %v1982 = vmin.f32 %v1975, 0.0
  %v1983 = vmin.f32 %v1978, 0.0
  %v1984 = vmul.f32 %v1982, 1.442695
  %v1985 = vpow.pop %v1984
  %v1986 = vmul.f32 %v1983, 1.442695
  %v1987 = vpow.pop %v1986
  %v1988 = vsub.f32 %v1985, 1.0
  %v1989 = vsub.f32 %v1987, 1.0
  %v1990 = vsel %vm1980, %v1975, %v1988
  %v1991 = vsel %vm1981, %v1978, %v1989
  %1992 = vst.msk [vmem:[#allocation4 + $0x50] sm:$0xff] %vm275, %v1990
  %1993 = vst.msk [vmem:[#allocation4 + $0x58] sm:$0xff] %vm275, %v1991
  %v1994 = vld [vmem:[#allocation2 + $0xb0] sm:$0xff]
  %v1995 = vld [vmem:[#allocation2 + $0xb8] sm:$0xff]
  %v1996 = vld [vmem:[#allocation3 + $0xb0] sm:$0xff]
  %v1997 = vld [vmem:[#allocation3 + $0xb8] sm:$0xff]
  %1999 = vset.pattern.permute.xlu0 0
  %2000 = vperm.xlu0 %1999, %v1996
  %v2001 = vpop.permute.xlu0 %2000
  %2004 = vset.pattern.permute.xlu0 0
  %2005 = vperm.xlu0 %2004, %v1997
  %v2006 = vpop.permute.xlu0 %2005
  %v2008 = vadd.f32 %v2001, %v1633
  %v2009 = vadd.f32 %v2006, %v1633
  %vm2010 = vcmp.gt.f32.partialorder %v2008, 0.0
  %vm2011 = vcmp.gt.f32.partialorder %v2009, 0.0
  %v2012 = vmul.f32 %v2008, 0.2
  %v2013 = vmul.f32 %v2009, 0.2
  %v2014 = vsel %vm2010, %v2008, %v2012
  %v2015 = vsel %vm2011, %v2009, %v2013
  %v2016 = vld [vmem:[%s1642] sm:$0xff]
  %v2017 = vld [vmem:[%s1642 + $0x8] sm:$0xff]
  %vm2018 = vcmp.gt.f32.partialorder %v2016, 0.0
  %vm2019 = vcmp.gt.f32.partialorder %v2017, 0.0
  %2022 = vrot.lane.b32.xlu0 %v2014, 80
  %v2023 = vpop.permute.xlu0 %2022
  %2024 = vrot.lane.b32.xlu0 %v2015, 80
  %v2025 = vpop.permute.xlu0 %2024
  %v2028 = vsel %vm2018, %v2023, -9e+15
  %v2029 = vsel %vm2019, %v2025, -9e+15
  %v2030 = vsel %vm638, %v2028, -inf
  %2031 = vmax.xlane.f32.xlu0 %v2030
  %v2032 = vpop.xlane.xlu0 %2031
  %v2033 = vsel %vm638, %v2029, -inf
  %2034 = vmax.xlane.f32.xlu0 %v2033
  %v2035 = vpop.xlane.xlu0 %2034
  %v2036 = vsub.f32 %v2028, %v2032
  %v2037 = vsub.f32 %v2029, %v2035
  %v2038 = vmul.f32 %v2036, 1.442695
  %v2039 = vpow.pop %v2038
  %v2040 = vmul.f32 %v2037, 1.442695
  %v2041 = vpow.pop %v2040
  %v2042 = vsel %vm638, %v2039, 0.0
  %2043 = vadd.xlane.f32.xlu0 %v2042
  %v2044 = vpop.xlane.xlu0 %2043
  %v2045 = vsel %vm638, %v2041, 0.0
  %2046 = vadd.xlane.f32.xlu0 %v2045
  %v2047 = vpop.xlane.xlu0 %2046
  %v2048 = vrcp.pop %v2044
  %v2049 = vmul.f32 %v2044, %v2048
  %v2050 = vsub.f32 1.0, %v2049
  %v2051 = vmul.f32 %v2048, %v2050
  %v2052 = vadd.f32 %v2048, %v2051
  %vm2053 = vweird.f32 %v2044
  %vm2054 = vweird.f32 %v2048
  %vm2055 = vmor %vm2053, %vm2054
  %v2056 = vsel %vm2055, %v2048, %v2052
  %v2057 = vand.u32 2147483647, %v2044
  %vm2058 = vcmp.eq.f32.partialorder %v2057, 8.507059e+37
  %v2059 = vand.u32 %v2044, 2147483648
  %v2060 = vor.u32 1.1754944e-38, %v2059
  %v2061 = vsel %vm2058, %v2060, %v2056
  %v2062 = vrcp.pop %v2047
  %v2063 = vmul.f32 %v2047, %v2062
  %v2064 = vsub.f32 1.0, %v2063
  %v2065 = vmul.f32 %v2062, %v2064
  %v2066 = vadd.f32 %v2062, %v2065
  %vm2067 = vweird.f32 %v2047
  %vm2068 = vweird.f32 %v2062
  %vm2069 = vmor %vm2067, %vm2068
  %v2070 = vsel %vm2069, %v2062, %v2066
  %v2071 = vand.u32 2147483647, %v2047
  %vm2072 = vcmp.eq.f32.partialorder %v2071, 8.507059e+37
  %v2073 = vand.u32 %v2047, 2147483648
  %v2074 = vor.u32 1.1754944e-38, %v2073
  %v2075 = vsel %vm2072, %v2074, %v2070
  %v2076 = vmul.f32 %v2039, %v2061
  %v2077 = vmul.f32 %v2041, %v2075
  %v2079 = vsel %vm638, %v2076, 0
  %v2082 = vsel %vm638, %v2077, 0
  %2084 = vmatpush.msra.mxu0 0.0
  %2085 = vmatpush.msra.mxu0 0.0
  %2086 = vmatpush.msra.mxu0 0.0
  %2087 = vmatpush.msra.mxu0 0.0
  %2088 = vmatpush.msra.mxu0 0.0
  %2089 = vmatpush.msra.mxu0 0.0
  %2090 = vmatpush.msra.mxu0 0.0
  %2091 = vmatpush.msra.mxu0 0.0
  %2092 = vmatpush.msra.mxu0 0.0
  %2093 = vmatpush.msra.mxu0 0.0
  %2094 = vmatpush.msra.mxu0 0.0
  %2095 = vmatpush.msra.mxu0 0.0
  %2096 = vmatpush.msra.mxu0 0.0
  %2097 = vmatpush.msra.mxu0 0.0
  %2098 = vmatpush.msra.mxu0 %v1995
  %2099 = vmatpush.msra.mxu0 %v1994
  %2100 = vmatmul.f32.gmra.mxu0 %v2079
  %v2101 = vpop.f32.mrf.mxu0
  %v2102 = vadd.f32 0.0, %v2101
  %2103 = vmatmul.f32.gmra.mxu0 %v2082
  %v2104 = vpop.f32.mrf.mxu0
  %v2105 = vadd.f32 0.0, %v2104
  %2106 = vdwg.mxu0
  %vm2107 = vcmp.gt.f32.partialorder %v2102, 0.0
  %vm2108 = vcmp.gt.f32.partialorder %v2105, 0.0
  %v2109 = vmin.f32 %v2102, 0.0
  %v2110 = vmin.f32 %v2105, 0.0
  %v2111 = vmul.f32 %v2109, 1.442695
  %v2112 = vpow.pop %v2111
  %v2113 = vmul.f32 %v2110, 1.442695
  %v2114 = vpow.pop %v2113
  %v2115 = vsub.f32 %v2112, 1.0
  %v2116 = vsub.f32 %v2114, 1.0
  %v2117 = vsel %vm2107, %v2102, %v2115
  %v2118 = vsel %vm2108, %v2105, %v2116
  %2119 = vst.msk [vmem:[#allocation4 + $0x70] sm:$0xff] %vm275, %v2117
  %2120 = vst.msk [vmem:[#allocation4 + $0x78] sm:$0xff] %vm275, %v2118
  %v2121 = vld [vmem:[#allocation2 + $0xc0] sm:$0xff]
  %v2122 = vld [vmem:[#allocation2 + $0xc8] sm:$0xff]
  %v2123 = vld [vmem:[#allocation3 + $0xc0] sm:$0xff]
  %v2124 = vld [vmem:[#allocation3 + $0xc8] sm:$0xff]
  %2126 = vset.pattern.permute.xlu0 0
  %2127 = vperm.xlu0 %2126, %v2123
  %v2128 = vpop.permute.xlu0 %2127
  %2131 = vset.pattern.permute.xlu0 0
  %2132 = vperm.xlu0 %2131, %v2124
  %v2133 = vpop.permute.xlu0 %2132
  %v2135 = vadd.f32 %v2128, %v1633
  %v2136 = vadd.f32 %v2133, %v1633
  %vm2137 = vcmp.gt.f32.partialorder %v2135, 0.0
  %vm2138 = vcmp.gt.f32.partialorder %v2136, 0.0
  %v2139 = vmul.f32 %v2135, 0.2
  %v2140 = vmul.f32 %v2136, 0.2
  %v2141 = vsel %vm2137, %v2135, %v2139
  %v2142 = vsel %vm2138, %v2136, %v2140
  %v2143 = vld [vmem:[%s1642] sm:$0xff]
  %v2144 = vld [vmem:[%s1642 + $0x8] sm:$0xff]
  %vm2145 = vcmp.gt.f32.partialorder %v2143, 0.0
  %vm2146 = vcmp.gt.f32.partialorder %v2144, 0.0
  %2149 = vrot.lane.b32.xlu0 %v2141, 64
  %v2150 = vpop.permute.xlu0 %2149
  %2151 = vrot.lane.b32.xlu0 %v2142, 64
  %v2152 = vpop.permute.xlu0 %2151
  %v2155 = vsel %vm2145, %v2150, -9e+15
  %v2156 = vsel %vm2146, %v2152, -9e+15
  %v2157 = vsel %vm638, %v2155, -inf
  %2158 = vmax.xlane.f32.xlu0 %v2157
  %v2159 = vpop.xlane.xlu0 %2158
  %v2160 = vsel %vm638, %v2156, -inf
  %2161 = vmax.xlane.f32.xlu0 %v2160
  %v2162 = vpop.xlane.xlu0 %2161
  %v2163 = vsub.f32 %v2155, %v2159
  %v2164 = vsub.f32 %v2156, %v2162
  %v2165 = vmul.f32 %v2163, 1.442695
  %v2166 = vpow.pop %v2165
  %v2167 = vmul.f32 %v2164, 1.442695
  %v2168 = vpow.pop %v2167
  %v2169 = vsel %vm638, %v2166, 0.0
  %2170 = vadd.xlane.f32.xlu0 %v2169
  %v2171 = vpop.xlane.xlu0 %2170
  %v2172 = vsel %vm638, %v2168, 0.0
  %2173 = vadd.xlane.f32.xlu0 %v2172
  %v2174 = vpop.xlane.xlu0 %2173
  %v2175 = vrcp.pop %v2171
  %v2176 = vmul.f32 %v2171, %v2175
  %v2177 = vsub.f32 1.0, %v2176
  %v2178 = vmul.f32 %v2175, %v2177
  %v2179 = vadd.f32 %v2175, %v2178
  %vm2180 = vweird.f32 %v2171
  %vm2181 = vweird.f32 %v2175
  %vm2182 = vmor %vm2180, %vm2181
  %v2183 = vsel %vm2182, %v2175, %v2179
  %v2184 = vand.u32 2147483647, %v2171
  %vm2185 = vcmp.eq.f32.partialorder %v2184, 8.507059e+37
  %v2186 = vand.u32 %v2171, 2147483648
  %v2187 = vor.u32 1.1754944e-38, %v2186
  %v2188 = vsel %vm2185, %v2187, %v2183
  %v2189 = vrcp.pop %v2174
  %v2190 = vmul.f32 %v2174, %v2189
  %v2191 = vsub.f32 1.0, %v2190
  %v2192 = vmul.f32 %v2189, %v2191
  %v2193 = vadd.f32 %v2189, %v2192
  %vm2194 = vweird.f32 %v2174
  %vm2195 = vweird.f32 %v2189
  %vm2196 = vmor %vm2194, %vm2195
  %v2197 = vsel %vm2196, %v2189, %v2193
  %v2198 = vand.u32 2147483647, %v2174
  %vm2199 = vcmp.eq.f32.partialorder %v2198, 8.507059e+37
  %v2200 = vand.u32 %v2174, 2147483648
  %v2201 = vor.u32 1.1754944e-38, %v2200
  %v2202 = vsel %vm2199, %v2201, %v2197
  %v2203 = vmul.f32 %v2166, %v2188
  %v2204 = vmul.f32 %v2168, %v2202
  %v2206 = vsel %vm638, %v2203, 0
  %v2209 = vsel %vm638, %v2204, 0
  %2211 = vmatpush.msra.mxu0 0.0
  %2212 = vmatpush.msra.mxu0 0.0
  %2213 = vmatpush.msra.mxu0 0.0
  %2214 = vmatpush.msra.mxu0 0.0
  %2215 = vmatpush.msra.mxu0 0.0
  %2216 = vmatpush.msra.mxu0 0.0
  %2217 = vmatpush.msra.mxu0 0.0
  %2218 = vmatpush.msra.mxu0 0.0
  %2219 = vmatpush.msra.mxu0 0.0
  %2220 = vmatpush.msra.mxu0 0.0
  %2221 = vmatpush.msra.mxu0 0.0
  %2222 = vmatpush.msra.mxu0 0.0
  %2223 = vmatpush.msra.mxu0 0.0
  %2224 = vmatpush.msra.mxu0 0.0
  %2225 = vmatpush.msra.mxu0 %v2122
  %2226 = vmatpush.msra.mxu0 %v2121
  %2227 = vmatmul.f32.gmra.mxu0 %v2206
  %v2228 = vpop.f32.mrf.mxu0
  %v2229 = vadd.f32 0.0, %v2228
  %2230 = vmatmul.f32.gmra.mxu0 %v2209
  %v2231 = vpop.f32.mrf.mxu0
  %v2232 = vadd.f32 0.0, %v2231
  %2233 = vdwg.mxu0
  %vm2234 = vcmp.gt.f32.partialorder %v2229, 0.0
  %vm2235 = vcmp.gt.f32.partialorder %v2232, 0.0
  %v2236 = vmin.f32 %v2229, 0.0
  %v2237 = vmin.f32 %v2232, 0.0
  %v2238 = vmul.f32 %v2236, 1.442695
  %v2239 = vpow.pop %v2238
  %v2240 = vmul.f32 %v2237, 1.442695
  %v2241 = vpow.pop %v2240
  %v2242 = vsub.f32 %v2239, 1.0
  %v2243 = vsub.f32 %v2241, 1.0
  %v2244 = vsel %vm2234, %v2229, %v2242
  %v2245 = vsel %vm2235, %v2232, %v2243
  %2246 = vst.msk [vmem:[#allocation4 + $0x90] sm:$0xff] %vm275, %v2244
  %2247 = vst.msk [vmem:[#allocation4 + $0x98] sm:$0xff] %vm275, %v2245
  %v2248 = vld [vmem:[#allocation2 + $0xd0] sm:$0xff]
  %v2249 = vld [vmem:[#allocation2 + $0xd8] sm:$0xff]
  %v2250 = vld [vmem:[#allocation3 + $0xd0] sm:$0xff]
  %v2251 = vld [vmem:[#allocation3 + $0xd8] sm:$0xff]
  %2253 = vset.pattern.permute.xlu0 0
  %2254 = vperm.xlu0 %2253, %v2250
  %v2255 = vpop.permute.xlu0 %2254
  %2258 = vset.pattern.permute.xlu0 0
  %2259 = vperm.xlu0 %2258, %v2251
  %v2260 = vpop.permute.xlu0 %2259
  %v2262 = vadd.f32 %v2255, %v1633
  %v2263 = vadd.f32 %v2260, %v1633
  %vm2264 = vcmp.gt.f32.partialorder %v2262, 0.0
  %vm2265 = vcmp.gt.f32.partialorder %v2263, 0.0
  %v2266 = vmul.f32 %v2262, 0.2
  %v2267 = vmul.f32 %v2263, 0.2
  %v2268 = vsel %vm2264, %v2262, %v2266
  %v2269 = vsel %vm2265, %v2263, %v2267
  %v2270 = vld [vmem:[%s1642] sm:$0xff]
  %v2271 = vld [vmem:[%s1642 + $0x8] sm:$0xff]
  %vm2272 = vcmp.gt.f32.partialorder %v2270, 0.0
  %vm2273 = vcmp.gt.f32.partialorder %v2271, 0.0
  %2276 = vrot.lane.b32.xlu0 %v2268, 48
  %v2277 = vpop.permute.xlu0 %2276
  %2278 = vrot.lane.b32.xlu0 %v2269, 48
  %v2279 = vpop.permute.xlu0 %2278
  %v2282 = vsel %vm2272, %v2277, -9e+15
  %v2283 = vsel %vm2273, %v2279, -9e+15
  %v2284 = vsel %vm638, %v2282, -inf
  %2285 = vmax.xlane.f32.xlu0 %v2284
  %v2286 = vpop.xlane.xlu0 %2285
  %v2287 = vsel %vm638, %v2283, -inf
  %2288 = vmax.xlane.f32.xlu0 %v2287
  %v2289 = vpop.xlane.xlu0 %2288
  %v2290 = vsub.f32 %v2282, %v2286
  %v2291 = vsub.f32 %v2283, %v2289
  %v2292 = vmul.f32 %v2290, 1.442695
  %v2293 = vpow.pop %v2292
  %v2294 = vmul.f32 %v2291, 1.442695
  %v2295 = vpow.pop %v2294
  %v2296 = vsel %vm638, %v2293, 0.0
  %2297 = vadd.xlane.f32.xlu0 %v2296
  %v2298 = vpop.xlane.xlu0 %2297
  %v2299 = vsel %vm638, %v2295, 0.0
  %2300 = vadd.xlane.f32.xlu0 %v2299
  %v2301 = vpop.xlane.xlu0 %2300
  %v2302 = vrcp.pop %v2298
  %v2303 = vmul.f32 %v2298, %v2302
  %v2304 = vsub.f32 1.0, %v2303
  %v2305 = vmul.f32 %v2302, %v2304
  %v2306 = vadd.f32 %v2302, %v2305
  %vm2307 = vweird.f32 %v2298
  %vm2308 = vweird.f32 %v2302
  %vm2309 = vmor %vm2307, %vm2308
  %v2310 = vsel %vm2309, %v2302, %v2306
  %v2311 = vand.u32 2147483647, %v2298
  %vm2312 = vcmp.eq.f32.partialorder %v2311, 8.507059e+37
  %v2313 = vand.u32 %v2298, 2147483648
  %v2314 = vor.u32 1.1754944e-38, %v2313
  %v2315 = vsel %vm2312, %v2314, %v2310
  %v2316 = vrcp.pop %v2301
  %v2317 = vmul.f32 %v2301, %v2316
  %v2318 = vsub.f32 1.0, %v2317
  %v2319 = vmul.f32 %v2316, %v2318
  %v2320 = vadd.f32 %v2316, %v2319
  %vm2321 = vweird.f32 %v2301
  %vm2322 = vweird.f32 %v2316
  %vm2323 = vmor %vm2321, %vm2322
  %v2324 = vsel %vm2323, %v2316, %v2320
  %v2325 = vand.u32 2147483647, %v2301
  %vm2326 = vcmp.eq.f32.partialorder %v2325, 8.507059e+37
  %v2327 = vand.u32 %v2301, 2147483648
  %v2328 = vor.u32 1.1754944e-38, %v2327
  %v2329 = vsel %vm2326, %v2328, %v2324
  %v2330 = vmul.f32 %v2293, %v2315
  %v2331 = vmul.f32 %v2295, %v2329
  %v2333 = vsel %vm638, %v2330, 0
  %v2336 = vsel %vm638, %v2331, 0
  %2338 = vmatpush.msra.mxu0 0.0
  %2339 = vmatpush.msra.mxu0 0.0
  %2340 = vmatpush.msra.mxu0 0.0
  %2341 = vmatpush.msra.mxu0 0.0
  %2342 = vmatpush.msra.mxu0 0.0
  %2343 = vmatpush.msra.mxu0 0.0
  %2344 = vmatpush.msra.mxu0 0.0
  %2345 = vmatpush.msra.mxu0 0.0
  %2346 = vmatpush.msra.mxu0 0.0
  %2347 = vmatpush.msra.mxu0 0.0
  %2348 = vmatpush.msra.mxu0 0.0
  %2349 = vmatpush.msra.mxu0 0.0
  %2350 = vmatpush.msra.mxu0 0.0
  %2351 = vmatpush.msra.mxu0 0.0
  %2352 = vmatpush.msra.mxu0 %v2249
  %2353 = vmatpush.msra.mxu0 %v2248
  %2354 = vmatmul.f32.gmra.mxu0 %v2333
  %v2355 = vpop.f32.mrf.mxu0
  %v2356 = vadd.f32 0.0, %v2355
  %2357 = vmatmul.f32.gmra.mxu0 %v2336
  %v2358 = vpop.f32.mrf.mxu0
  %v2359 = vadd.f32 0.0, %v2358
  %2360 = vdwg.mxu0
  %vm2361 = vcmp.gt.f32.partialorder %v2356, 0.0
  %vm2362 = vcmp.gt.f32.partialorder %v2359, 0.0
  %v2363 = vmin.f32 %v2356, 0.0
  %v2364 = vmin.f32 %v2359, 0.0
  %v2365 = vmul.f32 %v2363, 1.442695
  %v2366 = vpow.pop %v2365
  %v2367 = vmul.f32 %v2364, 1.442695
  %v2368 = vpow.pop %v2367
  %v2369 = vsub.f32 %v2366, 1.0
  %v2370 = vsub.f32 %v2368, 1.0
  %v2371 = vsel %vm2361, %v2356, %v2369
  %v2372 = vsel %vm2362, %v2359, %v2370
  %2373 = vst.msk [vmem:[#allocation4 + $0xb0] sm:$0xff] %vm275, %v2371
  %2374 = vst.msk [vmem:[#allocation4 + $0xb8] sm:$0xff] %vm275, %v2372
  %v2375 = vld [vmem:[#allocation2 + $0xe0] sm:$0xff]
  %v2376 = vld [vmem:[#allocation2 + $0xe8] sm:$0xff]
  %v2377 = vld [vmem:[#allocation3 + $0xe0] sm:$0xff]
  %v2378 = vld [vmem:[#allocation3 + $0xe8] sm:$0xff]
  %2380 = vset.pattern.permute.xlu0 0
  %2381 = vperm.xlu0 %2380, %v2377
  %v2382 = vpop.permute.xlu0 %2381
  %2385 = vset.pattern.permute.xlu0 0
  %2386 = vperm.xlu0 %2385, %v2378
  %v2387 = vpop.permute.xlu0 %2386
  %v2389 = vadd.f32 %v2382, %v1633
  %v2390 = vadd.f32 %v2387, %v1633
  %vm2391 = vcmp.gt.f32.partialorder %v2389, 0.0
  %vm2392 = vcmp.gt.f32.partialorder %v2390, 0.0
  %v2393 = vmul.f32 %v2389, 0.2
  %v2394 = vmul.f32 %v2390, 0.2
  %v2395 = vsel %vm2391, %v2389, %v2393
  %v2396 = vsel %vm2392, %v2390, %v2394
  %v2397 = vld [vmem:[%s1642] sm:$0xff]
  %v2398 = vld [vmem:[%s1642 + $0x8] sm:$0xff]
  %vm2399 = vcmp.gt.f32.partialorder %v2397, 0.0
  %vm2400 = vcmp.gt.f32.partialorder %v2398, 0.0
  %2403 = vrot.lane.b32.xlu0 %v2395, 32
  %v2404 = vpop.permute.xlu0 %2403
  %2405 = vrot.lane.b32.xlu0 %v2396, 32
  %v2406 = vpop.permute.xlu0 %2405
  %v2409 = vsel %vm2399, %v2404, -9e+15
  %v2410 = vsel %vm2400, %v2406, -9e+15
  %v2411 = vsel %vm638, %v2409, -inf
  %2412 = vmax.xlane.f32.xlu0 %v2411
  %v2413 = vpop.xlane.xlu0 %2412
  %v2414 = vsel %vm638, %v2410, -inf
  %2415 = vmax.xlane.f32.xlu0 %v2414
  %v2416 = vpop.xlane.xlu0 %2415
  %v2417 = vsub.f32 %v2409, %v2413
  %v2418 = vsub.f32 %v2410, %v2416
  %v2419 = vmul.f32 %v2417, 1.442695
  %v2420 = vpow.pop %v2419
  %v2421 = vmul.f32 %v2418, 1.442695
  %v2422 = vpow.pop %v2421
  %v2423 = vsel %vm638, %v2420, 0.0
  %2424 = vadd.xlane.f32.xlu0 %v2423
  %v2425 = vpop.xlane.xlu0 %2424
  %v2426 = vsel %vm638, %v2422, 0.0
  %2427 = vadd.xlane.f32.xlu0 %v2426
  %v2428 = vpop.xlane.xlu0 %2427
  %v2429 = vrcp.pop %v2425
  %v2430 = vmul.f32 %v2425, %v2429
  %v2431 = vsub.f32 1.0, %v2430
  %v2432 = vmul.f32 %v2429, %v2431
  %v2433 = vadd.f32 %v2429, %v2432
  %vm2434 = vweird.f32 %v2425
  %vm2435 = vweird.f32 %v2429
  %vm2436 = vmor %vm2434, %vm2435
  %v2437 = vsel %vm2436, %v2429, %v2433
  %v2438 = vand.u32 2147483647, %v2425
  %vm2439 = vcmp.eq.f32.partialorder %v2438, 8.507059e+37
  %v2440 = vand.u32 %v2425, 2147483648
  %v2441 = vor.u32 1.1754944e-38, %v2440
  %v2442 = vsel %vm2439, %v2441, %v2437
  %v2443 = vrcp.pop %v2428
  %v2444 = vmul.f32 %v2428, %v2443
  %v2445 = vsub.f32 1.0, %v2444
  %v2446 = vmul.f32 %v2443, %v2445
  %v2447 = vadd.f32 %v2443, %v2446
  %vm2448 = vweird.f32 %v2428
  %vm2449 = vweird.f32 %v2443
  %vm2450 = vmor %vm2448, %vm2449
  %v2451 = vsel %vm2450, %v2443, %v2447
  %v2452 = vand.u32 2147483647, %v2428
  %vm2453 = vcmp.eq.f32.partialorder %v2452, 8.507059e+37
  %v2454 = vand.u32 %v2428, 2147483648
  %v2455 = vor.u32 1.1754944e-38, %v2454
  %v2456 = vsel %vm2453, %v2455, %v2451
  %v2457 = vmul.f32 %v2420, %v2442
  %v2458 = vmul.f32 %v2422, %v2456
  %v2460 = vsel %vm638, %v2457, 0
  %v2463 = vsel %vm638, %v2458, 0
  %2465 = vmatpush.msra.mxu0 0.0
  %2466 = vmatpush.msra.mxu0 0.0
  %2467 = vmatpush.msra.mxu0 0.0
  %2468 = vmatpush.msra.mxu0 0.0
  %2469 = vmatpush.msra.mxu0 0.0
  %2470 = vmatpush.msra.mxu0 0.0
  %2471 = vmatpush.msra.mxu0 0.0
  %2472 = vmatpush.msra.mxu0 0.0
  %2473 = vmatpush.msra.mxu0 0.0
  %2474 = vmatpush.msra.mxu0 0.0
  %2475 = vmatpush.msra.mxu0 0.0
  %2476 = vmatpush.msra.mxu0 0.0
  %2477 = vmatpush.msra.mxu0 0.0
  %2478 = vmatpush.msra.mxu0 0.0
  %2479 = vmatpush.msra.mxu0 %v2376
  %2480 = vmatpush.msra.mxu0 %v2375
  %2481 = vmatmul.f32.gmra.mxu0 %v2460
  %v2482 = vpop.f32.mrf.mxu0
  %v2483 = vadd.f32 0.0, %v2482
  %2484 = vmatmul.f32.gmra.mxu0 %v2463
  %v2485 = vpop.f32.mrf.mxu0
  %v2486 = vadd.f32 0.0, %v2485
  %2487 = vdwg.mxu0
  %vm2488 = vcmp.gt.f32.partialorder %v2483, 0.0
  %vm2489 = vcmp.gt.f32.partialorder %v2486, 0.0
  %v2490 = vmin.f32 %v2483, 0.0
  %v2491 = vmin.f32 %v2486, 0.0
  %v2492 = vmul.f32 %v2490, 1.442695
  %v2493 = vpow.pop %v2492
  %v2494 = vmul.f32 %v2491, 1.442695
  %v2495 = vpow.pop %v2494
  %v2496 = vsub.f32 %v2493, 1.0
  %v2497 = vsub.f32 %v2495, 1.0
  %v2498 = vsel %vm2488, %v2483, %v2496
  %v2499 = vsel %vm2489, %v2486, %v2497
  %2500 = vst.msk [vmem:[#allocation4 + $0xd0] sm:$0xff] %vm275, %v2498
  %2501 = vst.msk [vmem:[#allocation4 + $0xd8] sm:$0xff] %vm275, %v2499
  %v2502 = vld [vmem:[#allocation2 + $0xf0] sm:$0xff]
  %v2503 = vld [vmem:[#allocation2 + $0xf8] sm:$0xff]
  %v2504 = vld [vmem:[#allocation3 + $0xf0] sm:$0xff]
  %v2505 = vld [vmem:[#allocation3 + $0xf8] sm:$0xff]
  %2507 = vset.pattern.permute.xlu0 0
  %2508 = vperm.xlu0 %2507, %v2504
  %v2509 = vpop.permute.xlu0 %2508
  %2512 = vset.pattern.permute.xlu0 0
  %2513 = vperm.xlu0 %2512, %v2505
  %v2514 = vpop.permute.xlu0 %2513
  %v2516 = vadd.f32 %v2509, %v1633
  %v2517 = vadd.f32 %v2514, %v1633
  %vm2518 = vcmp.gt.f32.partialorder %v2516, 0.0
  %vm2519 = vcmp.gt.f32.partialorder %v2517, 0.0
  %v2520 = vmul.f32 %v2516, 0.2
  %v2521 = vmul.f32 %v2517, 0.2
  %v2522 = vsel %vm2518, %v2516, %v2520
  %v2523 = vsel %vm2519, %v2517, %v2521
  %v2524 = vld [vmem:[%s1642] sm:$0xff]
  %v2525 = vld [vmem:[%s1642 + $0x8] sm:$0xff]
  %vm2526 = vcmp.gt.f32.partialorder %v2524, 0.0
  %vm2527 = vcmp.gt.f32.partialorder %v2525, 0.0
  %2530 = vrot.lane.b32.xlu0 %v2522, 16
  %v2531 = vpop.permute.xlu0 %2530
  %2532 = vrot.lane.b32.xlu0 %v2523, 16
  %v2533 = vpop.permute.xlu0 %2532
  %v2536 = vsel %vm2526, %v2531, -9e+15
  %v2537 = vsel %vm2527, %v2533, -9e+15
  %v2538 = vsel %vm638, %v2536, -inf
  %2539 = vmax.xlane.f32.xlu0 %v2538
  %v2540 = vpop.xlane.xlu0 %2539
  %v2541 = vsel %vm638, %v2537, -inf
  %2542 = vmax.xlane.f32.xlu0 %v2541
  %v2543 = vpop.xlane.xlu0 %2542
  %v2544 = vsub.f32 %v2536, %v2540
  %v2545 = vsub.f32 %v2537, %v2543
  %v2546 = vmul.f32 %v2544, 1.442695
  %v2547 = vpow.pop %v2546
  %v2548 = vmul.f32 %v2545, 1.442695
  %v2549 = vpow.pop %v2548
  %v2550 = vsel %vm638, %v2547, 0.0
  %2551 = vadd.xlane.f32.xlu0 %v2550
  %v2552 = vpop.xlane.xlu0 %2551
  %v2553 = vsel %vm638, %v2549, 0.0
  %2554 = vadd.xlane.f32.xlu0 %v2553
  %v2555 = vpop.xlane.xlu0 %2554
  %v2556 = vrcp.pop %v2552
  %v2557 = vmul.f32 %v2552, %v2556
  %v2558 = vsub.f32 1.0, %v2557
  %v2559 = vmul.f32 %v2556, %v2558
  %v2560 = vadd.f32 %v2556, %v2559
  %vm2561 = vweird.f32 %v2552
  %vm2562 = vweird.f32 %v2556
  %vm2563 = vmor %vm2561, %vm2562
  %v2564 = vsel %vm2563, %v2556, %v2560
  %v2565 = vand.u32 2147483647, %v2552
  %vm2566 = vcmp.eq.f32.partialorder %v2565, 8.507059e+37
  %v2567 = vand.u32 %v2552, 2147483648
  %v2568 = vor.u32 1.1754944e-38, %v2567
  %v2569 = vsel %vm2566, %v2568, %v2564
  %v2570 = vrcp.pop %v2555
  %v2571 = vmul.f32 %v2555, %v2570
  %v2572 = vsub.f32 1.0, %v2571
  %v2573 = vmul.f32 %v2570, %v2572
  %v2574 = vadd.f32 %v2570, %v2573
  %vm2575 = vweird.f32 %v2555
  %vm2576 = vweird.f32 %v2570
  %vm2577 = vmor %vm2575, %vm2576
  %v2578 = vsel %vm2577, %v2570, %v2574
  %v2579 = vand.u32 2147483647, %v2555
  %vm2580 = vcmp.eq.f32.partialorder %v2579, 8.507059e+37
  %v2581 = vand.u32 %v2555, 2147483648
  %v2582 = vor.u32 1.1754944e-38, %v2581
  %v2583 = vsel %vm2580, %v2582, %v2578
  %v2584 = vmul.f32 %v2547, %v2569
  %v2585 = vmul.f32 %v2549, %v2583
  %v2587 = vsel %vm638, %v2584, 0
  %v2590 = vsel %vm638, %v2585, 0
  %2592 = vmatpush.msra.mxu0 0.0
  %2593 = vmatpush.msra.mxu0 0.0
  %2594 = vmatpush.msra.mxu0 0.0
  %2595 = vmatpush.msra.mxu0 0.0
  %2596 = vmatpush.msra.mxu0 0.0
  %2597 = vmatpush.msra.mxu0 0.0
  %2598 = vmatpush.msra.mxu0 0.0
  %2599 = vmatpush.msra.mxu0 0.0
  %2600 = vmatpush.msra.mxu0 0.0
  %2601 = vmatpush.msra.mxu0 0.0
  %2602 = vmatpush.msra.mxu0 0.0
  %2603 = vmatpush.msra.mxu0 0.0
  %2604 = vmatpush.msra.mxu0 0.0
  %2605 = vmatpush.msra.mxu0 0.0
  %2606 = vmatpush.msra.mxu0 %v2503
  %2607 = vmatpush.msra.mxu0 %v2502
  %2608 = vmatmul.f32.gmra.mxu0 %v2587
  %v2609 = vpop.f32.mrf.mxu0
  %v2610 = vadd.f32 0.0, %v2609
  %2611 = vmatmul.f32.gmra.mxu0 %v2590
  %v2612 = vpop.f32.mrf.mxu0
  %v2613 = vadd.f32 0.0, %v2612
  %2614 = vdwg.mxu0
  %vm2615 = vcmp.gt.f32.partialorder %v2610, 0.0
  %vm2616 = vcmp.gt.f32.partialorder %v2613, 0.0
  %v2617 = vmin.f32 %v2610, 0.0
  %v2618 = vmin.f32 %v2613, 0.0
  %v2619 = vmul.f32 %v2617, 1.442695
  %v2620 = vpow.pop %v2619
  %v2621 = vmul.f32 %v2618, 1.442695
  %v2622 = vpow.pop %v2621
  %v2623 = vsub.f32 %v2620, 1.0
  %v2624 = vsub.f32 %v2622, 1.0
  %v2625 = vsel %vm2615, %v2610, %v2623
  %v2626 = vsel %vm2616, %v2613, %v2624
  %2627 = vst.msk [vmem:[#allocation4 + $0xf0] sm:$0xff] %vm275, %v2625
  %2628 = vst.msk [vmem:[#allocation4 + $0xf8] sm:$0xff] %vm275, %v2626
  %v2629 = vld [vmem:[%s4] sm:$0xff]
  %v2630 = vld [vmem:[%s4 + $0x8] sm:$0xff]
  %v2631 = vld [vmem:[%s4 + $0x10] sm:$0xff]
  %v2632 = vld [vmem:[%s4 + $0x18] sm:$0xff]
  %v2633 = vld [vmem:[%s4 + $0x20] sm:$0xff]
  %v2634 = vld [vmem:[%s4 + $0x28] sm:$0xff]
  %v2635 = vld [vmem:[%s4 + $0x30] sm:$0xff]
  %v2636 = vld [vmem:[%s4 + $0x38] sm:$0xff]
  %v2637 = vld [vmem:[%s4 + $0x40] sm:$0x1]
  %v2638 = vld [vmem:[#allocation4] sm:$0xff]
  %v2639 = vld [vmem:[#allocation4 + $0x8] sm:$0xff]
  %v2640 = vld [vmem:[#allocation4 + $0x10] sm:$0xff]
  %v2641 = vld [vmem:[#allocation4 + $0x18] sm:$0xff]
  %v2642 = vld [vmem:[#allocation4 + $0x20] sm:$0xff]
  %v2643 = vld [vmem:[#allocation4 + $0x28] sm:$0xff]
  %v2644 = vld [vmem:[#allocation4 + $0x30] sm:$0xff]
  %v2645 = vld [vmem:[#allocation4 + $0x38] sm:$0xff]
  %v2646 = vld [vmem:[#allocation4 + $0x40] sm:$0xff]
  %v2647 = vld [vmem:[#allocation4 + $0x48] sm:$0xff]
  %v2648 = vld [vmem:[#allocation4 + $0x50] sm:$0xff]
  %v2649 = vld [vmem:[#allocation4 + $0x58] sm:$0xff]
  %v2650 = vld [vmem:[#allocation4 + $0x60] sm:$0xff]
  %v2651 = vld [vmem:[#allocation4 + $0x68] sm:$0xff]
  %v2652 = vld [vmem:[#allocation4 + $0x70] sm:$0xff]
  %v2653 = vld [vmem:[#allocation4 + $0x78] sm:$0xff]
  %v2654 = vld [vmem:[#allocation4 + $0x80] sm:$0xff]
  %v2655 = vld [vmem:[#allocation4 + $0x88] sm:$0xff]
  %v2656 = vld [vmem:[#allocation4 + $0x90] sm:$0xff]
  %v2657 = vld [vmem:[#allocation4 + $0x98] sm:$0xff]
  %v2658 = vld [vmem:[#allocation4 + $0xa0] sm:$0xff]
  %v2659 = vld [vmem:[#allocation4 + $0xa8] sm:$0xff]
  %v2660 = vld [vmem:[#allocation4 + $0xb0] sm:$0xff]
  %v2661 = vld [vmem:[#allocation4 + $0xb8] sm:$0xff]
  %v2662 = vld [vmem:[#allocation4 + $0xc0] sm:$0xff]
  %v2663 = vld [vmem:[#allocation4 + $0xc8] sm:$0xff]
  %v2664 = vld [vmem:[#allocation4 + $0xd0] sm:$0xff]
  %v2665 = vld [vmem:[#allocation4 + $0xd8] sm:$0xff]
  %v2666 = vld [vmem:[#allocation4 + $0xe0] sm:$0xff]
  %v2667 = vld [vmem:[#allocation4 + $0xe8] sm:$0xff]
  %v2668 = vld [vmem:[#allocation4 + $0xf0] sm:$0xff]
  %v2669 = vld [vmem:[#allocation4 + $0xf8] sm:$0xff]
  %v2670 = vperm.slane %v2637, 0
  %v2672 = vsel %vm275, %v2638, 0
  %v2675 = vsel %vm275, %v2639, 0
  %v2678 = vsel %vm275, %v2640, 0
  %v2681 = vsel %vm275, %v2641, 0
  %v2684 = vsel %vm275, %v2642, 0
  %v2687 = vsel %vm275, %v2643, 0
  %v2690 = vsel %vm275, %v2644, 0
  %v2693 = vsel %vm275, %v2645, 0
  %v2696 = vsel %vm275, %v2646, 0
  %v2699 = vsel %vm275, %v2647, 0
  %v2702 = vsel %vm275, %v2648, 0
  %v2705 = vsel %vm275, %v2649, 0
  %v2708 = vsel %vm275, %v2650, 0
  %v2711 = vsel %vm275, %v2651, 0
  %v2714 = vsel %vm275, %v2652, 0
  %v2717 = vsel %vm275, %v2653, 0
  %v2720 = vsel %vm275, %v2654, 0
  %v2723 = vsel %vm275, %v2655, 0
  %v2726 = vsel %vm275, %v2656, 0
  %v2729 = vsel %vm275, %v2657, 0
  %v2732 = vsel %vm275, %v2658, 0
  %v2735 = vsel %vm275, %v2659, 0
  %v2738 = vsel %vm275, %v2660, 0
  %v2741 = vsel %vm275, %v2661, 0
  %v2744 = vsel %vm275, %v2662, 0
  %v2747 = vsel %vm275, %v2663, 0
  %v2750 = vsel %vm275, %v2664, 0
  %v2753 = vsel %vm275, %v2665, 0
  %v2756 = vsel %vm275, %v2666, 0
  %v2759 = vsel %vm275, %v2667, 0
  %v2762 = vsel %vm275, %v2668, 0
  %v2765 = vsel %vm275, %v2669, 0
  %2767 = vmatpush.msra.mxu0 0.0
  %2768 = vmatpush.msra.mxu0 0.0
  %2769 = vmatpush.msra.mxu0 0.0
  %2770 = vmatpush.msra.mxu0 0.0
  %2771 = vmatpush.msra.mxu0 0.0
  %2772 = vmatpush.msra.mxu0 0.0
  %2773 = vmatpush.msra.mxu0 0.0
  %2774 = vmatpush.msra.mxu0 0.0
  %2775 = vmatpush.msra.mxu0 0.0
  %2776 = vmatpush.msra.mxu0 0.0
  %2777 = vmatpush.msra.mxu0 0.0
  %2778 = vmatpush.msra.mxu0 0.0
  %2779 = vmatpush.msra.mxu0 %v2632
  %2780 = vmatpush.msra.mxu0 %v2631
  %2781 = vmatpush.msra.mxu0 %v2630
  %2782 = vmatpush.msra.mxu0 %v2629
  %2783 = vmatmul.f32.gmra.mxu0 %v2672
  %v2784 = vpop.f32.mrf.mxu0
  %v2785 = vadd.f32 %v2670, %v2784
  %2786 = vmatmul.f32.gmra.mxu0 %v2675
  %v2787 = vpop.f32.mrf.mxu0
  %v2788 = vadd.f32 %v2670, %v2787
  %2789 = vmatmul.f32.gmra.mxu0 %v2678
  %v2790 = vpop.f32.mrf.mxu0
  %v2791 = vadd.f32 %v2670, %v2790
  %2792 = vmatmul.f32.gmra.mxu0 %v2681
  %v2793 = vpop.f32.mrf.mxu0
  %v2794 = vadd.f32 %v2670, %v2793
  %2795 = vmatmul.f32.gmra.mxu0 %v2684
  %v2796 = vpop.f32.mrf.mxu0
  %v2797 = vadd.f32 %v2670, %v2796
  %2798 = vmatmul.f32.gmra.mxu0 %v2687
  %v2799 = vpop.f32.mrf.mxu0
  %v2800 = vadd.f32 %v2670, %v2799
  %2801 = vmatmul.f32.gmra.mxu0 %v2690
  %v2802 = vpop.f32.mrf.mxu0
  %v2803 = vadd.f32 %v2670, %v2802
  %2804 = vmatmul.f32.gmra.mxu0 %v2693
  %v2805 = vpop.f32.mrf.mxu0
  %v2806 = vadd.f32 %v2670, %v2805
  %2807 = vmatmul.f32.gmra.mxu0 %v2696
  %v2808 = vpop.f32.mrf.mxu0
  %v2809 = vadd.f32 %v2670, %v2808
  %2810 = vmatmul.f32.gmra.mxu0 %v2699
  %v2811 = vpop.f32.mrf.mxu0
  %v2812 = vadd.f32 %v2670, %v2811
  %2813 = vmatmul.f32.gmra.mxu0 %v2702
  %v2814 = vpop.f32.mrf.mxu0
  %v2815 = vadd.f32 %v2670, %v2814
  %2816 = vmatmul.f32.gmra.mxu0 %v2705
  %v2817 = vpop.f32.mrf.mxu0
  %v2818 = vadd.f32 %v2670, %v2817
  %2819 = vmatmul.f32.gmra.mxu0 %v2708
  %v2820 = vpop.f32.mrf.mxu0
  %v2821 = vadd.f32 %v2670, %v2820
  %2822 = vmatmul.f32.gmra.mxu0 %v2711
  %v2823 = vpop.f32.mrf.mxu0
  %v2824 = vadd.f32 %v2670, %v2823
  %2825 = vmatmul.f32.gmra.mxu0 %v2714
  %v2826 = vpop.f32.mrf.mxu0
  %v2827 = vadd.f32 %v2670, %v2826
  %2828 = vmatmul.f32.gmra.mxu0 %v2717
  %v2829 = vpop.f32.mrf.mxu0
  %v2830 = vadd.f32 %v2670, %v2829
  %2831 = vmatmul.f32.gmra.mxu0 %v2720
  %v2832 = vpop.f32.mrf.mxu0
  %v2833 = vadd.f32 %v2670, %v2832
  %2834 = vmatmul.f32.gmra.mxu0 %v2723
  %v2835 = vpop.f32.mrf.mxu0
  %v2836 = vadd.f32 %v2670, %v2835
  %2837 = vmatmul.f32.gmra.mxu0 %v2726
  %v2838 = vpop.f32.mrf.mxu0
  %v2839 = vadd.f32 %v2670, %v2838
  %2840 = vmatmul.f32.gmra.mxu0 %v2729
  %v2841 = vpop.f32.mrf.mxu0
  %v2842 = vadd.f32 %v2670, %v2841
  %2843 = vmatmul.f32.gmra.mxu0 %v2732
  %v2844 = vpop.f32.mrf.mxu0
  %v2845 = vadd.f32 %v2670, %v2844
  %2846 = vmatmul.f32.gmra.mxu0 %v2735
  %v2847 = vpop.f32.mrf.mxu0
  %v2848 = vadd.f32 %v2670, %v2847
  %2849 = vmatmul.f32.gmra.mxu0 %v2738
  %v2850 = vpop.f32.mrf.mxu0
  %v2851 = vadd.f32 %v2670, %v2850
  %2852 = vmatmul.f32.gmra.mxu0 %v2741
  %v2853 = vpop.f32.mrf.mxu0
  %v2854 = vadd.f32 %v2670, %v2853
  %2855 = vmatmul.f32.gmra.mxu0 %v2744
  %v2856 = vpop.f32.mrf.mxu0
  %v2857 = vadd.f32 %v2670, %v2856
  %2858 = vmatmul.f32.gmra.mxu0 %v2747
  %v2859 = vpop.f32.mrf.mxu0
  %v2860 = vadd.f32 %v2670, %v2859
  %2861 = vmatmul.f32.gmra.mxu0 %v2750
  %v2862 = vpop.f32.mrf.mxu0
  %v2863 = vadd.f32 %v2670, %v2862
  %2864 = vmatmul.f32.gmra.mxu0 %v2753
  %v2865 = vpop.f32.mrf.mxu0
  %v2866 = vadd.f32 %v2670, %v2865
  %2867 = vmatmul.f32.gmra.mxu0 %v2756
  %v2868 = vpop.f32.mrf.mxu0
  %v2869 = vadd.f32 %v2670, %v2868
  %2870 = vmatmul.f32.gmra.mxu0 %v2759
  %v2871 = vpop.f32.mrf.mxu0
  %v2872 = vadd.f32 %v2670, %v2871
  %2873 = vmatmul.f32.gmra.mxu0 %v2762
  %v2874 = vpop.f32.mrf.mxu0
  %v2875 = vadd.f32 %v2670, %v2874
  %2876 = vmatmul.f32.gmra.mxu0 %v2765
  %v2877 = vpop.f32.mrf.mxu0
  %v2878 = vadd.f32 %v2670, %v2877
  %2879 = vdwg.mxu0
  %2880 = vst [vmem:[#allocation5] sm:$0xff] %v2785
  %2881 = vst [vmem:[#allocation5 + $0x8] sm:$0xff] %v2788
  %2882 = vst [vmem:[#allocation5 + $0x10] sm:$0xff] %v2791
  %2883 = vst [vmem:[#allocation5 + $0x18] sm:$0xff] %v2794
  %2884 = vst [vmem:[#allocation5 + $0x20] sm:$0xff] %v2797
  %2885 = vst [vmem:[#allocation5 + $0x28] sm:$0xff] %v2800
  %2886 = vst [vmem:[#allocation5 + $0x30] sm:$0xff] %v2803
  %2887 = vst [vmem:[#allocation5 + $0x38] sm:$0xff] %v2806
  %2888 = vst [vmem:[#allocation5 + $0x40] sm:$0xff] %v2809
  %2889 = vst [vmem:[#allocation5 + $0x48] sm:$0xff] %v2812
  %2890 = vst [vmem:[#allocation5 + $0x50] sm:$0xff] %v2815
  %2891 = vst [vmem:[#allocation5 + $0x58] sm:$0xff] %v2818
  %2892 = vst [vmem:[#allocation5 + $0x60] sm:$0xff] %v2821
  %2893 = vst [vmem:[#allocation5 + $0x68] sm:$0xff] %v2824
  %2894 = vst [vmem:[#allocation5 + $0x70] sm:$0xff] %v2827
  %2895 = vst [vmem:[#allocation5 + $0x78] sm:$0xff] %v2830
  %2896 = vst [vmem:[#allocation5 + $0x80] sm:$0xff] %v2833
  %2897 = vst [vmem:[#allocation5 + $0x88] sm:$0xff] %v2836
  %2898 = vst [vmem:[#allocation5 + $0x90] sm:$0xff] %v2839
  %2899 = vst [vmem:[#allocation5 + $0x98] sm:$0xff] %v2842
  %2900 = vst [vmem:[#allocation5 + $0xa0] sm:$0xff] %v2845
  %2901 = vst [vmem:[#allocation5 + $0xa8] sm:$0xff] %v2848
  %2902 = vst [vmem:[#allocation5 + $0xb0] sm:$0xff] %v2851
  %2903 = vst [vmem:[#allocation5 + $0xb8] sm:$0xff] %v2854
  %2904 = vst [vmem:[#allocation5 + $0xc0] sm:$0xff] %v2857
  %2905 = vst [vmem:[#allocation5 + $0xc8] sm:$0xff] %v2860
  %2906 = vst [vmem:[#allocation5 + $0xd0] sm:$0xff] %v2863
  %2907 = vst [vmem:[#allocation5 + $0xd8] sm:$0xff] %v2866
  %2908 = vst [vmem:[#allocation5 + $0xe0] sm:$0xff] %v2869
  %2909 = vst [vmem:[#allocation5 + $0xe8] sm:$0xff] %v2872
  %2910 = vst [vmem:[#allocation5 + $0xf0] sm:$0xff] %v2875
  %2911 = vst [vmem:[#allocation5 + $0xf8] sm:$0xff] %v2878
  %v2912 = vld [vmem:[#allocation5] sm:$0xff]
  %v2913 = vld [vmem:[#allocation5 + $0x8] sm:$0xff]
  %v2914 = vld [vmem:[#allocation5 + $0x10] sm:$0xff]
  %v2915 = vld [vmem:[#allocation5 + $0x18] sm:$0xff]
  %v2917 = vsel %vm275, 0.0, 0
  %2919 = vmatpush.msra.mxu0 0.0
  %2920 = vmatpush.msra.mxu0 0.0
  %2921 = vmatpush.msra.mxu0 0.0
  %2922 = vmatpush.msra.mxu0 0.0
  %2923 = vmatpush.msra.mxu0 0.0
  %2924 = vmatpush.msra.mxu0 0.0
  %2925 = vmatpush.msra.mxu0 0.0
  %2926 = vmatpush.msra.mxu0 0.0
  %2927 = vmatpush.msra.mxu0 0.0
  %2928 = vmatpush.msra.mxu0 0.0
  %2929 = vmatpush.msra.mxu0 0.0
  %2930 = vmatpush.msra.mxu0 0.0
  %2931 = vmatpush.msra.mxu0 %v2636
  %2932 = vmatpush.msra.mxu0 %v2635
  %2933 = vmatpush.msra.mxu0 %v2634
  %2934 = vmatpush.msra.mxu0 %v2633
  %2935 = vmatmul.f32.gmra.mxu0 %v2917
  %v2936 = vpop.f32.mrf.mxu0
  %v2937 = vadd.f32 0.0, %v2936
  %2938 = vmatmul.f32.gmra.mxu0 %v2917
  %v2939 = vpop.f32.mrf.mxu0
  %v2940 = vadd.f32 0.0, %v2939
  %2941 = vmatmul.f32.gmra.mxu0 %v2917
  %v2942 = vpop.f32.mrf.mxu0
  %v2943 = vadd.f32 0.0, %v2942
  %2944 = vmatmul.f32.gmra.mxu0 %v2917
  %v2945 = vpop.f32.mrf.mxu0
  %v2946 = vadd.f32 0.0, %v2945
  %2947 = vdwg.mxu0
  %v2948 = vadd.f32 %v2912, %v2937
  %v2949 = vadd.f32 %v2913, %v2940
  %v2950 = vadd.f32 %v2914, %v2943
  %v2951 = vadd.f32 %v2915, %v2946
  %v2952 = vxor.u32 %v2948, 2147483648
  %v2953 = vxor.u32 %v2949, 2147483648
  %v2954 = vxor.u32 %v2950, 2147483648
  %v2955 = vxor.u32 %v2951, 2147483648
  %v2956 = vmul.f32 %v2952, 1.442695
  %v2957 = vpow.pop %v2956
  %v2958 = vmul.f32 %v2953, 1.442695
  %v2959 = vpow.pop %v2958
  %v2960 = vmul.f32 %v2954, 1.442695
  %v2961 = vpow.pop %v2960
  %v2962 = vmul.f32 %v2955, 1.442695
  %v2963 = vpow.pop %v2962
  %v2964 = vadd.f32 %v2957, 1.0
  %v2965 = vadd.f32 %v2959, 1.0
  %v2966 = vadd.f32 %v2961, 1.0
  %v2967 = vadd.f32 %v2963, 1.0
  %v2968 = vrcp.pop %v2964
  %v2969 = vmul.f32 %v2964, %v2968
  %v2970 = vsub.f32 1.0, %v2969
  %v2971 = vmul.f32 %v2968, %v2970
  %v2972 = vadd.f32 %v2968, %v2971
  %vm2973 = vweird.f32 %v2964
  %vm2974 = vweird.f32 %v2968
  %vm2975 = vmor %vm2973, %vm2974
  %v2976 = vsel %vm2975, %v2968, %v2972
  %v2977 = vand.u32 2147483647, %v2964
  %vm2978 = vcmp.eq.f32.partialorder %v2977, 8.507059e+37
  %v2979 = vand.u32 %v2964, 2147483648
  %v2980 = vor.u32 1.1754944e-38, %v2979
  %v2981 = vsel %vm2978, %v2980, %v2976
  %v2982 = vmul.f32 1.0, %v2981
  %v2983 = vrcp.pop %v2965
  %v2984 = vmul.f32 %v2965, %v2983
  %v2985 = vsub.f32 1.0, %v2984
  %v2986 = vmul.f32 %v2983, %v2985
  %v2987 = vadd.f32 %v2983, %v2986
  %vm2988 = vweird.f32 %v2965
  %vm2989 = vweird.f32 %v2983
  %vm2990 = vmor %vm2988, %vm2989
  %v2991 = vsel %vm2990, %v2983, %v2987
  %v2992 = vand.u32 2147483647, %v2965
  %vm2993 = vcmp.eq.f32.partialorder %v2992, 8.507059e+37
  %v2994 = vand.u32 %v2965, 2147483648
  %v2995 = vor.u32 1.1754944e-38, %v2994
  %v2996 = vsel %vm2993, %v2995, %v2991
  %v2997 = vmul.f32 1.0, %v2996
  %v2998 = vrcp.pop %v2966
  %v2999 = vmul.f32 %v2966, %v2998
  %v3000 = vsub.f32 1.0, %v2999
  %v3001 = vmul.f32 %v2998, %v3000
  %v3002 = vadd.f32 %v2998, %v3001
  %vm3003 = vweird.f32 %v2966
  %vm3004 = vweird.f32 %v2998
  %vm3005 = vmor %vm3003, %vm3004
  %v3006 = vsel %vm3005, %v2998, %v3002
  %v3007 = vand.u32 2147483647, %v2966
  %vm3008 = vcmp.eq.f32.partialorder %v3007, 8.507059e+37
  %v3009 = vand.u32 %v2966, 2147483648
  %v3010 = vor.u32 1.1754944e-38, %v3009
  %v3011 = vsel %vm3008, %v3010, %v3006
  %v3012 = vmul.f32 1.0, %v3011
  %v3013 = vrcp.pop %v2967
  %v3014 = vmul.f32 %v2967, %v3013
  %v3015 = vsub.f32 1.0, %v3014
  %v3016 = vmul.f32 %v3013, %v3015
  %v3017 = vadd.f32 %v3013, %v3016
  %vm3018 = vweird.f32 %v2967
  %vm3019 = vweird.f32 %v3013
  %vm3020 = vmor %vm3018, %vm3019
  %v3021 = vsel %vm3020, %v3013, %v3017
  %v3022 = vand.u32 2147483647, %v2967
  %vm3023 = vcmp.eq.f32.partialorder %v3022, 8.507059e+37
  %v3024 = vand.u32 %v2967, 2147483648
  %v3025 = vor.u32 1.1754944e-38, %v3024
  %v3026 = vsel %vm3023, %v3025, %v3021
  %v3027 = vmul.f32 1.0, %v3026
  %v3028 = vtanh.pop %v2948
  %v3029 = vtanh.pop %v2949
  %v3030 = vtanh.pop %v2950
  %v3031 = vtanh.pop %v2951
  %v3032 = vmul.f32 %v2982, 0.0
  %v3033 = vmul.f32 %v2997, 0.0
  %v3034 = vmul.f32 %v3012, 0.0
  %v3035 = vmul.f32 %v3027, 0.0
  %3040 = vrot.lane.b32.xlu0 %v3028, 64
  %v3041 = vpop.permute.xlu0 %3040
  %3042 = vrot.lane.b32.xlu0 %v3029, 64
  %v3043 = vpop.permute.xlu0 %3042
  %3044 = vrot.lane.b32.xlu0 %v3030, 64
  %v3045 = vpop.permute.xlu0 %3044
  %3046 = vrot.lane.b32.xlu0 %v3031, 64
  %v3047 = vpop.permute.xlu0 %3046
  %v3052 = vmul.f32 %v2982, %v3041
  %v3053 = vmul.f32 %v2997, %v3043
  %v3054 = vmul.f32 %v3012, %v3045
  %v3055 = vmul.f32 %v3027, %v3047
  %3060 = vrot.lane.b32.xlu0 %v3052, 32
  %v3061 = vpop.permute.xlu0 %3060
  %3062 = vrot.lane.b32.xlu0 %v3053, 32
  %v3063 = vpop.permute.xlu0 %3062
  %3064 = vrot.lane.b32.xlu0 %v3054, 32
  %v3065 = vpop.permute.xlu0 %3064
  %3066 = vrot.lane.b32.xlu0 %v3055, 32
  %v3067 = vpop.permute.xlu0 %3066
  %v3072 = vadd.f32 %v3032, %v3061
  %v3073 = vadd.f32 %v3033, %v3063
  %v3074 = vadd.f32 %v3034, %v3065
  %v3075 = vadd.f32 %v3035, %v3067
  %v3076 = vtanh.pop %v3072
  %v3077 = vtanh.pop %v3073
  %v3078 = vtanh.pop %v3074
  %v3079 = vtanh.pop %v3075
  %3084 = vrot.lane.b32.xlu0 %v3076, 64
  %v3085 = vpop.permute.xlu0 %3084
  %3086 = vrot.lane.b32.xlu0 %v3077, 64
  %v3087 = vpop.permute.xlu0 %3086
  %3088 = vrot.lane.b32.xlu0 %v3078, 64
  %v3089 = vpop.permute.xlu0 %3088
  %3090 = vrot.lane.b32.xlu0 %v3079, 64
  %v3091 = vpop.permute.xlu0 %3090
  %v3096 = vmul.f32 %v2982, %v3085
  %v3097 = vmul.f32 %v2997, %v3087
  %v3098 = vmul.f32 %v3012, %v3089
  %v3099 = vmul.f32 %v3027, %v3091
  %v3100 = vld [vmem:[#allocation5 + $0x20] sm:$0xff]
  %v3101 = vld [vmem:[#allocation5 + $0x28] sm:$0xff]
  %v3102 = vld [vmem:[#allocation5 + $0x30] sm:$0xff]
  %v3103 = vld [vmem:[#allocation5 + $0x38] sm:$0xff]
  %3108 = vrot.lane.b32.xlu0 %v3096, 32
  %v3109 = vpop.permute.xlu0 %3108
  %3110 = vrot.lane.b32.xlu0 %v3097, 32
  %v3111 = vpop.permute.xlu0 %3110
  %3112 = vrot.lane.b32.xlu0 %v3098, 32
  %v3113 = vpop.permute.xlu0 %3112
  %3114 = vrot.lane.b32.xlu0 %v3099, 32
  %v3115 = vpop.permute.xlu0 %3114
  %v3116 = vsel %vm275, %v3109, 0
  %v3118 = vsel %vm275, %v3111, 0
  %v3120 = vsel %vm275, %v3113, 0
  %v3122 = vsel %vm275, %v3115, 0
  %3124 = vmatpush.msra.mxu0 0.0
  %3125 = vmatpush.msra.mxu0 0.0
  %3126 = vmatpush.msra.mxu0 0.0
  %3127 = vmatpush.msra.mxu0 0.0
  %3128 = vmatpush.msra.mxu0 0.0
  %3129 = vmatpush.msra.mxu0 0.0
  %3130 = vmatpush.msra.mxu0 0.0
  %3131 = vmatpush.msra.mxu0 0.0
  %3132 = vmatpush.msra.mxu0 0.0
  %3133 = vmatpush.msra.mxu0 0.0
  %3134 = vmatpush.msra.mxu0 0.0
  %3135 = vmatpush.msra.mxu0 0.0
  %3136 = vmatpush.msra.mxu0 %v2636
  %3137 = vmatpush.msra.mxu0 %v2635
  %3138 = vmatpush.msra.mxu0 %v2634
  %3139 = vmatpush.msra.mxu0 %v2633
  %3140 = vmatmul.f32.gmra.mxu0 %v3116
  %v3141 = vpop.f32.mrf.mxu0
  %v3142 = vadd.f32 0.0, %v3141
  %3143 = vmatmul.f32.gmra.mxu0 %v3118
  %v3144 = vpop.f32.mrf.mxu0
  %v3145 = vadd.f32 0.0, %v3144
  %3146 = vmatmul.f32.gmra.mxu0 %v3120
  %v3147 = vpop.f32.mrf.mxu0
  %v3148 = vadd.f32 0.0, %v3147
  %3149 = vmatmul.f32.gmra.mxu0 %v3122
  %v3150 = vpop.f32.mrf.mxu0
  %v3151 = vadd.f32 0.0, %v3150
  %3152 = vdwg.mxu0
  %v3153 = vadd.f32 %v3100, %v3142
  %v3154 = vadd.f32 %v3101, %v3145
  %v3155 = vadd.f32 %v3102, %v3148
  %v3156 = vadd.f32 %v3103, %v3151
  %v3157 = vxor.u32 %v3153, 2147483648
  %v3158 = vxor.u32 %v3154, 2147483648
  %v3159 = vxor.u32 %v3155, 2147483648
  %v3160 = vxor.u32 %v3156, 2147483648
  %v3161 = vmul.f32 %v3157, 1.442695
  %v3162 = vpow.pop %v3161
  %v3163 = vmul.f32 %v3158, 1.442695
  %v3164 = vpow.pop %v3163
  %v3165 = vmul.f32 %v3159, 1.442695
  %v3166 = vpow.pop %v3165
  %v3167 = vmul.f32 %v3160, 1.442695
  %v3168 = vpow.pop %v3167
  %v3169 = vadd.f32 %v3162, 1.0
  %v3170 = vadd.f32 %v3164, 1.0
  %v3171 = vadd.f32 %v3166, 1.0
  %v3172 = vadd.f32 %v3168, 1.0
  %v3173 = vrcp.pop %v3169
  %v3174 = vmul.f32 %v3169, %v3173
  %v3175 = vsub.f32 1.0, %v3174
  %v3176 = vmul.f32 %v3173, %v3175
  %v3177 = vadd.f32 %v3173, %v3176
  %vm3178 = vweird.f32 %v3169
  %vm3179 = vweird.f32 %v3173
  %vm3180 = vmor %vm3178, %vm3179
  %v3181 = vsel %vm3180, %v3173, %v3177
  %v3182 = vand.u32 2147483647, %v3169
  %vm3183 = vcmp.eq.f32.partialorder %v3182, 8.507059e+37
  %v3184 = vand.u32 %v3169, 2147483648
  %v3185 = vor.u32 1.1754944e-38, %v3184
  %v3186 = vsel %vm3183, %v3185, %v3181
  %v3187 = vmul.f32 1.0, %v3186
  %v3188 = vrcp.pop %v3170
  %v3189 = vmul.f32 %v3170, %v3188
  %v3190 = vsub.f32 1.0, %v3189
  %v3191 = vmul.f32 %v3188, %v3190
  %v3192 = vadd.f32 %v3188, %v3191
  %vm3193 = vweird.f32 %v3170
  %vm3194 = vweird.f32 %v3188
  %vm3195 = vmor %vm3193, %vm3194
  %v3196 = vsel %vm3195, %v3188, %v3192
  %v3197 = vand.u32 2147483647, %v3170
  %vm3198 = vcmp.eq.f32.partialorder %v3197, 8.507059e+37
  %v3199 = vand.u32 %v3170, 2147483648
  %v3200 = vor.u32 1.1754944e-38, %v3199
  %v3201 = vsel %vm3198, %v3200, %v3196
  %v3202 = vmul.f32 1.0, %v3201
  %v3203 = vrcp.pop %v3171
  %v3204 = vmul.f32 %v3171, %v3203
  %v3205 = vsub.f32 1.0, %v3204
  %v3206 = vmul.f32 %v3203, %v3205
  %v3207 = vadd.f32 %v3203, %v3206
  %vm3208 = vweird.f32 %v3171
  %vm3209 = vweird.f32 %v3203
  %vm3210 = vmor %vm3208, %vm3209
  %v3211 = vsel %vm3210, %v3203, %v3207
  %v3212 = vand.u32 2147483647, %v3171
  %vm3213 = vcmp.eq.f32.partialorder %v3212, 8.507059e+37
  %v3214 = vand.u32 %v3171, 2147483648
  %v3215 = vor.u32 1.1754944e-38, %v3214
  %v3216 = vsel %vm3213, %v3215, %v3211
  %v3217 = vmul.f32 1.0, %v3216
  %v3218 = vrcp.pop %v3172
  %v3219 = vmul.f32 %v3172, %v3218
  %v3220 = vsub.f32 1.0, %v3219
  %v3221 = vmul.f32 %v3218, %v3220
  %v3222 = vadd.f32 %v3218, %v3221
  %vm3223 = vweird.f32 %v3172
  %vm3224 = vweird.f32 %v3218
  %vm3225 = vmor %vm3223, %vm3224
  %v3226 = vsel %vm3225, %v3218, %v3222
  %v3227 = vand.u32 2147483647, %v3172
  %vm3228 = vcmp.eq.f32.partialorder %v3227, 8.507059e+37
  %v3229 = vand.u32 %v3172, 2147483648
  %v3230 = vor.u32 1.1754944e-38, %v3229
  %v3231 = vsel %vm3228, %v3230, %v3226
  %v3232 = vmul.f32 1.0, %v3231
  %v3233 = vtanh.pop %v3153
  %v3234 = vtanh.pop %v3154
  %v3235 = vtanh.pop %v3155
  %v3236 = vtanh.pop %v3156
  %v3237 = vmul.f32 %v3187, %v3072
  %v3238 = vmul.f32 %v3202, %v3073
  %v3239 = vmul.f32 %v3217, %v3074
  %v3240 = vmul.f32 %v3232, %v3075
  %3245 = vrot.lane.b32.xlu0 %v3233, 64
  %v3246 = vpop.permute.xlu0 %3245
  %3247 = vrot.lane.b32.xlu0 %v3234, 64
  %v3248 = vpop.permute.xlu0 %3247
  %3249 = vrot.lane.b32.xlu0 %v3235, 64
  %v3250 = vpop.permute.xlu0 %3249
  %3251 = vrot.lane.b32.xlu0 %v3236, 64
  %v3252 = vpop.permute.xlu0 %3251
  %v3257 = vmul.f32 %v3187, %v3246
  %v3258 = vmul.f32 %v3202, %v3248
  %v3259 = vmul.f32 %v3217, %v3250
  %v3260 = vmul.f32 %v3232, %v3252
  %3265 = vrot.lane.b32.xlu0 %v3257, 32
  %v3266 = vpop.permute.xlu0 %3265
  %3267 = vrot.lane.b32.xlu0 %v3258, 32
  %v3268 = vpop.permute.xlu0 %3267
  %3269 = vrot.lane.b32.xlu0 %v3259, 32
  %v3270 = vpop.permute.xlu0 %3269
  %3271 = vrot.lane.b32.xlu0 %v3260, 32
  %v3272 = vpop.permute.xlu0 %3271
  %v3277 = vadd.f32 %v3237, %v3266
  %v3278 = vadd.f32 %v3238, %v3268
  %v3279 = vadd.f32 %v3239, %v3270
  %v3280 = vadd.f32 %v3240, %v3272
  %v3281 = vtanh.pop %v3277
  %v3282 = vtanh.pop %v3278
  %v3283 = vtanh.pop %v3279
  %v3284 = vtanh.pop %v3280
  %3289 = vrot.lane.b32.xlu0 %v3281, 64
  %v3290 = vpop.permute.xlu0 %3289
  %3291 = vrot.lane.b32.xlu0 %v3282, 64
  %v3292 = vpop.permute.xlu0 %3291
  %3293 = vrot.lane.b32.xlu0 %v3283, 64
  %v3294 = vpop.permute.xlu0 %3293
  %3295 = vrot.lane.b32.xlu0 %v3284, 64
  %v3296 = vpop.permute.xlu0 %3295
  %v3301 = vmul.f32 %v3187, %v3290
  %v3302 = vmul.f32 %v3202, %v3292
  %v3303 = vmul.f32 %v3217, %v3294
  %v3304 = vmul.f32 %v3232, %v3296
  %v3305 = vld [vmem:[#allocation5 + $0x40] sm:$0xff]
  %v3306 = vld [vmem:[#allocation5 + $0x48] sm:$0xff]
  %v3307 = vld [vmem:[#allocation5 + $0x50] sm:$0xff]
  %v3308 = vld [vmem:[#allocation5 + $0x58] sm:$0xff]
  %3313 = vrot.lane.b32.xlu0 %v3301, 32
  %v3314 = vpop.permute.xlu0 %3313
  %3315 = vrot.lane.b32.xlu0 %v3302, 32
  %v3316 = vpop.permute.xlu0 %3315
  %3317 = vrot.lane.b32.xlu0 %v3303, 32
  %v3318 = vpop.permute.xlu0 %3317
  %3319 = vrot.lane.b32.xlu0 %v3304, 32
  %v3320 = vpop.permute.xlu0 %3319
  %v3321 = vsel %vm275, %v3314, 0
  %v3323 = vsel %vm275, %v3316, 0
  %v3325 = vsel %vm275, %v3318, 0
  %v3327 = vsel %vm275, %v3320, 0
  %3329 = vmatpush.msra.mxu0 0.0
  %3330 = vmatpush.msra.mxu0 0.0
  %3331 = vmatpush.msra.mxu0 0.0
  %3332 = vmatpush.msra.mxu0 0.0
  %3333 = vmatpush.msra.mxu0 0.0
  %3334 = vmatpush.msra.mxu0 0.0
  %3335 = vmatpush.msra.mxu0 0.0
  %3336 = vmatpush.msra.mxu0 0.0
  %3337 = vmatpush.msra.mxu0 0.0
  %3338 = vmatpush.msra.mxu0 0.0
  %3339 = vmatpush.msra.mxu0 0.0
  %3340 = vmatpush.msra.mxu0 0.0
  %3341 = vmatpush.msra.mxu0 %v2636
  %3342 = vmatpush.msra.mxu0 %v2635
  %3343 = vmatpush.msra.mxu0 %v2634
  %3344 = vmatpush.msra.mxu0 %v2633
  %3345 = vmatmul.f32.gmra.mxu0 %v3321
  %v3346 = vpop.f32.mrf.mxu0
  %v3347 = vadd.f32 0.0, %v3346
  %3348 = vmatmul.f32.gmra.mxu0 %v3323
  %v3349 = vpop.f32.mrf.mxu0
  %v3350 = vadd.f32 0.0, %v3349
  %3351 = vmatmul.f32.gmra.mxu0 %v3325
  %v3352 = vpop.f32.mrf.mxu0
  %v3353 = vadd.f32 0.0, %v3352
  %3354 = vmatmul.f32.gmra.mxu0 %v3327
  %v3355 = vpop.f32.mrf.mxu0
  %v3356 = vadd.f32 0.0, %v3355
  %3357 = vdwg.mxu0
  %v3358 = vadd.f32 %v3305, %v3347
  %v3359 = vadd.f32 %v3306, %v3350
  %v3360 = vadd.f32 %v3307, %v3353
  %v3361 = vadd.f32 %v3308, %v3356
  %v3362 = vxor.u32 %v3358, 2147483648
  %v3363 = vxor.u32 %v3359, 2147483648
  %v3364 = vxor.u32 %v3360, 2147483648
  %v3365 = vxor.u32 %v3361, 2147483648
  %v3366 = vmul.f32 %v3362, 1.442695
  %v3367 = vpow.pop %v3366
  %v3368 = vmul.f32 %v3363, 1.442695
  %v3369 = vpow.pop %v3368
  %v3370 = vmul.f32 %v3364, 1.442695
  %v3371 = vpow.pop %v3370
  %v3372 = vmul.f32 %v3365, 1.442695
  %v3373 = vpow.pop %v3372
  %v3374 = vadd.f32 %v3367, 1.0
  %v3375 = vadd.f32 %v3369, 1.0
  %v3376 = vadd.f32 %v3371, 1.0
  %v3377 = vadd.f32 %v3373, 1.0
  %v3378 = vrcp.pop %v3374
  %v3379 = vmul.f32 %v3374, %v3378
  %v3380 = vsub.f32 1.0, %v3379
  %v3381 = vmul.f32 %v3378, %v3380
  %v3382 = vadd.f32 %v3378, %v3381
  %vm3383 = vweird.f32 %v3374
  %vm3384 = vweird.f32 %v3378
  %vm3385 = vmor %vm3383, %vm3384
  %v3386 = vsel %vm3385, %v3378, %v3382
  %v3387 = vand.u32 2147483647, %v3374
  %vm3388 = vcmp.eq.f32.partialorder %v3387, 8.507059e+37
  %v3389 = vand.u32 %v3374, 2147483648
  %v3390 = vor.u32 1.1754944e-38, %v3389
  %v3391 = vsel %vm3388, %v3390, %v3386
  %v3392 = vmul.f32 1.0, %v3391
  %v3393 = vrcp.pop %v3375
  %v3394 = vmul.f32 %v3375, %v3393
  %v3395 = vsub.f32 1.0, %v3394
  %v3396 = vmul.f32 %v3393, %v3395
  %v3397 = vadd.f32 %v3393, %v3396
  %vm3398 = vweird.f32 %v3375
  %vm3399 = vweird.f32 %v3393
  %vm3400 = vmor %vm3398, %vm3399
  %v3401 = vsel %vm3400, %v3393, %v3397
  %v3402 = vand.u32 2147483647, %v3375
  %vm3403 = vcmp.eq.f32.partialorder %v3402, 8.507059e+37
  %v3404 = vand.u32 %v3375, 2147483648
  %v3405 = vor.u32 1.1754944e-38, %v3404
  %v3406 = vsel %vm3403, %v3405, %v3401
  %v3407 = vmul.f32 1.0, %v3406
  %v3408 = vrcp.pop %v3376
  %v3409 = vmul.f32 %v3376, %v3408
  %v3410 = vsub.f32 1.0, %v3409
  %v3411 = vmul.f32 %v3408, %v3410
  %v3412 = vadd.f32 %v3408, %v3411
  %vm3413 = vweird.f32 %v3376
  %vm3414 = vweird.f32 %v3408
  %vm3415 = vmor %vm3413, %vm3414
  %v3416 = vsel %vm3415, %v3408, %v3412
  %v3417 = vand.u32 2147483647, %v3376
  %vm3418 = vcmp.eq.f32.partialorder %v3417, 8.507059e+37
  %v3419 = vand.u32 %v3376, 2147483648
  %v3420 = vor.u32 1.1754944e-38, %v3419
  %v3421 = vsel %vm3418, %v3420, %v3416
  %v3422 = vmul.f32 1.0, %v3421
  %v3423 = vrcp.pop %v3377
  %v3424 = vmul.f32 %v3377, %v3423
  %v3425 = vsub.f32 1.0, %v3424
  %v3426 = vmul.f32 %v3423, %v3425
  %v3427 = vadd.f32 %v3423, %v3426
  %vm3428 = vweird.f32 %v3377
  %vm3429 = vweird.f32 %v3423
  %vm3430 = vmor %vm3428, %vm3429
  %v3431 = vsel %vm3430, %v3423, %v3427
  %v3432 = vand.u32 2147483647, %v3377
  %vm3433 = vcmp.eq.f32.partialorder %v3432, 8.507059e+37
  %v3434 = vand.u32 %v3377, 2147483648
  %v3435 = vor.u32 1.1754944e-38, %v3434
  %v3436 = vsel %vm3433, %v3435, %v3431
  %v3437 = vmul.f32 1.0, %v3436
  %v3438 = vtanh.pop %v3358
  %v3439 = vtanh.pop %v3359
  %v3440 = vtanh.pop %v3360
  %v3441 = vtanh.pop %v3361
  %v3442 = vmul.f32 %v3392, %v3277
  %v3443 = vmul.f32 %v3407, %v3278
  %v3444 = vmul.f32 %v3422, %v3279
  %v3445 = vmul.f32 %v3437, %v3280
  %3450 = vrot.lane.b32.xlu0 %v3438, 64
  %v3451 = vpop.permute.xlu0 %3450
  %3452 = vrot.lane.b32.xlu0 %v3439, 64
  %v3453 = vpop.permute.xlu0 %3452
  %3454 = vrot.lane.b32.xlu0 %v3440, 64
  %v3455 = vpop.permute.xlu0 %3454
  %3456 = vrot.lane.b32.xlu0 %v3441, 64
  %v3457 = vpop.permute.xlu0 %3456
  %v3462 = vmul.f32 %v3392, %v3451
  %v3463 = vmul.f32 %v3407, %v3453
  %v3464 = vmul.f32 %v3422, %v3455
  %v3465 = vmul.f32 %v3437, %v3457
  %3470 = vrot.lane.b32.xlu0 %v3462, 32
  %v3471 = vpop.permute.xlu0 %3470
  %3472 = vrot.lane.b32.xlu0 %v3463, 32
  %v3473 = vpop.permute.xlu0 %3472
  %3474 = vrot.lane.b32.xlu0 %v3464, 32
  %v3475 = vpop.permute.xlu0 %3474
  %3476 = vrot.lane.b32.xlu0 %v3465, 32
  %v3477 = vpop.permute.xlu0 %3476
  %v3482 = vadd.f32 %v3442, %v3471
  %v3483 = vadd.f32 %v3443, %v3473
  %v3484 = vadd.f32 %v3444, %v3475
  %v3485 = vadd.f32 %v3445, %v3477
  %v3486 = vtanh.pop %v3482
  %v3487 = vtanh.pop %v3483
  %v3488 = vtanh.pop %v3484
  %v3489 = vtanh.pop %v3485
  %3494 = vrot.lane.b32.xlu0 %v3486, 64
  %v3495 = vpop.permute.xlu0 %3494
  %3496 = vrot.lane.b32.xlu0 %v3487, 64
  %v3497 = vpop.permute.xlu0 %3496
  %3498 = vrot.lane.b32.xlu0 %v3488, 64
  %v3499 = vpop.permute.xlu0 %3498
  %3500 = vrot.lane.b32.xlu0 %v3489, 64
  %v3501 = vpop.permute.xlu0 %3500
  %v3506 = vmul.f32 %v3392, %v3495
  %v3507 = vmul.f32 %v3407, %v3497
  %v3508 = vmul.f32 %v3422, %v3499
  %v3509 = vmul.f32 %v3437, %v3501
  %v3510 = vld [vmem:[#allocation5 + $0x60] sm:$0xff]
  %v3511 = vld [vmem:[#allocation5 + $0x68] sm:$0xff]
  %v3512 = vld [vmem:[#allocation5 + $0x70] sm:$0xff]
  %v3513 = vld [vmem:[#allocation5 + $0x78] sm:$0xff]
  %3518 = vrot.lane.b32.xlu0 %v3506, 32
  %v3519 = vpop.permute.xlu0 %3518
  %3520 = vrot.lane.b32.xlu0 %v3507, 32
  %v3521 = vpop.permute.xlu0 %3520
  %3522 = vrot.lane.b32.xlu0 %v3508, 32
  %v3523 = vpop.permute.xlu0 %3522
  %3524 = vrot.lane.b32.xlu0 %v3509, 32
  %v3525 = vpop.permute.xlu0 %3524
  %v3526 = vsel %vm275, %v3519, 0
  %v3528 = vsel %vm275, %v3521, 0
  %v3530 = vsel %vm275, %v3523, 0
  %v3532 = vsel %vm275, %v3525, 0
  %3534 = vmatpush.msra.mxu0 0.0
  %3535 = vmatpush.msra.mxu0 0.0
  %3536 = vmatpush.msra.mxu0 0.0
  %3537 = vmatpush.msra.mxu0 0.0
  %3538 = vmatpush.msra.mxu0 0.0
  %3539 = vmatpush.msra.mxu0 0.0
  %3540 = vmatpush.msra.mxu0 0.0
  %3541 = vmatpush.msra.mxu0 0.0
  %3542 = vmatpush.msra.mxu0 0.0
  %3543 = vmatpush.msra.mxu0 0.0
  %3544 = vmatpush.msra.mxu0 0.0
  %3545 = vmatpush.msra.mxu0 0.0
  %3546 = vmatpush.msra.mxu0 %v2636
  %3547 = vmatpush.msra.mxu0 %v2635
  %3548 = vmatpush.msra.mxu0 %v2634
  %3549 = vmatpush.msra.mxu0 %v2633
  %3550 = vmatmul.f32.gmra.mxu0 %v3526
  %v3551 = vpop.f32.mrf.mxu0
  %v3552 = vadd.f32 0.0, %v3551
  %3553 = vmatmul.f32.gmra.mxu0 %v3528
  %v3554 = vpop.f32.mrf.mxu0
  %v3555 = vadd.f32 0.0, %v3554
  %3556 = vmatmul.f32.gmra.mxu0 %v3530
  %v3557 = vpop.f32.mrf.mxu0
  %v3558 = vadd.f32 0.0, %v3557
  %3559 = vmatmul.f32.gmra.mxu0 %v3532
  %v3560 = vpop.f32.mrf.mxu0
  %v3561 = vadd.f32 0.0, %v3560
  %3562 = vdwg.mxu0
  %v3563 = vadd.f32 %v3510, %v3552
  %v3564 = vadd.f32 %v3511, %v3555
  %v3565 = vadd.f32 %v3512, %v3558
  %v3566 = vadd.f32 %v3513, %v3561
  %v3567 = vxor.u32 %v3563, 2147483648
  %v3568 = vxor.u32 %v3564, 2147483648
  %v3569 = vxor.u32 %v3565, 2147483648
  %v3570 = vxor.u32 %v3566, 2147483648
  %v3571 = vmul.f32 %v3567, 1.442695
  %v3572 = vpow.pop %v3571
  %v3573 = vmul.f32 %v3568, 1.442695
  %v3574 = vpow.pop %v3573
  %v3575 = vmul.f32 %v3569, 1.442695
  %v3576 = vpow.pop %v3575
  %v3577 = vmul.f32 %v3570, 1.442695
  %v3578 = vpow.pop %v3577
  %v3579 = vadd.f32 %v3572, 1.0
  %v3580 = vadd.f32 %v3574, 1.0
  %v3581 = vadd.f32 %v3576, 1.0
  %v3582 = vadd.f32 %v3578, 1.0
  %v3583 = vrcp.pop %v3579
  %v3584 = vmul.f32 %v3579, %v3583
  %v3585 = vsub.f32 1.0, %v3584
  %v3586 = vmul.f32 %v3583, %v3585
  %v3587 = vadd.f32 %v3583, %v3586
  %vm3588 = vweird.f32 %v3579
  %vm3589 = vweird.f32 %v3583
  %vm3590 = vmor %vm3588, %vm3589
  %v3591 = vsel %vm3590, %v3583, %v3587
  %v3592 = vand.u32 2147483647, %v3579
  %vm3593 = vcmp.eq.f32.partialorder %v3592, 8.507059e+37
  %v3594 = vand.u32 %v3579, 2147483648
  %v3595 = vor.u32 1.1754944e-38, %v3594
  %v3596 = vsel %vm3593, %v3595, %v3591
  %v3597 = vmul.f32 1.0, %v3596
  %v3598 = vrcp.pop %v3580
  %v3599 = vmul.f32 %v3580, %v3598
  %v3600 = vsub.f32 1.0, %v3599
  %v3601 = vmul.f32 %v3598, %v3600
  %v3602 = vadd.f32 %v3598, %v3601
  %vm3603 = vweird.f32 %v3580
  %vm3604 = vweird.f32 %v3598
  %vm3605 = vmor %vm3603, %vm3604
  %v3606 = vsel %vm3605, %v3598, %v3602
  %v3607 = vand.u32 2147483647, %v3580
  %vm3608 = vcmp.eq.f32.partialorder %v3607, 8.507059e+37
  %v3609 = vand.u32 %v3580, 2147483648
  %v3610 = vor.u32 1.1754944e-38, %v3609
  %v3611 = vsel %vm3608, %v3610, %v3606
  %v3612 = vmul.f32 1.0, %v3611
  %v3613 = vrcp.pop %v3581
  %v3614 = vmul.f32 %v3581, %v3613
  %v3615 = vsub.f32 1.0, %v3614
  %v3616 = vmul.f32 %v3613, %v3615
  %v3617 = vadd.f32 %v3613, %v3616
  %vm3618 = vweird.f32 %v3581
  %vm3619 = vweird.f32 %v3613
  %vm3620 = vmor %vm3618, %vm3619
  %v3621 = vsel %vm3620, %v3613, %v3617
  %v3622 = vand.u32 2147483647, %v3581
  %vm3623 = vcmp.eq.f32.partialorder %v3622, 8.507059e+37
  %v3624 = vand.u32 %v3581, 2147483648
  %v3625 = vor.u32 1.1754944e-38, %v3624
  %v3626 = vsel %vm3623, %v3625, %v3621
  %v3627 = vmul.f32 1.0, %v3626
  %v3628 = vrcp.pop %v3582
  %v3629 = vmul.f32 %v3582, %v3628
  %v3630 = vsub.f32 1.0, %v3629
  %v3631 = vmul.f32 %v3628, %v3630
  %v3632 = vadd.f32 %v3628, %v3631
  %vm3633 = vweird.f32 %v3582
  %vm3634 = vweird.f32 %v3628
  %vm3635 = vmor %vm3633, %vm3634
  %v3636 = vsel %vm3635, %v3628, %v3632
  %v3637 = vand.u32 2147483647, %v3582
  %vm3638 = vcmp.eq.f32.partialorder %v3637, 8.507059e+37
  %v3639 = vand.u32 %v3582, 2147483648
  %v3640 = vor.u32 1.1754944e-38, %v3639
  %v3641 = vsel %vm3638, %v3640, %v3636
  %v3642 = vmul.f32 1.0, %v3641
  %v3643 = vtanh.pop %v3563
  %v3644 = vtanh.pop %v3564
  %v3645 = vtanh.pop %v3565
  %v3646 = vtanh.pop %v3566
  %v3647 = vmul.f32 %v3597, %v3482
  %v3648 = vmul.f32 %v3612, %v3483
  %v3649 = vmul.f32 %v3627, %v3484
  %v3650 = vmul.f32 %v3642, %v3485
  %3655 = vrot.lane.b32.xlu0 %v3643, 64
  %v3656 = vpop.permute.xlu0 %3655
  %3657 = vrot.lane.b32.xlu0 %v3644, 64
  %v3658 = vpop.permute.xlu0 %3657
  %3659 = vrot.lane.b32.xlu0 %v3645, 64
  %v3660 = vpop.permute.xlu0 %3659
  %3661 = vrot.lane.b32.xlu0 %v3646, 64
  %v3662 = vpop.permute.xlu0 %3661
  %v3667 = vmul.f32 %v3597, %v3656
  %v3668 = vmul.f32 %v3612, %v3658
  %v3669 = vmul.f32 %v3627, %v3660
  %v3670 = vmul.f32 %v3642, %v3662
  %3675 = vrot.lane.b32.xlu0 %v3667, 32
  %v3676 = vpop.permute.xlu0 %3675
  %3677 = vrot.lane.b32.xlu0 %v3668, 32
  %v3678 = vpop.permute.xlu0 %3677
  %3679 = vrot.lane.b32.xlu0 %v3669, 32
  %v3680 = vpop.permute.xlu0 %3679
  %3681 = vrot.lane.b32.xlu0 %v3670, 32
  %v3682 = vpop.permute.xlu0 %3681
  %v3687 = vadd.f32 %v3647, %v3676
  %v3688 = vadd.f32 %v3648, %v3678
  %v3689 = vadd.f32 %v3649, %v3680
  %v3690 = vadd.f32 %v3650, %v3682
  %v3691 = vtanh.pop %v3687
  %v3692 = vtanh.pop %v3688
  %v3693 = vtanh.pop %v3689
  %v3694 = vtanh.pop %v3690
  %3699 = vrot.lane.b32.xlu0 %v3691, 64
  %v3700 = vpop.permute.xlu0 %3699
  %3701 = vrot.lane.b32.xlu0 %v3692, 64
  %v3702 = vpop.permute.xlu0 %3701
  %3703 = vrot.lane.b32.xlu0 %v3693, 64
  %v3704 = vpop.permute.xlu0 %3703
  %3705 = vrot.lane.b32.xlu0 %v3694, 64
  %v3706 = vpop.permute.xlu0 %3705
  %v3711 = vmul.f32 %v3597, %v3700
  %v3712 = vmul.f32 %v3612, %v3702
  %v3713 = vmul.f32 %v3627, %v3704
  %v3714 = vmul.f32 %v3642, %v3706
  %v3715 = vld [vmem:[#allocation5 + $0x80] sm:$0xff]
  %v3716 = vld [vmem:[#allocation5 + $0x88] sm:$0xff]
  %v3717 = vld [vmem:[#allocation5 + $0x90] sm:$0xff]
  %v3718 = vld [vmem:[#allocation5 + $0x98] sm:$0xff]
  %3723 = vrot.lane.b32.xlu0 %v3711, 32
  %v3724 = vpop.permute.xlu0 %3723
  %3725 = vrot.lane.b32.xlu0 %v3712, 32
  %v3726 = vpop.permute.xlu0 %3725
  %3727 = vrot.lane.b32.xlu0 %v3713, 32
  %v3728 = vpop.permute.xlu0 %3727
  %3729 = vrot.lane.b32.xlu0 %v3714, 32
  %v3730 = vpop.permute.xlu0 %3729
  %v3731 = vsel %vm275, %v3724, 0
  %v3733 = vsel %vm275, %v3726, 0
  %v3735 = vsel %vm275, %v3728, 0
  %v3737 = vsel %vm275, %v3730, 0
  %3739 = vmatpush.msra.mxu0 0.0
  %3740 = vmatpush.msra.mxu0 0.0
  %3741 = vmatpush.msra.mxu0 0.0
  %3742 = vmatpush.msra.mxu0 0.0
  %3743 = vmatpush.msra.mxu0 0.0
  %3744 = vmatpush.msra.mxu0 0.0
  %3745 = vmatpush.msra.mxu0 0.0
  %3746 = vmatpush.msra.mxu0 0.0
  %3747 = vmatpush.msra.mxu0 0.0
  %3748 = vmatpush.msra.mxu0 0.0
  %3749 = vmatpush.msra.mxu0 0.0
  %3750 = vmatpush.msra.mxu0 0.0
  %3751 = vmatpush.msra.mxu0 %v2636
  %3752 = vmatpush.msra.mxu0 %v2635
  %3753 = vmatpush.msra.mxu0 %v2634
  %3754 = vmatpush.msra.mxu0 %v2633
  %3755 = vmatmul.f32.gmra.mxu0 %v3731
  %v3756 = vpop.f32.mrf.mxu0
  %v3757 = vadd.f32 0.0, %v3756
  %3758 = vmatmul.f32.gmra.mxu0 %v3733
  %v3759 = vpop.f32.mrf.mxu0
  %v3760 = vadd.f32 0.0, %v3759
  %3761 = vmatmul.f32.gmra.mxu0 %v3735
  %v3762 = vpop.f32.mrf.mxu0
  %v3763 = vadd.f32 0.0, %v3762
  %3764 = vmatmul.f32.gmra.mxu0 %v3737
  %v3765 = vpop.f32.mrf.mxu0
  %v3766 = vadd.f32 0.0, %v3765
  %3767 = vdwg.mxu0
  %v3768 = vadd.f32 %v3715, %v3757
  %v3769 = vadd.f32 %v3716, %v3760
  %v3770 = vadd.f32 %v3717, %v3763
  %v3771 = vadd.f32 %v3718, %v3766
  %v3772 = vxor.u32 %v3768, 2147483648
  %v3773 = vxor.u32 %v3769, 2147483648
  %v3774 = vxor.u32 %v3770, 2147483648
  %v3775 = vxor.u32 %v3771, 2147483648
  %v3776 = vmul.f32 %v3772, 1.442695
  %v3777 = vpow.pop %v3776
  %v3778 = vmul.f32 %v3773, 1.442695
  %v3779 = vpow.pop %v3778
  %v3780 = vmul.f32 %v3774, 1.442695
  %v3781 = vpow.pop %v3780
  %v3782 = vmul.f32 %v3775, 1.442695
  %v3783 = vpow.pop %v3782
  %v3784 = vadd.f32 %v3777, 1.0
  %v3785 = vadd.f32 %v3779, 1.0
  %v3786 = vadd.f32 %v3781, 1.0
  %v3787 = vadd.f32 %v3783, 1.0
  %v3788 = vrcp.pop %v3784
  %v3789 = vmul.f32 %v3784, %v3788
  %v3790 = vsub.f32 1.0, %v3789
  %v3791 = vmul.f32 %v3788, %v3790
  %v3792 = vadd.f32 %v3788, %v3791
  %vm3793 = vweird.f32 %v3784
  %vm3794 = vweird.f32 %v3788
  %vm3795 = vmor %vm3793, %vm3794
  %v3796 = vsel %vm3795, %v3788, %v3792
  %v3797 = vand.u32 2147483647, %v3784
  %vm3798 = vcmp.eq.f32.partialorder %v3797, 8.507059e+37
  %v3799 = vand.u32 %v3784, 2147483648
  %v3800 = vor.u32 1.1754944e-38, %v3799
  %v3801 = vsel %vm3798, %v3800, %v3796
  %v3802 = vmul.f32 1.0, %v3801
  %v3803 = vrcp.pop %v3785
  %v3804 = vmul.f32 %v3785, %v3803
  %v3805 = vsub.f32 1.0, %v3804
  %v3806 = vmul.f32 %v3803, %v3805
  %v3807 = vadd.f32 %v3803, %v3806
  %vm3808 = vweird.f32 %v3785
  %vm3809 = vweird.f32 %v3803
  %vm3810 = vmor %vm3808, %vm3809
  %v3811 = vsel %vm3810, %v3803, %v3807
  %v3812 = vand.u32 2147483647, %v3785
  %vm3813 = vcmp.eq.f32.partialorder %v3812, 8.507059e+37
  %v3814 = vand.u32 %v3785, 2147483648
  %v3815 = vor.u32 1.1754944e-38, %v3814
  %v3816 = vsel %vm3813, %v3815, %v3811
  %v3817 = vmul.f32 1.0, %v3816
  %v3818 = vrcp.pop %v3786
  %v3819 = vmul.f32 %v3786, %v3818
  %v3820 = vsub.f32 1.0, %v3819
  %v3821 = vmul.f32 %v3818, %v3820
  %v3822 = vadd.f32 %v3818, %v3821
  %vm3823 = vweird.f32 %v3786
  %vm3824 = vweird.f32 %v3818
  %vm3825 = vmor %vm3823, %vm3824
  %v3826 = vsel %vm3825, %v3818, %v3822
  %v3827 = vand.u32 2147483647, %v3786
  %vm3828 = vcmp.eq.f32.partialorder %v3827, 8.507059e+37
  %v3829 = vand.u32 %v3786, 2147483648
  %v3830 = vor.u32 1.1754944e-38, %v3829
  %v3831 = vsel %vm3828, %v3830, %v3826
  %v3832 = vmul.f32 1.0, %v3831
  %v3833 = vrcp.pop %v3787
  %v3834 = vmul.f32 %v3787, %v3833
  %v3835 = vsub.f32 1.0, %v3834
  %v3836 = vmul.f32 %v3833, %v3835
  %v3837 = vadd.f32 %v3833, %v3836
  %vm3838 = vweird.f32 %v3787
  %vm3839 = vweird.f32 %v3833
  %vm3840 = vmor %vm3838, %vm3839
  %v3841 = vsel %vm3840, %v3833, %v3837
  %v3842 = vand.u32 2147483647, %v3787
  %vm3843 = vcmp.eq.f32.partialorder %v3842, 8.507059e+37
  %v3844 = vand.u32 %v3787, 2147483648
  %v3845 = vor.u32 1.1754944e-38, %v3844
  %v3846 = vsel %vm3843, %v3845, %v3841
  %v3847 = vmul.f32 1.0, %v3846
  %v3848 = vtanh.pop %v3768
  %v3849 = vtanh.pop %v3769
  %v3850 = vtanh.pop %v3770
  %v3851 = vtanh.pop %v3771
  %v3852 = vmul.f32 %v3802, %v3687
  %v3853 = vmul.f32 %v3817, %v3688
  %v3854 = vmul.f32 %v3832, %v3689
  %v3855 = vmul.f32 %v3847, %v3690
  %3860 = vrot.lane.b32.xlu0 %v3848, 64
  %v3861 = vpop.permute.xlu0 %3860
  %3862 = vrot.lane.b32.xlu0 %v3849, 64
  %v3863 = vpop.permute.xlu0 %3862
  %3864 = vrot.lane.b32.xlu0 %v3850, 64
  %v3865 = vpop.permute.xlu0 %3864
  %3866 = vrot.lane.b32.xlu0 %v3851, 64
  %v3867 = vpop.permute.xlu0 %3866
  %v3872 = vmul.f32 %v3802, %v3861
  %v3873 = vmul.f32 %v3817, %v3863
  %v3874 = vmul.f32 %v3832, %v3865
  %v3875 = vmul.f32 %v3847, %v3867
  %3880 = vrot.lane.b32.xlu0 %v3872, 32
  %v3881 = vpop.permute.xlu0 %3880
  %3882 = vrot.lane.b32.xlu0 %v3873, 32
  %v3883 = vpop.permute.xlu0 %3882
  %3884 = vrot.lane.b32.xlu0 %v3874, 32
  %v3885 = vpop.permute.xlu0 %3884
  %3886 = vrot.lane.b32.xlu0 %v3875, 32
  %v3887 = vpop.permute.xlu0 %3886
  %v3892 = vadd.f32 %v3852, %v3881
  %v3893 = vadd.f32 %v3853, %v3883
  %v3894 = vadd.f32 %v3854, %v3885
  %v3895 = vadd.f32 %v3855, %v3887
  %v3896 = vtanh.pop %v3892
  %v3897 = vtanh.pop %v3893
  %v3898 = vtanh.pop %v3894
  %v3899 = vtanh.pop %v3895
  %3904 = vrot.lane.b32.xlu0 %v3896, 64
  %v3905 = vpop.permute.xlu0 %3904
  %3906 = vrot.lane.b32.xlu0 %v3897, 64
  %v3907 = vpop.permute.xlu0 %3906
  %3908 = vrot.lane.b32.xlu0 %v3898, 64
  %v3909 = vpop.permute.xlu0 %3908
  %3910 = vrot.lane.b32.xlu0 %v3899, 64
  %v3911 = vpop.permute.xlu0 %3910
  %v3916 = vmul.f32 %v3802, %v3905
  %v3917 = vmul.f32 %v3817, %v3907
  %v3918 = vmul.f32 %v3832, %v3909
  %v3919 = vmul.f32 %v3847, %v3911
  %v3920 = vld [vmem:[#allocation5 + $0xa0] sm:$0xff]
  %v3921 = vld [vmem:[#allocation5 + $0xa8] sm:$0xff]
  %v3922 = vld [vmem:[#allocation5 + $0xb0] sm:$0xff]
  %v3923 = vld [vmem:[#allocation5 + $0xb8] sm:$0xff]
  %3928 = vrot.lane.b32.xlu0 %v3916, 32
  %v3929 = vpop.permute.xlu0 %3928
  %3930 = vrot.lane.b32.xlu0 %v3917, 32
  %v3931 = vpop.permute.xlu0 %3930
  %3932 = vrot.lane.b32.xlu0 %v3918, 32
  %v3933 = vpop.permute.xlu0 %3932
  %3934 = vrot.lane.b32.xlu0 %v3919, 32
  %v3935 = vpop.permute.xlu0 %3934
  %v3936 = vsel %vm275, %v3929, 0
  %v3938 = vsel %vm275, %v3931, 0
  %v3940 = vsel %vm275, %v3933, 0
  %v3942 = vsel %vm275, %v3935, 0
  %3944 = vmatpush.msra.mxu0 0.0
  %3945 = vmatpush.msra.mxu0 0.0
  %3946 = vmatpush.msra.mxu0 0.0
  %3947 = vmatpush.msra.mxu0 0.0
  %3948 = vmatpush.msra.mxu0 0.0
  %3949 = vmatpush.msra.mxu0 0.0
  %3950 = vmatpush.msra.mxu0 0.0
  %3951 = vmatpush.msra.mxu0 0.0
  %3952 = vmatpush.msra.mxu0 0.0
  %3953 = vmatpush.msra.mxu0 0.0
  %3954 = vmatpush.msra.mxu0 0.0
  %3955 = vmatpush.msra.mxu0 0.0
  %3956 = vmatpush.msra.mxu0 %v2636
  %3957 = vmatpush.msra.mxu0 %v2635
  %3958 = vmatpush.msra.mxu0 %v2634
  %3959 = vmatpush.msra.mxu0 %v2633
  %3960 = vmatmul.f32.gmra.mxu0 %v3936
  %v3961 = vpop.f32.mrf.mxu0
  %v3962 = vadd.f32 0.0, %v3961
  %3963 = vmatmul.f32.gmra.mxu0 %v3938
  %v3964 = vpop.f32.mrf.mxu0
  %v3965 = vadd.f32 0.0, %v3964
  %3966 = vmatmul.f32.gmra.mxu0 %v3940
  %v3967 = vpop.f32.mrf.mxu0
  %v3968 = vadd.f32 0.0, %v3967
  %3969 = vmatmul.f32.gmra.mxu0 %v3942
  %v3970 = vpop.f32.mrf.mxu0
  %v3971 = vadd.f32 0.0, %v3970
  %3972 = vdwg.mxu0
  %v3973 = vadd.f32 %v3920, %v3962
  %v3974 = vadd.f32 %v3921, %v3965
  %v3975 = vadd.f32 %v3922, %v3968
  %v3976 = vadd.f32 %v3923, %v3971
  %v3977 = vxor.u32 %v3973, 2147483648
  %v3978 = vxor.u32 %v3974, 2147483648
  %v3979 = vxor.u32 %v3975, 2147483648
  %v3980 = vxor.u32 %v3976, 2147483648
  %v3981 = vmul.f32 %v3977, 1.442695
  %v3982 = vpow.pop %v3981
  %v3983 = vmul.f32 %v3978, 1.442695
  %v3984 = vpow.pop %v3983
  %v3985 = vmul.f32 %v3979, 1.442695
  %v3986 = vpow.pop %v3985
  %v3987 = vmul.f32 %v3980, 1.442695
  %v3988 = vpow.pop %v3987
  %v3989 = vadd.f32 %v3982, 1.0
  %v3990 = vadd.f32 %v3984, 1.0
  %v3991 = vadd.f32 %v3986, 1.0
  %v3992 = vadd.f32 %v3988, 1.0
  %v3993 = vrcp.pop %v3989
  %v3994 = vmul.f32 %v3989, %v3993
  %v3995 = vsub.f32 1.0, %v3994
  %v3996 = vmul.f32 %v3993, %v3995
  %v3997 = vadd.f32 %v3993, %v3996
  %vm3998 = vweird.f32 %v3989
  %vm3999 = vweird.f32 %v3993
  %vm4000 = vmor %vm3998, %vm3999
  %v4001 = vsel %vm4000, %v3993, %v3997
  %v4002 = vand.u32 2147483647, %v3989
  %vm4003 = vcmp.eq.f32.partialorder %v4002, 8.507059e+37
  %v4004 = vand.u32 %v3989, 2147483648
  %v4005 = vor.u32 1.1754944e-38, %v4004
  %v4006 = vsel %vm4003, %v4005, %v4001
  %v4007 = vmul.f32 1.0, %v4006
  %v4008 = vrcp.pop %v3990
  %v4009 = vmul.f32 %v3990, %v4008
  %v4010 = vsub.f32 1.0, %v4009
  %v4011 = vmul.f32 %v4008, %v4010
  %v4012 = vadd.f32 %v4008, %v4011
  %vm4013 = vweird.f32 %v3990
  %vm4014 = vweird.f32 %v4008
  %vm4015 = vmor %vm4013, %vm4014
  %v4016 = vsel %vm4015, %v4008, %v4012
  %v4017 = vand.u32 2147483647, %v3990
  %vm4018 = vcmp.eq.f32.partialorder %v4017, 8.507059e+37
  %v4019 = vand.u32 %v3990, 2147483648
  %v4020 = vor.u32 1.1754944e-38, %v4019
  %v4021 = vsel %vm4018, %v4020, %v4016
  %v4022 = vmul.f32 1.0, %v4021
  %v4023 = vrcp.pop %v3991
  %v4024 = vmul.f32 %v3991, %v4023
  %v4025 = vsub.f32 1.0, %v4024
  %v4026 = vmul.f32 %v4023, %v4025
  %v4027 = vadd.f32 %v4023, %v4026
  %vm4028 = vweird.f32 %v3991
  %vm4029 = vweird.f32 %v4023
  %vm4030 = vmor %vm4028, %vm4029
  %v4031 = vsel %vm4030, %v4023, %v4027
  %v4032 = vand.u32 2147483647, %v3991
  %vm4033 = vcmp.eq.f32.partialorder %v4032, 8.507059e+37
  %v4034 = vand.u32 %v3991, 2147483648
  %v4035 = vor.u32 1.1754944e-38, %v4034
  %v4036 = vsel %vm4033, %v4035, %v4031
  %v4037 = vmul.f32 1.0, %v4036
  %v4038 = vrcp.pop %v3992
  %v4039 = vmul.f32 %v3992, %v4038
  %v4040 = vsub.f32 1.0, %v4039
  %v4041 = vmul.f32 %v4038, %v4040
  %v4042 = vadd.f32 %v4038, %v4041
  %vm4043 = vweird.f32 %v3992
  %vm4044 = vweird.f32 %v4038
  %vm4045 = vmor %vm4043, %vm4044
  %v4046 = vsel %vm4045, %v4038, %v4042
  %v4047 = vand.u32 2147483647, %v3992
  %vm4048 = vcmp.eq.f32.partialorder %v4047, 8.507059e+37
  %v4049 = vand.u32 %v3992, 2147483648
  %v4050 = vor.u32 1.1754944e-38, %v4049
  %v4051 = vsel %vm4048, %v4050, %v4046
  %v4052 = vmul.f32 1.0, %v4051
  %v4053 = vtanh.pop %v3973
  %v4054 = vtanh.pop %v3974
  %v4055 = vtanh.pop %v3975
  %v4056 = vtanh.pop %v3976
  %v4057 = vmul.f32 %v4007, %v3892
  %v4058 = vmul.f32 %v4022, %v3893
  %v4059 = vmul.f32 %v4037, %v3894
  %v4060 = vmul.f32 %v4052, %v3895
  %4065 = vrot.lane.b32.xlu0 %v4053, 64
  %v4066 = vpop.permute.xlu0 %4065
  %4067 = vrot.lane.b32.xlu0 %v4054, 64
  %v4068 = vpop.permute.xlu0 %4067
  %4069 = vrot.lane.b32.xlu0 %v4055, 64
  %v4070 = vpop.permute.xlu0 %4069
  %4071 = vrot.lane.b32.xlu0 %v4056, 64
  %v4072 = vpop.permute.xlu0 %4071
  %v4077 = vmul.f32 %v4007, %v4066
  %v4078 = vmul.f32 %v4022, %v4068
  %v4079 = vmul.f32 %v4037, %v4070
  %v4080 = vmul.f32 %v4052, %v4072
  %4085 = vrot.lane.b32.xlu0 %v4077, 32
  %v4086 = vpop.permute.xlu0 %4085
  %4087 = vrot.lane.b32.xlu0 %v4078, 32
  %v4088 = vpop.permute.xlu0 %4087
  %4089 = vrot.lane.b32.xlu0 %v4079, 32
  %v4090 = vpop.permute.xlu0 %4089
  %4091 = vrot.lane.b32.xlu0 %v4080, 32
  %v4092 = vpop.permute.xlu0 %4091
  %v4097 = vadd.f32 %v4057, %v4086
  %v4098 = vadd.f32 %v4058, %v4088
  %v4099 = vadd.f32 %v4059, %v4090
  %v4100 = vadd.f32 %v4060, %v4092
  %v4101 = vtanh.pop %v4097
  %v4102 = vtanh.pop %v4098
  %v4103 = vtanh.pop %v4099
  %v4104 = vtanh.pop %v4100
  %4109 = vrot.lane.b32.xlu0 %v4101, 64
  %v4110 = vpop.permute.xlu0 %4109
  %4111 = vrot.lane.b32.xlu0 %v4102, 64
  %v4112 = vpop.permute.xlu0 %4111
  %4113 = vrot.lane.b32.xlu0 %v4103, 64
  %v4114 = vpop.permute.xlu0 %4113
  %4115 = vrot.lane.b32.xlu0 %v4104, 64
  %v4116 = vpop.permute.xlu0 %4115
  %v4121 = vmul.f32 %v4007, %v4110
  %v4122 = vmul.f32 %v4022, %v4112
  %v4123 = vmul.f32 %v4037, %v4114
  %v4124 = vmul.f32 %v4052, %v4116
  %v4125 = vld [vmem:[#allocation5 + $0xc0] sm:$0xff]
  %v4126 = vld [vmem:[#allocation5 + $0xc8] sm:$0xff]
  %v4127 = vld [vmem:[#allocation5 + $0xd0] sm:$0xff]
  %v4128 = vld [vmem:[#allocation5 + $0xd8] sm:$0xff]
  %4133 = vrot.lane.b32.xlu0 %v4121, 32
  %v4134 = vpop.permute.xlu0 %4133
  %4135 = vrot.lane.b32.xlu0 %v4122, 32
  %v4136 = vpop.permute.xlu0 %4135
  %4137 = vrot.lane.b32.xlu0 %v4123, 32
  %v4138 = vpop.permute.xlu0 %4137
  %4139 = vrot.lane.b32.xlu0 %v4124, 32
  %v4140 = vpop.permute.xlu0 %4139
  %v4141 = vsel %vm275, %v4134, 0
  %v4143 = vsel %vm275, %v4136, 0
  %v4145 = vsel %vm275, %v4138, 0
  %v4147 = vsel %vm275, %v4140, 0
  %4149 = vmatpush.msra.mxu0 0.0
  %4150 = vmatpush.msra.mxu0 0.0
  %4151 = vmatpush.msra.mxu0 0.0
  %4152 = vmatpush.msra.mxu0 0.0
  %4153 = vmatpush.msra.mxu0 0.0
  %4154 = vmatpush.msra.mxu0 0.0
  %4155 = vmatpush.msra.mxu0 0.0
  %4156 = vmatpush.msra.mxu0 0.0
  %4157 = vmatpush.msra.mxu0 0.0
  %4158 = vmatpush.msra.mxu0 0.0
  %4159 = vmatpush.msra.mxu0 0.0
  %4160 = vmatpush.msra.mxu0 0.0
  %4161 = vmatpush.msra.mxu0 %v2636
  %4162 = vmatpush.msra.mxu0 %v2635
  %4163 = vmatpush.msra.mxu0 %v2634
  %4164 = vmatpush.msra.mxu0 %v2633
  %4165 = vmatmul.f32.gmra.mxu0 %v4141
  %v4166 = vpop.f32.mrf.mxu0
  %v4167 = vadd.f32 0.0, %v4166
  %4168 = vmatmul.f32.gmra.mxu0 %v4143
  %v4169 = vpop.f32.mrf.mxu0
  %v4170 = vadd.f32 0.0, %v4169
  %4171 = vmatmul.f32.gmra.mxu0 %v4145
  %v4172 = vpop.f32.mrf.mxu0
  %v4173 = vadd.f32 0.0, %v4172
  %4174 = vmatmul.f32.gmra.mxu0 %v4147
  %v4175 = vpop.f32.mrf.mxu0
  %v4176 = vadd.f32 0.0, %v4175
  %4177 = vdwg.mxu0
  %v4178 = vadd.f32 %v4125, %v4167
  %v4179 = vadd.f32 %v4126, %v4170
  %v4180 = vadd.f32 %v4127, %v4173
  %v4181 = vadd.f32 %v4128, %v4176
  %v4182 = vxor.u32 %v4178, 2147483648
  %v4183 = vxor.u32 %v4179, 2147483648
  %v4184 = vxor.u32 %v4180, 2147483648
  %v4185 = vxor.u32 %v4181, 2147483648
  %v4186 = vmul.f32 %v4182, 1.442695
  %v4187 = vpow.pop %v4186
  %v4188 = vmul.f32 %v4183, 1.442695
  %v4189 = vpow.pop %v4188
  %v4190 = vmul.f32 %v4184, 1.442695
  %v4191 = vpow.pop %v4190
  %v4192 = vmul.f32 %v4185, 1.442695
  %v4193 = vpow.pop %v4192
  %v4194 = vadd.f32 %v4187, 1.0
  %v4195 = vadd.f32 %v4189, 1.0
  %v4196 = vadd.f32 %v4191, 1.0
  %v4197 = vadd.f32 %v4193, 1.0
  %v4198 = vrcp.pop %v4194
  %v4199 = vmul.f32 %v4194, %v4198
  %v4200 = vsub.f32 1.0, %v4199
  %v4201 = vmul.f32 %v4198, %v4200
  %v4202 = vadd.f32 %v4198, %v4201
  %vm4203 = vweird.f32 %v4194
  %vm4204 = vweird.f32 %v4198
  %vm4205 = vmor %vm4203, %vm4204
  %v4206 = vsel %vm4205, %v4198, %v4202
  %v4207 = vand.u32 2147483647, %v4194
  %vm4208 = vcmp.eq.f32.partialorder %v4207, 8.507059e+37
  %v4209 = vand.u32 %v4194, 2147483648
  %v4210 = vor.u32 1.1754944e-38, %v4209
  %v4211 = vsel %vm4208, %v4210, %v4206
  %v4212 = vmul.f32 1.0, %v4211
  %v4213 = vrcp.pop %v4195
  %v4214 = vmul.f32 %v4195, %v4213
  %v4215 = vsub.f32 1.0, %v4214
  %v4216 = vmul.f32 %v4213, %v4215
  %v4217 = vadd.f32 %v4213, %v4216
  %vm4218 = vweird.f32 %v4195
  %vm4219 = vweird.f32 %v4213
  %vm4220 = vmor %vm4218, %vm4219
  %v4221 = vsel %vm4220, %v4213, %v4217
  %v4222 = vand.u32 2147483647, %v4195
  %vm4223 = vcmp.eq.f32.partialorder %v4222, 8.507059e+37
  %v4224 = vand.u32 %v4195, 2147483648
  %v4225 = vor.u32 1.1754944e-38, %v4224
  %v4226 = vsel %vm4223, %v4225, %v4221
  %v4227 = vmul.f32 1.0, %v4226
  %v4228 = vrcp.pop %v4196
  %v4229 = vmul.f32 %v4196, %v4228
  %v4230 = vsub.f32 1.0, %v4229
  %v4231 = vmul.f32 %v4228, %v4230
  %v4232 = vadd.f32 %v4228, %v4231
  %vm4233 = vweird.f32 %v4196
  %vm4234 = vweird.f32 %v4228
  %vm4235 = vmor %vm4233, %vm4234
  %v4236 = vsel %vm4235, %v4228, %v4232
  %v4237 = vand.u32 2147483647, %v4196
  %vm4238 = vcmp.eq.f32.partialorder %v4237, 8.507059e+37
  %v4239 = vand.u32 %v4196, 2147483648
  %v4240 = vor.u32 1.1754944e-38, %v4239
  %v4241 = vsel %vm4238, %v4240, %v4236
  %v4242 = vmul.f32 1.0, %v4241
  %v4243 = vrcp.pop %v4197
  %v4244 = vmul.f32 %v4197, %v4243
  %v4245 = vsub.f32 1.0, %v4244
  %v4246 = vmul.f32 %v4243, %v4245
  %v4247 = vadd.f32 %v4243, %v4246
  %vm4248 = vweird.f32 %v4197
  %vm4249 = vweird.f32 %v4243
  %vm4250 = vmor %vm4248, %vm4249
  %v4251 = vsel %vm4250, %v4243, %v4247
  %v4252 = vand.u32 2147483647, %v4197
  %vm4253 = vcmp.eq.f32.partialorder %v4252, 8.507059e+37
  %v4254 = vand.u32 %v4197, 2147483648
  %v4255 = vor.u32 1.1754944e-38, %v4254
  %v4256 = vsel %vm4253, %v4255, %v4251
  %v4257 = vmul.f32 1.0, %v4256
  %v4258 = vtanh.pop %v4178
  %v4259 = vtanh.pop %v4179
  %v4260 = vtanh.pop %v4180
  %v4261 = vtanh.pop %v4181
  %v4262 = vmul.f32 %v4212, %v4097
  %v4263 = vmul.f32 %v4227, %v4098
  %v4264 = vmul.f32 %v4242, %v4099
  %v4265 = vmul.f32 %v4257, %v4100
  %4270 = vrot.lane.b32.xlu0 %v4258, 64
  %v4271 = vpop.permute.xlu0 %4270
  %4272 = vrot.lane.b32.xlu0 %v4259, 64
  %v4273 = vpop.permute.xlu0 %4272
  %4274 = vrot.lane.b32.xlu0 %v4260, 64
  %v4275 = vpop.permute.xlu0 %4274
  %4276 = vrot.lane.b32.xlu0 %v4261, 64
  %v4277 = vpop.permute.xlu0 %4276
  %v4282 = vmul.f32 %v4212, %v4271
  %v4283 = vmul.f32 %v4227, %v4273
  %v4284 = vmul.f32 %v4242, %v4275
  %v4285 = vmul.f32 %v4257, %v4277
  %4290 = vrot.lane.b32.xlu0 %v4282, 32
  %v4291 = vpop.permute.xlu0 %4290
  %4292 = vrot.lane.b32.xlu0 %v4283, 32
  %v4293 = vpop.permute.xlu0 %4292
  %4294 = vrot.lane.b32.xlu0 %v4284, 32
  %v4295 = vpop.permute.xlu0 %4294
  %4296 = vrot.lane.b32.xlu0 %v4285, 32
  %v4297 = vpop.permute.xlu0 %4296
  %v4302 = vadd.f32 %v4262, %v4291
  %v4303 = vadd.f32 %v4263, %v4293
  %v4304 = vadd.f32 %v4264, %v4295
  %v4305 = vadd.f32 %v4265, %v4297
  %v4306 = vtanh.pop %v4302
  %v4307 = vtanh.pop %v4303
  %v4308 = vtanh.pop %v4304
  %v4309 = vtanh.pop %v4305
  %4314 = vrot.lane.b32.xlu0 %v4306, 64
  %v4315 = vpop.permute.xlu0 %4314
  %4316 = vrot.lane.b32.xlu0 %v4307, 64
  %v4317 = vpop.permute.xlu0 %4316
  %4318 = vrot.lane.b32.xlu0 %v4308, 64
  %v4319 = vpop.permute.xlu0 %4318
  %4320 = vrot.lane.b32.xlu0 %v4309, 64
  %v4321 = vpop.permute.xlu0 %4320
  %v4326 = vmul.f32 %v4212, %v4315
  %v4327 = vmul.f32 %v4227, %v4317
  %v4328 = vmul.f32 %v4242, %v4319
  %v4329 = vmul.f32 %v4257, %v4321
  %v4330 = vld [vmem:[#allocation5 + $0xe0] sm:$0xff]
  %v4331 = vld [vmem:[#allocation5 + $0xe8] sm:$0xff]
  %v4332 = vld [vmem:[#allocation5 + $0xf0] sm:$0xff]
  %v4333 = vld [vmem:[#allocation5 + $0xf8] sm:$0xff]
  %4338 = vrot.lane.b32.xlu0 %v4326, 32
  %v4339 = vpop.permute.xlu0 %4338
  %4340 = vrot.lane.b32.xlu0 %v4327, 32
  %v4341 = vpop.permute.xlu0 %4340
  %4342 = vrot.lane.b32.xlu0 %v4328, 32
  %v4343 = vpop.permute.xlu0 %4342
  %4344 = vrot.lane.b32.xlu0 %v4329, 32
  %v4345 = vpop.permute.xlu0 %4344
  %v4346 = vsel %vm275, %v4339, 0
  %v4348 = vsel %vm275, %v4341, 0
  %v4350 = vsel %vm275, %v4343, 0
  %v4352 = vsel %vm275, %v4345, 0
  %4354 = vmatpush.msra.mxu0 0.0
  %4355 = vmatpush.msra.mxu0 0.0
  %4356 = vmatpush.msra.mxu0 0.0
  %4357 = vmatpush.msra.mxu0 0.0
  %4358 = vmatpush.msra.mxu0 0.0
  %4359 = vmatpush.msra.mxu0 0.0
  %4360 = vmatpush.msra.mxu0 0.0
  %4361 = vmatpush.msra.mxu0 0.0
  %4362 = vmatpush.msra.mxu0 0.0
  %4363 = vmatpush.msra.mxu0 0.0
  %4364 = vmatpush.msra.mxu0 0.0
  %4365 = vmatpush.msra.mxu0 0.0
  %4366 = vmatpush.msra.mxu0 %v2636
  %4367 = vmatpush.msra.mxu0 %v2635
  %4368 = vmatpush.msra.mxu0 %v2634
  %4369 = vmatpush.msra.mxu0 %v2633
  %4370 = vmatmul.f32.gmra.mxu0 %v4346
  %v4371 = vpop.f32.mrf.mxu0
  %v4372 = vadd.f32 0.0, %v4371
  %4373 = vmatmul.f32.gmra.mxu0 %v4348
  %v4374 = vpop.f32.mrf.mxu0
  %v4375 = vadd.f32 0.0, %v4374
  %4376 = vmatmul.f32.gmra.mxu0 %v4350
  %v4377 = vpop.f32.mrf.mxu0
  %v4378 = vadd.f32 0.0, %v4377
  %4379 = vmatmul.f32.gmra.mxu0 %v4352
  %v4380 = vpop.f32.mrf.mxu0
  %v4381 = vadd.f32 0.0, %v4380
  %4382 = vdwg.mxu0
  %v4383 = vadd.f32 %v4330, %v4372
  %v4384 = vadd.f32 %v4331, %v4375
  %v4385 = vadd.f32 %v4332, %v4378
  %v4386 = vadd.f32 %v4333, %v4381
  %v4387 = vxor.u32 %v4383, 2147483648
  %v4388 = vxor.u32 %v4384, 2147483648
  %v4389 = vxor.u32 %v4385, 2147483648
  %v4390 = vxor.u32 %v4386, 2147483648
  %v4391 = vmul.f32 %v4387, 1.442695
  %v4392 = vpow.pop %v4391
  %v4393 = vmul.f32 %v4388, 1.442695
  %v4394 = vpow.pop %v4393
  %v4395 = vmul.f32 %v4389, 1.442695
  %v4396 = vpow.pop %v4395
  %v4397 = vmul.f32 %v4390, 1.442695
  %v4398 = vpow.pop %v4397
  %v4399 = vadd.f32 %v4392, 1.0
  %v4400 = vadd.f32 %v4394, 1.0
  %v4401 = vadd.f32 %v4396, 1.0
  %v4402 = vadd.f32 %v4398, 1.0
  %v4403 = vrcp.pop %v4399
  %v4404 = vmul.f32 %v4399, %v4403
  %v4405 = vsub.f32 1.0, %v4404
  %v4406 = vmul.f32 %v4403, %v4405
  %v4407 = vadd.f32 %v4403, %v4406
  %vm4408 = vweird.f32 %v4399
  %vm4409 = vweird.f32 %v4403
  %vm4410 = vmor %vm4408, %vm4409
  %v4411 = vsel %vm4410, %v4403, %v4407
  %v4412 = vand.u32 2147483647, %v4399
  %vm4413 = vcmp.eq.f32.partialorder %v4412, 8.507059e+37
  %v4414 = vand.u32 %v4399, 2147483648
  %v4415 = vor.u32 1.1754944e-38, %v4414
  %v4416 = vsel %vm4413, %v4415, %v4411
  %v4417 = vmul.f32 1.0, %v4416
  %v4418 = vrcp.pop %v4400
  %v4419 = vmul.f32 %v4400, %v4418
  %v4420 = vsub.f32 1.0, %v4419
  %v4421 = vmul.f32 %v4418, %v4420
  %v4422 = vadd.f32 %v4418, %v4421
  %vm4423 = vweird.f32 %v4400
  %vm4424 = vweird.f32 %v4418
  %vm4425 = vmor %vm4423, %vm4424
  %v4426 = vsel %vm4425, %v4418, %v4422
  %v4427 = vand.u32 2147483647, %v4400
  %vm4428 = vcmp.eq.f32.partialorder %v4427, 8.507059e+37
  %v4429 = vand.u32 %v4400, 2147483648
  %v4430 = vor.u32 1.1754944e-38, %v4429
  %v4431 = vsel %vm4428, %v4430, %v4426
  %v4432 = vmul.f32 1.0, %v4431
  %v4433 = vrcp.pop %v4401
  %v4434 = vmul.f32 %v4401, %v4433
  %v4435 = vsub.f32 1.0, %v4434
  %v4436 = vmul.f32 %v4433, %v4435
  %v4437 = vadd.f32 %v4433, %v4436
  %vm4438 = vweird.f32 %v4401
  %vm4439 = vweird.f32 %v4433
  %vm4440 = vmor %vm4438, %vm4439
  %v4441 = vsel %vm4440, %v4433, %v4437
  %v4442 = vand.u32 2147483647, %v4401
  %vm4443 = vcmp.eq.f32.partialorder %v4442, 8.507059e+37
  %v4444 = vand.u32 %v4401, 2147483648
  %v4445 = vor.u32 1.1754944e-38, %v4444
  %v4446 = vsel %vm4443, %v4445, %v4441
  %v4447 = vmul.f32 1.0, %v4446
  %v4448 = vrcp.pop %v4402
  %v4449 = vmul.f32 %v4402, %v4448
  %v4450 = vsub.f32 1.0, %v4449
  %v4451 = vmul.f32 %v4448, %v4450
  %v4452 = vadd.f32 %v4448, %v4451
  %vm4453 = vweird.f32 %v4402
  %vm4454 = vweird.f32 %v4448
  %vm4455 = vmor %vm4453, %vm4454
  %v4456 = vsel %vm4455, %v4448, %v4452
  %v4457 = vand.u32 2147483647, %v4402
  %vm4458 = vcmp.eq.f32.partialorder %v4457, 8.507059e+37
  %v4459 = vand.u32 %v4402, 2147483648
  %v4460 = vor.u32 1.1754944e-38, %v4459
  %v4461 = vsel %vm4458, %v4460, %v4456
  %v4462 = vmul.f32 1.0, %v4461
  %v4463 = vtanh.pop %v4383
  %v4464 = vtanh.pop %v4384
  %v4465 = vtanh.pop %v4385
  %v4466 = vtanh.pop %v4386
  %v4467 = vmul.f32 %v4417, %v4302
  %v4468 = vmul.f32 %v4432, %v4303
  %v4469 = vmul.f32 %v4447, %v4304
  %v4470 = vmul.f32 %v4462, %v4305
  %4475 = vrot.lane.b32.xlu0 %v4463, 64
  %v4476 = vpop.permute.xlu0 %4475
  %4477 = vrot.lane.b32.xlu0 %v4464, 64
  %v4478 = vpop.permute.xlu0 %4477
  %4479 = vrot.lane.b32.xlu0 %v4465, 64
  %v4480 = vpop.permute.xlu0 %4479
  %4481 = vrot.lane.b32.xlu0 %v4466, 64
  %v4482 = vpop.permute.xlu0 %4481
  %v4487 = vmul.f32 %v4417, %v4476
  %v4488 = vmul.f32 %v4432, %v4478
  %v4489 = vmul.f32 %v4447, %v4480
  %v4490 = vmul.f32 %v4462, %v4482
  %4495 = vrot.lane.b32.xlu0 %v4487, 32
  %v4496 = vpop.permute.xlu0 %4495
  %4497 = vrot.lane.b32.xlu0 %v4488, 32
  %v4498 = vpop.permute.xlu0 %4497
  %4499 = vrot.lane.b32.xlu0 %v4489, 32
  %v4500 = vpop.permute.xlu0 %4499
  %4501 = vrot.lane.b32.xlu0 %v4490, 32
  %v4502 = vpop.permute.xlu0 %4501
  %v4507 = vadd.f32 %v4467, %v4496
  %v4508 = vadd.f32 %v4468, %v4498
  %v4509 = vadd.f32 %v4469, %v4500
  %v4510 = vadd.f32 %v4470, %v4502
  %v4511 = vtanh.pop %v4507
  %v4512 = vtanh.pop %v4508
  %v4513 = vtanh.pop %v4509
  %v4514 = vtanh.pop %v4510
  %4519 = vrot.lane.b32.xlu0 %v4511, 64
  %v4520 = vpop.permute.xlu0 %4519
  %4521 = vrot.lane.b32.xlu0 %v4512, 64
  %v4522 = vpop.permute.xlu0 %4521
  %4523 = vrot.lane.b32.xlu0 %v4513, 64
  %v4524 = vpop.permute.xlu0 %4523
  %4525 = vrot.lane.b32.xlu0 %v4514, 64
  %v4526 = vpop.permute.xlu0 %4525
  %v4531 = vmul.f32 %v4417, %v4520
  %v4532 = vmul.f32 %v4432, %v4522
  %v4533 = vmul.f32 %v4447, %v4524
  %v4534 = vmul.f32 %v4462, %v4526
  %v4535 = vld [vmem:[%s4 + $0x48] sm:$0x3]
  %v4536 = vld [vmem:[%s4 + $0x50] sm:$0xff]
  %v4537 = vld [vmem:[%s4 + $0x58] sm:$0xff]
  %v4538 = vld [vmem:[%s4 + $0x60] sm:$0xff]
  %v4539 = vld [vmem:[%s4 + $0x68] sm:$0xff]
  %v4540 = vld [vmem:[%s4 + $0x70] sm:$0x1]
  %v4541 = vld [vmem:[%s5] sm:$0xff]
  %v4542 = vld [vmem:[%s5 + $0x8] sm:$0xff]
  %v4543 = vld [vmem:[%s5 + $0x10] sm:$0xff]
  %v4544 = vld [vmem:[%s5 + $0x18] sm:$0xff]
  %v4545 = vld [vmem:[%s6] sm:$0x1]
  %vm4546 = vcmask 15360
  %v4548 = vsel %vm4546, %v4541, 0
  %v4551 = vsel %vm4546, %v4542, 0
  %v4554 = vsel %vm4546, %v4543, 0
  %v4557 = vsel %vm4546, %v4544, 0
  %vm4559 = vcmask 1041408
  %v4561 = vsel %vm4559, %v4535, 0
  %4563 = vmatpush.msra.mxu0 0.0
  %4564 = vmatpush.msra.mxu0 0.0
  %4565 = vmatpush.msra.mxu0 0.0
  %4566 = vmatpush.msra.mxu0 0.0
  %4567 = vmatpush.msra.mxu0 0.0
  %4568 = vmatpush.msra.mxu0 0.0
  %4569 = vmatpush.msra.mxu0 0.0
  %4570 = vmatpush.msra.mxu0 0.0
  %4571 = vmatpush.msra.mxu0 0.0
  %4572 = vmatpush.msra.mxu0 0.0
  %4573 = vmatpush.msra.mxu0 0.0
  %4574 = vmatpush.msra.mxu0 0.0
  %4575 = vmatpush.msra.mxu0 0.0
  %4576 = vmatpush.msra.mxu0 0.0
  %4577 = vmatpush.msra.mxu0 0.0
  %4578 = vmatpush.msra.mxu0 %v4561
  %4579 = vmatmul.f32.gmra.mxu0 %v4548
  %v4580 = vpop.f32.mrf.mxu0
  %v4581 = vadd.f32 %v4536, %v4580
  %4582 = vmatmul.f32.gmra.mxu0 %v4551
  %v4583 = vpop.f32.mrf.mxu0
  %v4584 = vadd.f32 %v4537, %v4583
  %4585 = vmatmul.f32.gmra.mxu0 %v4554
  %v4586 = vpop.f32.mrf.mxu0
  %v4587 = vadd.f32 %v4538, %v4586
  %4588 = vmatmul.f32.gmra.mxu0 %v4557
  %v4589 = vpop.f32.mrf.mxu0
  %v4590 = vadd.f32 %v4539, %v4589
  %4591 = vdwg.mxu0
  %v4593 = vsel %vm4546, %v4545, 0
  %4595 = vmatpush.msra.mxu0 0.0
  %4596 = vmatpush.msra.mxu0 0.0
  %4597 = vmatpush.msra.mxu0 0.0
  %4598 = vmatpush.msra.mxu0 0.0
  %4599 = vmatpush.msra.mxu0 0.0
  %4600 = vmatpush.msra.mxu0 0.0
  %4601 = vmatpush.msra.mxu0 0.0
  %4602 = vmatpush.msra.mxu0 0.0
  %4603 = vmatpush.msra.mxu0 0.0
  %4604 = vmatpush.msra.mxu0 0.0
  %4605 = vmatpush.msra.mxu0 0.0
  %4606 = vmatpush.msra.mxu0 0.0
  %4607 = vmatpush.msra.mxu0 0.0
  %4608 = vmatpush.msra.mxu0 0.0
  %4609 = vmatpush.msra.mxu0 0.0
  %4610 = vmatpush.msra.mxu0 %v4561
  %4611 = vmatmul.f32.gmra.mxu0 %v4593
  %v4612 = vpop.f32.mrf.mxu0
  %v4613 = vadd.f32 %v4540, %v4612
  %4614 = vdwg.mxu0
  %v4615 = vperm.slane %v4540, 0
  %4620 = vrot.lane.b32.xlu0 %v4531, 32
  %v4621 = vpop.permute.xlu0 %4620
  %4622 = vrot.lane.b32.xlu0 %v4532, 32
  %v4623 = vpop.permute.xlu0 %4622
  %4624 = vrot.lane.b32.xlu0 %v4533, 32
  %v4625 = vpop.permute.xlu0 %4624
  %4626 = vrot.lane.b32.xlu0 %v4534, 32
  %v4627 = vpop.permute.xlu0 %4626
  %v4628 = vsel %vm275, %v4621, 0
  %v4630 = vsel %vm275, %v4623, 0
  %v4632 = vsel %vm275, %v4625, 0
  %v4634 = vsel %vm275, %v4627, 0
  %4636 = vmatpush.msra.mxu0 0.0
  %4637 = vmatpush.msra.mxu0 0.0
  %4638 = vmatpush.msra.mxu0 0.0
  %4639 = vmatpush.msra.mxu0 0.0
  %4640 = vmatpush.msra.mxu0 0.0
  %4641 = vmatpush.msra.mxu0 0.0
  %4642 = vmatpush.msra.mxu0 0.0
  %4643 = vmatpush.msra.mxu0 0.0
  %4644 = vmatpush.msra.mxu0 0.0
  %4645 = vmatpush.msra.mxu0 0.0
  %4646 = vmatpush.msra.mxu0 0.0
  %4647 = vmatpush.msra.mxu0 0.0
  %4648 = vmatpush.msra.mxu0 %v4539
  %4649 = vmatpush.msra.mxu0 %v4538
  %4650 = vmatpush.msra.mxu0 %v4537
  %4651 = vmatpush.msra.mxu0 %v4536
  %4652 = vmatmul.f32.gmra.mxu0 %v4628
  %v4653 = vpop.f32.mrf.mxu0
  %v4654 = vadd.f32 %v4615, %v4653
  %4655 = vmatmul.f32.gmra.mxu0 %v4630
  %v4656 = vpop.f32.mrf.mxu0
  %v4657 = vadd.f32 %v4615, %v4656
  %4658 = vmatmul.f32.gmra.mxu0 %v4632
  %v4659 = vpop.f32.mrf.mxu0
  %v4660 = vadd.f32 %v4615, %v4659
  %4661 = vmatmul.f32.gmra.mxu0 %v4634
  %v4662 = vpop.f32.mrf.mxu0
  %v4663 = vadd.f32 %v4615, %v4662
  %4664 = vdwg.mxu0
  %v4665 = vxor.u32 %v4654, 2147483648
  %v4666 = vxor.u32 %v4657, 2147483648
  %v4667 = vxor.u32 %v4660, 2147483648
  %v4668 = vxor.u32 %v4663, 2147483648
  %v4669 = vmul.f32 %v4665, 1.442695
  %v4670 = vpow.pop %v4669
  %v4671 = vmul.f32 %v4666, 1.442695
  %v4672 = vpow.pop %v4671
  %v4673 = vmul.f32 %v4667, 1.442695
  %v4674 = vpow.pop %v4673
  %v4675 = vmul.f32 %v4668, 1.442695
  %v4676 = vpow.pop %v4675
  %v4677 = vadd.f32 %v4670, 1.0
  %v4678 = vadd.f32 %v4672, 1.0
  %v4679 = vadd.f32 %v4674, 1.0
  %v4680 = vadd.f32 %v4676, 1.0
  %v4681 = vrcp.pop %v4677
  %v4682 = vmul.f32 %v4677, %v4681
  %v4683 = vsub.f32 1.0, %v4682
  %v4684 = vmul.f32 %v4681, %v4683
  %v4685 = vadd.f32 %v4681, %v4684
  %vm4686 = vweird.f32 %v4677
  %vm4687 = vweird.f32 %v4681
  %vm4688 = vmor %vm4686, %vm4687
  %v4689 = vsel %vm4688, %v4681, %v4685
  %v4690 = vand.u32 2147483647, %v4677
  %vm4691 = vcmp.eq.f32.partialorder %v4690, 8.507059e+37
  %v4692 = vand.u32 %v4677, 2147483648
  %v4693 = vor.u32 1.1754944e-38, %v4692
  %v4694 = vsel %vm4691, %v4693, %v4689
  %v4695 = vmul.f32 1.0, %v4694
  %v4696 = vrcp.pop %v4678
  %v4697 = vmul.f32 %v4678, %v4696
  %v4698 = vsub.f32 1.0, %v4697
  %v4699 = vmul.f32 %v4696, %v4698
  %v4700 = vadd.f32 %v4696, %v4699
  %vm4701 = vweird.f32 %v4678
  %vm4702 = vweird.f32 %v4696
  %vm4703 = vmor %vm4701, %vm4702
  %v4704 = vsel %vm4703, %v4696, %v4700
  %v4705 = vand.u32 2147483647, %v4678
  %vm4706 = vcmp.eq.f32.partialorder %v4705, 8.507059e+37
  %v4707 = vand.u32 %v4678, 2147483648
  %v4708 = vor.u32 1.1754944e-38, %v4707
  %v4709 = vsel %vm4706, %v4708, %v4704
  %v4710 = vmul.f32 1.0, %v4709
  %v4711 = vrcp.pop %v4679
  %v4712 = vmul.f32 %v4679, %v4711
  %v4713 = vsub.f32 1.0, %v4712
  %v4714 = vmul.f32 %v4711, %v4713
  %v4715 = vadd.f32 %v4711, %v4714
  %vm4716 = vweird.f32 %v4679
  %vm4717 = vweird.f32 %v4711
  %vm4718 = vmor %vm4716, %vm4717
  %v4719 = vsel %vm4718, %v4711, %v4715
  %v4720 = vand.u32 2147483647, %v4679
  %vm4721 = vcmp.eq.f32.partialorder %v4720, 8.507059e+37
  %v4722 = vand.u32 %v4679, 2147483648
  %v4723 = vor.u32 1.1754944e-38, %v4722
  %v4724 = vsel %vm4721, %v4723, %v4719
  %v4725 = vmul.f32 1.0, %v4724
  %v4726 = vrcp.pop %v4680
  %v4727 = vmul.f32 %v4680, %v4726
  %v4728 = vsub.f32 1.0, %v4727
  %v4729 = vmul.f32 %v4726, %v4728
  %v4730 = vadd.f32 %v4726, %v4729
  %vm4731 = vweird.f32 %v4680
  %vm4732 = vweird.f32 %v4726
  %vm4733 = vmor %vm4731, %vm4732
  %v4734 = vsel %vm4733, %v4726, %v4730
  %v4735 = vand.u32 2147483647, %v4680
  %vm4736 = vcmp.eq.f32.partialorder %v4735, 8.507059e+37
  %v4737 = vand.u32 %v4680, 2147483648
  %v4738 = vor.u32 1.1754944e-38, %v4737
  %v4739 = vsel %vm4736, %v4738, %v4734
  %v4740 = vmul.f32 1.0, %v4739
  %v4741 = vtanh.pop %v4654
  %v4742 = vtanh.pop %v4657
  %v4743 = vtanh.pop %v4660
  %v4744 = vtanh.pop %v4663
  %v4745 = vmul.f32 %v4695, 0.0
  %v4746 = vmul.f32 %v4710, 0.0
  %v4747 = vmul.f32 %v4725, 0.0
  %v4748 = vmul.f32 %v4740, 0.0
  %4753 = vrot.lane.b32.xlu0 %v4741, 64
  %v4754 = vpop.permute.xlu0 %4753
  %4755 = vrot.lane.b32.xlu0 %v4742, 64
  %v4756 = vpop.permute.xlu0 %4755
  %4757 = vrot.lane.b32.xlu0 %v4743, 64
  %v4758 = vpop.permute.xlu0 %4757
  %4759 = vrot.lane.b32.xlu0 %v4744, 64
  %v4760 = vpop.permute.xlu0 %4759
  %v4765 = vmul.f32 %v4695, %v4754
  %v4766 = vmul.f32 %v4710, %v4756
  %v4767 = vmul.f32 %v4725, %v4758
  %v4768 = vmul.f32 %v4740, %v4760
  %4773 = vrot.lane.b32.xlu0 %v4765, 32
  %v4774 = vpop.permute.xlu0 %4773
  %4775 = vrot.lane.b32.xlu0 %v4766, 32
  %v4776 = vpop.permute.xlu0 %4775
  %4777 = vrot.lane.b32.xlu0 %v4767, 32
  %v4778 = vpop.permute.xlu0 %4777
  %4779 = vrot.lane.b32.xlu0 %v4768, 32
  %v4780 = vpop.permute.xlu0 %4779
  %v4785 = vadd.f32 %v4745, %v4774
  %v4786 = vadd.f32 %v4746, %v4776
  %v4787 = vadd.f32 %v4747, %v4778
  %v4788 = vadd.f32 %v4748, %v4780
  %v4789 = vtanh.pop %v4785
  %v4790 = vtanh.pop %v4786
  %v4791 = vtanh.pop %v4787
  %v4792 = vtanh.pop %v4788
  %4797 = vrot.lane.b32.xlu0 %v4789, 64
  %v4798 = vpop.permute.xlu0 %4797
  %4799 = vrot.lane.b32.xlu0 %v4790, 64
  %v4800 = vpop.permute.xlu0 %4799
  %4801 = vrot.lane.b32.xlu0 %v4791, 64
  %v4802 = vpop.permute.xlu0 %4801
  %4803 = vrot.lane.b32.xlu0 %v4792, 64
  %v4804 = vpop.permute.xlu0 %4803
  %v4809 = vmul.f32 %v4695, %v4798
  %v4810 = vmul.f32 %v4710, %v4800
  %v4811 = vmul.f32 %v4725, %v4802
  %v4812 = vmul.f32 %v4740, %v4804
  %v4813 = vperm.slane %v4545, 0
  %4819 = vrot.lane.b32.xlu0 %v4809, 32
  %v4820 = vpop.permute.xlu0 %4819
  %4821 = vrot.lane.b32.xlu0 %v4810, 32
  %v4822 = vpop.permute.xlu0 %4821
  %4823 = vrot.lane.b32.xlu0 %v4811, 32
  %v4824 = vpop.permute.xlu0 %4823
  %4825 = vrot.lane.b32.xlu0 %v4812, 32
  %v4826 = vpop.permute.xlu0 %4825
  %v4827 = vsel %vm275, %v4820, 0
  %v4829 = vsel %vm275, %v4822, 0
  %v4831 = vsel %vm275, %v4824, 0
  %v4833 = vsel %vm275, %v4826, 0
  %4835 = vmatpush.msra.mxu0 0.0
  %4836 = vmatpush.msra.mxu0 0.0
  %4837 = vmatpush.msra.mxu0 0.0
  %4838 = vmatpush.msra.mxu0 0.0
  %4839 = vmatpush.msra.mxu0 0.0
  %4840 = vmatpush.msra.mxu0 0.0
  %4841 = vmatpush.msra.mxu0 0.0
  %4842 = vmatpush.msra.mxu0 0.0
  %4843 = vmatpush.msra.mxu0 0.0
  %4844 = vmatpush.msra.mxu0 0.0
  %4845 = vmatpush.msra.mxu0 0.0
  %4846 = vmatpush.msra.mxu0 0.0
  %4847 = vmatpush.msra.mxu0 %v4544
  %4848 = vmatpush.msra.mxu0 %v4543
  %4849 = vmatpush.msra.mxu0 %v4542
  %4850 = vmatpush.msra.mxu0 %v4541
  %4851 = vmatmul.f32.gmra.mxu0 %v4827
  %v4852 = vpop.f32.mrf.mxu0
  %v4853 = vadd.f32 %v4813, %v4852
  %4854 = vmatmul.f32.gmra.mxu0 %v4829
  %v4855 = vpop.f32.mrf.mxu0
  %v4856 = vadd.f32 %v4813, %v4855
  %4857 = vmatmul.f32.gmra.mxu0 %v4831
  %v4858 = vpop.f32.mrf.mxu0
  %v4859 = vadd.f32 %v4813, %v4858
  %4860 = vmatmul.f32.gmra.mxu0 %v4833
  %v4861 = vpop.f32.mrf.mxu0
  %v4862 = vadd.f32 %v4813, %v4861
  %4863 = vdwg.mxu0
  %4864 = vst.msk [vmem:[%s7] sm:$0xff] %vm4546, %v4853
  %4865 = vst.msk [vmem:[%s7 + $0x8] sm:$0xff] %vm4546, %v4856
  %4866 = vst.msk [vmem:[%s7 + $0x10] sm:$0xff] %vm4546, %v4859
  %4867 = vst.msk [vmem:[%s7 + $0x18] sm:$0xff] %vm4546, %v4862
  %v4868 = vperm.slane %v4613, 0
  %4869 = vmatpush.msra.mxu0 0.0
  %4870 = vmatpush.msra.mxu0 0.0
  %4871 = vmatpush.msra.mxu0 0.0
  %4872 = vmatpush.msra.mxu0 0.0
  %4873 = vmatpush.msra.mxu0 0.0
  %4874 = vmatpush.msra.mxu0 0.0
  %4875 = vmatpush.msra.mxu0 0.0
  %4876 = vmatpush.msra.mxu0 0.0
  %4877 = vmatpush.msra.mxu0 0.0
  %4878 = vmatpush.msra.mxu0 0.0
  %4879 = vmatpush.msra.mxu0 0.0
  %4880 = vmatpush.msra.mxu0 0.0
  %4881 = vmatpush.msra.mxu0 %v4590
  %4882 = vmatpush.msra.mxu0 %v4587
  %4883 = vmatpush.msra.mxu0 %v4584
  %4884 = vmatpush.msra.mxu0 %v4581
  %4885 = vmatmul.f32.gmra.mxu0 %v4827
  %v4886 = vpop.f32.mrf.mxu0
  %v4887 = vadd.f32 %v4868, %v4886
  %4888 = vmatmul.f32.gmra.mxu0 %v4829
  %v4889 = vpop.f32.mrf.mxu0
  %v4890 = vadd.f32 %v4868, %v4889
  %4891 = vmatmul.f32.gmra.mxu0 %v4831
  %v4892 = vpop.f32.mrf.mxu0
  %v4893 = vadd.f32 %v4868, %v4892
  %4894 = vmatmul.f32.gmra.mxu0 %v4833
  %v4895 = vpop.f32.mrf.mxu0
  %v4896 = vadd.f32 %v4868, %v4895
  %4897 = vdwg.mxu0
  %v4898 = vxor.u32 %v4887, 2147483648
  %v4899 = vxor.u32 %v4890, 2147483648
  %v4900 = vxor.u32 %v4893, 2147483648
  %v4901 = vxor.u32 %v4896, 2147483648
  %v4902 = vmul.f32 %v4898, 1.442695
  %v4903 = vpow.pop %v4902
  %v4904 = vmul.f32 %v4899, 1.442695
  %v4905 = vpow.pop %v4904
  %v4906 = vmul.f32 %v4900, 1.442695
  %v4907 = vpow.pop %v4906
  %v4908 = vmul.f32 %v4901, 1.442695
  %v4909 = vpow.pop %v4908
  %v4910 = vadd.f32 %v4903, 1.0
  %v4911 = vadd.f32 %v4905, 1.0
  %v4912 = vadd.f32 %v4907, 1.0
  %v4913 = vadd.f32 %v4909, 1.0
  %v4914 = vrcp.pop %v4910
  %v4915 = vmul.f32 %v4910, %v4914
  %v4916 = vsub.f32 1.0, %v4915
  %v4917 = vmul.f32 %v4914, %v4916
  %v4918 = vadd.f32 %v4914, %v4917
  %vm4919 = vweird.f32 %v4910
  %vm4920 = vweird.f32 %v4914
  %vm4921 = vmor %vm4919, %vm4920
  %v4922 = vsel %vm4921, %v4914, %v4918
  %v4923 = vand.u32 2147483647, %v4910
  %vm4924 = vcmp.eq.f32.partialorder %v4923, 8.507059e+37
  %v4925 = vand.u32 %v4910, 2147483648
  %v4926 = vor.u32 1.1754944e-38, %v4925
  %v4927 = vsel %vm4924, %v4926, %v4922
  %v4928 = vmul.f32 1.0, %v4927
  %v4929 = vrcp.pop %v4911
  %v4930 = vmul.f32 %v4911, %v4929
  %v4931 = vsub.f32 1.0, %v4930
  %v4932 = vmul.f32 %v4929, %v4931
  %v4933 = vadd.f32 %v4929, %v4932
  %vm4934 = vweird.f32 %v4911
  %vm4935 = vweird.f32 %v4929
  %vm4936 = vmor %vm4934, %vm4935
  %v4937 = vsel %vm4936, %v4929, %v4933
  %v4938 = vand.u32 2147483647, %v4911
  %vm4939 = vcmp.eq.f32.partialorder %v4938, 8.507059e+37
  %v4940 = vand.u32 %v4911, 2147483648
  %v4941 = vor.u32 1.1754944e-38, %v4940
  %v4942 = vsel %vm4939, %v4941, %v4937
  %v4943 = vmul.f32 1.0, %v4942
  %v4944 = vrcp.pop %v4912
  %v4945 = vmul.f32 %v4912, %v4944
  %v4946 = vsub.f32 1.0, %v4945
  %v4947 = vmul.f32 %v4944, %v4946
  %v4948 = vadd.f32 %v4944, %v4947
  %vm4949 = vweird.f32 %v4912
  %vm4950 = vweird.f32 %v4944
  %vm4951 = vmor %vm4949, %vm4950
  %v4952 = vsel %vm4951, %v4944, %v4948
  %v4953 = vand.u32 2147483647, %v4912
  %vm4954 = vcmp.eq.f32.partialorder %v4953, 8.507059e+37
  %v4955 = vand.u32 %v4912, 2147483648
  %v4956 = vor.u32 1.1754944e-38, %v4955
  %v4957 = vsel %vm4954, %v4956, %v4952
  %v4958 = vmul.f32 1.0, %v4957
  %v4959 = vrcp.pop %v4913
  %v4960 = vmul.f32 %v4913, %v4959
  %v4961 = vsub.f32 1.0, %v4960
  %v4962 = vmul.f32 %v4959, %v4961
  %v4963 = vadd.f32 %v4959, %v4962
  %vm4964 = vweird.f32 %v4913
  %vm4965 = vweird.f32 %v4959
  %vm4966 = vmor %vm4964, %vm4965
  %v4967 = vsel %vm4966, %v4959, %v4963
  %v4968 = vand.u32 2147483647, %v4913
  %vm4969 = vcmp.eq.f32.partialorder %v4968, 8.507059e+37
  %v4970 = vand.u32 %v4913, 2147483648
  %v4971 = vor.u32 1.1754944e-38, %v4970
  %v4972 = vsel %vm4969, %v4971, %v4967
  %v4973 = vmul.f32 1.0, %v4972
  %v4974 = vtanh.pop %v4887
  %v4975 = vtanh.pop %v4890
  %v4976 = vtanh.pop %v4893
  %v4977 = vtanh.pop %v4896
  %v4978 = vmul.f32 %v4928, %v4785
  %v4979 = vmul.f32 %v4943, %v4786
  %v4980 = vmul.f32 %v4958, %v4787
  %v4981 = vmul.f32 %v4973, %v4788
  %4986 = vrot.lane.b32.xlu0 %v4974, 64
  %v4987 = vpop.permute.xlu0 %4986
  %4988 = vrot.lane.b32.xlu0 %v4975, 64
  %v4989 = vpop.permute.xlu0 %4988
  %4990 = vrot.lane.b32.xlu0 %v4976, 64
  %v4991 = vpop.permute.xlu0 %4990
  %4992 = vrot.lane.b32.xlu0 %v4977, 64
  %v4993 = vpop.permute.xlu0 %4992
  %v4998 = vmul.f32 %v4928, %v4987
  %v4999 = vmul.f32 %v4943, %v4989
  %v5000 = vmul.f32 %v4958, %v4991
  %v5001 = vmul.f32 %v4973, %v4993
  %5006 = vrot.lane.b32.xlu0 %v4998, 32
  %v5007 = vpop.permute.xlu0 %5006
  %5008 = vrot.lane.b32.xlu0 %v4999, 32
  %v5009 = vpop.permute.xlu0 %5008
  %5010 = vrot.lane.b32.xlu0 %v5000, 32
  %v5011 = vpop.permute.xlu0 %5010
  %5012 = vrot.lane.b32.xlu0 %v5001, 32
  %v5013 = vpop.permute.xlu0 %5012
  %v5018 = vadd.f32 %v4978, %v5007
  %v5019 = vadd.f32 %v4979, %v5009
  %v5020 = vadd.f32 %v4980, %v5011
  %v5021 = vadd.f32 %v4981, %v5013
  %v5022 = vtanh.pop %v5018
  %v5023 = vtanh.pop %v5019
  %v5024 = vtanh.pop %v5020
  %v5025 = vtanh.pop %v5021
  %5030 = vrot.lane.b32.xlu0 %v5022, 64
  %v5031 = vpop.permute.xlu0 %5030
  %5032 = vrot.lane.b32.xlu0 %v5023, 64
  %v5033 = vpop.permute.xlu0 %5032
  %5034 = vrot.lane.b32.xlu0 %v5024, 64
  %v5035 = vpop.permute.xlu0 %5034
  %5036 = vrot.lane.b32.xlu0 %v5025, 64
  %v5037 = vpop.permute.xlu0 %5036
  %v5042 = vmul.f32 %v4928, %v5031
  %v5043 = vmul.f32 %v4943, %v5033
  %v5044 = vmul.f32 %v4958, %v5035
  %v5045 = vmul.f32 %v4973, %v5037
  %5050 = vrot.lane.b32.xlu0 %v5042, 32
  %v5051 = vpop.permute.xlu0 %5050
  %5052 = vrot.lane.b32.xlu0 %v5043, 32
  %v5053 = vpop.permute.xlu0 %5052
  %5054 = vrot.lane.b32.xlu0 %v5044, 32
  %v5055 = vpop.permute.xlu0 %5054
  %5056 = vrot.lane.b32.xlu0 %v5045, 32
  %v5057 = vpop.permute.xlu0 %5056
  %v5058 = vsel %vm275, %v5051, 0
  %v5060 = vsel %vm275, %v5053, 0
  %v5062 = vsel %vm275, %v5055, 0
  %v5064 = vsel %vm275, %v5057, 0
  %5066 = vmatpush.msra.mxu0 0.0
  %5067 = vmatpush.msra.mxu0 0.0
  %5068 = vmatpush.msra.mxu0 0.0
  %5069 = vmatpush.msra.mxu0 0.0
  %5070 = vmatpush.msra.mxu0 0.0
  %5071 = vmatpush.msra.mxu0 0.0
  %5072 = vmatpush.msra.mxu0 0.0
  %5073 = vmatpush.msra.mxu0 0.0
  %5074 = vmatpush.msra.mxu0 0.0
  %5075 = vmatpush.msra.mxu0 0.0
  %5076 = vmatpush.msra.mxu0 0.0
  %5077 = vmatpush.msra.mxu0 0.0
  %5078 = vmatpush.msra.mxu0 %v4544
  %5079 = vmatpush.msra.mxu0 %v4543
  %5080 = vmatpush.msra.mxu0 %v4542
  %5081 = vmatpush.msra.mxu0 %v4541
  %5082 = vmatmul.f32.gmra.mxu0 %v5058
  %v5083 = vpop.f32.mrf.mxu0
  %v5084 = vadd.f32 %v4813, %v5083
  %5085 = vmatmul.f32.gmra.mxu0 %v5060
  %v5086 = vpop.f32.mrf.mxu0
  %v5087 = vadd.f32 %v4813, %v5086
  %5088 = vmatmul.f32.gmra.mxu0 %v5062
  %v5089 = vpop.f32.mrf.mxu0
  %v5090 = vadd.f32 %v4813, %v5089
  %5091 = vmatmul.f32.gmra.mxu0 %v5064
  %v5092 = vpop.f32.mrf.mxu0
  %v5093 = vadd.f32 %v4813, %v5092
  %5094 = vdwg.mxu0
  %5099 = vrot.lane.b32.xlu0 %v5084, 2
  %v5100 = vpop.permute.xlu0 %5099
  %5101 = vrot.lane.b32.xlu0 %v5087, 2
  %v5102 = vpop.permute.xlu0 %5101
  %5103 = vrot.lane.b32.xlu0 %v5090, 2
  %v5104 = vpop.permute.xlu0 %5103
  %5105 = vrot.lane.b32.xlu0 %v5093, 2
  %v5106 = vpop.permute.xlu0 %5105
  %vm5111 = vcmask 31760
  %5112 = vst.msk [vmem:[%s7] sm:$0xff] %vm5111, %v5100
  %5113 = vst.msk [vmem:[%s7 + $0x8] sm:$0xff] %vm5111, %v5102
  %5114 = vst.msk [vmem:[%s7 + $0x10] sm:$0xff] %vm5111, %v5104
  %5115 = vst.msk [vmem:[%s7 + $0x18] sm:$0xff] %vm5111, %v5106
  %5116 = vmatpush.msra.mxu0 0.0
  %5117 = vmatpush.msra.mxu0 0.0
  %5118 = vmatpush.msra.mxu0 0.0
  %5119 = vmatpush.msra.mxu0 0.0
  %5120 = vmatpush.msra.mxu0 0.0
  %5121 = vmatpush.msra.mxu0 0.0
  %5122 = vmatpush.msra.mxu0 0.0
  %5123 = vmatpush.msra.mxu0 0.0
  %5124 = vmatpush.msra.mxu0 0.0
  %5125 = vmatpush.msra.mxu0 0.0
  %5126 = vmatpush.msra.mxu0 0.0
  %5127 = vmatpush.msra.mxu0 0.0
  %5128 = vmatpush.msra.mxu0 %v4590
  %5129 = vmatpush.msra.mxu0 %v4587
  %5130 = vmatpush.msra.mxu0 %v4584
  %5131 = vmatpush.msra.mxu0 %v4581
  %5132 = vmatmul.f32.gmra.mxu0 %v5058
  %v5133 = vpop.f32.mrf.mxu0
  %v5134 = vadd.f32 %v4868, %v5133
  %5135 = vmatmul.f32.gmra.mxu0 %v5060
  %v5136 = vpop.f32.mrf.mxu0
  %v5137 = vadd.f32 %v4868, %v5136
  %5138 = vmatmul.f32.gmra.mxu0 %v5062
  %v5139 = vpop.f32.mrf.mxu0
  %v5140 = vadd.f32 %v4868, %v5139
  %5141 = vmatmul.f32.gmra.mxu0 %v5064
  %v5142 = vpop.f32.mrf.mxu0
  %v5143 = vadd.f32 %v4868, %v5142
  %5144 = vdwg.mxu0
  %v5145 = vxor.u32 %v5134, 2147483648
  %v5146 = vxor.u32 %v5137, 2147483648
  %v5147 = vxor.u32 %v5140, 2147483648
  %v5148 = vxor.u32 %v5143, 2147483648
  %v5149 = vmul.f32 %v5145, 1.442695
  %v5150 = vpow.pop %v5149
  %v5151 = vmul.f32 %v5146, 1.442695
  %v5152 = vpow.pop %v5151
  %v5153 = vmul.f32 %v5147, 1.442695
  %v5154 = vpow.pop %v5153
  %v5155 = vmul.f32 %v5148, 1.442695
  %v5156 = vpow.pop %v5155
  %v5157 = vadd.f32 %v5150, 1.0
  %v5158 = vadd.f32 %v5152, 1.0
  %v5159 = vadd.f32 %v5154, 1.0
  %v5160 = vadd.f32 %v5156, 1.0
  %v5161 = vrcp.pop %v5157
  %v5162 = vmul.f32 %v5157, %v5161
  %v5163 = vsub.f32 1.0, %v5162
  %v5164 = vmul.f32 %v5161, %v5163
  %v5165 = vadd.f32 %v5161, %v5164
  %vm5166 = vweird.f32 %v5157
  %vm5167 = vweird.f32 %v5161
  %vm5168 = vmor %vm5166, %vm5167
  %v5169 = vsel %vm5168, %v5161, %v5165
  %v5170 = vand.u32 2147483647, %v5157
  %vm5171 = vcmp.eq.f32.partialorder %v5170, 8.507059e+37
  %v5172 = vand.u32 %v5157, 2147483648
  %v5173 = vor.u32 1.1754944e-38, %v5172
  %v5174 = vsel %vm5171, %v5173, %v5169
  %v5175 = vmul.f32 1.0, %v5174
  %v5176 = vrcp.pop %v5158
  %v5177 = vmul.f32 %v5158, %v5176
  %v5178 = vsub.f32 1.0, %v5177
  %v5179 = vmul.f32 %v5176, %v5178
  %v5180 = vadd.f32 %v5176, %v5179
  %vm5181 = vweird.f32 %v5158
  %vm5182 = vweird.f32 %v5176
  %vm5183 = vmor %vm5181, %vm5182
  %v5184 = vsel %vm5183, %v5176, %v5180
  %v5185 = vand.u32 2147483647, %v5158
  %vm5186 = vcmp.eq.f32.partialorder %v5185, 8.507059e+37
  %v5187 = vand.u32 %v5158, 2147483648
  %v5188 = vor.u32 1.1754944e-38, %v5187
  %v5189 = vsel %vm5186, %v5188, %v5184
  %v5190 = vmul.f32 1.0, %v5189
  %v5191 = vrcp.pop %v5159
  %v5192 = vmul.f32 %v5159, %v5191
  %v5193 = vsub.f32 1.0, %v5192
  %v5194 = vmul.f32 %v5191, %v5193
  %v5195 = vadd.f32 %v5191, %v5194
  %vm5196 = vweird.f32 %v5159
  %vm5197 = vweird.f32 %v5191
  %vm5198 = vmor %vm5196, %vm5197
  %v5199 = vsel %vm5198, %v5191, %v5195
  %v5200 = vand.u32 2147483647, %v5159
  %vm5201 = vcmp.eq.f32.partialorder %v5200, 8.507059e+37
  %v5202 = vand.u32 %v5159, 2147483648
  %v5203 = vor.u32 1.1754944e-38, %v5202
  %v5204 = vsel %vm5201, %v5203, %v5199
  %v5205 = vmul.f32 1.0, %v5204
  %v5206 = vrcp.pop %v5160
  %v5207 = vmul.f32 %v5160, %v5206
  %v5208 = vsub.f32 1.0, %v5207
  %v5209 = vmul.f32 %v5206, %v5208
  %v5210 = vadd.f32 %v5206, %v5209
  %vm5211 = vweird.f32 %v5160
  %vm5212 = vweird.f32 %v5206
  %vm5213 = vmor %vm5211, %vm5212
  %v5214 = vsel %vm5213, %v5206, %v5210
  %v5215 = vand.u32 2147483647, %v5160
  %vm5216 = vcmp.eq.f32.partialorder %v5215, 8.507059e+37
  %v5217 = vand.u32 %v5160, 2147483648
  %v5218 = vor.u32 1.1754944e-38, %v5217
  %v5219 = vsel %vm5216, %v5218, %v5214
  %v5220 = vmul.f32 1.0, %v5219
  %v5221 = vtanh.pop %v5134
  %v5222 = vtanh.pop %v5137
  %v5223 = vtanh.pop %v5140
  %v5224 = vtanh.pop %v5143
  %v5225 = vmul.f32 %v5175, %v5018
  %v5226 = vmul.f32 %v5190, %v5019
  %v5227 = vmul.f32 %v5205, %v5020
  %v5228 = vmul.f32 %v5220, %v5021
  %5233 = vrot.lane.b32.xlu0 %v5221, 64
  %v5234 = vpop.permute.xlu0 %5233
  %5235 = vrot.lane.b32.xlu0 %v5222, 64
  %v5236 = vpop.permute.xlu0 %5235
  %5237 = vrot.lane.b32.xlu0 %v5223, 64
  %v5238 = vpop.permute.xlu0 %5237
  %5239 = vrot.lane.b32.xlu0 %v5224, 64
  %v5240 = vpop.permute.xlu0 %5239
  %v5245 = vmul.f32 %v5175, %v5234
  %v5246 = vmul.f32 %v5190, %v5236
  %v5247 = vmul.f32 %v5205, %v5238
  %v5248 = vmul.f32 %v5220, %v5240
  %5253 = vrot.lane.b32.xlu0 %v5245, 32
  %v5254 = vpop.permute.xlu0 %5253
  %5255 = vrot.lane.b32.xlu0 %v5246, 32
  %v5256 = vpop.permute.xlu0 %5255
  %5257 = vrot.lane.b32.xlu0 %v5247, 32
  %v5258 = vpop.permute.xlu0 %5257
  %5259 = vrot.lane.b32.xlu0 %v5248, 32
  %v5260 = vpop.permute.xlu0 %5259
  %v5265 = vadd.f32 %v5225, %v5254
  %v5266 = vadd.f32 %v5226, %v5256
  %v5267 = vadd.f32 %v5227, %v5258
  %v5268 = vadd.f32 %v5228, %v5260
  %v5269 = vtanh.pop %v5265
  %v5270 = vtanh.pop %v5266
  %v5271 = vtanh.pop %v5267
  %v5272 = vtanh.pop %v5268
  %5277 = vrot.lane.b32.xlu0 %v5269, 64
  %v5278 = vpop.permute.xlu0 %5277
  %5279 = vrot.lane.b32.xlu0 %v5270, 64
  %v5280 = vpop.permute.xlu0 %5279
  %5281 = vrot.lane.b32.xlu0 %v5271, 64
  %v5282 = vpop.permute.xlu0 %5281
  %5283 = vrot.lane.b32.xlu0 %v5272, 64
  %v5284 = vpop.permute.xlu0 %5283
  %v5289 = vmul.f32 %v5175, %v5278
  %v5290 = vmul.f32 %v5190, %v5280
  %v5291 = vmul.f32 %v5205, %v5282
  %v5292 = vmul.f32 %v5220, %v5284
  %5297 = vrot.lane.b32.xlu0 %v5289, 32
  %v5298 = vpop.permute.xlu0 %5297
  %5299 = vrot.lane.b32.xlu0 %v5290, 32
  %v5300 = vpop.permute.xlu0 %5299
  %5301 = vrot.lane.b32.xlu0 %v5291, 32
  %v5302 = vpop.permute.xlu0 %5301
  %5303 = vrot.lane.b32.xlu0 %v5292, 32
  %v5304 = vpop.permute.xlu0 %5303
  %v5305 = vsel %vm275, %v5298, 0
  %v5307 = vsel %vm275, %v5300, 0
  %v5309 = vsel %vm275, %v5302, 0
  %v5311 = vsel %vm275, %v5304, 0
  %5313 = vmatpush.msra.mxu0 0.0
  %5314 = vmatpush.msra.mxu0 0.0
  %5315 = vmatpush.msra.mxu0 0.0
  %5316 = vmatpush.msra.mxu0 0.0
  %5317 = vmatpush.msra.mxu0 0.0
  %5318 = vmatpush.msra.mxu0 0.0
  %5319 = vmatpush.msra.mxu0 0.0
  %5320 = vmatpush.msra.mxu0 0.0
  %5321 = vmatpush.msra.mxu0 0.0
  %5322 = vmatpush.msra.mxu0 0.0
  %5323 = vmatpush.msra.mxu0 0.0
  %5324 = vmatpush.msra.mxu0 0.0
  %5325 = vmatpush.msra.mxu0 %v4544
  %5326 = vmatpush.msra.mxu0 %v4543
  %5327 = vmatpush.msra.mxu0 %v4542
  %5328 = vmatpush.msra.mxu0 %v4541
  %5329 = vmatmul.f32.gmra.mxu0 %v5305
  %v5330 = vpop.f32.mrf.mxu0
  %v5331 = vadd.f32 %v4813, %v5330
  %5332 = vmatmul.f32.gmra.mxu0 %v5307
  %v5333 = vpop.f32.mrf.mxu0
  %v5334 = vadd.f32 %v4813, %v5333
  %5335 = vmatmul.f32.gmra.mxu0 %v5309
  %v5336 = vpop.f32.mrf.mxu0
  %v5337 = vadd.f32 %v4813, %v5336
  %5338 = vmatmul.f32.gmra.mxu0 %v5311
  %v5339 = vpop.f32.mrf.mxu0
  %v5340 = vadd.f32 %v4813, %v5339
  %5341 = vdwg.mxu0
  %5346 = vrot.lane.b32.xlu0 %v5331, 4
  %v5347 = vpop.permute.xlu0 %5346
  %5348 = vrot.lane.b32.xlu0 %v5334, 4
  %v5349 = vpop.permute.xlu0 %5348
  %5350 = vrot.lane.b32.xlu0 %v5337, 4
  %v5351 = vpop.permute.xlu0 %5350
  %5352 = vrot.lane.b32.xlu0 %v5340, 4
  %v5353 = vpop.permute.xlu0 %5352
  %vm5358 = vcmask 48160
  %5359 = vst.msk [vmem:[%s7] sm:$0xff] %vm5358, %v5347
  %5360 = vst.msk [vmem:[%s7 + $0x8] sm:$0xff] %vm5358, %v5349
  %5361 = vst.msk [vmem:[%s7 + $0x10] sm:$0xff] %vm5358, %v5351
  %5362 = vst.msk [vmem:[%s7 + $0x18] sm:$0xff] %vm5358, %v5353
  %5363 = vmatpush.msra.mxu0 0.0
  %5364 = vmatpush.msra.mxu0 0.0
  %5365 = vmatpush.msra.mxu0 0.0
  %5366 = vmatpush.msra.mxu0 0.0
  %5367 = vmatpush.msra.mxu0 0.0
  %5368 = vmatpush.msra.mxu0 0.0
  %5369 = vmatpush.msra.mxu0 0.0
  %5370 = vmatpush.msra.mxu0 0.0
  %5371 = vmatpush.msra.mxu0 0.0
  %5372 = vmatpush.msra.mxu0 0.0
  %5373 = vmatpush.msra.mxu0 0.0
  %5374 = vmatpush.msra.mxu0 0.0
  %5375 = vmatpush.msra.mxu0 %v4590
  %5376 = vmatpush.msra.mxu0 %v4587
  %5377 = vmatpush.msra.mxu0 %v4584
  %5378 = vmatpush.msra.mxu0 %v4581
  %5379 = vmatmul.f32.gmra.mxu0 %v5305
  %v5380 = vpop.f32.mrf.mxu0
  %v5381 = vadd.f32 %v4868, %v5380
  %5382 = vmatmul.f32.gmra.mxu0 %v5307
  %v5383 = vpop.f32.mrf.mxu0
  %v5384 = vadd.f32 %v4868, %v5383
  %5385 = vmatmul.f32.gmra.mxu0 %v5309
  %v5386 = vpop.f32.mrf.mxu0
  %v5387 = vadd.f32 %v4868, %v5386
  %5388 = vmatmul.f32.gmra.mxu0 %v5311
  %v5389 = vpop.f32.mrf.mxu0
  %v5390 = vadd.f32 %v4868, %v5389
  %5391 = vdwg.mxu0
  %v5392 = vxor.u32 %v5381, 2147483648
  %v5393 = vxor.u32 %v5384, 2147483648
  %v5394 = vxor.u32 %v5387, 2147483648
  %v5395 = vxor.u32 %v5390, 2147483648
  %v5396 = vmul.f32 %v5392, 1.442695
  %v5397 = vpow.pop %v5396
  %v5398 = vmul.f32 %v5393, 1.442695
  %v5399 = vpow.pop %v5398
  %v5400 = vmul.f32 %v5394, 1.442695
  %v5401 = vpow.pop %v5400
  %v5402 = vmul.f32 %v5395, 1.442695
  %v5403 = vpow.pop %v5402
  %v5404 = vadd.f32 %v5397, 1.0
  %v5405 = vadd.f32 %v5399, 1.0
  %v5406 = vadd.f32 %v5401, 1.0
  %v5407 = vadd.f32 %v5403, 1.0
  %v5408 = vrcp.pop %v5404
  %v5409 = vmul.f32 %v5404, %v5408
  %v5410 = vsub.f32 1.0, %v5409
  %v5411 = vmul.f32 %v5408, %v5410
  %v5412 = vadd.f32 %v5408, %v5411
  %vm5413 = vweird.f32 %v5404
  %vm5414 = vweird.f32 %v5408
  %vm5415 = vmor %vm5413, %vm5414
  %v5416 = vsel %vm5415, %v5408, %v5412
  %v5417 = vand.u32 2147483647, %v5404
  %vm5418 = vcmp.eq.f32.partialorder %v5417, 8.507059e+37
  %v5419 = vand.u32 %v5404, 2147483648
  %v5420 = vor.u32 1.1754944e-38, %v5419
  %v5421 = vsel %vm5418, %v5420, %v5416
  %v5422 = vmul.f32 1.0, %v5421
  %v5423 = vrcp.pop %v5405
  %v5424 = vmul.f32 %v5405, %v5423
  %v5425 = vsub.f32 1.0, %v5424
  %v5426 = vmul.f32 %v5423, %v5425
  %v5427 = vadd.f32 %v5423, %v5426
  %vm5428 = vweird.f32 %v5405
  %vm5429 = vweird.f32 %v5423
  %vm5430 = vmor %vm5428, %vm5429
  %v5431 = vsel %vm5430, %v5423, %v5427
  %v5432 = vand.u32 2147483647, %v5405
  %vm5433 = vcmp.eq.f32.partialorder %v5432, 8.507059e+37
  %v5434 = vand.u32 %v5405, 2147483648
  %v5435 = vor.u32 1.1754944e-38, %v5434
  %v5436 = vsel %vm5433, %v5435, %v5431
  %v5437 = vmul.f32 1.0, %v5436
  %v5438 = vrcp.pop %v5406
  %v5439 = vmul.f32 %v5406, %v5438
  %v5440 = vsub.f32 1.0, %v5439
  %v5441 = vmul.f32 %v5438, %v5440
  %v5442 = vadd.f32 %v5438, %v5441
  %vm5443 = vweird.f32 %v5406
  %vm5444 = vweird.f32 %v5438
  %vm5445 = vmor %vm5443, %vm5444
  %v5446 = vsel %vm5445, %v5438, %v5442
  %v5447 = vand.u32 2147483647, %v5406
  %vm5448 = vcmp.eq.f32.partialorder %v5447, 8.507059e+37
  %v5449 = vand.u32 %v5406, 2147483648
  %v5450 = vor.u32 1.1754944e-38, %v5449
  %v5451 = vsel %vm5448, %v5450, %v5446
  %v5452 = vmul.f32 1.0, %v5451
  %v5453 = vrcp.pop %v5407
  %v5454 = vmul.f32 %v5407, %v5453
  %v5455 = vsub.f32 1.0, %v5454
  %v5456 = vmul.f32 %v5453, %v5455
  %v5457 = vadd.f32 %v5453, %v5456
  %vm5458 = vweird.f32 %v5407
  %vm5459 = vweird.f32 %v5453
  %vm5460 = vmor %vm5458, %vm5459
  %v5461 = vsel %vm5460, %v5453, %v5457
  %v5462 = vand.u32 2147483647, %v5407
  %vm5463 = vcmp.eq.f32.partialorder %v5462, 8.507059e+37
  %v5464 = vand.u32 %v5407, 2147483648
  %v5465 = vor.u32 1.1754944e-38, %v5464
  %v5466 = vsel %vm5463, %v5465, %v5461
  %v5467 = vmul.f32 1.0, %v5466
  %v5468 = vtanh.pop %v5381
  %v5469 = vtanh.pop %v5384
  %v5470 = vtanh.pop %v5387
  %v5471 = vtanh.pop %v5390
  %v5472 = vmul.f32 %v5422, %v5265
  %v5473 = vmul.f32 %v5437, %v5266
  %v5474 = vmul.f32 %v5452, %v5267
  %v5475 = vmul.f32 %v5467, %v5268
  %5480 = vrot.lane.b32.xlu0 %v5468, 64
  %v5481 = vpop.permute.xlu0 %5480
  %5482 = vrot.lane.b32.xlu0 %v5469, 64
  %v5483 = vpop.permute.xlu0 %5482
  %5484 = vrot.lane.b32.xlu0 %v5470, 64
  %v5485 = vpop.permute.xlu0 %5484
  %5486 = vrot.lane.b32.xlu0 %v5471, 64
  %v5487 = vpop.permute.xlu0 %5486
  %v5492 = vmul.f32 %v5422, %v5481
  %v5493 = vmul.f32 %v5437, %v5483
  %v5494 = vmul.f32 %v5452, %v5485
  %v5495 = vmul.f32 %v5467, %v5487
  %5500 = vrot.lane.b32.xlu0 %v5492, 32
  %v5501 = vpop.permute.xlu0 %5500
  %5502 = vrot.lane.b32.xlu0 %v5493, 32
  %v5503 = vpop.permute.xlu0 %5502
  %5504 = vrot.lane.b32.xlu0 %v5494, 32
  %v5505 = vpop.permute.xlu0 %5504
  %5506 = vrot.lane.b32.xlu0 %v5495, 32
  %v5507 = vpop.permute.xlu0 %5506
  %v5512 = vadd.f32 %v5472, %v5501
  %v5513 = vadd.f32 %v5473, %v5503
  %v5514 = vadd.f32 %v5474, %v5505
  %v5515 = vadd.f32 %v5475, %v5507
  %v5516 = vtanh.pop %v5512
  %v5517 = vtanh.pop %v5513
  %v5518 = vtanh.pop %v5514
  %v5519 = vtanh.pop %v5515
  %5524 = vrot.lane.b32.xlu0 %v5516, 64
  %v5525 = vpop.permute.xlu0 %5524
  %5526 = vrot.lane.b32.xlu0 %v5517, 64
  %v5527 = vpop.permute.xlu0 %5526
  %5528 = vrot.lane.b32.xlu0 %v5518, 64
  %v5529 = vpop.permute.xlu0 %5528
  %5530 = vrot.lane.b32.xlu0 %v5519, 64
  %v5531 = vpop.permute.xlu0 %5530
  %v5536 = vmul.f32 %v5422, %v5525
  %v5537 = vmul.f32 %v5437, %v5527
  %v5538 = vmul.f32 %v5452, %v5529
  %v5539 = vmul.f32 %v5467, %v5531
  %5544 = vrot.lane.b32.xlu0 %v5536, 32
  %v5545 = vpop.permute.xlu0 %5544
  %5546 = vrot.lane.b32.xlu0 %v5537, 32
  %v5547 = vpop.permute.xlu0 %5546
  %5548 = vrot.lane.b32.xlu0 %v5538, 32
  %v5549 = vpop.permute.xlu0 %5548
  %5550 = vrot.lane.b32.xlu0 %v5539, 32
  %v5551 = vpop.permute.xlu0 %5550
  %v5552 = vsel %vm275, %v5545, 0
  %v5554 = vsel %vm275, %v5547, 0
  %v5556 = vsel %vm275, %v5549, 0
  %v5558 = vsel %vm275, %v5551, 0
  %5560 = vmatpush.msra.mxu0 0.0
  %5561 = vmatpush.msra.mxu0 0.0
  %5562 = vmatpush.msra.mxu0 0.0
  %5563 = vmatpush.msra.mxu0 0.0
  %5564 = vmatpush.msra.mxu0 0.0
  %5565 = vmatpush.msra.mxu0 0.0
  %5566 = vmatpush.msra.mxu0 0.0
  %5567 = vmatpush.msra.mxu0 0.0
  %5568 = vmatpush.msra.mxu0 0.0
  %5569 = vmatpush.msra.mxu0 0.0
  %5570 = vmatpush.msra.mxu0 0.0
  %5571 = vmatpush.msra.mxu0 0.0
  %5572 = vmatpush.msra.mxu0 %v4544
  %5573 = vmatpush.msra.mxu0 %v4543
  %5574 = vmatpush.msra.mxu0 %v4542
  %5575 = vmatpush.msra.mxu0 %v4541
  %5576 = vmatmul.f32.gmra.mxu0 %v5552
  %v5577 = vpop.f32.mrf.mxu0
  %v5578 = vadd.f32 %v4813, %v5577
  %5579 = vmatmul.f32.gmra.mxu0 %v5554
  %v5580 = vpop.f32.mrf.mxu0
  %v5581 = vadd.f32 %v4813, %v5580
  %5582 = vmatmul.f32.gmra.mxu0 %v5556
  %v5583 = vpop.f32.mrf.mxu0
  %v5584 = vadd.f32 %v4813, %v5583
  %5585 = vmatmul.f32.gmra.mxu0 %v5558
  %v5586 = vpop.f32.mrf.mxu0
  %v5587 = vadd.f32 %v4813, %v5586
  %5588 = vdwg.mxu0
  %5593 = vrot.lane.b32.xlu0 %v5578, 6
  %v5594 = vpop.permute.xlu0 %5593
  %5595 = vrot.lane.b32.xlu0 %v5581, 6
  %v5596 = vpop.permute.xlu0 %5595
  %5597 = vrot.lane.b32.xlu0 %v5584, 6
  %v5598 = vpop.permute.xlu0 %5597
  %5599 = vrot.lane.b32.xlu0 %v5587, 6
  %v5600 = vpop.permute.xlu0 %5599
  %vm5605 = vcmask 64560
  %5606 = vst.msk [vmem:[%s7] sm:$0xff] %vm5605, %v5594
  %5607 = vst.msk [vmem:[%s7 + $0x8] sm:$0xff] %vm5605, %v5596
  %5608 = vst.msk [vmem:[%s7 + $0x10] sm:$0xff] %vm5605, %v5598
  %5609 = vst.msk [vmem:[%s7 + $0x18] sm:$0xff] %vm5605, %v5600
  // Predicated region
  $region30: #{tpu_custom_call.1} parent=0 // pred_check
    _
  $region31: #{tpu_custom_call.1} parent=0 // pred_check_branch
    %5611 = sbr.rel (0) target = $region33
  $region32: #{tpu_custom_call.1} parent=0 // pred_region
    _
  $region33: #{tpu_custom_call.1} parent=0 // pred_fallthru
    _
  // Predicated region
  $region34: #{tpu_custom_call.1} parent=0 // pred_check
    _
  $region35: #{tpu_custom_call.1} parent=0 // pred_check_branch
    %5613 = sbr.rel (0) target = $region37
  $region36: #{tpu_custom_call.1} parent=0 // pred_region
    _
  $region37: #{tpu_custom_call.1} parent=0 // pred_fallthru
    _

</llo_original>
